<compile_context>
chip_gen: v6e
topology: v6e:2x2x1
jax: 0.10.0
libtpu: 0.0.40
codegen_flags: <defaults>
</compile_context>

<pallas_src>
import jax
import jax.numpy as jnp
import numpy as np
from jax import lax
from jax.experimental import pallas as pl
from jax.experimental.pallas import tpu as pltpu


# --------------------------------------------------------------------------
# Fused kernel: one image per grid step.
#   inputs : x (1,H,W,Cin), w1 (9,Cin,Cout), w2 (9,Cout,Cout), aff (3,Cout)
#   output : pooled activation (1,H/2,W/2,Cout)
#   scratch: xpad (H+2,W+2,Cin), ypad (H+2,W+2,Cout)  -- zero halos, interior
#            overwritten each step.
# --------------------------------------------------------------------------
def fused_downsample_kernel(x_ref, w1_ref, w2_ref, aff_ref, o_ref,
                            xpad_ref, ypad_ref):
    _, H, W, Cin = x_ref.shape
    Cout = w1_ref.shape[-1]
    _, Ho, Wo, _ = o_ref.shape

    # ---- in-kernel zero padding (halo). Scratch persists across grid steps
    # and megacore partitions, so re-zero every step (tiny, <16 KiB total).
    xpad_ref[...] = jnp.zeros_like(xpad_ref)
    ypad_ref[...] = jnp.zeros_like(ypad_ref)
    xpad_ref[pl.ds(1, H), pl.ds(1, W), :] = x_ref[0]

    aff = aff_ref[...]                       # (3, Cout)
    b1, scale2, shift2 = aff[0:1, :], aff[1:2, :], aff[2:3, :]

    # ---- conv1 (3x3, pad=1) + bias ----------------------------------------
    # 9 shifted (H*W, Cin) @ (Cin, Cout) MXU dots, f32 accumulation.
    acc1 = jnp.zeros((H * W, Cout), jnp.float32)
    for k in range(9):                       # static, fully unrolled taps
        dy, dx = divmod(k, 3)
        patch = xpad_ref[pl.ds(dy, H), pl.ds(dx, W), :].reshape(H * W, Cin)
        acc1 = acc1 + jnp.dot(patch, w1_ref[k],
                              preferred_element_type=jnp.float32)
    y1 = acc1 + b1
    ypad_ref[pl.ds(1, H), pl.ds(1, W), :] = y1.reshape(H, W, Cout)

    # ---- conv2 (3x3, pad=1) + folded (bias, BatchNorm) + ReLU --------------
    acc2 = jnp.zeros((H * W, Cout), jnp.float32)
    for k in range(9):
        dy, dx = divmod(k, 3)
        patch = ypad_ref[pl.ds(dy, H), pl.ds(dx, W), :].reshape(H * W, Cout)
        acc2 = acc2 + jnp.dot(patch, w2_ref[k],
                              preferred_element_type=jnp.float32)
    y2 = jnp.maximum(acc2 * scale2 + shift2, 0.0)

    # ---- MaxPool2d(2, 2) fused into the epilogue ---------------------------
    t = y2.reshape(H, W, Cout)
    t = jnp.max(t.reshape(Ho, 2, W, Cout), axis=1)       # pool along H
    t = jnp.max(t.reshape(Ho, Wo, 2, Cout), axis=2)      # pool along W
    o_ref[...] = t.reshape(1, Ho, Wo, Cout).astype(o_ref.dtype)


# --------------------------------------------------------------------------
# Module wrapper (parameters + forward), mirroring Downsample_Conv2d_2
# --------------------------------------------------------------------------
def init_params(key, in_size, out_size):
    ks = jax.random.split(key, 8)
    p = {}
    # conv weights stored directly in HWIO (== transposed PyTorch OIHW)
    p["w1"] = 0.1 * jax.random.normal(ks[0], (3, 3, in_size, out_size), jnp.float32)
    p["b1"] = 0.1 * jax.random.normal(ks[1], (out_size,), jnp.float32)
    p["w2"] = 0.1 * jax.random.normal(ks[2], (3, 3, out_size, out_size), jnp.float32)
    p["b2"] = 0.1 * jax.random.normal(ks[3], (out_size,), jnp.float32)
    # BatchNorm2d (eval-mode running statistics + affine)
    p["gamma"] = 1.0 + 0.1 * jax.random.normal(ks[4], (out_size,), jnp.float32)
    p["beta"] = 0.1 * jax.random.normal(ks[5], (out_size,), jnp.float32)
    p["running_mean"] = 0.1 * jax.random.normal(ks[6], (out_size,), jnp.float32)
    p["running_var"] = 1.0 + 0.1 * jnp.abs(jax.random.normal(ks[7], (out_size,), jnp.float32))
    return p


def downsample_conv2d_2_forward(x_nchw, params, *, is_batchnorm=True,
                                is_drop=False, eps=1e-5):
    x = jnp.transpose(x_nchw, (0, 2, 3, 1)).astype(jnp.float32)   # NCHW -> NHWC
    N, H, W, Cin = x.shape
    Cout = params["w1"].shape[-1]
    Ho, Wo = H // 2, W // 2

    w1 = params["w1"].reshape(9, Cin, Cout)          # per-tap (Cin, Cout)
    w2 = params["w2"].reshape(9, Cout, Cout)

    # Host-side folding: conv1 bias -> shift row 0; conv2 bias + eval-BN ->
    #   y = conv2(.)*scale2 + shift2  with scale2 = gamma/sqrt(var+eps),
    #   shift2 = beta - mean*scale2 + b2*scale2.
    if is_batchnorm:
        scale2 = params["gamma"] / jnp.sqrt(params["running_var"] + eps)
        shift2 = params["beta"] - params["running_mean"] * scale2 + params["b2"] * scale2
    else:
        scale2 = jnp.ones((Cout,), jnp.float32)
        shift2 = params["b2"]
    aff = jnp.stack([params["b1"], scale2, shift2], axis=0)        # (3, Cout)

    out = pl.pallas_call(
        fused_downsample_kernel,
        out_shape=jax.ShapeDtypeStruct((N, Ho, Wo, Cout), jnp.float32),
        grid=(N,),
        in_specs=[
            pl.BlockSpec((1, H, W, Cin), lambda n: (n, 0, 0, 0)),
            pl.BlockSpec((9, Cin, Cout), lambda n: (0, 0, 0)),     # invariant
            pl.BlockSpec((9, Cout, Cout), lambda n: (0, 0, 0)),    # invariant
            pl.BlockSpec((3, Cout), lambda n: (0, 0)),             # invariant
        ],
        out_specs=pl.BlockSpec((1, Ho, Wo, Cout), lambda n: (n, 0, 0, 0)),
        scratch_shapes=[
            pltpu.VMEM((H + 2, W + 2, Cin), jnp.float32),
            pltpu.VMEM((H + 2, W + 2, Cout), jnp.float32),
        ],
        compiler_params=pltpu.CompilerParams(dimension_semantics=("parallel",)),
    )(x, w1, w2, aff)

    if is_drop:
        # TODO(synk): training-mode Dropout(p=0.6) with torch-matching RNG has
        # no clean equivalent; eval-mode dropout is the identity, applied here.
        pass

    return jnp.transpose(out, (0, 3, 1, 2))                        # NHWC -> NCHW


# --------------------------------------------------------------------------
# Pure-JAX reference for verification
# --------------------------------------------------------------------------
def reference_forward(x_nchw, params, *, is_batchnorm=True, eps=1e-5):
    x = jnp.transpose(x_nchw, (0, 2, 3, 1))
    dn = ("NHWC", "HWIO", "NHWC")
    y = lax.conv_general_dilated(x, params["w1"], (1, 1), "SAME",
                                 dimension_numbers=dn) + params["b1"]
    y = lax.conv_general_dilated(y, params["w2"], (1, 1), "SAME",
                                 dimension_numbers=dn) + params["b2"]
    if is_batchnorm:
        y = (y - params["running_mean"]) / jnp.sqrt(params["running_var"] + eps)
        y = y * params["gamma"] + params["beta"]
    y = jnp.maximum(y, 0.0)
    y = lax.reduce_window(y, -jnp.inf, lax.max, (1, 2, 2, 1), (1, 2, 2, 1), "VALID")
    return jnp.transpose(y, (0, 3, 1, 2))


if __name__ == "__main__":
    key = jax.random.PRNGKey(0)
    k_x, k_p = jax.random.split(key)

    N, Cin, Cout, H, W = 2, 4, 8, 16, 16
    x = jax.random.normal(k_x, (N, Cin, H, W), jnp.float32)   # NCHW, like PyTorch
    params = init_params(k_p, Cin, Cout)

    out = downsample_conv2d_2_forward(x, params, is_batchnorm=True, is_drop=True)
    out = jax.block_until_ready(out)

    ref = jax.block_until_ready(reference_forward(x, params, is_batchnorm=True))
    assert out.shape == (N, Cout, H // 2, W // 2), out.shape
    np.testing.assert_allclose(np.asarray(out), np.asarray(ref),
                               rtol=1e-4, atol=1e-4)
    print("KERNEL_OK")
</pallas_src>

<mosaic_0001>
module attributes {stable_mosaic.version = 11 : i64} {
  func.func @fused_downsample_kernel(%arg0: i32, %arg1: memref<1x16x16x4xf32, #tpu.memory_space<vmem>>, %arg2: memref<9x4x8xf32, #tpu.memory_space<vmem>>, %arg3: memref<9x8x8xf32, #tpu.memory_space<vmem>>, %arg4: memref<3x8xf32, #tpu.memory_space<vmem>>, %arg5: memref<1x8x8x8xf32, #tpu.memory_space<vmem>>, %arg6: memref<18x18x4xf32, #tpu.memory_space<vmem>>, %arg7: memref<18x18x8xf32, #tpu.memory_space<vmem>>) attributes {dimension_semantics = [#tpu.dimension_semantics<parallel>], iteration_bounds = array<i64: 2>, scalar_prefetch = 0 : i64, scratch_operands = 2 : i64, tpu.core_type = #tpu.core_type<tc>, window_params = [{transform_indices = @transform_0, window_bounds = array<i64: 1, 16, 16, 4>}, {pipeline_mode = #tpu.pipeline_mode<synchronous>, transform_indices = @transform_1, window_bounds = array<i64: 9, 4, 8>}, {pipeline_mode = #tpu.pipeline_mode<synchronous>, transform_indices = @transform_2, window_bounds = array<i64: 9, 8, 8>}, {pipeline_mode = #tpu.pipeline_mode<synchronous>, transform_indices = @transform_3, window_bounds = array<i64: 3, 8>}, {transform_indices = @transform_4, window_bounds = array<i64: 1, 8, 8, 8>}]} {
    %cst = arith.constant 0.000000e+00 : f32
    %0 = vector.broadcast %cst : f32 to vector<18x18x4xf32>
    %c0 = arith.constant 0 : index
    %c0_0 = arith.constant 0 : index
    %c0_1 = arith.constant 0 : index
    %1 = vector.load %arg6[%c0, %c0_0, %c0_1] : memref<18x18x4xf32, #tpu.memory_space<vmem>>, vector<18x18x4xf32>
    tpu.vector_store %arg6[%c0, %c0_0, %c0_1], %0 {strides = array<i32>} : memref<18x18x4xf32, #tpu.memory_space<vmem>>, vector<18x18x4xf32>,
    %cst_2 = arith.constant 0.000000e+00 : f32
    %2 = vector.broadcast %cst_2 : f32 to vector<18x18x8xf32>
    %c0_3 = arith.constant 0 : index
    %c0_4 = arith.constant 0 : index
    %c0_5 = arith.constant 0 : index
    %3 = vector.load %arg7[%c0_3, %c0_4, %c0_5] : memref<18x18x8xf32, #tpu.memory_space<vmem>>, vector<18x18x8xf32>
    tpu.vector_store %arg7[%c0_3, %c0_4, %c0_5], %2 {strides = array<i32>} : memref<18x18x8xf32, #tpu.memory_space<vmem>>, vector<18x18x8xf32>,
    %c0_6 = arith.constant 0 : index
    %c0_7 = arith.constant 0 : index
    %c0_8 = arith.constant 0 : index
    %c0_9 = arith.constant 0 : index
    %4 = vector.load %arg1[%c0_6, %c0_7, %c0_8, %c0_9] : memref<1x16x16x4xf32, #tpu.memory_space<vmem>>, vector<1x16x16x4xf32>
    %5 = vector.shape_cast %4 : vector<1x16x16x4xf32> to vector<16x16x4xf32>
    %c1 = arith.constant 1 : index
    %c1_10 = arith.constant 1 : index
    %c0_11 = arith.constant 0 : index
    %6 = vector.load %arg6[%c1, %c1_10, %c0_11] : memref<18x18x4xf32, #tpu.memory_space<vmem>>, vector<16x16x4xf32>
    tpu.vector_store %arg6[%c1, %c1_10, %c0_11], %5 {strides = array<i32>} : memref<18x18x4xf32, #tpu.memory_space<vmem>>, vector<16x16x4xf32>,
    %c0_12 = arith.constant 0 : index
    %c0_13 = arith.constant 0 : index
    %7 = vector.load %arg4[%c0_12, %c0_13] : memref<3x8xf32, #tpu.memory_space<vmem>>, vector<3x8xf32>
    %8 = vector.extract_strided_slice %7 {offsets = [0, 0], sizes = [1, 8], strides = [1, 1]} : vector<3x8xf32> to vector<1x8xf32>
    %9 = vector.extract_strided_slice %7 {offsets = [1, 0], sizes = [1, 8], strides = [1, 1]} : vector<3x8xf32> to vector<1x8xf32>
    %10 = vector.extract_strided_slice %7 {offsets = [2, 0], sizes = [1, 8], strides = [1, 1]} : vector<3x8xf32> to vector<1x8xf32>
    %cst_14 = arith.constant 0.000000e+00 : f32
    %11 = vector.broadcast %cst_14 : f32 to vector<256x8xf32>
    %c0_15 = arith.constant 0 : index
    %c0_16 = arith.constant 0 : index
    %c0_17 = arith.constant 0 : index
    %12 = vector.load %arg6[%c0_15, %c0_16, %c0_17] : memref<18x18x4xf32, #tpu.memory_space<vmem>>, vector<16x16x4xf32>
    %13 = vector.shape_cast %12 : vector<16x16x4xf32> to vector<256x4xf32>
    %c0_18 = arith.constant 0 : index
    %c0_19 = arith.constant 0 : index
    %c0_20 = arith.constant 0 : index
    %14 = vector.load %arg2[%c0_18, %c0_19, %c0_20] : memref<9x4x8xf32, #tpu.memory_space<vmem>>, vector<1x4x8xf32>
    %15 = vector.shape_cast %14 : vector<1x4x8xf32> to vector<4x8xf32>
    %cst_21 = arith.constant dense<0.000000e+00> : vector<256x8xf32>
    %16 = tpu.matmul %13, %15, %cst_21 {dimension_numbers = #tpu.dot_dimension_numbers<[1], [0], [0], [1], [0, 0, 1, 1], [], []>} : vector<256x4xf32>, vector<4x8xf32>, vector<256x8xf32> -> vector<256x8xf32>
    %17 = arith.addf %11, %16 : vector<256x8xf32>
    %c0_22 = arith.constant 0 : index
    %c1_23 = arith.constant 1 : index
    %c0_24 = arith.constant 0 : index
    %18 = vector.load %arg6[%c0_22, %c1_23, %c0_24] : memref<18x18x4xf32, #tpu.memory_space<vmem>>, vector<16x16x4xf32>
    %19 = vector.shape_cast %18 : vector<16x16x4xf32> to vector<256x4xf32>
    %c1_25 = arith.constant 1 : index
    %c0_26 = arith.constant 0 : index
    %c0_27 = arith.constant 0 : index
    %20 = vector.load %arg2[%c1_25, %c0_26, %c0_27] : memref<9x4x8xf32, #tpu.memory_space<vmem>>, vector<1x4x8xf32>
    %21 = vector.shape_cast %20 : vector<1x4x8xf32> to vector<4x8xf32>
    %cst_28 = arith.constant dense<0.000000e+00> : vector<256x8xf32>
    %22 = tpu.matmul %19, %21, %cst_28 {dimension_numbers = #tpu.dot_dimension_numbers<[1], [0], [0], [1], [0, 0, 1, 1], [], []>} : vector<256x4xf32>, vector<4x8xf32>, vector<256x8xf32> -> vector<256x8xf32>
    %23 = arith.addf %17, %22 : vector<256x8xf32>
    %c0_29 = arith.constant 0 : index
    %c2 = arith.constant 2 : index
    %c0_30 = arith.constant 0 : index
    %24 = vector.load %arg6[%c0_29, %c2, %c0_30] : memref<18x18x4xf32, #tpu.memory_space<vmem>>, vector<16x16x4xf32>
    %25 = vector.shape_cast %24 : vector<16x16x4xf32> to vector<256x4xf32>
    %c2_31 = arith.constant 2 : index
    %c0_32 = arith.constant 0 : index
    %c0_33 = arith.constant 0 : index
    %26 = vector.load %arg2[%c2_31, %c0_32, %c0_33] : memref<9x4x8xf32, #tpu.memory_space<vmem>>, vector<1x4x8xf32>
    %27 = vector.shape_cast %26 : vector<1x4x8xf32> to vector<4x8xf32>
    %cst_34 = arith.constant dense<0.000000e+00> : vector<256x8xf32>
    %28 = tpu.matmul %25, %27, %cst_34 {dimension_numbers = #tpu.dot_dimension_numbers<[1], [0], [0], [1], [0, 0, 1, 1], [], []>} : vector<256x4xf32>, vector<4x8xf32>, vector<256x8xf32> -> vector<256x8xf32>
    %29 = arith.addf %23, %28 : vector<256x8xf32>
    %c1_35 = arith.constant 1 : index
    %c0_36 = arith.constant 0 : index
    %c0_37 = arith.constant 0 : index
    %30 = vector.load %arg6[%c1_35, %c0_36, %c0_37] : memref<18x18x4xf32, #tpu.memory_space<vmem>>, vector<16x16x4xf32>
    %31 = vector.shape_cast %30 : vector<16x16x4xf32> to vector<256x4xf32>
    %c3 = arith.constant 3 : index
    %c0_38 = arith.constant 0 : index
    %c0_39 = arith.constant 0 : index
    %32 = vector.load %arg2[%c3, %c0_38, %c0_39] : memref<9x4x8xf32, #tpu.memory_space<vmem>>, vector<1x4x8xf32>
    %33 = vector.shape_cast %32 : vector<1x4x8xf32> to vector<4x8xf32>
    %cst_40 = arith.constant dense<0.000000e+00> : vector<256x8xf32>
    %34 = tpu.matmul %31, %33, %cst_40 {dimension_numbers = #tpu.dot_dimension_numbers<[1], [0], [0], [1], [0, 0, 1, 1], [], []>} : vector<256x4xf32>, vector<4x8xf32>, vector<256x8xf32> -> vector<256x8xf32>
    %35 = arith.addf %29, %34 : vector<256x8xf32>
    %c1_41 = arith.constant 1 : index
    %c1_42 = arith.constant 1 : index
    %c0_43 = arith.constant 0 : index
    %36 = vector.load %arg6[%c1_41, %c1_42, %c0_43] : memref<18x18x4xf32, #tpu.memory_space<vmem>>, vector<16x16x4xf32>
    %37 = vector.shape_cast %36 : vector<16x16x4xf32> to vector<256x4xf32>
    %c4 = arith.constant 4 : index
    %c0_44 = arith.constant 0 : index
    %c0_45 = arith.constant 0 : index
    %38 = vector.load %arg2[%c4, %c0_44, %c0_45] : memref<9x4x8xf32, #tpu.memory_space<vmem>>, vector<1x4x8xf32>
    %39 = vector.shape_cast %38 : vector<1x4x8xf32> to vector<4x8xf32>
    %cst_46 = arith.constant dense<0.000000e+00> : vector<256x8xf32>
    %40 = tpu.matmul %37, %39, %cst_46 {dimension_numbers = #tpu.dot_dimension_numbers<[1], [0], [0], [1], [0, 0, 1, 1], [], []>} : vector<256x4xf32>, vector<4x8xf32>, vector<256x8xf32> -> vector<256x8xf32>
    %41 = arith.addf %35, %40 : vector<256x8xf32>
    %c1_47 = arith.constant 1 : index
    %c2_48 = arith.constant 2 : index
    %c0_49 = arith.constant 0 : index
    %42 = vector.load %arg6[%c1_47, %c2_48, %c0_49] : memref<18x18x4xf32, #tpu.memory_space<vmem>>, vector<16x16x4xf32>
    %43 = vector.shape_cast %42 : vector<16x16x4xf32> to vector<256x4xf32>
    %c5 = arith.constant 5 : index
    %c0_50 = arith.constant 0 : index
    %c0_51 = arith.constant 0 : index
    %44 = vector.load %arg2[%c5, %c0_50, %c0_51] : memref<9x4x8xf32, #tpu.memory_space<vmem>>, vector<1x4x8xf32>
    %45 = vector.shape_cast %44 : vector<1x4x8xf32> to vector<4x8xf32>
    %cst_52 = arith.constant dense<0.000000e+00> : vector<256x8xf32>
    %46 = tpu.matmul %43, %45, %cst_52 {dimension_numbers = #tpu.dot_dimension_numbers<[1], [0], [0], [1], [0, 0, 1, 1], [], []>} : vector<256x4xf32>, vector<4x8xf32>, vector<256x8xf32> -> vector<256x8xf32>
    %47 = arith.addf %41, %46 : vector<256x8xf32>
    %c2_53 = arith.constant 2 : index
    %c0_54 = arith.constant 0 : index
    %c0_55 = arith.constant 0 : index
    %48 = vector.load %arg6[%c2_53, %c0_54, %c0_55] : memref<18x18x4xf32, #tpu.memory_space<vmem>>, vector<16x16x4xf32>
    %49 = vector.shape_cast %48 : vector<16x16x4xf32> to vector<256x4xf32>
    %c6 = arith.constant 6 : index
    %c0_56 = arith.constant 0 : index
    %c0_57 = arith.constant 0 : index
    %50 = vector.load %arg2[%c6, %c0_56, %c0_57] : memref<9x4x8xf32, #tpu.memory_space<vmem>>, vector<1x4x8xf32>
    %51 = vector.shape_cast %50 : vector<1x4x8xf32> to vector<4x8xf32>
    %cst_58 = arith.constant dense<0.000000e+00> : vector<256x8xf32>
    %52 = tpu.matmul %49, %51, %cst_58 {dimension_numbers = #tpu.dot_dimension_numbers<[1], [0], [0], [1], [0, 0, 1, 1], [], []>} : vector<256x4xf32>, vector<4x8xf32>, vector<256x8xf32> -> vector<256x8xf32>
    %53 = arith.addf %47, %52 : vector<256x8xf32>
    %c2_59 = arith.constant 2 : index
    %c1_60 = arith.constant 1 : index
    %c0_61 = arith.constant 0 : index
    %54 = vector.load %arg6[%c2_59, %c1_60, %c0_61] : memref<18x18x4xf32, #tpu.memory_space<vmem>>, vector<16x16x4xf32>
    %55 = vector.shape_cast %54 : vector<16x16x4xf32> to vector<256x4xf32>
    %c7 = arith.constant 7 : index
    %c0_62 = arith.constant 0 : index
    %c0_63 = arith.constant 0 : index
    %56 = vector.load %arg2[%c7, %c0_62, %c0_63] : memref<9x4x8xf32, #tpu.memory_space<vmem>>, vector<1x4x8xf32>
    %57 = vector.shape_cast %56 : vector<1x4x8xf32> to vector<4x8xf32>
    %cst_64 = arith.constant dense<0.000000e+00> : vector<256x8xf32>
    %58 = tpu.matmul %55, %57, %cst_64 {dimension_numbers = #tpu.dot_dimension_numbers<[1], [0], [0], [1], [0, 0, 1, 1], [], []>} : vector<256x4xf32>, vector<4x8xf32>, vector<256x8xf32> -> vector<256x8xf32>
    %59 = arith.addf %53, %58 : vector<256x8xf32>
    %c2_65 = arith.constant 2 : index
    %c2_66 = arith.constant 2 : index
    %c0_67 = arith.constant 0 : index
    %60 = vector.load %arg6[%c2_65, %c2_66, %c0_67] : memref<18x18x4xf32, #tpu.memory_space<vmem>>, vector<16x16x4xf32>
    %61 = vector.shape_cast %60 : vector<16x16x4xf32> to vector<256x4xf32>
    %c8 = arith.constant 8 : index
    %c0_68 = arith.constant 0 : index
    %c0_69 = arith.constant 0 : index
    %62 = vector.load %arg2[%c8, %c0_68, %c0_69] : memref<9x4x8xf32, #tpu.memory_space<vmem>>, vector<1x4x8xf32>
    %63 = vector.shape_cast %62 : vector<1x4x8xf32> to vector<4x8xf32>
    %cst_70 = arith.constant dense<0.000000e+00> : vector<256x8xf32>
    %64 = tpu.matmul %61, %63, %cst_70 {dimension_numbers = #tpu.dot_dimension_numbers<[1], [0], [0], [1], [0, 0, 1, 1], [], []>} : vector<256x4xf32>, vector<4x8xf32>, vector<256x8xf32> -> vector<256x8xf32>
    %65 = arith.addf %59, %64 : vector<256x8xf32>
    %66 = vector.broadcast %8 : vector<1x8xf32> to vector<256x8xf32>
    %67 = arith.addf %65, %66 : vector<256x8xf32>
    %68 = vector.shape_cast %67 : vector<256x8xf32> to vector<16x16x8xf32>
    %c1_71 = arith.constant 1 : index
    %c1_72 = arith.constant 1 : index
    %c0_73 = arith.constant 0 : index
    %69 = vector.load %arg7[%c1_71, %c1_72, %c0_73] : memref<18x18x8xf32, #tpu.memory_space<vmem>>, vector<16x16x8xf32>
    tpu.vector_store %arg7[%c1_71, %c1_72, %c0_73], %68 {strides = array<i32>} : memref<18x18x8xf32, #tpu.memory_space<vmem>>, vector<16x16x8xf32>,
    %cst_74 = arith.constant 0.000000e+00 : f32
    %70 = vector.broadcast %cst_74 : f32 to vector<256x8xf32>
    %c0_75 = arith.constant 0 : index
    %c0_76 = arith.constant 0 : index
    %c0_77 = arith.constant 0 : index
    %71 = vector.load %arg7[%c0_75, %c0_76, %c0_77] : memref<18x18x8xf32, #tpu.memory_space<vmem>>, vector<16x16x8xf32>
    %72 = vector.shape_cast %71 : vector<16x16x8xf32> to vector<256x8xf32>
    %c0_78 = arith.constant 0 : index
    %c0_79 = arith.constant 0 : index
    %c0_80 = arith.constant 0 : index
    %73 = vector.load %arg3[%c0_78, %c0_79, %c0_80] : memref<9x8x8xf32, #tpu.memory_space<vmem>>, vector<1x8x8xf32>
    %74 = vector.shape_cast %73 : vector<1x8x8xf32> to vector<8x8xf32>
    %cst_81 = arith.constant dense<0.000000e+00> : vector<256x8xf32>
    %75 = tpu.matmul %72, %74, %cst_81 {dimension_numbers = #tpu.dot_dimension_numbers<[1], [0], [0], [1], [0, 0, 1, 1], [], []>} : vector<256x8xf32>, vector<8x8xf32>, vector<256x8xf32> -> vector<256x8xf32>
    %76 = arith.addf %70, %75 : vector<256x8xf32>
    %c0_82 = arith.constant 0 : index
    %c1_83 = arith.constant 1 : index
    %c0_84 = arith.constant 0 : index
    %77 = vector.load %arg7[%c0_82, %c1_83, %c0_84] : memref<18x18x8xf32, #tpu.memory_space<vmem>>, vector<16x16x8xf32>
    %78 = vector.shape_cast %77 : vector<16x16x8xf32> to vector<256x8xf32>
    %c1_85 = arith.constant 1 : index
    %c0_86 = arith.constant 0 : index
    %c0_87 = arith.constant 0 : index
    %79 = vector.load %arg3[%c1_85, %c0_86, %c0_87] : memref<9x8x8xf32, #tpu.memory_space<vmem>>, vector<1x8x8xf32>
    %80 = vector.shape_cast %79 : vector<1x8x8xf32> to vector<8x8xf32>
    %cst_88 = arith.constant dense<0.000000e+00> : vector<256x8xf32>
    %81 = tpu.matmul %78, %80, %cst_88 {dimension_numbers = #tpu.dot_dimension_numbers<[1], [0], [0], [1], [0, 0, 1, 1], [], []>} : vector<256x8xf32>, vector<8x8xf32>, vector<256x8xf32> -> vector<256x8xf32>
    %82 = arith.addf %76, %81 : vector<256x8xf32>
    %c0_89 = arith.constant 0 : index
    %c2_90 = arith.constant 2 : index
    %c0_91 = arith.constant 0 : index
    %83 = vector.load %arg7[%c0_89, %c2_90, %c0_91] : memref<18x18x8xf32, #tpu.memory_space<vmem>>, vector<16x16x8xf32>
    %84 = vector.shape_cast %83 : vector<16x16x8xf32> to vector<256x8xf32>
    %c2_92 = arith.constant 2 : index
    %c0_93 = arith.constant 0 : index
    %c0_94 = arith.constant 0 : index
    %85 = vector.load %arg3[%c2_92, %c0_93, %c0_94] : memref<9x8x8xf32, #tpu.memory_space<vmem>>, vector<1x8x8xf32>
    %86 = vector.shape_cast %85 : vector<1x8x8xf32> to vector<8x8xf32>
    %cst_95 = arith.constant dense<0.000000e+00> : vector<256x8xf32>
    %87 = tpu.matmul %84, %86, %cst_95 {dimension_numbers = #tpu.dot_dimension_numbers<[1], [0], [0], [1], [0, 0, 1, 1], [], []>} : vector<256x8xf32>, vector<8x8xf32>, vector<256x8xf32> -> vector<256x8xf32>
    %88 = arith.addf %82, %87 : vector<256x8xf32>
    %c1_96 = arith.constant 1 : index
    %c0_97 = arith.constant 0 : index
    %c0_98 = arith.constant 0 : index
    %89 = vector.load %arg7[%c1_96, %c0_97, %c0_98] : memref<18x18x8xf32, #tpu.memory_space<vmem>>, vector<16x16x8xf32>
    %90 = vector.shape_cast %89 : vector<16x16x8xf32> to vector<256x8xf32>
    %c3_99 = arith.constant 3 : index
    %c0_100 = arith.constant 0 : index
    %c0_101 = arith.constant 0 : index
    %91 = vector.load %arg3[%c3_99, %c0_100, %c0_101] : memref<9x8x8xf32, #tpu.memory_space<vmem>>, vector<1x8x8xf32>
    %92 = vector.shape_cast %91 : vector<1x8x8xf32> to vector<8x8xf32>
    %cst_102 = arith.constant dense<0.000000e+00> : vector<256x8xf32>
    %93 = tpu.matmul %90, %92, %cst_102 {dimension_numbers = #tpu.dot_dimension_numbers<[1], [0], [0], [1], [0, 0, 1, 1], [], []>} : vector<256x8xf32>, vector<8x8xf32>, vector<256x8xf32> -> vector<256x8xf32>
    %94 = arith.addf %88, %93 : vector<256x8xf32>
    %c1_103 = arith.constant 1 : index
    %c1_104 = arith.constant 1 : index
    %c0_105 = arith.constant 0 : index
    %95 = vector.load %arg7[%c1_103, %c1_104, %c0_105] : memref<18x18x8xf32, #tpu.memory_space<vmem>>, vector<16x16x8xf32>
    %96 = vector.shape_cast %95 : vector<16x16x8xf32> to vector<256x8xf32>
    %c4_106 = arith.constant 4 : index
    %c0_107 = arith.constant 0 : index
    %c0_108 = arith.constant 0 : index
    %97 = vector.load %arg3[%c4_106, %c0_107, %c0_108] : memref<9x8x8xf32, #tpu.memory_space<vmem>>, vector<1x8x8xf32>
    %98 = vector.shape_cast %97 : vector<1x8x8xf32> to vector<8x8xf32>
    %cst_109 = arith.constant dense<0.000000e+00> : vector<256x8xf32>
    %99 = tpu.matmul %96, %98, %cst_109 {dimension_numbers = #tpu.dot_dimension_numbers<[1], [0], [0], [1], [0, 0, 1, 1], [], []>} : vector<256x8xf32>, vector<8x8xf32>, vector<256x8xf32> -> vector<256x8xf32>
    %100 = arith.addf %94, %99 : vector<256x8xf32>
    %c1_110 = arith.constant 1 : index
    %c2_111 = arith.constant 2 : index
    %c0_112 = arith.constant 0 : index
    %101 = vector.load %arg7[%c1_110, %c2_111, %c0_112] : memref<18x18x8xf32, #tpu.memory_space<vmem>>, vector<16x16x8xf32>
    %102 = vector.shape_cast %101 : vector<16x16x8xf32> to vector<256x8xf32>
    %c5_113 = arith.constant 5 : index
    %c0_114 = arith.constant 0 : index
    %c0_115 = arith.constant 0 : index
    %103 = vector.load %arg3[%c5_113, %c0_114, %c0_115] : memref<9x8x8xf32, #tpu.memory_space<vmem>>, vector<1x8x8xf32>
    %104 = vector.shape_cast %103 : vector<1x8x8xf32> to vector<8x8xf32>
    %cst_116 = arith.constant dense<0.000000e+00> : vector<256x8xf32>
    %105 = tpu.matmul %102, %104, %cst_116 {dimension_numbers = #tpu.dot_dimension_numbers<[1], [0], [0], [1], [0, 0, 1, 1], [], []>} : vector<256x8xf32>, vector<8x8xf32>, vector<256x8xf32> -> vector<256x8xf32>
    %106 = arith.addf %100, %105 : vector<256x8xf32>
    %c2_117 = arith.constant 2 : index
    %c0_118 = arith.constant 0 : index
    %c0_119 = arith.constant 0 : index
    %107 = vector.load %arg7[%c2_117, %c0_118, %c0_119] : memref<18x18x8xf32, #tpu.memory_space<vmem>>, vector<16x16x8xf32>
    %108 = vector.shape_cast %107 : vector<16x16x8xf32> to vector<256x8xf32>
    %c6_120 = arith.constant 6 : index
    %c0_121 = arith.constant 0 : index
    %c0_122 = arith.constant 0 : index
    %109 = vector.load %arg3[%c6_120, %c0_121, %c0_122] : memref<9x8x8xf32, #tpu.memory_space<vmem>>, vector<1x8x8xf32>
    %110 = vector.shape_cast %109 : vector<1x8x8xf32> to vector<8x8xf32>
    %cst_123 = arith.constant dense<0.000000e+00> : vector<256x8xf32>
    %111 = tpu.matmul %108, %110, %cst_123 {dimension_numbers = #tpu.dot_dimension_numbers<[1], [0], [0], [1], [0, 0, 1, 1], [], []>} : vector<256x8xf32>, vector<8x8xf32>, vector<256x8xf32> -> vector<256x8xf32>
    %112 = arith.addf %106, %111 : vector<256x8xf32>
    %c2_124 = arith.constant 2 : index
    %c1_125 = arith.constant 1 : index
    %c0_126 = arith.constant 0 : index
    %113 = vector.load %arg7[%c2_124, %c1_125, %c0_126] : memref<18x18x8xf32, #tpu.memory_space<vmem>>, vector<16x16x8xf32>
    %114 = vector.shape_cast %113 : vector<16x16x8xf32> to vector<256x8xf32>
    %c7_127 = arith.constant 7 : index
    %c0_128 = arith.constant 0 : index
    %c0_129 = arith.constant 0 : index
    %115 = vector.load %arg3[%c7_127, %c0_128, %c0_129] : memref<9x8x8xf32, #tpu.memory_space<vmem>>, vector<1x8x8xf32>
    %116 = vector.shape_cast %115 : vector<1x8x8xf32> to vector<8x8xf32>
    %cst_130 = arith.constant dense<0.000000e+00> : vector<256x8xf32>
    %117 = tpu.matmul %114, %116, %cst_130 {dimension_numbers = #tpu.dot_dimension_numbers<[1], [0], [0], [1], [0, 0, 1, 1], [], []>} : vector<256x8xf32>, vector<8x8xf32>, vector<256x8xf32> -> vector<256x8xf32>
    %118 = arith.addf %112, %117 : vector<256x8xf32>
    %c2_131 = arith.constant 2 : index
    %c2_132 = arith.constant 2 : index
    %c0_133 = arith.constant 0 : index
    %119 = vector.load %arg7[%c2_131, %c2_132, %c0_133] : memref<18x18x8xf32, #tpu.memory_space<vmem>>, vector<16x16x8xf32>
    %120 = vector.shape_cast %119 : vector<16x16x8xf32> to vector<256x8xf32>
    %c8_134 = arith.constant 8 : index
    %c0_135 = arith.constant 0 : index
    %c0_136 = arith.constant 0 : index
    %121 = vector.load %arg3[%c8_134, %c0_135, %c0_136] : memref<9x8x8xf32, #tpu.memory_space<vmem>>, vector<1x8x8xf32>
    %122 = vector.shape_cast %121 : vector<1x8x8xf32> to vector<8x8xf32>
    %cst_137 = arith.constant dense<0.000000e+00> : vector<256x8xf32>
    %123 = tpu.matmul %120, %122, %cst_137 {dimension_numbers = #tpu.dot_dimension_numbers<[1], [0], [0], [1], [0, 0, 1, 1], [], []>} : vector<256x8xf32>, vector<8x8xf32>, vector<256x8xf32> -> vector<256x8xf32>
    %124 = arith.addf %118, %123 : vector<256x8xf32>
    %125 = vector.broadcast %9 : vector<1x8xf32> to vector<256x8xf32>
    %126 = arith.mulf %124, %125 : vector<256x8xf32>
    %127 = vector.broadcast %10 : vector<1x8xf32> to vector<256x8xf32>
    %128 = arith.addf %126, %127 : vector<256x8xf32>
    %cst_138 = arith.constant 0.000000e+00 : f32
    %129 = vector.broadcast %cst_138 : f32 to vector<256x8xf32>
    %130 = arith.maximumf %128, %129 : vector<256x8xf32>
    %131 = vector.shape_cast %130 : vector<256x8xf32> to vector<16x16x8xf32>
    %132 = vector.shape_cast %131 : vector<16x16x8xf32> to vector<8x2x16x8xf32>
    %cst_139 = arith.constant dense<0xFF800000> : vector<8x16x8xf32>
    %133 = vector.multi_reduction <maximumf>, %132, %cst_139 [1] : vector<8x2x16x8xf32> to vector<8x16x8xf32>
    %134 = vector.shape_cast %133 : vector<8x16x8xf32> to vector<8x8x2x8xf32>
    %cst_140 = arith.constant dense<0xFF800000> : vector<8x8x8xf32>
    %135 = vector.multi_reduction <maximumf>, %134, %cst_140 [2] : vector<8x8x2x8xf32> to vector<8x8x8xf32>
    %136 = vector.shape_cast %135 : vector<8x8x8xf32> to vector<1x8x8x8xf32>
    %c0_141 = arith.constant 0 : index
    %c0_142 = arith.constant 0 : index
    %c0_143 = arith.constant 0 : index
    %c0_144 = arith.constant 0 : index
    %137 = vector.load %arg5[%c0_141, %c0_142, %c0_143, %c0_144] : memref<1x8x8x8xf32, #tpu.memory_space<vmem>>, vector<1x8x8x8xf32>
    tpu.vector_store %arg5[%c0_141, %c0_142, %c0_143, %c0_144], %136 {strides = array<i32>} : memref<1x8x8x8xf32, #tpu.memory_space<vmem>>, vector<1x8x8x8xf32>,
    return
  }
  func.func @transform_0(%arg0: i32) -> (i32, i32, i32, i32) {
    %c0_i32 = arith.constant 0 : i32
    %c0_i32_0 = arith.constant 0 : i32
    %c0_i32_1 = arith.constant 0 : i32
    %c0_i32_2 = arith.constant 0 : i32
    return %arg0, %c0_i32, %c0_i32_0, %c0_i32_1 : i32, i32, i32, i32
  }
  func.func @transform_1(%arg0: i32) -> (i32, i32, i32) {
    %c0_i32 = arith.constant 0 : i32
    %c0_i32_0 = arith.constant 0 : i32
    %c0_i32_1 = arith.constant 0 : i32
    %c0_i32_2 = arith.constant 0 : i32
    return %c0_i32, %c0_i32_0, %c0_i32_1 : i32, i32, i32
  }
  func.func @transform_2(%arg0: i32) -> (i32, i32, i32) {
    %c0_i32 = arith.constant 0 : i32
    %c0_i32_0 = arith.constant 0 : i32
    %c0_i32_1 = arith.constant 0 : i32
    %c0_i32_2 = arith.constant 0 : i32
    return %c0_i32, %c0_i32_0, %c0_i32_1 : i32, i32, i32
  }
  func.func @transform_3(%arg0: i32) -> (i32, i32) {
    %c0_i32 = arith.constant 0 : i32
    %c0_i32_0 = arith.constant 0 : i32
    %c0_i32_1 = arith.constant 0 : i32
    return %c0_i32, %c0_i32_0 : i32, i32
  }
  func.func @transform_4(%arg0: i32) -> (i32, i32, i32, i32) {
    %c0_i32 = arith.constant 0 : i32
    %c0_i32_0 = arith.constant 0 : i32
    %c0_i32_1 = arith.constant 0 : i32
    %c0_i32_2 = arith.constant 0 : i32
    return %arg0, %c0_i32, %c0_i32_0, %c0_i32_1 : i32, i32, i32, i32
  }
}

</mosaic_0001>

<llo_original>
// kernel: tpu_custom_call.1
$region0: #{tpu_custom_call.1}
  #allocation0 [shape = 'u32[]', space=smem, size = 0x4, offset = 0x4, fixed_abs, tag = 'smem constant byte address 0x4 - core index']
  #allocation1 [shape = 'u32[144,128]{1,0:T(1,128)}', space=vmem, size = 0x12000, scoped, tag = 'internal scratch']
  #allocation2 [shape = 'f32[18,18,4]{2,1,0:T(8,128)}', space=vmem, size = 0x36000, scoped, tag = 'scratch operand']
  #allocation3 [shape = 'f32[18,18,8]{2,1,0:T(8,128)}', space=vmem, size = 0x36000, scoped, tag = 'scratch operand']
  %s0 = inlined_call_operand.vmem [shape: f32[2,16,16,4], index: 0, kind: input, shape index: {}]
  %s1 = inlined_call_operand.vmem [shape: f32[9,4,8], index: 1, kind: input, shape index: {}]
  %s2 = inlined_call_operand.vmem [shape: f32[9,8,8], index: 2, kind: input, shape index: {}]
  %s3 = inlined_call_operand.vmem [shape: f32[3,8], index: 3, kind: input, shape index: {}]
  %s4 = inlined_call_operand.hbm [shape: f32[2,8,8,8], index: 4, kind: output, shape index: {}]
  %s5 = sld [smem:[#allocation0]]
  $region49: #{tpu_custom_call.1} parent=0
    _
  %s7 = ssub.s32 1, %s5
  %s8 = scalar_select 0, %s7, %s5
  $region1: #{tpu_custom_call.1} parent=0
    #allocation4 [shape = 'u8[65536]{0}', space=vmem, size = 0x10000, scoped, tag = 'output window, operand 0']
    #allocation5 [shape = 's32[2]{0}', space=sflag, size = 0x8, scoped, tag = 'scoped memory for tpu_custom_call.1']
    %9 = vsyncpa [#allocation5], 0
    %s10 = scalar_lea.sflag [#allocation5], 1
    %11 = vsyncpa %s10, 0
    loop: start=0, step=1, limit=4
    $region2: #{tpu_custom_call.1} parent=1 // loop_pre_header
      _
    $region3: #{tpu_custom_call.1} parent=1 // loop_header
      %s13 = sphi 0, %s17
      %p14 = scmp.ge.s32.totalorder %s13, 4
      %s23 = sphi 0, %s25
      %s26 = sphi 0, %s23
      %s27 = sphi 0, %s26
      %s43 = sphi 0, %s27
      %s47 = sphi 0, %s47
      %s49 = sphi 0, %s47
      %s50 = sphi 0, %s49
      %s64 = sphi 0, %s50
      %s68 = sphi 0, %s68
      %s70 = sphi 0, %s68
      %s71 = sphi 0, %s70
      %s85 = sphi 0, %s71
      %s89 = sphi 0, %s89
      %s91 = sphi 0, %s89
      %s92 = sphi 0, %s91
      %s106 = sphi 0, %s92
      %s112 = sphi 0, %s114
      %s115 = sphi 0, %s112
      %s116 = sphi 0, %s115
      %s132 = sphi 0, %s116
    $region4: #{tpu_custom_call.1} parent=1 // loop_header_branch
      %16 = sbr.rel (%p14) target = $region8
    $region5: #{tpu_custom_call.1} parent=1 // loop_body
      %s18 = ssub.s32 %s13, 1
      %s19 = ssub.s32 %s13, 2
      %s20 = sadd.s32 %s13, 1
      %s21 = ssub.s32 %s13, %s20
      %p22 = scmp.eq.s32.totalorder %s21, 0
      %s24 = sadd.s32 %s23, 1
      %s25 = scalar_select %p22, %s23, %s24
      %p28 = pneg %p22
      %p29 = scmp.eq.s32.totalorder %s13, 1
      %p30 = por %p28, %p29
      %p31 = scmp.ne.s32.totalorder %s23, %s26
      %p32 = scmp.eq.s32.totalorder %s13, 0
      %p33 = por %p31, %p32
      %p34 = scmp.ne.s32.totalorder %s23, %s26
      %p35 = scmp.eq.s32.totalorder %s18, 1
      %p36 = por %p34, %p35
      %p37 = scmp.ne.s32.totalorder %s26, %s27
      %p38 = scmp.eq.s32.totalorder %s18, 0
      %p39 = por %p37, %p38
      %p40 = scmp.ne.s32.totalorder %s26, %s27
      %p41 = scmp.eq.s32.totalorder %s19, 1
      %p42 = por %p40, %p41
      %p44 = scmp.ne.s32.totalorder %s27, %s43
      %p45 = scmp.eq.s32.totalorder %s19, 0
      %p46 = por %p44, %p45
      %s48 = sadd.s32 %s47, 1
      %p51 = scmp.eq.s32.totalorder %s13, 1
      %p52 = scmp.ne.s32.totalorder %s47, %s49
      %p53 = scmp.eq.s32.totalorder %s13, 0
      %p54 = por %p52, %p53
      %p55 = scmp.ne.s32.totalorder %s47, %s49
      %p56 = scmp.eq.s32.totalorder %s18, 1
      %p57 = por %p55, %p56
      %p58 = scmp.ne.s32.totalorder %s49, %s50
      %p59 = scmp.eq.s32.totalorder %s18, 0
      %p60 = por %p58, %p59
      %p61 = scmp.ne.s32.totalorder %s49, %s50
      %p62 = scmp.eq.s32.totalorder %s19, 1
      %p63 = por %p61, %p62
      %p65 = scmp.ne.s32.totalorder %s50, %s64
      %p66 = scmp.eq.s32.totalorder %s19, 0
      %p67 = por %p65, %p66
      %s69 = sadd.s32 %s68, 1
      %p72 = scmp.eq.s32.totalorder %s13, 1
      %p73 = scmp.ne.s32.totalorder %s68, %s70
      %p74 = scmp.eq.s32.totalorder %s13, 0
      %p75 = por %p73, %p74
      %p76 = scmp.ne.s32.totalorder %s68, %s70
      %p77 = scmp.eq.s32.totalorder %s18, 1
      %p78 = por %p76, %p77
      %p79 = scmp.ne.s32.totalorder %s70, %s71
      %p80 = scmp.eq.s32.totalorder %s18, 0
      %p81 = por %p79, %p80
      %p82 = scmp.ne.s32.totalorder %s70, %s71
      %p83 = scmp.eq.s32.totalorder %s19, 1
      %p84 = por %p82, %p83
      %p86 = scmp.ne.s32.totalorder %s71, %s85
      %p87 = scmp.eq.s32.totalorder %s19, 0
      %p88 = por %p86, %p87
      %s90 = sadd.s32 %s89, 1
      %p93 = scmp.eq.s32.totalorder %s13, 1
      %p94 = scmp.ne.s32.totalorder %s89, %s91
      %p95 = scmp.eq.s32.totalorder %s13, 0
      %p96 = por %p94, %p95
      %p97 = scmp.ne.s32.totalorder %s89, %s91
      %p98 = scmp.eq.s32.totalorder %s18, 1
      %p99 = por %p97, %p98
      %p100 = scmp.ne.s32.totalorder %s91, %s92
      %p101 = scmp.eq.s32.totalorder %s18, 0
      %p102 = por %p100, %p101
      %p103 = scmp.ne.s32.totalorder %s91, %s92
      %p104 = scmp.eq.s32.totalorder %s19, 1
      %p105 = por %p103, %p104
      %p107 = scmp.ne.s32.totalorder %s92, %s106
      %p108 = scmp.eq.s32.totalorder %s19, 0
      %p109 = por %p107, %p108
      %s110 = ssub.s32 %s13, %s20
      %p111 = scmp.eq.s32.totalorder %s110, 0
      %s113 = sadd.s32 %s112, 1
      %s114 = scalar_select %p111, %s112, %s113
      %p117 = pneg %p111
      %p118 = scmp.eq.s32.totalorder %s13, 1
      %p119 = por %p117, %p118
      %p120 = scmp.ne.s32.totalorder %s112, %s115
      %p121 = scmp.eq.s32.totalorder %s13, 0
      %p122 = por %p120, %p121
      %p123 = scmp.ne.s32.totalorder %s112, %s115
      %p124 = scmp.eq.s32.totalorder %s18, 1
      %p125 = por %p123, %p124
      %p126 = scmp.ne.s32.totalorder %s115, %s116
      %p127 = scmp.eq.s32.totalorder %s18, 0
      %p128 = por %p126, %p127
      %p129 = scmp.ne.s32.totalorder %s115, %s116
      %p130 = scmp.eq.s32.totalorder %s19, 1
      %p131 = por %p129, %p130
      %p133 = scmp.ne.s32.totalorder %s116, %s132
      %p134 = scmp.eq.s32.totalorder %s19, 0
      %p135 = por %p133, %p134
      %p136 = scmp.le.s32.totalorder 1, %s13
      %p137 = scmp.lt.s32.totalorder %s13, 3
      %p138 = pnand %p136, %p137
      %p139 = pneg %p138
      // Predicated region
      $region9: #{tpu_custom_call.1} parent=5 // pred_check
        _
      $region10: #{tpu_custom_call.1} parent=5 // pred_check_branch
        %141 = sbr.rel (%p138) target = $region12
      $region11: #{tpu_custom_call.1} parent=5 // pred_region
        %s142 = ssub.s32 %s13, 1
        // Predicated region
        $region13: #{tpu_custom_call.1} parent=11 // pred_check
          %p143 = pneg %p60
        $region14: #{tpu_custom_call.1} parent=11 // pred_check_branch
          %145 = sbr.rel (%p143) target = $region16
        $region15: #{tpu_custom_call.1} parent=11 // pred_region
          _
        $region16: #{tpu_custom_call.1} parent=11 // pred_fallthru
          _
        // Predicated region
        $region17: #{tpu_custom_call.1} parent=11 // pred_check
          %p146 = pneg %p81
        $region18: #{tpu_custom_call.1} parent=11 // pred_check_branch
          %148 = sbr.rel (%p146) target = $region20
        $region19: #{tpu_custom_call.1} parent=11 // pred_region
          _
        $region20: #{tpu_custom_call.1} parent=11 // pred_fallthru
          _
        // Predicated region
        $region21: #{tpu_custom_call.1} parent=11 // pred_check
          %p149 = pneg %p102
        $region22: #{tpu_custom_call.1} parent=11 // pred_check_branch
          %151 = sbr.rel (%p149) target = $region24
        $region23: #{tpu_custom_call.1} parent=11 // pred_region
          _
        $region24: #{tpu_custom_call.1} parent=11 // pred_fallthru
          _
      $region12: #{tpu_custom_call.1} parent=5 // pred_fallthru
        _
      %p152 = scmp.lt.s32.totalorder %s13, 2
      // Predicated region
      $region25: #{tpu_custom_call.1} parent=5 // pred_check
        %p153 = pneg %p152
      $region26: #{tpu_custom_call.1} parent=5 // pred_check_branch
        %155 = sbr.rel (%p153) target = $region28
      $region27: #{tpu_custom_call.1} parent=5 // pred_region
        // Predicated region
        $region29: #{tpu_custom_call.1} parent=27 // pred_check
          %p156 = pneg %p33
        $region30: #{tpu_custom_call.1} parent=27 // pred_check_branch
          %158 = sbr.rel (%p156) target = $region32
        $region31: #{tpu_custom_call.1} parent=27 // pred_region
          %p159 = scmp.lt.s32.totalorder %s13, 1
          %s160 = scalar_select %p159, %s13, 1
          %s161 = smul.addr %s160, 32
          %s162 = smul.addr %s161, 8
          %s163 = scalar_lea.vmem %s0, %s162
        $region32: #{tpu_custom_call.1} parent=27 // pred_fallthru
          _
      $region28: #{tpu_custom_call.1} parent=5 // pred_fallthru
        _
      %p164 = scmp.le.s32.totalorder 1, %s13
      %p165 = scmp.lt.s32.totalorder %s13, 3
      %p166 = pnand %p164, %p165
      %p167 = pneg %p166
      // Predicated region
      $region33: #{tpu_custom_call.1} parent=5 // pred_check
        _
      $region34: #{tpu_custom_call.1} parent=5 // pred_check_branch
        %169 = sbr.rel (%p166) target = $region36
      $region35: #{tpu_custom_call.1} parent=5 // pred_region
        %s170 = ssub.s32 %s13, 1
        %p171 = scmp.lt.s32.totalorder %s18, 1
        %s172 = scalar_select %p171, %s18, 1
        %s173 = smul.addr %s172, 32
        %s174 = smul.addr %s173, 8
        %s175 = scalar_lea.vmem %s0, %s174
        %p176 = pneg %p39
        %p177 = pneg %p36
        %p178 = pneg %p60
        %p179 = pneg %p57
        %p180 = pneg %p81
        %p181 = pneg %p78
        %p182 = pneg %p102
        %p183 = pneg %p99
        %p184 = pneg %p128
        %p185 = pneg %p125
        %s186 = sand.u32 %s115, 1
        %s187 = scalar_lea.sflag [#allocation5], %s186
        %s188 = sand.u32 %s115, 1
        %s189 = smul.addr %s188, 64
        %s190 = scalar_lea.vmem [#allocation4], %s189
        %p191 = scmp.lt.s32.totalorder %s18, 1
        %s192 = scalar_select %p191, %s18, 1
        %s193 = smul.addr %s192, 32
        %s194 = smul.addr %s193, 8
        %s195 = scalar_lea.vmem %s0, %s194
        %vm196 = vcmask 31744
        %197 = vst.msk [vmem:[#allocation2] sm:$0xff] %vm196, 0.0
        %198 = vst.msk [vmem:[#allocation2 + $0x8] sm:$0xff] %vm196, 0.0
        %vm199 = vcmask 25600
        %200 = vst.msk [vmem:[#allocation2 + $0x10] sm:$0x3] %vm199, 0.0
        %201 = vst.msk [vmem:[#allocation2 + $0x18] sm:$0xff] %vm196, 0.0
        %202 = vst.msk [vmem:[#allocation2 + $0x20] sm:$0xff] %vm196, 0.0
        %203 = vst.msk [vmem:[#allocation2 + $0x28] sm:$0x3] %vm199, 0.0
        %204 = vst.msk [vmem:[#allocation2 + $0x30] sm:$0xff] %vm196, 0.0
        %205 = vst.msk [vmem:[#allocation2 + $0x38] sm:$0xff] %vm196, 0.0
        %206 = vst.msk [vmem:[#allocation2 + $0x40] sm:$0x3] %vm199, 0.0
        %207 = vst.msk [vmem:[#allocation2 + $0x48] sm:$0xff] %vm196, 0.0
        %208 = vst.msk [vmem:[#allocation2 + $0x50] sm:$0xff] %vm196, 0.0
        %209 = vst.msk [vmem:[#allocation2 + $0x58] sm:$0x3] %vm199, 0.0
        %210 = vst.msk [vmem:[#allocation2 + $0x60] sm:$0xff] %vm196, 0.0
        %211 = vst.msk [vmem:[#allocation2 + $0x68] sm:$0xff] %vm196, 0.0
        %212 = vst.msk [vmem:[#allocation2 + $0x70] sm:$0x3] %vm199, 0.0
        %213 = vst.msk [vmem:[#allocation2 + $0x78] sm:$0xff] %vm196, 0.0
        %214 = vst.msk [vmem:[#allocation2 + $0x80] sm:$0xff] %vm196, 0.0
        %215 = vst.msk [vmem:[#allocation2 + $0x88] sm:$0x3] %vm199, 0.0
        %216 = vst.msk [vmem:[#allocation2 + $0x90] sm:$0xff] %vm196, 0.0
        %217 = vst.msk [vmem:[#allocation2 + $0x98] sm:$0xff] %vm196, 0.0
        %218 = vst.msk [vmem:[#allocation2 + $0xa0] sm:$0x3] %vm199, 0.0
        %219 = vst.msk [vmem:[#allocation2 + $0xa8] sm:$0xff] %vm196, 0.0
        %220 = vst.msk [vmem:[#allocation2 + $0xb0] sm:$0xff] %vm196, 0.0
        %221 = vst.msk [vmem:[#allocation2 + $0xb8] sm:$0x3] %vm199, 0.0
        %222 = vst.msk [vmem:[#allocation2 + $0xc0] sm:$0xff] %vm196, 0.0
        %223 = vst.msk [vmem:[#allocation2 + $0xc8] sm:$0xff] %vm196, 0.0
        %224 = vst.msk [vmem:[#allocation2 + $0xd0] sm:$0x3] %vm199, 0.0
        %225 = vst.msk [vmem:[#allocation2 + $0xd8] sm:$0xff] %vm196, 0.0
        %226 = vst.msk [vmem:[#allocation2 + $0xe0] sm:$0xff] %vm196, 0.0
        %227 = vst.msk [vmem:[#allocation2 + $0xe8] sm:$0x3] %vm199, 0.0
        %228 = vst.msk [vmem:[#allocation2 + $0xf0] sm:$0xff] %vm196, 0.0
        %229 = vst.msk [vmem:[#allocation2 + $0xf8] sm:$0xff] %vm196, 0.0
        %230 = vst.msk [vmem:[#allocation2 + $0x100] sm:$0x3] %vm199, 0.0
        %231 = vst.msk [vmem:[#allocation2 + $0x108] sm:$0xff] %vm196, 0.0
        %232 = vst.msk [vmem:[#allocation2 + $0x110] sm:$0xff] %vm196, 0.0
        %233 = vst.msk [vmem:[#allocation2 + $0x118] sm:$0x3] %vm199, 0.0
        %234 = vst.msk [vmem:[#allocation2 + $0x120] sm:$0xff] %vm196, 0.0
        %235 = vst.msk [vmem:[#allocation2 + $0x128] sm:$0xff] %vm196, 0.0
        %236 = vst.msk [vmem:[#allocation2 + $0x130] sm:$0x3] %vm199, 0.0
        %237 = vst.msk [vmem:[#allocation2 + $0x138] sm:$0xff] %vm196, 0.0
        %238 = vst.msk [vmem:[#allocation2 + $0x140] sm:$0xff] %vm196, 0.0
        %239 = vst.msk [vmem:[#allocation2 + $0x148] sm:$0x3] %vm199, 0.0
        %240 = vst.msk [vmem:[#allocation2 + $0x150] sm:$0xff] %vm196, 0.0
        %241 = vst.msk [vmem:[#allocation2 + $0x158] sm:$0xff] %vm196, 0.0
        %242 = vst.msk [vmem:[#allocation2 + $0x160] sm:$0x3] %vm199, 0.0
        %243 = vst.msk [vmem:[#allocation2 + $0x168] sm:$0xff] %vm196, 0.0
        %244 = vst.msk [vmem:[#allocation2 + $0x170] sm:$0xff] %vm196, 0.0
        %245 = vst.msk [vmem:[#allocation2 + $0x178] sm:$0x3] %vm199, 0.0
        %246 = vst.msk [vmem:[#allocation2 + $0x180] sm:$0xff] %vm196, 0.0
        %247 = vst.msk [vmem:[#allocation2 + $0x188] sm:$0xff] %vm196, 0.0
        %248 = vst.msk [vmem:[#allocation2 + $0x190] sm:$0x3] %vm199, 0.0
        %249 = vst.msk [vmem:[#allocation2 + $0x198] sm:$0xff] %vm196, 0.0
        %250 = vst.msk [vmem:[#allocation2 + $0x1a0] sm:$0xff] %vm196, 0.0
        %251 = vst.msk [vmem:[#allocation2 + $0x1a8] sm:$0x3] %vm199, 0.0
        %vm252 = vcmask 64512
        %253 = vst.msk [vmem:[#allocation3] sm:$0xff] %vm252, 0.0
        %254 = vst.msk [vmem:[#allocation3 + $0x8] sm:$0xff] %vm252, 0.0
        %vm255 = vcmask 58368
        %256 = vst.msk [vmem:[#allocation3 + $0x10] sm:$0x3] %vm255, 0.0
        %257 = vst.msk [vmem:[#allocation3 + $0x18] sm:$0xff] %vm252, 0.0
        %258 = vst.msk [vmem:[#allocation3 + $0x20] sm:$0xff] %vm252, 0.0
        %259 = vst.msk [vmem:[#allocation3 + $0x28] sm:$0x3] %vm255, 0.0
        %260 = vst.msk [vmem:[#allocation3 + $0x30] sm:$0xff] %vm252, 0.0
        %261 = vst.msk [vmem:[#allocation3 + $0x38] sm:$0xff] %vm252, 0.0
        %262 = vst.msk [vmem:[#allocation3 + $0x40] sm:$0x3] %vm255, 0.0
        %263 = vst.msk [vmem:[#allocation3 + $0x48] sm:$0xff] %vm252, 0.0
        %264 = vst.msk [vmem:[#allocation3 + $0x50] sm:$0xff] %vm252, 0.0
        %265 = vst.msk [vmem:[#allocation3 + $0x58] sm:$0x3] %vm255, 0.0
        %266 = vst.msk [vmem:[#allocation3 + $0x60] sm:$0xff] %vm252, 0.0
        %267 = vst.msk [vmem:[#allocation3 + $0x68] sm:$0xff] %vm252, 0.0
        %268 = vst.msk [vmem:[#allocation3 + $0x70] sm:$0x3] %vm255, 0.0
        %269 = vst.msk [vmem:[#allocation3 + $0x78] sm:$0xff] %vm252, 0.0
        %270 = vst.msk [vmem:[#allocation3 + $0x80] sm:$0xff] %vm252, 0.0
        %271 = vst.msk [vmem:[#allocation3 + $0x88] sm:$0x3] %vm255, 0.0
        %272 = vst.msk [vmem:[#allocation3 + $0x90] sm:$0xff] %vm252, 0.0
        %273 = vst.msk [vmem:[#allocation3 + $0x98] sm:$0xff] %vm252, 0.0
        %274 = vst.msk [vmem:[#allocation3 + $0xa0] sm:$0x3] %vm255, 0.0
        %275 = vst.msk [vmem:[#allocation3 + $0xa8] sm:$0xff] %vm252, 0.0
        %276 = vst.msk [vmem:[#allocation3 + $0xb0] sm:$0xff] %vm252, 0.0
        %277 = vst.msk [vmem:[#allocation3 + $0xb8] sm:$0x3] %vm255, 0.0
        %278 = vst.msk [vmem:[#allocation3 + $0xc0] sm:$0xff] %vm252, 0.0
        %279 = vst.msk [vmem:[#allocation3 + $0xc8] sm:$0xff] %vm252, 0.0
        %280 = vst.msk [vmem:[#allocation3 + $0xd0] sm:$0x3] %vm255, 0.0
        %281 = vst.msk [vmem:[#allocation3 + $0xd8] sm:$0xff] %vm252, 0.0
        %282 = vst.msk [vmem:[#allocation3 + $0xe0] sm:$0xff] %vm252, 0.0
        %283 = vst.msk [vmem:[#allocation3 + $0xe8] sm:$0x3] %vm255, 0.0
        %284 = vst.msk [vmem:[#allocation3 + $0xf0] sm:$0xff] %vm252, 0.0
        %285 = vst.msk [vmem:[#allocation3 + $0xf8] sm:$0xff] %vm252, 0.0
        %286 = vst.msk [vmem:[#allocation3 + $0x100] sm:$0x3] %vm255, 0.0
        %287 = vst.msk [vmem:[#allocation3 + $0x108] sm:$0xff] %vm252, 0.0
        %288 = vst.msk [vmem:[#allocation3 + $0x110] sm:$0xff] %vm252, 0.0
        %289 = vst.msk [vmem:[#allocation3 + $0x118] sm:$0x3] %vm255, 0.0
        %290 = vst.msk [vmem:[#allocation3 + $0x120] sm:$0xff] %vm252, 0.0
        %291 = vst.msk [vmem:[#allocation3 + $0x128] sm:$0xff] %vm252, 0.0
        %292 = vst.msk [vmem:[#allocation3 + $0x130] sm:$0x3] %vm255, 0.0
        %293 = vst.msk [vmem:[#allocation3 + $0x138] sm:$0xff] %vm252, 0.0
        %294 = vst.msk [vmem:[#allocation3 + $0x140] sm:$0xff] %vm252, 0.0
        %295 = vst.msk [vmem:[#allocation3 + $0x148] sm:$0x3] %vm255, 0.0
        %296 = vst.msk [vmem:[#allocation3 + $0x150] sm:$0xff] %vm252, 0.0
        %297 = vst.msk [vmem:[#allocation3 + $0x158] sm:$0xff] %vm252, 0.0
        %298 = vst.msk [vmem:[#allocation3 + $0x160] sm:$0x3] %vm255, 0.0
        %299 = vst.msk [vmem:[#allocation3 + $0x168] sm:$0xff] %vm252, 0.0
        %300 = vst.msk [vmem:[#allocation3 + $0x170] sm:$0xff] %vm252, 0.0
        %301 = vst.msk [vmem:[#allocation3 + $0x178] sm:$0x3] %vm255, 0.0
        %302 = vst.msk [vmem:[#allocation3 + $0x180] sm:$0xff] %vm252, 0.0
        %303 = vst.msk [vmem:[#allocation3 + $0x188] sm:$0xff] %vm252, 0.0
        %304 = vst.msk [vmem:[#allocation3 + $0x190] sm:$0x3] %vm255, 0.0
        %305 = vst.msk [vmem:[#allocation3 + $0x198] sm:$0xff] %vm252, 0.0
        %306 = vst.msk [vmem:[#allocation3 + $0x1a0] sm:$0xff] %vm252, 0.0
        %307 = vst.msk [vmem:[#allocation3 + $0x1a8] sm:$0x3] %vm255, 0.0
        %v308 = vld [vmem:[%s195] sm:$0xff]
        %v309 = vld [vmem:[%s195 + $0x8] sm:$0xff]
        %v310 = vld [vmem:[%s195 + $0x10] sm:$0xff]
        %v311 = vld [vmem:[%s195 + $0x18] sm:$0xff]
        %v312 = vld [vmem:[%s195 + $0x20] sm:$0xff]
        %v313 = vld [vmem:[%s195 + $0x28] sm:$0xff]
        %v314 = vld [vmem:[%s195 + $0x30] sm:$0xff]
        %v315 = vld [vmem:[%s195 + $0x38] sm:$0xff]
        %v316 = vld [vmem:[%s195 + $0x40] sm:$0xff]
        %v317 = vld [vmem:[%s195 + $0x48] sm:$0xff]
        %v318 = vld [vmem:[%s195 + $0x50] sm:$0xff]
        %v319 = vld [vmem:[%s195 + $0x58] sm:$0xff]
        %v320 = vld [vmem:[%s195 + $0x60] sm:$0xff]
        %v321 = vld [vmem:[%s195 + $0x68] sm:$0xff]
        %v322 = vld [vmem:[%s195 + $0x70] sm:$0xff]
        %v323 = vld [vmem:[%s195 + $0x78] sm:$0xff]
        %v324 = vld [vmem:[%s195 + $0x80] sm:$0xff]
        %v325 = vld [vmem:[%s195 + $0x88] sm:$0xff]
        %v326 = vld [vmem:[%s195 + $0x90] sm:$0xff]
        %v327 = vld [vmem:[%s195 + $0x98] sm:$0xff]
        %v328 = vld [vmem:[%s195 + $0xa0] sm:$0xff]
        %v329 = vld [vmem:[%s195 + $0xa8] sm:$0xff]
        %v330 = vld [vmem:[%s195 + $0xb0] sm:$0xff]
        %v331 = vld [vmem:[%s195 + $0xb8] sm:$0xff]
        %v332 = vld [vmem:[%s195 + $0xc0] sm:$0xff]
        %v333 = vld [vmem:[%s195 + $0xc8] sm:$0xff]
        %v334 = vld [vmem:[%s195 + $0xd0] sm:$0xff]
        %v335 = vld [vmem:[%s195 + $0xd8] sm:$0xff]
        %v336 = vld [vmem:[%s195 + $0xe0] sm:$0xff]
        %v337 = vld [vmem:[%s195 + $0xe8] sm:$0xff]
        %v338 = vld [vmem:[%s195 + $0xf0] sm:$0xff]
        %v339 = vld [vmem:[%s195 + $0xf8] sm:$0xff]
        %s340 = scalar_lea.vmem [#allocation2], 24
        %341 = vst.msk [vmem:[%s340 + $0x1] sm:$0xff] %vm196, %v308
        %342 = vst.msk [vmem:[%s340 + $0x9] sm:$0xff] %vm196, %v309
        %343 = vst.msk [vmem:[%s340 + $0x19] sm:$0xff] %vm196, %v310
        %344 = vst.msk [vmem:[%s340 + $0x21] sm:$0xff] %vm196, %v311
        %345 = vst.msk [vmem:[%s340 + $0x31] sm:$0xff] %vm196, %v312
        %346 = vst.msk [vmem:[%s340 + $0x39] sm:$0xff] %vm196, %v313
        %347 = vst.msk [vmem:[%s340 + $0x49] sm:$0xff] %vm196, %v314
        %348 = vst.msk [vmem:[%s340 + $0x51] sm:$0xff] %vm196, %v315
        %349 = vst.msk [vmem:[%s340 + $0x61] sm:$0xff] %vm196, %v316
        %350 = vst.msk [vmem:[%s340 + $0x69] sm:$0xff] %vm196, %v317
        %351 = vst.msk [vmem:[%s340 + $0x79] sm:$0xff] %vm196, %v318
        %352 = vst.msk [vmem:[%s340 + $0x81] sm:$0xff] %vm196, %v319
        %353 = vst.msk [vmem:[%s340 + $0x91] sm:$0xff] %vm196, %v320
        %354 = vst.msk [vmem:[%s340 + $0x99] sm:$0xff] %vm196, %v321
        %355 = vst.msk [vmem:[%s340 + $0xa9] sm:$0xff] %vm196, %v322
        %356 = vst.msk [vmem:[%s340 + $0xb1] sm:$0xff] %vm196, %v323
        %357 = vst.msk [vmem:[%s340 + $0xc1] sm:$0xff] %vm196, %v324
        %358 = vst.msk [vmem:[%s340 + $0xc9] sm:$0xff] %vm196, %v325
        %359 = vst.msk [vmem:[%s340 + $0xd9] sm:$0xff] %vm196, %v326
        %360 = vst.msk [vmem:[%s340 + $0xe1] sm:$0xff] %vm196, %v327
        %361 = vst.msk [vmem:[%s340 + $0xf1] sm:$0xff] %vm196, %v328
        %362 = vst.msk [vmem:[%s340 + $0xf9] sm:$0xff] %vm196, %v329
        %363 = vst.msk [vmem:[%s340 + $0x109] sm:$0xff] %vm196, %v330
        %364 = vst.msk [vmem:[%s340 + $0x111] sm:$0xff] %vm196, %v331
        %365 = vst.msk [vmem:[%s340 + $0x121] sm:$0xff] %vm196, %v332
        %366 = vst.msk [vmem:[%s340 + $0x129] sm:$0xff] %vm196, %v333
        %367 = vst.msk [vmem:[%s340 + $0x139] sm:$0xff] %vm196, %v334
        %368 = vst.msk [vmem:[%s340 + $0x141] sm:$0xff] %vm196, %v335
        %369 = vst.msk [vmem:[%s340 + $0x151] sm:$0xff] %vm196, %v336
        %370 = vst.msk [vmem:[%s340 + $0x159] sm:$0xff] %vm196, %v337
        %371 = vst.msk [vmem:[%s340 + $0x169] sm:$0xff] %vm196, %v338
        %372 = vst.msk [vmem:[%s340 + $0x171] sm:$0xff] %vm196, %v339
        %v373 = vld [vmem:[%s3] sm:$0x7]
        %v374 = vld [vmem:[#allocation2] sm:$0xff]
        %v375 = vld [vmem:[#allocation2 + $0x8] sm:$0xff]
        %v376 = vld [vmem:[#allocation2 + $0x18] sm:$0xff]
        %v377 = vld [vmem:[#allocation2 + $0x20] sm:$0xff]
        %v378 = vld [vmem:[#allocation2 + $0x30] sm:$0xff]
        %v379 = vld [vmem:[#allocation2 + $0x38] sm:$0xff]
        %v380 = vld [vmem:[#allocation2 + $0x48] sm:$0xff]
        %v381 = vld [vmem:[#allocation2 + $0x50] sm:$0xff]
        %v382 = vld [vmem:[#allocation2 + $0x60] sm:$0xff]
        %v383 = vld [vmem:[#allocation2 + $0x68] sm:$0xff]
        %v384 = vld [vmem:[#allocation2 + $0x78] sm:$0xff]
        %v385 = vld [vmem:[#allocation2 + $0x80] sm:$0xff]
        %v386 = vld [vmem:[#allocation2 + $0x90] sm:$0xff]
        %v387 = vld [vmem:[#allocation2 + $0x98] sm:$0xff]
        %v388 = vld [vmem:[#allocation2 + $0xa8] sm:$0xff]
        %v389 = vld [vmem:[#allocation2 + $0xb0] sm:$0xff]
        %v390 = vld [vmem:[#allocation2 + $0xc0] sm:$0xff]
        %v391 = vld [vmem:[#allocation2 + $0xc8] sm:$0xff]
        %v392 = vld [vmem:[#allocation2 + $0xd8] sm:$0xff]
        %v393 = vld [vmem:[#allocation2 + $0xe0] sm:$0xff]
        %v394 = vld [vmem:[#allocation2 + $0xf0] sm:$0xff]
        %v395 = vld [vmem:[#allocation2 + $0xf8] sm:$0xff]
        %v396 = vld [vmem:[#allocation2 + $0x108] sm:$0xff]
        %v397 = vld [vmem:[#allocation2 + $0x110] sm:$0xff]
        %v398 = vld [vmem:[#allocation2 + $0x120] sm:$0xff]
        %v399 = vld [vmem:[#allocation2 + $0x128] sm:$0xff]
        %v400 = vld [vmem:[#allocation2 + $0x138] sm:$0xff]
        %v401 = vld [vmem:[#allocation2 + $0x140] sm:$0xff]
        %v402 = vld [vmem:[#allocation2 + $0x150] sm:$0xff]
        %v403 = vld [vmem:[#allocation2 + $0x158] sm:$0xff]
        %v404 = vld [vmem:[#allocation2 + $0x168] sm:$0xff]
        %v405 = vld [vmem:[#allocation2 + $0x170] sm:$0xff]
        %v406 = vld [vmem:[%s1] sm:$0xf]
        %v407 = vld [vmem:[#allocation2 + $0x1] sm:$0xff]
        %v408 = vld [vmem:[#allocation2 + $0x9] sm:$0xff]
        %v409 = vld [vmem:[#allocation2 + $0x19] sm:$0xff]
        %v410 = vld [vmem:[#allocation2 + $0x21] sm:$0xff]
        %v411 = vld [vmem:[#allocation2 + $0x31] sm:$0xff]
        %v412 = vld [vmem:[#allocation2 + $0x39] sm:$0xff]
        %v413 = vld [vmem:[#allocation2 + $0x49] sm:$0xff]
        %v414 = vld [vmem:[#allocation2 + $0x51] sm:$0xff]
        %v415 = vld [vmem:[#allocation2 + $0x61] sm:$0xff]
        %v416 = vld [vmem:[#allocation2 + $0x69] sm:$0xff]
        %v417 = vld [vmem:[#allocation2 + $0x79] sm:$0xff]
        %v418 = vld [vmem:[#allocation2 + $0x81] sm:$0xff]
        %v419 = vld [vmem:[#allocation2 + $0x91] sm:$0xff]
        %v420 = vld [vmem:[#allocation2 + $0x99] sm:$0xff]
        %v421 = vld [vmem:[#allocation2 + $0xa9] sm:$0xff]
        %v422 = vld [vmem:[#allocation2 + $0xb1] sm:$0xff]
        %v423 = vld [vmem:[#allocation2 + $0xc1] sm:$0xff]
        %v424 = vld [vmem:[#allocation2 + $0xc9] sm:$0xff]
        %v425 = vld [vmem:[#allocation2 + $0xd9] sm:$0xff]
        %v426 = vld [vmem:[#allocation2 + $0xe1] sm:$0xff]
        %v427 = vld [vmem:[#allocation2 + $0xf1] sm:$0xff]
        %v428 = vld [vmem:[#allocation2 + $0xf9] sm:$0xff]
        %v429 = vld [vmem:[#allocation2 + $0x109] sm:$0xff]
        %v430 = vld [vmem:[#allocation2 + $0x111] sm:$0xff]
        %v431 = vld [vmem:[#allocation2 + $0x121] sm:$0xff]
        %v432 = vld [vmem:[#allocation2 + $0x129] sm:$0xff]
        %v433 = vld [vmem:[#allocation2 + $0x139] sm:$0xff]
        %v434 = vld [vmem:[#allocation2 + $0x141] sm:$0xff]
        %v435 = vld [vmem:[#allocation2 + $0x151] sm:$0xff]
        %v436 = vld [vmem:[#allocation2 + $0x159] sm:$0xff]
        %v437 = vld [vmem:[#allocation2 + $0x169] sm:$0xff]
        %v438 = vld [vmem:[#allocation2 + $0x171] sm:$0xff]
        %s439 = scalar_lea.vmem %s1, 4
        %v440 = vld [vmem:[%s439] sm:$0xf]
        %v442 = vsel %vm196, %v407, 0
        %v445 = vsel %vm196, %v408, 0
        %v448 = vsel %vm196, %v409, 0
        %v451 = vsel %vm196, %v410, 0
        %v454 = vsel %vm196, %v411, 0
        %v457 = vsel %vm196, %v412, 0
        %v460 = vsel %vm196, %v413, 0
        %v463 = vsel %vm196, %v414, 0
        %v466 = vsel %vm196, %v415, 0
        %v469 = vsel %vm196, %v416, 0
        %v472 = vsel %vm196, %v417, 0
        %v475 = vsel %vm196, %v418, 0
        %v478 = vsel %vm196, %v419, 0
        %v481 = vsel %vm196, %v420, 0
        %v484 = vsel %vm196, %v421, 0
        %v487 = vsel %vm196, %v422, 0
        %v490 = vsel %vm196, %v423, 0
        %v493 = vsel %vm196, %v424, 0
        %v496 = vsel %vm196, %v425, 0
        %v499 = vsel %vm196, %v426, 0
        %v502 = vsel %vm196, %v427, 0
        %v505 = vsel %vm196, %v428, 0
        %v508 = vsel %vm196, %v429, 0
        %v511 = vsel %vm196, %v430, 0
        %v514 = vsel %vm196, %v431, 0
        %v517 = vsel %vm196, %v432, 0
        %v520 = vsel %vm196, %v433, 0
        %v523 = vsel %vm196, %v434, 0
        %v526 = vsel %vm196, %v435, 0
        %v529 = vsel %vm196, %v436, 0
        %v532 = vsel %vm196, %v437, 0
        %v535 = vsel %vm196, %v438, 0
        %vm537 = vcmask 1043456
        %v539 = vsel %vm537, %v440, 0
        %541 = vmatprep.subr.mxu0 0.0
        %542 = vmatpush1.msra.mxu0 0.0
        %543 = vmatprep.subr.mxu0 0.0
        %544 = vmatpush1.msra.mxu0 0.0
        %545 = vmatprep.subr.mxu0 0.0
        %546 = vmatpush1.msra.mxu0 0.0
        %547 = vmatprep.subr.mxu0 0.0
        %548 = vmatpush1.msra.mxu0 0.0
        %549 = vmatprep.subr.mxu0 0.0
        %550 = vmatpush1.msra.mxu0 0.0
        %551 = vmatprep.subr.mxu0 0.0
        %552 = vmatpush1.msra.mxu0 0.0
        %553 = vmatprep.subr.mxu0 0.0
        %554 = vmatpush1.msra.mxu0 0.0
        %555 = vmatprep.subr.mxu0 0.0
        %556 = vmatpush1.msra.mxu0 0.0
        %557 = vmatprep.subr.mxu0 0.0
        %558 = vmatpush1.msra.mxu0 0.0
        %559 = vmatprep.subr.mxu0 0.0
        %560 = vmatpush1.msra.mxu0 0.0
        %561 = vmatprep.subr.mxu0 0.0
        %562 = vmatpush1.msra.mxu0 0.0
        %563 = vmatprep.subr.mxu0 0.0
        %564 = vmatpush1.msra.mxu0 0.0
        %565 = vmatprep.subr.mxu0 0.0
        %566 = vmatpush1.msra.mxu0 0.0
        %567 = vmatprep.subr.mxu0 0.0
        %568 = vmatpush1.msra.mxu0 0.0
        %569 = vmatprep.subr.mxu0 0.0
        %570 = vmatpush1.msra.mxu0 0.0
        %571 = vmatprep.subr.mxu0 0.0
        %572 = vmatpush1.msra.mxu0 %v539
        %573 = vmatprep.subr.mxu0 0.0
        %574 = vmatpush2.msra.mxu0 0.0
        %575 = vmatprep.subr.mxu0 0.0
        %576 = vmatpush2.msra.mxu0 0.0
        %577 = vmatprep.subr.mxu0 0.0
        %578 = vmatpush2.msra.mxu0 0.0
        %579 = vmatprep.subr.mxu0 0.0
        %580 = vmatpush2.msra.mxu0 0.0
        %581 = vmatprep.subr.mxu0 0.0
        %582 = vmatpush2.msra.mxu0 0.0
        %583 = vmatprep.subr.mxu0 0.0
        %584 = vmatpush2.msra.mxu0 0.0
        %585 = vmatprep.subr.mxu0 0.0
        %586 = vmatpush2.msra.mxu0 0.0
        %587 = vmatprep.subr.mxu0 0.0
        %588 = vmatpush2.msra.mxu0 0.0
        %589 = vmatprep.subr.mxu0 0.0
        %590 = vmatpush2.msra.mxu0 0.0
        %591 = vmatprep.subr.mxu0 0.0
        %592 = vmatpush2.msra.mxu0 0.0
        %593 = vmatprep.subr.mxu0 0.0
        %594 = vmatpush2.msra.mxu0 0.0
        %595 = vmatprep.subr.mxu0 0.0
        %596 = vmatpush2.msra.mxu0 0.0
        %597 = vmatprep.subr.mxu0 0.0
        %598 = vmatpush2.msra.mxu0 0.0
        %599 = vmatprep.subr.mxu0 0.0
        %600 = vmatpush2.msra.mxu0 0.0
        %601 = vmatprep.subr.mxu0 0.0
        %602 = vmatpush2.msra.mxu0 0.0
        %603 = vmatprep.subr.mxu0 0.0
        %604 = vmatpush2.msra.mxu0 0.0
        %605 = vmatprep.mubr.f32.mxu0 0.0
        %606 = vmatmul.mubr.f32.gmra.mxu0 %v442
        %v607 = vpop.f32.mrf.mxu0
        %v608 = vadd.f32 0.0, %v607
        %v609 = vpop.f32.mrf.mxu0
        %610 = vmatprep.mubr.f32.mxu0 0.0
        %611 = vmatmul.mubr.f32.gmra.mxu0 %v445
        %v612 = vpop.f32.mrf.mxu0
        %v613 = vadd.f32 0.0, %v612
        %v614 = vpop.f32.mrf.mxu0
        %615 = vmatprep.mubr.f32.mxu0 0.0
        %616 = vmatmul.mubr.f32.gmra.mxu0 %v448
        %v617 = vpop.f32.mrf.mxu0
        %v618 = vadd.f32 0.0, %v617
        %v619 = vpop.f32.mrf.mxu0
        %620 = vmatprep.mubr.f32.mxu0 0.0
        %621 = vmatmul.mubr.f32.gmra.mxu0 %v451
        %v622 = vpop.f32.mrf.mxu0
        %v623 = vadd.f32 0.0, %v622
        %v624 = vpop.f32.mrf.mxu0
        %625 = vmatprep.mubr.f32.mxu0 0.0
        %626 = vmatmul.mubr.f32.gmra.mxu0 %v454
        %v627 = vpop.f32.mrf.mxu0
        %v628 = vadd.f32 0.0, %v627
        %v629 = vpop.f32.mrf.mxu0
        %630 = vmatprep.mubr.f32.mxu0 0.0
        %631 = vmatmul.mubr.f32.gmra.mxu0 %v457
        %v632 = vpop.f32.mrf.mxu0
        %v633 = vadd.f32 0.0, %v632
        %v634 = vpop.f32.mrf.mxu0
        %635 = vmatprep.mubr.f32.mxu0 0.0
        %636 = vmatmul.mubr.f32.gmra.mxu0 %v460
        %v637 = vpop.f32.mrf.mxu0
        %v638 = vadd.f32 0.0, %v637
        %v639 = vpop.f32.mrf.mxu0
        %640 = vmatprep.mubr.f32.mxu0 0.0
        %641 = vmatmul.mubr.f32.gmra.mxu0 %v463
        %v642 = vpop.f32.mrf.mxu0
        %v643 = vadd.f32 0.0, %v642
        %v644 = vpop.f32.mrf.mxu0
        %645 = vmatprep.mubr.f32.mxu0 0.0
        %646 = vmatmul.mubr.f32.gmra.mxu0 %v466
        %v647 = vpop.f32.mrf.mxu0
        %v648 = vadd.f32 0.0, %v647
        %v649 = vpop.f32.mrf.mxu0
        %650 = vmatprep.mubr.f32.mxu0 0.0
        %651 = vmatmul.mubr.f32.gmra.mxu0 %v469
        %v652 = vpop.f32.mrf.mxu0
        %v653 = vadd.f32 0.0, %v652
        %v654 = vpop.f32.mrf.mxu0
        %655 = vmatprep.mubr.f32.mxu0 0.0
        %656 = vmatmul.mubr.f32.gmra.mxu0 %v472
        %v657 = vpop.f32.mrf.mxu0
        %v658 = vadd.f32 0.0, %v657
        %v659 = vpop.f32.mrf.mxu0
        %660 = vmatprep.mubr.f32.mxu0 0.0
        %661 = vmatmul.mubr.f32.gmra.mxu0 %v475
        %v662 = vpop.f32.mrf.mxu0
        %v663 = vadd.f32 0.0, %v662
        %v664 = vpop.f32.mrf.mxu0
        %665 = vmatprep.mubr.f32.mxu0 0.0
        %666 = vmatmul.mubr.f32.gmra.mxu0 %v478
        %v667 = vpop.f32.mrf.mxu0
        %v668 = vadd.f32 0.0, %v667
        %v669 = vpop.f32.mrf.mxu0
        %670 = vmatprep.mubr.f32.mxu0 0.0
        %671 = vmatmul.mubr.f32.gmra.mxu0 %v481
        %v672 = vpop.f32.mrf.mxu0
        %v673 = vadd.f32 0.0, %v672
        %v674 = vpop.f32.mrf.mxu0
        %675 = vmatprep.mubr.f32.mxu0 0.0
        %676 = vmatmul.mubr.f32.gmra.mxu0 %v484
        %v677 = vpop.f32.mrf.mxu0
        %v678 = vadd.f32 0.0, %v677
        %v679 = vpop.f32.mrf.mxu0
        %680 = vmatprep.mubr.f32.mxu0 0.0
        %681 = vmatmul.mubr.f32.gmra.mxu0 %v487
        %v682 = vpop.f32.mrf.mxu0
        %v683 = vadd.f32 0.0, %v682
        %v684 = vpop.f32.mrf.mxu0
        %685 = vmatprep.mubr.f32.mxu0 0.0
        %686 = vmatmul.mubr.f32.gmra.mxu0 %v490
        %v687 = vpop.f32.mrf.mxu0
        %v688 = vadd.f32 0.0, %v687
        %v689 = vpop.f32.mrf.mxu0
        %690 = vmatprep.mubr.f32.mxu0 0.0
        %691 = vmatmul.mubr.f32.gmra.mxu0 %v493
        %v692 = vpop.f32.mrf.mxu0
        %v693 = vadd.f32 0.0, %v692
        %v694 = vpop.f32.mrf.mxu0
        %695 = vmatprep.mubr.f32.mxu0 0.0
        %696 = vmatmul.mubr.f32.gmra.mxu0 %v496
        %v697 = vpop.f32.mrf.mxu0
        %v698 = vadd.f32 0.0, %v697
        %v699 = vpop.f32.mrf.mxu0
        %700 = vmatprep.mubr.f32.mxu0 0.0
        %701 = vmatmul.mubr.f32.gmra.mxu0 %v499
        %v702 = vpop.f32.mrf.mxu0
        %v703 = vadd.f32 0.0, %v702
        %v704 = vpop.f32.mrf.mxu0
        %705 = vmatprep.mubr.f32.mxu0 0.0
        %706 = vmatmul.mubr.f32.gmra.mxu0 %v502
        %v707 = vpop.f32.mrf.mxu0
        %v708 = vadd.f32 0.0, %v707
        %v709 = vpop.f32.mrf.mxu0
        %710 = vmatprep.mubr.f32.mxu0 0.0
        %711 = vmatmul.mubr.f32.gmra.mxu0 %v505
        %v712 = vpop.f32.mrf.mxu0
        %v713 = vadd.f32 0.0, %v712
        %v714 = vpop.f32.mrf.mxu0
        %715 = vmatprep.mubr.f32.mxu0 0.0
        %716 = vmatmul.mubr.f32.gmra.mxu0 %v508
        %v717 = vpop.f32.mrf.mxu0
        %v718 = vadd.f32 0.0, %v717
        %v719 = vpop.f32.mrf.mxu0
        %720 = vmatprep.mubr.f32.mxu0 0.0
        %721 = vmatmul.mubr.f32.gmra.mxu0 %v511
        %v722 = vpop.f32.mrf.mxu0
        %v723 = vadd.f32 0.0, %v722
        %v724 = vpop.f32.mrf.mxu0
        %725 = vmatprep.mubr.f32.mxu0 0.0
        %726 = vmatmul.mubr.f32.gmra.mxu0 %v514
        %v727 = vpop.f32.mrf.mxu0
        %v728 = vadd.f32 0.0, %v727
        %v729 = vpop.f32.mrf.mxu0
        %730 = vmatprep.mubr.f32.mxu0 0.0
        %731 = vmatmul.mubr.f32.gmra.mxu0 %v517
        %v732 = vpop.f32.mrf.mxu0
        %v733 = vadd.f32 0.0, %v732
        %v734 = vpop.f32.mrf.mxu0
        %735 = vmatprep.mubr.f32.mxu0 0.0
        %736 = vmatmul.mubr.f32.gmra.mxu0 %v520
        %v737 = vpop.f32.mrf.mxu0
        %v738 = vadd.f32 0.0, %v737
        %v739 = vpop.f32.mrf.mxu0
        %740 = vmatprep.mubr.f32.mxu0 0.0
        %741 = vmatmul.mubr.f32.gmra.mxu0 %v523
        %v742 = vpop.f32.mrf.mxu0
        %v743 = vadd.f32 0.0, %v742
        %v744 = vpop.f32.mrf.mxu0
        %745 = vmatprep.mubr.f32.mxu0 0.0
        %746 = vmatmul.mubr.f32.gmra.mxu0 %v526
        %v747 = vpop.f32.mrf.mxu0
        %v748 = vadd.f32 0.0, %v747
        %v749 = vpop.f32.mrf.mxu0
        %750 = vmatprep.mubr.f32.mxu0 0.0
        %751 = vmatmul.mubr.f32.gmra.mxu0 %v529
        %v752 = vpop.f32.mrf.mxu0
        %v753 = vadd.f32 0.0, %v752
        %v754 = vpop.f32.mrf.mxu0
        %755 = vmatprep.mubr.f32.mxu0 0.0
        %756 = vmatmul.mubr.f32.gmra.mxu0 %v532
        %v757 = vpop.f32.mrf.mxu0
        %v758 = vadd.f32 0.0, %v757
        %v759 = vpop.f32.mrf.mxu0
        %760 = vmatprep.mubr.f32.mxu0 0.0
        %761 = vmatmul.mubr.f32.gmra.mxu0 %v535
        %v762 = vpop.f32.mrf.mxu0
        %v763 = vadd.f32 0.0, %v762
        %v764 = vpop.f32.mrf.mxu0
        %765 = vdwg.mxu0
        %v767 = vsel %vm196, %v374, 0
        %v770 = vsel %vm196, %v375, 0
        %v773 = vsel %vm196, %v376, 0
        %v776 = vsel %vm196, %v377, 0
        %v779 = vsel %vm196, %v378, 0
        %v782 = vsel %vm196, %v379, 0
        %v785 = vsel %vm196, %v380, 0
        %v788 = vsel %vm196, %v381, 0
        %v791 = vsel %vm196, %v382, 0
        %v794 = vsel %vm196, %v383, 0
        %v797 = vsel %vm196, %v384, 0
        %v800 = vsel %vm196, %v385, 0
        %v803 = vsel %vm196, %v386, 0
        %v806 = vsel %vm196, %v387, 0
        %v809 = vsel %vm196, %v388, 0
        %v812 = vsel %vm196, %v389, 0
        %v815 = vsel %vm196, %v390, 0
        %v818 = vsel %vm196, %v391, 0
        %v821 = vsel %vm196, %v392, 0
        %v824 = vsel %vm196, %v393, 0
        %v827 = vsel %vm196, %v394, 0
        %v830 = vsel %vm196, %v395, 0
        %v833 = vsel %vm196, %v396, 0
        %v836 = vsel %vm196, %v397, 0
        %v839 = vsel %vm196, %v398, 0
        %v842 = vsel %vm196, %v399, 0
        %v845 = vsel %vm196, %v400, 0
        %v848 = vsel %vm196, %v401, 0
        %v851 = vsel %vm196, %v402, 0
        %v854 = vsel %vm196, %v403, 0
        %v857 = vsel %vm196, %v404, 0
        %v860 = vsel %vm196, %v405, 0
        %v863 = vsel %vm537, %v406, 0
        %865 = vmatprep.subr.mxu0 0.0
        %866 = vmatpush1.msra.mxu0 0.0
        %867 = vmatprep.subr.mxu0 0.0
        %868 = vmatpush1.msra.mxu0 0.0
        %869 = vmatprep.subr.mxu0 0.0
        %870 = vmatpush1.msra.mxu0 0.0
        %871 = vmatprep.subr.mxu0 0.0
        %872 = vmatpush1.msra.mxu0 0.0
        %873 = vmatprep.subr.mxu0 0.0
        %874 = vmatpush1.msra.mxu0 0.0
        %875 = vmatprep.subr.mxu0 0.0
        %876 = vmatpush1.msra.mxu0 0.0
        %877 = vmatprep.subr.mxu0 0.0
        %878 = vmatpush1.msra.mxu0 0.0
        %879 = vmatprep.subr.mxu0 0.0
        %880 = vmatpush1.msra.mxu0 0.0
        %881 = vmatprep.subr.mxu0 0.0
        %882 = vmatpush1.msra.mxu0 0.0
        %883 = vmatprep.subr.mxu0 0.0
        %884 = vmatpush1.msra.mxu0 0.0
        %885 = vmatprep.subr.mxu0 0.0
        %886 = vmatpush1.msra.mxu0 0.0
        %887 = vmatprep.subr.mxu0 0.0
        %888 = vmatpush1.msra.mxu0 0.0
        %889 = vmatprep.subr.mxu0 0.0
        %890 = vmatpush1.msra.mxu0 0.0
        %891 = vmatprep.subr.mxu0 0.0
        %892 = vmatpush1.msra.mxu0 0.0
        %893 = vmatprep.subr.mxu0 0.0
        %894 = vmatpush1.msra.mxu0 0.0
        %895 = vmatprep.subr.mxu0 0.0
        %896 = vmatpush1.msra.mxu0 %v863
        %897 = vmatprep.subr.mxu0 0.0
        %898 = vmatpush2.msra.mxu0 0.0
        %899 = vmatprep.subr.mxu0 0.0
        %900 = vmatpush2.msra.mxu0 0.0
        %901 = vmatprep.subr.mxu0 0.0
        %902 = vmatpush2.msra.mxu0 0.0
        %903 = vmatprep.subr.mxu0 0.0
        %904 = vmatpush2.msra.mxu0 0.0
        %905 = vmatprep.subr.mxu0 0.0
        %906 = vmatpush2.msra.mxu0 0.0
        %907 = vmatprep.subr.mxu0 0.0
        %908 = vmatpush2.msra.mxu0 0.0
        %909 = vmatprep.subr.mxu0 0.0
        %910 = vmatpush2.msra.mxu0 0.0
        %911 = vmatprep.subr.mxu0 0.0
        %912 = vmatpush2.msra.mxu0 0.0
        %913 = vmatprep.subr.mxu0 0.0
        %914 = vmatpush2.msra.mxu0 0.0
        %915 = vmatprep.subr.mxu0 0.0
        %916 = vmatpush2.msra.mxu0 0.0
        %917 = vmatprep.subr.mxu0 0.0
        %918 = vmatpush2.msra.mxu0 0.0
        %919 = vmatprep.subr.mxu0 0.0
        %920 = vmatpush2.msra.mxu0 0.0
        %921 = vmatprep.subr.mxu0 0.0
        %922 = vmatpush2.msra.mxu0 0.0
        %923 = vmatprep.subr.mxu0 0.0
        %924 = vmatpush2.msra.mxu0 0.0
        %925 = vmatprep.subr.mxu0 0.0
        %926 = vmatpush2.msra.mxu0 0.0
        %927 = vmatprep.subr.mxu0 0.0
        %928 = vmatpush2.msra.mxu0 0.0
        %929 = vmatprep.mubr.f32.mxu0 0.0
        %930 = vmatmul.mubr.f32.gmra.mxu0 %v767
        %v931 = vpop.f32.mrf.mxu0
        %v932 = vadd.f32 %v608, %v931
        %v933 = vpop.f32.mrf.mxu0
        %934 = vmatprep.mubr.f32.mxu0 0.0
        %935 = vmatmul.mubr.f32.gmra.mxu0 %v770
        %v936 = vpop.f32.mrf.mxu0
        %v937 = vadd.f32 %v613, %v936
        %v938 = vpop.f32.mrf.mxu0
        %939 = vmatprep.mubr.f32.mxu0 0.0
        %940 = vmatmul.mubr.f32.gmra.mxu0 %v773
        %v941 = vpop.f32.mrf.mxu0
        %v942 = vadd.f32 %v618, %v941
        %v943 = vpop.f32.mrf.mxu0
        %944 = vmatprep.mubr.f32.mxu0 0.0
        %945 = vmatmul.mubr.f32.gmra.mxu0 %v776
        %v946 = vpop.f32.mrf.mxu0
        %v947 = vadd.f32 %v623, %v946
        %v948 = vpop.f32.mrf.mxu0
        %949 = vmatprep.mubr.f32.mxu0 0.0
        %950 = vmatmul.mubr.f32.gmra.mxu0 %v779
        %v951 = vpop.f32.mrf.mxu0
        %v952 = vadd.f32 %v628, %v951
        %v953 = vpop.f32.mrf.mxu0
        %954 = vmatprep.mubr.f32.mxu0 0.0
        %955 = vmatmul.mubr.f32.gmra.mxu0 %v782
        %v956 = vpop.f32.mrf.mxu0
        %v957 = vadd.f32 %v633, %v956
        %v958 = vpop.f32.mrf.mxu0
        %959 = vmatprep.mubr.f32.mxu0 0.0
        %960 = vmatmul.mubr.f32.gmra.mxu0 %v785
        %v961 = vpop.f32.mrf.mxu0
        %v962 = vadd.f32 %v638, %v961
        %v963 = vpop.f32.mrf.mxu0
        %964 = vmatprep.mubr.f32.mxu0 0.0
        %965 = vmatmul.mubr.f32.gmra.mxu0 %v788
        %v966 = vpop.f32.mrf.mxu0
        %v967 = vadd.f32 %v643, %v966
        %v968 = vpop.f32.mrf.mxu0
        %969 = vmatprep.mubr.f32.mxu0 0.0
        %970 = vmatmul.mubr.f32.gmra.mxu0 %v791
        %v971 = vpop.f32.mrf.mxu0
        %v972 = vadd.f32 %v648, %v971
        %v973 = vpop.f32.mrf.mxu0
        %974 = vmatprep.mubr.f32.mxu0 0.0
        %975 = vmatmul.mubr.f32.gmra.mxu0 %v794
        %v976 = vpop.f32.mrf.mxu0
        %v977 = vadd.f32 %v653, %v976
        %v978 = vpop.f32.mrf.mxu0
        %979 = vmatprep.mubr.f32.mxu0 0.0
        %980 = vmatmul.mubr.f32.gmra.mxu0 %v797
        %v981 = vpop.f32.mrf.mxu0
        %v982 = vadd.f32 %v658, %v981
        %v983 = vpop.f32.mrf.mxu0
        %984 = vmatprep.mubr.f32.mxu0 0.0
        %985 = vmatmul.mubr.f32.gmra.mxu0 %v800
        %v986 = vpop.f32.mrf.mxu0
        %v987 = vadd.f32 %v663, %v986
        %v988 = vpop.f32.mrf.mxu0
        %989 = vmatprep.mubr.f32.mxu0 0.0
        %990 = vmatmul.mubr.f32.gmra.mxu0 %v803
        %v991 = vpop.f32.mrf.mxu0
        %v992 = vadd.f32 %v668, %v991
        %v993 = vpop.f32.mrf.mxu0
        %994 = vmatprep.mubr.f32.mxu0 0.0
        %995 = vmatmul.mubr.f32.gmra.mxu0 %v806
        %v996 = vpop.f32.mrf.mxu0
        %v997 = vadd.f32 %v673, %v996
        %v998 = vpop.f32.mrf.mxu0
        %999 = vmatprep.mubr.f32.mxu0 0.0
        %1000 = vmatmul.mubr.f32.gmra.mxu0 %v809
        %v1001 = vpop.f32.mrf.mxu0
        %v1002 = vadd.f32 %v678, %v1001
        %v1003 = vpop.f32.mrf.mxu0
        %1004 = vmatprep.mubr.f32.mxu0 0.0
        %1005 = vmatmul.mubr.f32.gmra.mxu0 %v812
        %v1006 = vpop.f32.mrf.mxu0
        %v1007 = vadd.f32 %v683, %v1006
        %v1008 = vpop.f32.mrf.mxu0
        %1009 = vmatprep.mubr.f32.mxu0 0.0
        %1010 = vmatmul.mubr.f32.gmra.mxu0 %v815
        %v1011 = vpop.f32.mrf.mxu0
        %v1012 = vadd.f32 %v688, %v1011
        %v1013 = vpop.f32.mrf.mxu0
        %1014 = vmatprep.mubr.f32.mxu0 0.0
        %1015 = vmatmul.mubr.f32.gmra.mxu0 %v818
        %v1016 = vpop.f32.mrf.mxu0
        %v1017 = vadd.f32 %v693, %v1016
        %v1018 = vpop.f32.mrf.mxu0
        %1019 = vmatprep.mubr.f32.mxu0 0.0
        %1020 = vmatmul.mubr.f32.gmra.mxu0 %v821
        %v1021 = vpop.f32.mrf.mxu0
        %v1022 = vadd.f32 %v698, %v1021
        %v1023 = vpop.f32.mrf.mxu0
        %1024 = vmatprep.mubr.f32.mxu0 0.0
        %1025 = vmatmul.mubr.f32.gmra.mxu0 %v824
        %v1026 = vpop.f32.mrf.mxu0
        %v1027 = vadd.f32 %v703, %v1026
        %v1028 = vpop.f32.mrf.mxu0
        %1029 = vmatprep.mubr.f32.mxu0 0.0
        %1030 = vmatmul.mubr.f32.gmra.mxu0 %v827
        %v1031 = vpop.f32.mrf.mxu0
        %v1032 = vadd.f32 %v708, %v1031
        %v1033 = vpop.f32.mrf.mxu0
        %1034 = vmatprep.mubr.f32.mxu0 0.0
        %1035 = vmatmul.mubr.f32.gmra.mxu0 %v830
        %v1036 = vpop.f32.mrf.mxu0
        %v1037 = vadd.f32 %v713, %v1036
        %v1038 = vpop.f32.mrf.mxu0
        %1039 = vmatprep.mubr.f32.mxu0 0.0
        %1040 = vmatmul.mubr.f32.gmra.mxu0 %v833
        %v1041 = vpop.f32.mrf.mxu0
        %v1042 = vadd.f32 %v718, %v1041
        %v1043 = vpop.f32.mrf.mxu0
        %1044 = vmatprep.mubr.f32.mxu0 0.0
        %1045 = vmatmul.mubr.f32.gmra.mxu0 %v836
        %v1046 = vpop.f32.mrf.mxu0
        %v1047 = vadd.f32 %v723, %v1046
        %v1048 = vpop.f32.mrf.mxu0
        %1049 = vmatprep.mubr.f32.mxu0 0.0
        %1050 = vmatmul.mubr.f32.gmra.mxu0 %v839
        %v1051 = vpop.f32.mrf.mxu0
        %v1052 = vadd.f32 %v728, %v1051
        %v1053 = vpop.f32.mrf.mxu0
        %1054 = vmatprep.mubr.f32.mxu0 0.0
        %1055 = vmatmul.mubr.f32.gmra.mxu0 %v842
        %v1056 = vpop.f32.mrf.mxu0
        %v1057 = vadd.f32 %v733, %v1056
        %v1058 = vpop.f32.mrf.mxu0
        %1059 = vmatprep.mubr.f32.mxu0 0.0
        %1060 = vmatmul.mubr.f32.gmra.mxu0 %v845
        %v1061 = vpop.f32.mrf.mxu0
        %v1062 = vadd.f32 %v738, %v1061
        %v1063 = vpop.f32.mrf.mxu0
        %1064 = vmatprep.mubr.f32.mxu0 0.0
        %1065 = vmatmul.mubr.f32.gmra.mxu0 %v848
        %v1066 = vpop.f32.mrf.mxu0
        %v1067 = vadd.f32 %v743, %v1066
        %v1068 = vpop.f32.mrf.mxu0
        %1069 = vmatprep.mubr.f32.mxu0 0.0
        %1070 = vmatmul.mubr.f32.gmra.mxu0 %v851
        %v1071 = vpop.f32.mrf.mxu0
        %v1072 = vadd.f32 %v748, %v1071
        %v1073 = vpop.f32.mrf.mxu0
        %1074 = vmatprep.mubr.f32.mxu0 0.0
        %1075 = vmatmul.mubr.f32.gmra.mxu0 %v854
        %v1076 = vpop.f32.mrf.mxu0
        %v1077 = vadd.f32 %v753, %v1076
        %v1078 = vpop.f32.mrf.mxu0
        %1079 = vmatprep.mubr.f32.mxu0 0.0
        %1080 = vmatmul.mubr.f32.gmra.mxu0 %v857
        %v1081 = vpop.f32.mrf.mxu0
        %v1082 = vadd.f32 %v758, %v1081
        %v1083 = vpop.f32.mrf.mxu0
        %1084 = vmatprep.mubr.f32.mxu0 0.0
        %1085 = vmatmul.mubr.f32.gmra.mxu0 %v860
        %v1086 = vpop.f32.mrf.mxu0
        %v1087 = vadd.f32 %v763, %v1086
        %v1088 = vpop.f32.mrf.mxu0
        %1089 = vdwg.mxu0
        %v1090 = vld [vmem:[#allocation2 + $0x2] sm:$0xff]
        %v1091 = vld [vmem:[#allocation2 + $0xa] sm:$0xff]
        %v1092 = vld [vmem:[#allocation2 + $0x1a] sm:$0xff]
        %v1093 = vld [vmem:[#allocation2 + $0x22] sm:$0xff]
        %v1094 = vld [vmem:[#allocation2 + $0x32] sm:$0xff]
        %v1095 = vld [vmem:[#allocation2 + $0x3a] sm:$0xff]
        %v1096 = vld [vmem:[#allocation2 + $0x4a] sm:$0xff]
        %v1097 = vld [vmem:[#allocation2 + $0x52] sm:$0xff]
        %v1098 = vld [vmem:[#allocation2 + $0x62] sm:$0xff]
        %v1099 = vld [vmem:[#allocation2 + $0x6a] sm:$0xff]
        %v1100 = vld [vmem:[#allocation2 + $0x7a] sm:$0xff]
        %v1101 = vld [vmem:[#allocation2 + $0x82] sm:$0xff]
        %v1102 = vld [vmem:[#allocation2 + $0x92] sm:$0xff]
        %v1103 = vld [vmem:[#allocation2 + $0x9a] sm:$0xff]
        %v1104 = vld [vmem:[#allocation2 + $0xaa] sm:$0xff]
        %v1105 = vld [vmem:[#allocation2 + $0xb2] sm:$0xff]
        %v1106 = vld [vmem:[#allocation2 + $0xc2] sm:$0xff]
        %v1107 = vld [vmem:[#allocation2 + $0xca] sm:$0xff]
        %v1108 = vld [vmem:[#allocation2 + $0xda] sm:$0xff]
        %v1109 = vld [vmem:[#allocation2 + $0xe2] sm:$0xff]
        %v1110 = vld [vmem:[#allocation2 + $0xf2] sm:$0xff]
        %v1111 = vld [vmem:[#allocation2 + $0xfa] sm:$0xff]
        %v1112 = vld [vmem:[#allocation2 + $0x10a] sm:$0xff]
        %v1113 = vld [vmem:[#allocation2 + $0x112] sm:$0xff]
        %v1114 = vld [vmem:[#allocation2 + $0x122] sm:$0xff]
        %v1115 = vld [vmem:[#allocation2 + $0x12a] sm:$0xff]
        %v1116 = vld [vmem:[#allocation2 + $0x13a] sm:$0xff]
        %v1117 = vld [vmem:[#allocation2 + $0x142] sm:$0xff]
        %v1118 = vld [vmem:[#allocation2 + $0x152] sm:$0xff]
        %v1119 = vld [vmem:[#allocation2 + $0x15a] sm:$0xff]
        %v1120 = vld [vmem:[#allocation2 + $0x16a] sm:$0xff]
        %v1121 = vld [vmem:[#allocation2 + $0x172] sm:$0xff]
        %s1122 = scalar_lea.vmem %s1, 8
        %v1123 = vld [vmem:[%s1122] sm:$0xf]
        %v1125 = vsel %vm196, %v1090, 0
        %v1128 = vsel %vm196, %v1091, 0
        %v1131 = vsel %vm196, %v1092, 0
        %v1134 = vsel %vm196, %v1093, 0
        %v1137 = vsel %vm196, %v1094, 0
        %v1140 = vsel %vm196, %v1095, 0
        %v1143 = vsel %vm196, %v1096, 0
        %v1146 = vsel %vm196, %v1097, 0
        %v1149 = vsel %vm196, %v1098, 0
        %v1152 = vsel %vm196, %v1099, 0
        %v1155 = vsel %vm196, %v1100, 0
        %v1158 = vsel %vm196, %v1101, 0
        %v1161 = vsel %vm196, %v1102, 0
        %v1164 = vsel %vm196, %v1103, 0
        %v1167 = vsel %vm196, %v1104, 0
        %v1170 = vsel %vm196, %v1105, 0
        %v1173 = vsel %vm196, %v1106, 0
        %v1176 = vsel %vm196, %v1107, 0
        %v1179 = vsel %vm196, %v1108, 0
        %v1182 = vsel %vm196, %v1109, 0
        %v1185 = vsel %vm196, %v1110, 0
        %v1188 = vsel %vm196, %v1111, 0
        %v1191 = vsel %vm196, %v1112, 0
        %v1194 = vsel %vm196, %v1113, 0
        %v1197 = vsel %vm196, %v1114, 0
        %v1200 = vsel %vm196, %v1115, 0
        %v1203 = vsel %vm196, %v1116, 0
        %v1206 = vsel %vm196, %v1117, 0
        %v1209 = vsel %vm196, %v1118, 0
        %v1212 = vsel %vm196, %v1119, 0
        %v1215 = vsel %vm196, %v1120, 0
        %v1218 = vsel %vm196, %v1121, 0
        %v1221 = vsel %vm537, %v1123, 0
        %1223 = vmatprep.subr.mxu0 0.0
        %1224 = vmatpush1.msra.mxu0 0.0
        %1225 = vmatprep.subr.mxu0 0.0
        %1226 = vmatpush1.msra.mxu0 0.0
        %1227 = vmatprep.subr.mxu0 0.0
        %1228 = vmatpush1.msra.mxu0 0.0
        %1229 = vmatprep.subr.mxu0 0.0
        %1230 = vmatpush1.msra.mxu0 0.0
        %1231 = vmatprep.subr.mxu0 0.0
        %1232 = vmatpush1.msra.mxu0 0.0
        %1233 = vmatprep.subr.mxu0 0.0
        %1234 = vmatpush1.msra.mxu0 0.0
        %1235 = vmatprep.subr.mxu0 0.0
        %1236 = vmatpush1.msra.mxu0 0.0
        %1237 = vmatprep.subr.mxu0 0.0
        %1238 = vmatpush1.msra.mxu0 0.0
        %1239 = vmatprep.subr.mxu0 0.0
        %1240 = vmatpush1.msra.mxu0 0.0
        %1241 = vmatprep.subr.mxu0 0.0
        %1242 = vmatpush1.msra.mxu0 0.0
        %1243 = vmatprep.subr.mxu0 0.0
        %1244 = vmatpush1.msra.mxu0 0.0
        %1245 = vmatprep.subr.mxu0 0.0
        %1246 = vmatpush1.msra.mxu0 0.0
        %1247 = vmatprep.subr.mxu0 0.0
        %1248 = vmatpush1.msra.mxu0 0.0
        %1249 = vmatprep.subr.mxu0 0.0
        %1250 = vmatpush1.msra.mxu0 0.0
        %1251 = vmatprep.subr.mxu0 0.0
        %1252 = vmatpush1.msra.mxu0 0.0
        %1253 = vmatprep.subr.mxu0 0.0
        %1254 = vmatpush1.msra.mxu0 %v1221
        %1255 = vmatprep.subr.mxu0 0.0
        %1256 = vmatpush2.msra.mxu0 0.0
        %1257 = vmatprep.subr.mxu0 0.0
        %1258 = vmatpush2.msra.mxu0 0.0
        %1259 = vmatprep.subr.mxu0 0.0
        %1260 = vmatpush2.msra.mxu0 0.0
        %1261 = vmatprep.subr.mxu0 0.0
        %1262 = vmatpush2.msra.mxu0 0.0
        %1263 = vmatprep.subr.mxu0 0.0
        %1264 = vmatpush2.msra.mxu0 0.0
        %1265 = vmatprep.subr.mxu0 0.0
        %1266 = vmatpush2.msra.mxu0 0.0
        %1267 = vmatprep.subr.mxu0 0.0
        %1268 = vmatpush2.msra.mxu0 0.0
        %1269 = vmatprep.subr.mxu0 0.0
        %1270 = vmatpush2.msra.mxu0 0.0
        %1271 = vmatprep.subr.mxu0 0.0
        %1272 = vmatpush2.msra.mxu0 0.0
        %1273 = vmatprep.subr.mxu0 0.0
        %1274 = vmatpush2.msra.mxu0 0.0
        %1275 = vmatprep.subr.mxu0 0.0
        %1276 = vmatpush2.msra.mxu0 0.0
        %1277 = vmatprep.subr.mxu0 0.0
        %1278 = vmatpush2.msra.mxu0 0.0
        %1279 = vmatprep.subr.mxu0 0.0
        %1280 = vmatpush2.msra.mxu0 0.0
        %1281 = vmatprep.subr.mxu0 0.0
        %1282 = vmatpush2.msra.mxu0 0.0
        %1283 = vmatprep.subr.mxu0 0.0
        %1284 = vmatpush2.msra.mxu0 0.0
        %1285 = vmatprep.subr.mxu0 0.0
        %1286 = vmatpush2.msra.mxu0 0.0
        %1287 = vmatprep.mubr.f32.mxu0 0.0
        %1288 = vmatmul.mubr.f32.gmra.mxu0 %v1125
        %v1289 = vpop.f32.mrf.mxu0
        %v1290 = vadd.f32 0.0, %v1289
        %v1291 = vpop.f32.mrf.mxu0
        %1292 = vmatprep.mubr.f32.mxu0 0.0
        %1293 = vmatmul.mubr.f32.gmra.mxu0 %v1128
        %v1294 = vpop.f32.mrf.mxu0
        %v1295 = vadd.f32 0.0, %v1294
        %v1296 = vpop.f32.mrf.mxu0
        %1297 = vmatprep.mubr.f32.mxu0 0.0
        %1298 = vmatmul.mubr.f32.gmra.mxu0 %v1131
        %v1299 = vpop.f32.mrf.mxu0
        %v1300 = vadd.f32 0.0, %v1299
        %v1301 = vpop.f32.mrf.mxu0
        %1302 = vmatprep.mubr.f32.mxu0 0.0
        %1303 = vmatmul.mubr.f32.gmra.mxu0 %v1134
        %v1304 = vpop.f32.mrf.mxu0
        %v1305 = vadd.f32 0.0, %v1304
        %v1306 = vpop.f32.mrf.mxu0
        %1307 = vmatprep.mubr.f32.mxu0 0.0
        %1308 = vmatmul.mubr.f32.gmra.mxu0 %v1137
        %v1309 = vpop.f32.mrf.mxu0
        %v1310 = vadd.f32 0.0, %v1309
        %v1311 = vpop.f32.mrf.mxu0
        %1312 = vmatprep.mubr.f32.mxu0 0.0
        %1313 = vmatmul.mubr.f32.gmra.mxu0 %v1140
        %v1314 = vpop.f32.mrf.mxu0
        %v1315 = vadd.f32 0.0, %v1314
        %v1316 = vpop.f32.mrf.mxu0
        %1317 = vmatprep.mubr.f32.mxu0 0.0
        %1318 = vmatmul.mubr.f32.gmra.mxu0 %v1143
        %v1319 = vpop.f32.mrf.mxu0
        %v1320 = vadd.f32 0.0, %v1319
        %v1321 = vpop.f32.mrf.mxu0
        %1322 = vmatprep.mubr.f32.mxu0 0.0
        %1323 = vmatmul.mubr.f32.gmra.mxu0 %v1146
        %v1324 = vpop.f32.mrf.mxu0
        %v1325 = vadd.f32 0.0, %v1324
        %v1326 = vpop.f32.mrf.mxu0
        %1327 = vmatprep.mubr.f32.mxu0 0.0
        %1328 = vmatmul.mubr.f32.gmra.mxu0 %v1149
        %v1329 = vpop.f32.mrf.mxu0
        %v1330 = vadd.f32 0.0, %v1329
        %v1331 = vpop.f32.mrf.mxu0
        %1332 = vmatprep.mubr.f32.mxu0 0.0
        %1333 = vmatmul.mubr.f32.gmra.mxu0 %v1152
        %v1334 = vpop.f32.mrf.mxu0
        %v1335 = vadd.f32 0.0, %v1334
        %v1336 = vpop.f32.mrf.mxu0
        %1337 = vmatprep.mubr.f32.mxu0 0.0
        %1338 = vmatmul.mubr.f32.gmra.mxu0 %v1155
        %v1339 = vpop.f32.mrf.mxu0
        %v1340 = vadd.f32 0.0, %v1339
        %v1341 = vpop.f32.mrf.mxu0
        %1342 = vmatprep.mubr.f32.mxu0 0.0
        %1343 = vmatmul.mubr.f32.gmra.mxu0 %v1158
        %v1344 = vpop.f32.mrf.mxu0
        %v1345 = vadd.f32 0.0, %v1344
        %v1346 = vpop.f32.mrf.mxu0
        %1347 = vmatprep.mubr.f32.mxu0 0.0
        %1348 = vmatmul.mubr.f32.gmra.mxu0 %v1161
        %v1349 = vpop.f32.mrf.mxu0
        %v1350 = vadd.f32 0.0, %v1349
        %v1351 = vpop.f32.mrf.mxu0
        %1352 = vmatprep.mubr.f32.mxu0 0.0
        %1353 = vmatmul.mubr.f32.gmra.mxu0 %v1164
        %v1354 = vpop.f32.mrf.mxu0
        %v1355 = vadd.f32 0.0, %v1354
        %v1356 = vpop.f32.mrf.mxu0
        %1357 = vmatprep.mubr.f32.mxu0 0.0
        %1358 = vmatmul.mubr.f32.gmra.mxu0 %v1167
        %v1359 = vpop.f32.mrf.mxu0
        %v1360 = vadd.f32 0.0, %v1359
        %v1361 = vpop.f32.mrf.mxu0
        %1362 = vmatprep.mubr.f32.mxu0 0.0
        %1363 = vmatmul.mubr.f32.gmra.mxu0 %v1170
        %v1364 = vpop.f32.mrf.mxu0
        %v1365 = vadd.f32 0.0, %v1364
        %v1366 = vpop.f32.mrf.mxu0
        %1367 = vmatprep.mubr.f32.mxu0 0.0
        %1368 = vmatmul.mubr.f32.gmra.mxu0 %v1173
        %v1369 = vpop.f32.mrf.mxu0
        %v1370 = vadd.f32 0.0, %v1369
        %v1371 = vpop.f32.mrf.mxu0
        %1372 = vmatprep.mubr.f32.mxu0 0.0
        %1373 = vmatmul.mubr.f32.gmra.mxu0 %v1176
        %v1374 = vpop.f32.mrf.mxu0
        %v1375 = vadd.f32 0.0, %v1374
        %v1376 = vpop.f32.mrf.mxu0
        %1377 = vmatprep.mubr.f32.mxu0 0.0
        %1378 = vmatmul.mubr.f32.gmra.mxu0 %v1179
        %v1379 = vpop.f32.mrf.mxu0
        %v1380 = vadd.f32 0.0, %v1379
        %v1381 = vpop.f32.mrf.mxu0
        %1382 = vmatprep.mubr.f32.mxu0 0.0
        %1383 = vmatmul.mubr.f32.gmra.mxu0 %v1182
        %v1384 = vpop.f32.mrf.mxu0
        %v1385 = vadd.f32 0.0, %v1384
        %v1386 = vpop.f32.mrf.mxu0
        %1387 = vmatprep.mubr.f32.mxu0 0.0
        %1388 = vmatmul.mubr.f32.gmra.mxu0 %v1185
        %v1389 = vpop.f32.mrf.mxu0
        %v1390 = vadd.f32 0.0, %v1389
        %v1391 = vpop.f32.mrf.mxu0
        %1392 = vmatprep.mubr.f32.mxu0 0.0
        %1393 = vmatmul.mubr.f32.gmra.mxu0 %v1188
        %v1394 = vpop.f32.mrf.mxu0
        %v1395 = vadd.f32 0.0, %v1394
        %v1396 = vpop.f32.mrf.mxu0
        %1397 = vmatprep.mubr.f32.mxu0 0.0
        %1398 = vmatmul.mubr.f32.gmra.mxu0 %v1191
        %v1399 = vpop.f32.mrf.mxu0
        %v1400 = vadd.f32 0.0, %v1399
        %v1401 = vpop.f32.mrf.mxu0
        %1402 = vmatprep.mubr.f32.mxu0 0.0
        %1403 = vmatmul.mubr.f32.gmra.mxu0 %v1194
        %v1404 = vpop.f32.mrf.mxu0
        %v1405 = vadd.f32 0.0, %v1404
        %v1406 = vpop.f32.mrf.mxu0
        %1407 = vmatprep.mubr.f32.mxu0 0.0
        %1408 = vmatmul.mubr.f32.gmra.mxu0 %v1197
        %v1409 = vpop.f32.mrf.mxu0
        %v1410 = vadd.f32 0.0, %v1409
        %v1411 = vpop.f32.mrf.mxu0
        %1412 = vmatprep.mubr.f32.mxu0 0.0
        %1413 = vmatmul.mubr.f32.gmra.mxu0 %v1200
        %v1414 = vpop.f32.mrf.mxu0
        %v1415 = vadd.f32 0.0, %v1414
        %v1416 = vpop.f32.mrf.mxu0
        %1417 = vmatprep.mubr.f32.mxu0 0.0
        %1418 = vmatmul.mubr.f32.gmra.mxu0 %v1203
        %v1419 = vpop.f32.mrf.mxu0
        %v1420 = vadd.f32 0.0, %v1419
        %v1421 = vpop.f32.mrf.mxu0
        %1422 = vmatprep.mubr.f32.mxu0 0.0
        %1423 = vmatmul.mubr.f32.gmra.mxu0 %v1206
        %v1424 = vpop.f32.mrf.mxu0
        %v1425 = vadd.f32 0.0, %v1424
        %v1426 = vpop.f32.mrf.mxu0
        %1427 = vmatprep.mubr.f32.mxu0 0.0
        %1428 = vmatmul.mubr.f32.gmra.mxu0 %v1209
        %v1429 = vpop.f32.mrf.mxu0
        %v1430 = vadd.f32 0.0, %v1429
        %v1431 = vpop.f32.mrf.mxu0
        %1432 = vmatprep.mubr.f32.mxu0 0.0
        %1433 = vmatmul.mubr.f32.gmra.mxu0 %v1212
        %v1434 = vpop.f32.mrf.mxu0
        %v1435 = vadd.f32 0.0, %v1434
        %v1436 = vpop.f32.mrf.mxu0
        %1437 = vmatprep.mubr.f32.mxu0 0.0
        %1438 = vmatmul.mubr.f32.gmra.mxu0 %v1215
        %v1439 = vpop.f32.mrf.mxu0
        %v1440 = vadd.f32 0.0, %v1439
        %v1441 = vpop.f32.mrf.mxu0
        %1442 = vmatprep.mubr.f32.mxu0 0.0
        %1443 = vmatmul.mubr.f32.gmra.mxu0 %v1218
        %v1444 = vpop.f32.mrf.mxu0
        %v1445 = vadd.f32 0.0, %v1444
        %v1446 = vpop.f32.mrf.mxu0
        %1447 = vdwg.mxu0
        %v1448 = vadd.f32 %v932, %v1290
        %v1449 = vadd.f32 %v937, %v1295
        %v1450 = vadd.f32 %v942, %v1300
        %v1451 = vadd.f32 %v947, %v1305
        %v1452 = vadd.f32 %v952, %v1310
        %v1453 = vadd.f32 %v957, %v1315
        %v1454 = vadd.f32 %v962, %v1320
        %v1455 = vadd.f32 %v967, %v1325
        %v1456 = vadd.f32 %v972, %v1330
        %v1457 = vadd.f32 %v977, %v1335
        %v1458 = vadd.f32 %v982, %v1340
        %v1459 = vadd.f32 %v987, %v1345
        %v1460 = vadd.f32 %v992, %v1350
        %v1461 = vadd.f32 %v997, %v1355
        %v1462 = vadd.f32 %v1002, %v1360
        %v1463 = vadd.f32 %v1007, %v1365
        %v1464 = vadd.f32 %v1012, %v1370
        %v1465 = vadd.f32 %v1017, %v1375
        %v1466 = vadd.f32 %v1022, %v1380
        %v1467 = vadd.f32 %v1027, %v1385
        %v1468 = vadd.f32 %v1032, %v1390
        %v1469 = vadd.f32 %v1037, %v1395
        %v1470 = vadd.f32 %v1042, %v1400
        %v1471 = vadd.f32 %v1047, %v1405
        %v1472 = vadd.f32 %v1052, %v1410
        %v1473 = vadd.f32 %v1057, %v1415
        %v1474 = vadd.f32 %v1062, %v1420
        %v1475 = vadd.f32 %v1067, %v1425
        %v1476 = vadd.f32 %v1072, %v1430
        %v1477 = vadd.f32 %v1077, %v1435
        %v1478 = vadd.f32 %v1082, %v1440
        %v1479 = vadd.f32 %v1087, %v1445
        %v1480 = vld [vmem:[%s340] sm:$0xff]
        %v1481 = vld [vmem:[%s340 + $0x8] sm:$0xff]
        %v1482 = vld [vmem:[%s340 + $0x18] sm:$0xff]
        %v1483 = vld [vmem:[%s340 + $0x20] sm:$0xff]
        %v1484 = vld [vmem:[%s340 + $0x30] sm:$0xff]
        %v1485 = vld [vmem:[%s340 + $0x38] sm:$0xff]
        %v1486 = vld [vmem:[%s340 + $0x48] sm:$0xff]
        %v1487 = vld [vmem:[%s340 + $0x50] sm:$0xff]
        %v1488 = vld [vmem:[%s340 + $0x60] sm:$0xff]
        %v1489 = vld [vmem:[%s340 + $0x68] sm:$0xff]
        %v1490 = vld [vmem:[%s340 + $0x78] sm:$0xff]
        %v1491 = vld [vmem:[%s340 + $0x80] sm:$0xff]
        %v1492 = vld [vmem:[%s340 + $0x90] sm:$0xff]
        %v1493 = vld [vmem:[%s340 + $0x98] sm:$0xff]
        %v1494 = vld [vmem:[%s340 + $0xa8] sm:$0xff]
        %v1495 = vld [vmem:[%s340 + $0xb0] sm:$0xff]
        %v1496 = vld [vmem:[%s340 + $0xc0] sm:$0xff]
        %v1497 = vld [vmem:[%s340 + $0xc8] sm:$0xff]
        %v1498 = vld [vmem:[%s340 + $0xd8] sm:$0xff]
        %v1499 = vld [vmem:[%s340 + $0xe0] sm:$0xff]
        %v1500 = vld [vmem:[%s340 + $0xf0] sm:$0xff]
        %v1501 = vld [vmem:[%s340 + $0xf8] sm:$0xff]
        %v1502 = vld [vmem:[%s340 + $0x108] sm:$0xff]
        %v1503 = vld [vmem:[%s340 + $0x110] sm:$0xff]
        %v1504 = vld [vmem:[%s340 + $0x120] sm:$0xff]
        %v1505 = vld [vmem:[%s340 + $0x128] sm:$0xff]
        %v1506 = vld [vmem:[%s340 + $0x138] sm:$0xff]
        %v1507 = vld [vmem:[%s340 + $0x140] sm:$0xff]
        %v1508 = vld [vmem:[%s340 + $0x150] sm:$0xff]
        %v1509 = vld [vmem:[%s340 + $0x158] sm:$0xff]
        %v1510 = vld [vmem:[%s340 + $0x168] sm:$0xff]
        %v1511 = vld [vmem:[%s340 + $0x170] sm:$0xff]
        %s1512 = scalar_lea.vmem %s1, 12
        %v1513 = vld [vmem:[%s1512] sm:$0xf]
        %v1515 = vsel %vm196, %v1480, 0
        %v1518 = vsel %vm196, %v1481, 0
        %v1521 = vsel %vm196, %v1482, 0
        %v1524 = vsel %vm196, %v1483, 0
        %v1527 = vsel %vm196, %v1484, 0
        %v1530 = vsel %vm196, %v1485, 0
        %v1533 = vsel %vm196, %v1486, 0
        %v1536 = vsel %vm196, %v1487, 0
        %v1539 = vsel %vm196, %v1488, 0
        %v1542 = vsel %vm196, %v1489, 0
        %v1545 = vsel %vm196, %v1490, 0
        %v1548 = vsel %vm196, %v1491, 0
        %v1551 = vsel %vm196, %v1492, 0
        %v1554 = vsel %vm196, %v1493, 0
        %v1557 = vsel %vm196, %v1494, 0
        %v1560 = vsel %vm196, %v1495, 0
        %v1563 = vsel %vm196, %v1496, 0
        %v1566 = vsel %vm196, %v1497, 0
        %v1569 = vsel %vm196, %v1498, 0
        %v1572 = vsel %vm196, %v1499, 0
        %v1575 = vsel %vm196, %v1500, 0
        %v1578 = vsel %vm196, %v1501, 0
        %v1581 = vsel %vm196, %v1502, 0
        %v1584 = vsel %vm196, %v1503, 0
        %v1587 = vsel %vm196, %v1504, 0
        %v1590 = vsel %vm196, %v1505, 0
        %v1593 = vsel %vm196, %v1506, 0
        %v1596 = vsel %vm196, %v1507, 0
        %v1599 = vsel %vm196, %v1508, 0
        %v1602 = vsel %vm196, %v1509, 0
        %v1605 = vsel %vm196, %v1510, 0
        %v1608 = vsel %vm196, %v1511, 0
        %v1611 = vsel %vm537, %v1513, 0
        %1613 = vmatprep.subr.mxu0 0.0
        %1614 = vmatpush1.msra.mxu0 0.0
        %1615 = vmatprep.subr.mxu0 0.0
        %1616 = vmatpush1.msra.mxu0 0.0
        %1617 = vmatprep.subr.mxu0 0.0
        %1618 = vmatpush1.msra.mxu0 0.0
        %1619 = vmatprep.subr.mxu0 0.0
        %1620 = vmatpush1.msra.mxu0 0.0
        %1621 = vmatprep.subr.mxu0 0.0
        %1622 = vmatpush1.msra.mxu0 0.0
        %1623 = vmatprep.subr.mxu0 0.0
        %1624 = vmatpush1.msra.mxu0 0.0
        %1625 = vmatprep.subr.mxu0 0.0
        %1626 = vmatpush1.msra.mxu0 0.0
        %1627 = vmatprep.subr.mxu0 0.0
        %1628 = vmatpush1.msra.mxu0 0.0
        %1629 = vmatprep.subr.mxu0 0.0
        %1630 = vmatpush1.msra.mxu0 0.0
        %1631 = vmatprep.subr.mxu0 0.0
        %1632 = vmatpush1.msra.mxu0 0.0
        %1633 = vmatprep.subr.mxu0 0.0
        %1634 = vmatpush1.msra.mxu0 0.0
        %1635 = vmatprep.subr.mxu0 0.0
        %1636 = vmatpush1.msra.mxu0 0.0
        %1637 = vmatprep.subr.mxu0 0.0
        %1638 = vmatpush1.msra.mxu0 0.0
        %1639 = vmatprep.subr.mxu0 0.0
        %1640 = vmatpush1.msra.mxu0 0.0
        %1641 = vmatprep.subr.mxu0 0.0
        %1642 = vmatpush1.msra.mxu0 0.0
        %1643 = vmatprep.subr.mxu0 0.0
        %1644 = vmatpush1.msra.mxu0 %v1611
        %1645 = vmatprep.subr.mxu0 0.0
        %1646 = vmatpush2.msra.mxu0 0.0
        %1647 = vmatprep.subr.mxu0 0.0
        %1648 = vmatpush2.msra.mxu0 0.0
        %1649 = vmatprep.subr.mxu0 0.0
        %1650 = vmatpush2.msra.mxu0 0.0
        %1651 = vmatprep.subr.mxu0 0.0
        %1652 = vmatpush2.msra.mxu0 0.0
        %1653 = vmatprep.subr.mxu0 0.0
        %1654 = vmatpush2.msra.mxu0 0.0
        %1655 = vmatprep.subr.mxu0 0.0
        %1656 = vmatpush2.msra.mxu0 0.0
        %1657 = vmatprep.subr.mxu0 0.0
        %1658 = vmatpush2.msra.mxu0 0.0
        %1659 = vmatprep.subr.mxu0 0.0
        %1660 = vmatpush2.msra.mxu0 0.0
        %1661 = vmatprep.subr.mxu0 0.0
        %1662 = vmatpush2.msra.mxu0 0.0
        %1663 = vmatprep.subr.mxu0 0.0
        %1664 = vmatpush2.msra.mxu0 0.0
        %1665 = vmatprep.subr.mxu0 0.0
        %1666 = vmatpush2.msra.mxu0 0.0
        %1667 = vmatprep.subr.mxu0 0.0
        %1668 = vmatpush2.msra.mxu0 0.0
        %1669 = vmatprep.subr.mxu0 0.0
        %1670 = vmatpush2.msra.mxu0 0.0
        %1671 = vmatprep.subr.mxu0 0.0
        %1672 = vmatpush2.msra.mxu0 0.0
        %1673 = vmatprep.subr.mxu0 0.0
        %1674 = vmatpush2.msra.mxu0 0.0
        %1675 = vmatprep.subr.mxu0 0.0
        %1676 = vmatpush2.msra.mxu0 0.0
        %1677 = vmatprep.mubr.f32.mxu0 0.0
        %1678 = vmatmul.mubr.f32.gmra.mxu0 %v1515
        %v1679 = vpop.f32.mrf.mxu0
        %v1680 = vadd.f32 0.0, %v1679
        %v1681 = vpop.f32.mrf.mxu0
        %1682 = vmatprep.mubr.f32.mxu0 0.0
        %1683 = vmatmul.mubr.f32.gmra.mxu0 %v1518
        %v1684 = vpop.f32.mrf.mxu0
        %v1685 = vadd.f32 0.0, %v1684
        %v1686 = vpop.f32.mrf.mxu0
        %1687 = vmatprep.mubr.f32.mxu0 0.0
        %1688 = vmatmul.mubr.f32.gmra.mxu0 %v1521
        %v1689 = vpop.f32.mrf.mxu0
        %v1690 = vadd.f32 0.0, %v1689
        %v1691 = vpop.f32.mrf.mxu0
        %1692 = vmatprep.mubr.f32.mxu0 0.0
        %1693 = vmatmul.mubr.f32.gmra.mxu0 %v1524
        %v1694 = vpop.f32.mrf.mxu0
        %v1695 = vadd.f32 0.0, %v1694
        %v1696 = vpop.f32.mrf.mxu0
        %1697 = vmatprep.mubr.f32.mxu0 0.0
        %1698 = vmatmul.mubr.f32.gmra.mxu0 %v1527
        %v1699 = vpop.f32.mrf.mxu0
        %v1700 = vadd.f32 0.0, %v1699
        %v1701 = vpop.f32.mrf.mxu0
        %1702 = vmatprep.mubr.f32.mxu0 0.0
        %1703 = vmatmul.mubr.f32.gmra.mxu0 %v1530
        %v1704 = vpop.f32.mrf.mxu0
        %v1705 = vadd.f32 0.0, %v1704
        %v1706 = vpop.f32.mrf.mxu0
        %1707 = vmatprep.mubr.f32.mxu0 0.0
        %1708 = vmatmul.mubr.f32.gmra.mxu0 %v1533
        %v1709 = vpop.f32.mrf.mxu0
        %v1710 = vadd.f32 0.0, %v1709
        %v1711 = vpop.f32.mrf.mxu0
        %1712 = vmatprep.mubr.f32.mxu0 0.0
        %1713 = vmatmul.mubr.f32.gmra.mxu0 %v1536
        %v1714 = vpop.f32.mrf.mxu0
        %v1715 = vadd.f32 0.0, %v1714
        %v1716 = vpop.f32.mrf.mxu0
        %1717 = vmatprep.mubr.f32.mxu0 0.0
        %1718 = vmatmul.mubr.f32.gmra.mxu0 %v1539
        %v1719 = vpop.f32.mrf.mxu0
        %v1720 = vadd.f32 0.0, %v1719
        %v1721 = vpop.f32.mrf.mxu0
        %1722 = vmatprep.mubr.f32.mxu0 0.0
        %1723 = vmatmul.mubr.f32.gmra.mxu0 %v1542
        %v1724 = vpop.f32.mrf.mxu0
        %v1725 = vadd.f32 0.0, %v1724
        %v1726 = vpop.f32.mrf.mxu0
        %1727 = vmatprep.mubr.f32.mxu0 0.0
        %1728 = vmatmul.mubr.f32.gmra.mxu0 %v1545
        %v1729 = vpop.f32.mrf.mxu0
        %v1730 = vadd.f32 0.0, %v1729
        %v1731 = vpop.f32.mrf.mxu0
        %1732 = vmatprep.mubr.f32.mxu0 0.0
        %1733 = vmatmul.mubr.f32.gmra.mxu0 %v1548
        %v1734 = vpop.f32.mrf.mxu0
        %v1735 = vadd.f32 0.0, %v1734
        %v1736 = vpop.f32.mrf.mxu0
        %1737 = vmatprep.mubr.f32.mxu0 0.0
        %1738 = vmatmul.mubr.f32.gmra.mxu0 %v1551
        %v1739 = vpop.f32.mrf.mxu0
        %v1740 = vadd.f32 0.0, %v1739
        %v1741 = vpop.f32.mrf.mxu0
        %1742 = vmatprep.mubr.f32.mxu0 0.0
        %1743 = vmatmul.mubr.f32.gmra.mxu0 %v1554
        %v1744 = vpop.f32.mrf.mxu0
        %v1745 = vadd.f32 0.0, %v1744
        %v1746 = vpop.f32.mrf.mxu0
        %1747 = vmatprep.mubr.f32.mxu0 0.0
        %1748 = vmatmul.mubr.f32.gmra.mxu0 %v1557
        %v1749 = vpop.f32.mrf.mxu0
        %v1750 = vadd.f32 0.0, %v1749
        %v1751 = vpop.f32.mrf.mxu0
        %1752 = vmatprep.mubr.f32.mxu0 0.0
        %1753 = vmatmul.mubr.f32.gmra.mxu0 %v1560
        %v1754 = vpop.f32.mrf.mxu0
        %v1755 = vadd.f32 0.0, %v1754
        %v1756 = vpop.f32.mrf.mxu0
        %1757 = vmatprep.mubr.f32.mxu0 0.0
        %1758 = vmatmul.mubr.f32.gmra.mxu0 %v1563
        %v1759 = vpop.f32.mrf.mxu0
        %v1760 = vadd.f32 0.0, %v1759
        %v1761 = vpop.f32.mrf.mxu0
        %1762 = vmatprep.mubr.f32.mxu0 0.0
        %1763 = vmatmul.mubr.f32.gmra.mxu0 %v1566
        %v1764 = vpop.f32.mrf.mxu0
        %v1765 = vadd.f32 0.0, %v1764
        %v1766 = vpop.f32.mrf.mxu0
        %1767 = vmatprep.mubr.f32.mxu0 0.0
        %1768 = vmatmul.mubr.f32.gmra.mxu0 %v1569
        %v1769 = vpop.f32.mrf.mxu0
        %v1770 = vadd.f32 0.0, %v1769
        %v1771 = vpop.f32.mrf.mxu0
        %1772 = vmatprep.mubr.f32.mxu0 0.0
        %1773 = vmatmul.mubr.f32.gmra.mxu0 %v1572
        %v1774 = vpop.f32.mrf.mxu0
        %v1775 = vadd.f32 0.0, %v1774
        %v1776 = vpop.f32.mrf.mxu0
        %1777 = vmatprep.mubr.f32.mxu0 0.0
        %1778 = vmatmul.mubr.f32.gmra.mxu0 %v1575
        %v1779 = vpop.f32.mrf.mxu0
        %v1780 = vadd.f32 0.0, %v1779
        %v1781 = vpop.f32.mrf.mxu0
        %1782 = vmatprep.mubr.f32.mxu0 0.0
        %1783 = vmatmul.mubr.f32.gmra.mxu0 %v1578
        %v1784 = vpop.f32.mrf.mxu0
        %v1785 = vadd.f32 0.0, %v1784
        %v1786 = vpop.f32.mrf.mxu0
        %1787 = vmatprep.mubr.f32.mxu0 0.0
        %1788 = vmatmul.mubr.f32.gmra.mxu0 %v1581
        %v1789 = vpop.f32.mrf.mxu0
        %v1790 = vadd.f32 0.0, %v1789
        %v1791 = vpop.f32.mrf.mxu0
        %1792 = vmatprep.mubr.f32.mxu0 0.0
        %1793 = vmatmul.mubr.f32.gmra.mxu0 %v1584
        %v1794 = vpop.f32.mrf.mxu0
        %v1795 = vadd.f32 0.0, %v1794
        %v1796 = vpop.f32.mrf.mxu0
        %1797 = vmatprep.mubr.f32.mxu0 0.0
        %1798 = vmatmul.mubr.f32.gmra.mxu0 %v1587
        %v1799 = vpop.f32.mrf.mxu0
        %v1800 = vadd.f32 0.0, %v1799
        %v1801 = vpop.f32.mrf.mxu0
        %1802 = vmatprep.mubr.f32.mxu0 0.0
        %1803 = vmatmul.mubr.f32.gmra.mxu0 %v1590
        %v1804 = vpop.f32.mrf.mxu0
        %v1805 = vadd.f32 0.0, %v1804
        %v1806 = vpop.f32.mrf.mxu0
        %1807 = vmatprep.mubr.f32.mxu0 0.0
        %1808 = vmatmul.mubr.f32.gmra.mxu0 %v1593
        %v1809 = vpop.f32.mrf.mxu0
        %v1810 = vadd.f32 0.0, %v1809
        %v1811 = vpop.f32.mrf.mxu0
        %1812 = vmatprep.mubr.f32.mxu0 0.0
        %1813 = vmatmul.mubr.f32.gmra.mxu0 %v1596
        %v1814 = vpop.f32.mrf.mxu0
        %v1815 = vadd.f32 0.0, %v1814
        %v1816 = vpop.f32.mrf.mxu0
        %1817 = vmatprep.mubr.f32.mxu0 0.0
        %1818 = vmatmul.mubr.f32.gmra.mxu0 %v1599
        %v1819 = vpop.f32.mrf.mxu0
        %v1820 = vadd.f32 0.0, %v1819
        %v1821 = vpop.f32.mrf.mxu0
        %1822 = vmatprep.mubr.f32.mxu0 0.0
        %1823 = vmatmul.mubr.f32.gmra.mxu0 %v1602
        %v1824 = vpop.f32.mrf.mxu0
        %v1825 = vadd.f32 0.0, %v1824
        %v1826 = vpop.f32.mrf.mxu0
        %1827 = vmatprep.mubr.f32.mxu0 0.0
        %1828 = vmatmul.mubr.f32.gmra.mxu0 %v1605
        %v1829 = vpop.f32.mrf.mxu0
        %v1830 = vadd.f32 0.0, %v1829
        %v1831 = vpop.f32.mrf.mxu0
        %1832 = vmatprep.mubr.f32.mxu0 0.0
        %1833 = vmatmul.mubr.f32.gmra.mxu0 %v1608
        %v1834 = vpop.f32.mrf.mxu0
        %v1835 = vadd.f32 0.0, %v1834
        %v1836 = vpop.f32.mrf.mxu0
        %1837 = vdwg.mxu0
        %v1838 = vadd.f32 %v1448, %v1680
        %v1839 = vadd.f32 %v1449, %v1685
        %v1840 = vadd.f32 %v1450, %v1690
        %v1841 = vadd.f32 %v1451, %v1695
        %v1842 = vadd.f32 %v1452, %v1700
        %v1843 = vadd.f32 %v1453, %v1705
        %v1844 = vadd.f32 %v1454, %v1710
        %v1845 = vadd.f32 %v1455, %v1715
        %v1846 = vadd.f32 %v1456, %v1720
        %v1847 = vadd.f32 %v1457, %v1725
        %v1848 = vadd.f32 %v1458, %v1730
        %v1849 = vadd.f32 %v1459, %v1735
        %v1850 = vadd.f32 %v1460, %v1740
        %v1851 = vadd.f32 %v1461, %v1745
        %v1852 = vadd.f32 %v1462, %v1750
        %v1853 = vadd.f32 %v1463, %v1755
        %v1854 = vadd.f32 %v1464, %v1760
        %v1855 = vadd.f32 %v1465, %v1765
        %v1856 = vadd.f32 %v1466, %v1770
        %v1857 = vadd.f32 %v1467, %v1775
        %v1858 = vadd.f32 %v1468, %v1780
        %v1859 = vadd.f32 %v1469, %v1785
        %v1860 = vadd.f32 %v1470, %v1790
        %v1861 = vadd.f32 %v1471, %v1795
        %v1862 = vadd.f32 %v1472, %v1800
        %v1863 = vadd.f32 %v1473, %v1805
        %v1864 = vadd.f32 %v1474, %v1810
        %v1865 = vadd.f32 %v1475, %v1815
        %v1866 = vadd.f32 %v1476, %v1820
        %v1867 = vadd.f32 %v1477, %v1825
        %v1868 = vadd.f32 %v1478, %v1830
        %v1869 = vadd.f32 %v1479, %v1835
        %v1870 = vld [vmem:[%s340 + $0x1] sm:$0xff]
        %v1871 = vld [vmem:[%s340 + $0x9] sm:$0xff]
        %v1872 = vld [vmem:[%s340 + $0x19] sm:$0xff]
        %v1873 = vld [vmem:[%s340 + $0x21] sm:$0xff]
        %v1874 = vld [vmem:[%s340 + $0x31] sm:$0xff]
        %v1875 = vld [vmem:[%s340 + $0x39] sm:$0xff]
        %v1876 = vld [vmem:[%s340 + $0x49] sm:$0xff]
        %v1877 = vld [vmem:[%s340 + $0x51] sm:$0xff]
        %v1878 = vld [vmem:[%s340 + $0x61] sm:$0xff]
        %v1879 = vld [vmem:[%s340 + $0x69] sm:$0xff]
        %v1880 = vld [vmem:[%s340 + $0x79] sm:$0xff]
        %v1881 = vld [vmem:[%s340 + $0x81] sm:$0xff]
        %v1882 = vld [vmem:[%s340 + $0x91] sm:$0xff]
        %v1883 = vld [vmem:[%s340 + $0x99] sm:$0xff]
        %v1884 = vld [vmem:[%s340 + $0xa9] sm:$0xff]
        %v1885 = vld [vmem:[%s340 + $0xb1] sm:$0xff]
        %v1886 = vld [vmem:[%s340 + $0xc1] sm:$0xff]
        %v1887 = vld [vmem:[%s340 + $0xc9] sm:$0xff]
        %v1888 = vld [vmem:[%s340 + $0xd9] sm:$0xff]
        %v1889 = vld [vmem:[%s340 + $0xe1] sm:$0xff]
        %v1890 = vld [vmem:[%s340 + $0xf1] sm:$0xff]
        %v1891 = vld [vmem:[%s340 + $0xf9] sm:$0xff]
        %v1892 = vld [vmem:[%s340 + $0x109] sm:$0xff]
        %v1893 = vld [vmem:[%s340 + $0x111] sm:$0xff]
        %v1894 = vld [vmem:[%s340 + $0x121] sm:$0xff]
        %v1895 = vld [vmem:[%s340 + $0x129] sm:$0xff]
        %v1896 = vld [vmem:[%s340 + $0x139] sm:$0xff]
        %v1897 = vld [vmem:[%s340 + $0x141] sm:$0xff]
        %v1898 = vld [vmem:[%s340 + $0x151] sm:$0xff]
        %v1899 = vld [vmem:[%s340 + $0x159] sm:$0xff]
        %v1900 = vld [vmem:[%s340 + $0x169] sm:$0xff]
        %v1901 = vld [vmem:[%s340 + $0x171] sm:$0xff]
        %s1902 = scalar_lea.vmem %s1, 16
        %v1903 = vld [vmem:[%s1902] sm:$0xf]
        %v1905 = vsel %vm196, %v1870, 0
        %v1908 = vsel %vm196, %v1871, 0
        %v1911 = vsel %vm196, %v1872, 0
        %v1914 = vsel %vm196, %v1873, 0
        %v1917 = vsel %vm196, %v1874, 0
        %v1920 = vsel %vm196, %v1875, 0
        %v1923 = vsel %vm196, %v1876, 0
        %v1926 = vsel %vm196, %v1877, 0
        %v1929 = vsel %vm196, %v1878, 0
        %v1932 = vsel %vm196, %v1879, 0
        %v1935 = vsel %vm196, %v1880, 0
        %v1938 = vsel %vm196, %v1881, 0
        %v1941 = vsel %vm196, %v1882, 0
        %v1944 = vsel %vm196, %v1883, 0
        %v1947 = vsel %vm196, %v1884, 0
        %v1950 = vsel %vm196, %v1885, 0
        %v1953 = vsel %vm196, %v1886, 0
        %v1956 = vsel %vm196, %v1887, 0
        %v1959 = vsel %vm196, %v1888, 0
        %v1962 = vsel %vm196, %v1889, 0
        %v1965 = vsel %vm196, %v1890, 0
        %v1968 = vsel %vm196, %v1891, 0
        %v1971 = vsel %vm196, %v1892, 0
        %v1974 = vsel %vm196, %v1893, 0
        %v1977 = vsel %vm196, %v1894, 0
        %v1980 = vsel %vm196, %v1895, 0
        %v1983 = vsel %vm196, %v1896, 0
        %v1986 = vsel %vm196, %v1897, 0
        %v1989 = vsel %vm196, %v1898, 0
        %v1992 = vsel %vm196, %v1899, 0
        %v1995 = vsel %vm196, %v1900, 0
        %v1998 = vsel %vm196, %v1901, 0
        %v2001 = vsel %vm537, %v1903, 0
        %2003 = vmatprep.subr.mxu0 0.0
        %2004 = vmatpush1.msra.mxu0 0.0
        %2005 = vmatprep.subr.mxu0 0.0
        %2006 = vmatpush1.msra.mxu0 0.0
        %2007 = vmatprep.subr.mxu0 0.0
        %2008 = vmatpush1.msra.mxu0 0.0
        %2009 = vmatprep.subr.mxu0 0.0
        %2010 = vmatpush1.msra.mxu0 0.0
        %2011 = vmatprep.subr.mxu0 0.0
        %2012 = vmatpush1.msra.mxu0 0.0
        %2013 = vmatprep.subr.mxu0 0.0
        %2014 = vmatpush1.msra.mxu0 0.0
        %2015 = vmatprep.subr.mxu0 0.0
        %2016 = vmatpush1.msra.mxu0 0.0
        %2017 = vmatprep.subr.mxu0 0.0
        %2018 = vmatpush1.msra.mxu0 0.0
        %2019 = vmatprep.subr.mxu0 0.0
        %2020 = vmatpush1.msra.mxu0 0.0
        %2021 = vmatprep.subr.mxu0 0.0
        %2022 = vmatpush1.msra.mxu0 0.0
        %2023 = vmatprep.subr.mxu0 0.0
        %2024 = vmatpush1.msra.mxu0 0.0
        %2025 = vmatprep.subr.mxu0 0.0
        %2026 = vmatpush1.msra.mxu0 0.0
        %2027 = vmatprep.subr.mxu0 0.0
        %2028 = vmatpush1.msra.mxu0 0.0
        %2029 = vmatprep.subr.mxu0 0.0
        %2030 = vmatpush1.msra.mxu0 0.0
        %2031 = vmatprep.subr.mxu0 0.0
        %2032 = vmatpush1.msra.mxu0 0.0
        %2033 = vmatprep.subr.mxu0 0.0
        %2034 = vmatpush1.msra.mxu0 %v2001
        %2035 = vmatprep.subr.mxu0 0.0
        %2036 = vmatpush2.msra.mxu0 0.0
        %2037 = vmatprep.subr.mxu0 0.0
        %2038 = vmatpush2.msra.mxu0 0.0
        %2039 = vmatprep.subr.mxu0 0.0
        %2040 = vmatpush2.msra.mxu0 0.0
        %2041 = vmatprep.subr.mxu0 0.0
        %2042 = vmatpush2.msra.mxu0 0.0
        %2043 = vmatprep.subr.mxu0 0.0
        %2044 = vmatpush2.msra.mxu0 0.0
        %2045 = vmatprep.subr.mxu0 0.0
        %2046 = vmatpush2.msra.mxu0 0.0
        %2047 = vmatprep.subr.mxu0 0.0
        %2048 = vmatpush2.msra.mxu0 0.0
        %2049 = vmatprep.subr.mxu0 0.0
        %2050 = vmatpush2.msra.mxu0 0.0
        %2051 = vmatprep.subr.mxu0 0.0
        %2052 = vmatpush2.msra.mxu0 0.0
        %2053 = vmatprep.subr.mxu0 0.0
        %2054 = vmatpush2.msra.mxu0 0.0
        %2055 = vmatprep.subr.mxu0 0.0
        %2056 = vmatpush2.msra.mxu0 0.0
        %2057 = vmatprep.subr.mxu0 0.0
        %2058 = vmatpush2.msra.mxu0 0.0
        %2059 = vmatprep.subr.mxu0 0.0
        %2060 = vmatpush2.msra.mxu0 0.0
        %2061 = vmatprep.subr.mxu0 0.0
        %2062 = vmatpush2.msra.mxu0 0.0
        %2063 = vmatprep.subr.mxu0 0.0
        %2064 = vmatpush2.msra.mxu0 0.0
        %2065 = vmatprep.subr.mxu0 0.0
        %2066 = vmatpush2.msra.mxu0 0.0
        %2067 = vmatprep.mubr.f32.mxu0 0.0
        %2068 = vmatmul.mubr.f32.gmra.mxu0 %v1905
        %v2069 = vpop.f32.mrf.mxu0
        %v2070 = vadd.f32 0.0, %v2069
        %v2071 = vpop.f32.mrf.mxu0
        %2072 = vmatprep.mubr.f32.mxu0 0.0
        %2073 = vmatmul.mubr.f32.gmra.mxu0 %v1908
        %v2074 = vpop.f32.mrf.mxu0
        %v2075 = vadd.f32 0.0, %v2074
        %v2076 = vpop.f32.mrf.mxu0
        %2077 = vmatprep.mubr.f32.mxu0 0.0
        %2078 = vmatmul.mubr.f32.gmra.mxu0 %v1911
        %v2079 = vpop.f32.mrf.mxu0
        %v2080 = vadd.f32 0.0, %v2079
        %v2081 = vpop.f32.mrf.mxu0
        %2082 = vmatprep.mubr.f32.mxu0 0.0
        %2083 = vmatmul.mubr.f32.gmra.mxu0 %v1914
        %v2084 = vpop.f32.mrf.mxu0
        %v2085 = vadd.f32 0.0, %v2084
        %v2086 = vpop.f32.mrf.mxu0
        %2087 = vmatprep.mubr.f32.mxu0 0.0
        %2088 = vmatmul.mubr.f32.gmra.mxu0 %v1917
        %v2089 = vpop.f32.mrf.mxu0
        %v2090 = vadd.f32 0.0, %v2089
        %v2091 = vpop.f32.mrf.mxu0
        %2092 = vmatprep.mubr.f32.mxu0 0.0
        %2093 = vmatmul.mubr.f32.gmra.mxu0 %v1920
        %v2094 = vpop.f32.mrf.mxu0
        %v2095 = vadd.f32 0.0, %v2094
        %v2096 = vpop.f32.mrf.mxu0
        %2097 = vmatprep.mubr.f32.mxu0 0.0
        %2098 = vmatmul.mubr.f32.gmra.mxu0 %v1923
        %v2099 = vpop.f32.mrf.mxu0
        %v2100 = vadd.f32 0.0, %v2099
        %v2101 = vpop.f32.mrf.mxu0
        %2102 = vmatprep.mubr.f32.mxu0 0.0
        %2103 = vmatmul.mubr.f32.gmra.mxu0 %v1926
        %v2104 = vpop.f32.mrf.mxu0
        %v2105 = vadd.f32 0.0, %v2104
        %v2106 = vpop.f32.mrf.mxu0
        %2107 = vmatprep.mubr.f32.mxu0 0.0
        %2108 = vmatmul.mubr.f32.gmra.mxu0 %v1929
        %v2109 = vpop.f32.mrf.mxu0
        %v2110 = vadd.f32 0.0, %v2109
        %v2111 = vpop.f32.mrf.mxu0
        %2112 = vmatprep.mubr.f32.mxu0 0.0
        %2113 = vmatmul.mubr.f32.gmra.mxu0 %v1932
        %v2114 = vpop.f32.mrf.mxu0
        %v2115 = vadd.f32 0.0, %v2114
        %v2116 = vpop.f32.mrf.mxu0
        %2117 = vmatprep.mubr.f32.mxu0 0.0
        %2118 = vmatmul.mubr.f32.gmra.mxu0 %v1935
        %v2119 = vpop.f32.mrf.mxu0
        %v2120 = vadd.f32 0.0, %v2119
        %v2121 = vpop.f32.mrf.mxu0
        %2122 = vmatprep.mubr.f32.mxu0 0.0
        %2123 = vmatmul.mubr.f32.gmra.mxu0 %v1938
        %v2124 = vpop.f32.mrf.mxu0
        %v2125 = vadd.f32 0.0, %v2124
        %v2126 = vpop.f32.mrf.mxu0
        %2127 = vmatprep.mubr.f32.mxu0 0.0
        %2128 = vmatmul.mubr.f32.gmra.mxu0 %v1941
        %v2129 = vpop.f32.mrf.mxu0
        %v2130 = vadd.f32 0.0, %v2129
        %v2131 = vpop.f32.mrf.mxu0
        %2132 = vmatprep.mubr.f32.mxu0 0.0
        %2133 = vmatmul.mubr.f32.gmra.mxu0 %v1944
        %v2134 = vpop.f32.mrf.mxu0
        %v2135 = vadd.f32 0.0, %v2134
        %v2136 = vpop.f32.mrf.mxu0
        %2137 = vmatprep.mubr.f32.mxu0 0.0
        %2138 = vmatmul.mubr.f32.gmra.mxu0 %v1947
        %v2139 = vpop.f32.mrf.mxu0
        %v2140 = vadd.f32 0.0, %v2139
        %v2141 = vpop.f32.mrf.mxu0
        %2142 = vmatprep.mubr.f32.mxu0 0.0
        %2143 = vmatmul.mubr.f32.gmra.mxu0 %v1950
        %v2144 = vpop.f32.mrf.mxu0
        %v2145 = vadd.f32 0.0, %v2144
        %v2146 = vpop.f32.mrf.mxu0
        %2147 = vmatprep.mubr.f32.mxu0 0.0
        %2148 = vmatmul.mubr.f32.gmra.mxu0 %v1953
        %v2149 = vpop.f32.mrf.mxu0
        %v2150 = vadd.f32 0.0, %v2149
        %v2151 = vpop.f32.mrf.mxu0
        %2152 = vmatprep.mubr.f32.mxu0 0.0
        %2153 = vmatmul.mubr.f32.gmra.mxu0 %v1956
        %v2154 = vpop.f32.mrf.mxu0
        %v2155 = vadd.f32 0.0, %v2154
        %v2156 = vpop.f32.mrf.mxu0
        %2157 = vmatprep.mubr.f32.mxu0 0.0
        %2158 = vmatmul.mubr.f32.gmra.mxu0 %v1959
        %v2159 = vpop.f32.mrf.mxu0
        %v2160 = vadd.f32 0.0, %v2159
        %v2161 = vpop.f32.mrf.mxu0
        %2162 = vmatprep.mubr.f32.mxu0 0.0
        %2163 = vmatmul.mubr.f32.gmra.mxu0 %v1962
        %v2164 = vpop.f32.mrf.mxu0
        %v2165 = vadd.f32 0.0, %v2164
        %v2166 = vpop.f32.mrf.mxu0
        %2167 = vmatprep.mubr.f32.mxu0 0.0
        %2168 = vmatmul.mubr.f32.gmra.mxu0 %v1965
        %v2169 = vpop.f32.mrf.mxu0
        %v2170 = vadd.f32 0.0, %v2169
        %v2171 = vpop.f32.mrf.mxu0
        %2172 = vmatprep.mubr.f32.mxu0 0.0
        %2173 = vmatmul.mubr.f32.gmra.mxu0 %v1968
        %v2174 = vpop.f32.mrf.mxu0
        %v2175 = vadd.f32 0.0, %v2174
        %v2176 = vpop.f32.mrf.mxu0
        %2177 = vmatprep.mubr.f32.mxu0 0.0
        %2178 = vmatmul.mubr.f32.gmra.mxu0 %v1971
        %v2179 = vpop.f32.mrf.mxu0
        %v2180 = vadd.f32 0.0, %v2179
        %v2181 = vpop.f32.mrf.mxu0
        %2182 = vmatprep.mubr.f32.mxu0 0.0
        %2183 = vmatmul.mubr.f32.gmra.mxu0 %v1974
        %v2184 = vpop.f32.mrf.mxu0
        %v2185 = vadd.f32 0.0, %v2184
        %v2186 = vpop.f32.mrf.mxu0
        %2187 = vmatprep.mubr.f32.mxu0 0.0
        %2188 = vmatmul.mubr.f32.gmra.mxu0 %v1977
        %v2189 = vpop.f32.mrf.mxu0
        %v2190 = vadd.f32 0.0, %v2189
        %v2191 = vpop.f32.mrf.mxu0
        %2192 = vmatprep.mubr.f32.mxu0 0.0
        %2193 = vmatmul.mubr.f32.gmra.mxu0 %v1980
        %v2194 = vpop.f32.mrf.mxu0
        %v2195 = vadd.f32 0.0, %v2194
        %v2196 = vpop.f32.mrf.mxu0
        %2197 = vmatprep.mubr.f32.mxu0 0.0
        %2198 = vmatmul.mubr.f32.gmra.mxu0 %v1983
        %v2199 = vpop.f32.mrf.mxu0
        %v2200 = vadd.f32 0.0, %v2199
        %v2201 = vpop.f32.mrf.mxu0
        %2202 = vmatprep.mubr.f32.mxu0 0.0
        %2203 = vmatmul.mubr.f32.gmra.mxu0 %v1986
        %v2204 = vpop.f32.mrf.mxu0
        %v2205 = vadd.f32 0.0, %v2204
        %v2206 = vpop.f32.mrf.mxu0
        %2207 = vmatprep.mubr.f32.mxu0 0.0
        %2208 = vmatmul.mubr.f32.gmra.mxu0 %v1989
        %v2209 = vpop.f32.mrf.mxu0
        %v2210 = vadd.f32 0.0, %v2209
        %v2211 = vpop.f32.mrf.mxu0
        %2212 = vmatprep.mubr.f32.mxu0 0.0
        %2213 = vmatmul.mubr.f32.gmra.mxu0 %v1992
        %v2214 = vpop.f32.mrf.mxu0
        %v2215 = vadd.f32 0.0, %v2214
        %v2216 = vpop.f32.mrf.mxu0
        %2217 = vmatprep.mubr.f32.mxu0 0.0
        %2218 = vmatmul.mubr.f32.gmra.mxu0 %v1995
        %v2219 = vpop.f32.mrf.mxu0
        %v2220 = vadd.f32 0.0, %v2219
        %v2221 = vpop.f32.mrf.mxu0
        %2222 = vmatprep.mubr.f32.mxu0 0.0
        %2223 = vmatmul.mubr.f32.gmra.mxu0 %v1998
        %v2224 = vpop.f32.mrf.mxu0
        %v2225 = vadd.f32 0.0, %v2224
        %v2226 = vpop.f32.mrf.mxu0
        %2227 = vdwg.mxu0
        %v2228 = vadd.f32 %v1838, %v2070
        %v2229 = vadd.f32 %v1839, %v2075
        %v2230 = vadd.f32 %v1840, %v2080
        %v2231 = vadd.f32 %v1841, %v2085
        %v2232 = vadd.f32 %v1842, %v2090
        %v2233 = vadd.f32 %v1843, %v2095
        %v2234 = vadd.f32 %v1844, %v2100
        %v2235 = vadd.f32 %v1845, %v2105
        %v2236 = vadd.f32 %v1846, %v2110
        %v2237 = vadd.f32 %v1847, %v2115
        %v2238 = vadd.f32 %v1848, %v2120
        %v2239 = vadd.f32 %v1849, %v2125
        %v2240 = vadd.f32 %v1850, %v2130
        %v2241 = vadd.f32 %v1851, %v2135
        %v2242 = vadd.f32 %v1852, %v2140
        %v2243 = vadd.f32 %v1853, %v2145
        %v2244 = vadd.f32 %v1854, %v2150
        %v2245 = vadd.f32 %v1855, %v2155
        %v2246 = vadd.f32 %v1856, %v2160
        %v2247 = vadd.f32 %v1857, %v2165
        %v2248 = vadd.f32 %v1858, %v2170
        %v2249 = vadd.f32 %v1859, %v2175
        %v2250 = vadd.f32 %v1860, %v2180
        %v2251 = vadd.f32 %v1861, %v2185
        %v2252 = vadd.f32 %v1862, %v2190
        %v2253 = vadd.f32 %v1863, %v2195
        %v2254 = vadd.f32 %v1864, %v2200
        %v2255 = vadd.f32 %v1865, %v2205
        %v2256 = vadd.f32 %v1866, %v2210
        %v2257 = vadd.f32 %v1867, %v2215
        %v2258 = vadd.f32 %v1868, %v2220
        %v2259 = vadd.f32 %v1869, %v2225
        %v2260 = vld [vmem:[%s340 + $0x2] sm:$0xff]
        %v2261 = vld [vmem:[%s340 + $0xa] sm:$0xff]
        %v2262 = vld [vmem:[%s340 + $0x1a] sm:$0xff]
        %v2263 = vld [vmem:[%s340 + $0x22] sm:$0xff]
        %v2264 = vld [vmem:[%s340 + $0x32] sm:$0xff]
        %v2265 = vld [vmem:[%s340 + $0x3a] sm:$0xff]
        %v2266 = vld [vmem:[%s340 + $0x4a] sm:$0xff]
        %v2267 = vld [vmem:[%s340 + $0x52] sm:$0xff]
        %v2268 = vld [vmem:[%s340 + $0x62] sm:$0xff]
        %v2269 = vld [vmem:[%s340 + $0x6a] sm:$0xff]
        %v2270 = vld [vmem:[%s340 + $0x7a] sm:$0xff]
        %v2271 = vld [vmem:[%s340 + $0x82] sm:$0xff]
        %v2272 = vld [vmem:[%s340 + $0x92] sm:$0xff]
        %v2273 = vld [vmem:[%s340 + $0x9a] sm:$0xff]
        %v2274 = vld [vmem:[%s340 + $0xaa] sm:$0xff]
        %v2275 = vld [vmem:[%s340 + $0xb2] sm:$0xff]
        %v2276 = vld [vmem:[%s340 + $0xc2] sm:$0xff]
        %v2277 = vld [vmem:[%s340 + $0xca] sm:$0xff]
        %v2278 = vld [vmem:[%s340 + $0xda] sm:$0xff]
        %v2279 = vld [vmem:[%s340 + $0xe2] sm:$0xff]
        %v2280 = vld [vmem:[%s340 + $0xf2] sm:$0xff]
        %v2281 = vld [vmem:[%s340 + $0xfa] sm:$0xff]
        %v2282 = vld [vmem:[%s340 + $0x10a] sm:$0xff]
        %v2283 = vld [vmem:[%s340 + $0x112] sm:$0xff]
        %v2284 = vld [vmem:[%s340 + $0x122] sm:$0xff]
        %v2285 = vld [vmem:[%s340 + $0x12a] sm:$0xff]
        %v2286 = vld [vmem:[%s340 + $0x13a] sm:$0xff]
        %v2287 = vld [vmem:[%s340 + $0x142] sm:$0xff]
        %v2288 = vld [vmem:[%s340 + $0x152] sm:$0xff]
        %v2289 = vld [vmem:[%s340 + $0x15a] sm:$0xff]
        %v2290 = vld [vmem:[%s340 + $0x16a] sm:$0xff]
        %v2291 = vld [vmem:[%s340 + $0x172] sm:$0xff]
        %s2292 = scalar_lea.vmem %s1, 20
        %v2293 = vld [vmem:[%s2292] sm:$0xf]
        %v2295 = vsel %vm196, %v2260, 0
        %v2298 = vsel %vm196, %v2261, 0
        %v2301 = vsel %vm196, %v2262, 0
        %v2304 = vsel %vm196, %v2263, 0
        %v2307 = vsel %vm196, %v2264, 0
        %v2310 = vsel %vm196, %v2265, 0
        %v2313 = vsel %vm196, %v2266, 0
        %v2316 = vsel %vm196, %v2267, 0
        %v2319 = vsel %vm196, %v2268, 0
        %v2322 = vsel %vm196, %v2269, 0
        %v2325 = vsel %vm196, %v2270, 0
        %v2328 = vsel %vm196, %v2271, 0
        %v2331 = vsel %vm196, %v2272, 0
        %v2334 = vsel %vm196, %v2273, 0
        %v2337 = vsel %vm196, %v2274, 0
        %v2340 = vsel %vm196, %v2275, 0
        %v2343 = vsel %vm196, %v2276, 0
        %v2346 = vsel %vm196, %v2277, 0
        %v2349 = vsel %vm196, %v2278, 0
        %v2352 = vsel %vm196, %v2279, 0
        %v2355 = vsel %vm196, %v2280, 0
        %v2358 = vsel %vm196, %v2281, 0
        %v2361 = vsel %vm196, %v2282, 0
        %v2364 = vsel %vm196, %v2283, 0
        %v2367 = vsel %vm196, %v2284, 0
        %v2370 = vsel %vm196, %v2285, 0
        %v2373 = vsel %vm196, %v2286, 0
        %v2376 = vsel %vm196, %v2287, 0
        %v2379 = vsel %vm196, %v2288, 0
        %v2382 = vsel %vm196, %v2289, 0
        %v2385 = vsel %vm196, %v2290, 0
        %v2388 = vsel %vm196, %v2291, 0
        %v2391 = vsel %vm537, %v2293, 0
        %2393 = vmatprep.subr.mxu0 0.0
        %2394 = vmatpush1.msra.mxu0 0.0
        %2395 = vmatprep.subr.mxu0 0.0
        %2396 = vmatpush1.msra.mxu0 0.0
        %2397 = vmatprep.subr.mxu0 0.0
        %2398 = vmatpush1.msra.mxu0 0.0
        %2399 = vmatprep.subr.mxu0 0.0
        %2400 = vmatpush1.msra.mxu0 0.0
        %2401 = vmatprep.subr.mxu0 0.0
        %2402 = vmatpush1.msra.mxu0 0.0
        %2403 = vmatprep.subr.mxu0 0.0
        %2404 = vmatpush1.msra.mxu0 0.0
        %2405 = vmatprep.subr.mxu0 0.0
        %2406 = vmatpush1.msra.mxu0 0.0
        %2407 = vmatprep.subr.mxu0 0.0
        %2408 = vmatpush1.msra.mxu0 0.0
        %2409 = vmatprep.subr.mxu0 0.0
        %2410 = vmatpush1.msra.mxu0 0.0
        %2411 = vmatprep.subr.mxu0 0.0
        %2412 = vmatpush1.msra.mxu0 0.0
        %2413 = vmatprep.subr.mxu0 0.0
        %2414 = vmatpush1.msra.mxu0 0.0
        %2415 = vmatprep.subr.mxu0 0.0
        %2416 = vmatpush1.msra.mxu0 0.0
        %2417 = vmatprep.subr.mxu0 0.0
        %2418 = vmatpush1.msra.mxu0 0.0
        %2419 = vmatprep.subr.mxu0 0.0
        %2420 = vmatpush1.msra.mxu0 0.0
        %2421 = vmatprep.subr.mxu0 0.0
        %2422 = vmatpush1.msra.mxu0 0.0
        %2423 = vmatprep.subr.mxu0 0.0
        %2424 = vmatpush1.msra.mxu0 %v2391
        %2425 = vmatprep.subr.mxu0 0.0
        %2426 = vmatpush2.msra.mxu0 0.0
        %2427 = vmatprep.subr.mxu0 0.0
        %2428 = vmatpush2.msra.mxu0 0.0
        %2429 = vmatprep.subr.mxu0 0.0
        %2430 = vmatpush2.msra.mxu0 0.0
        %2431 = vmatprep.subr.mxu0 0.0
        %2432 = vmatpush2.msra.mxu0 0.0
        %2433 = vmatprep.subr.mxu0 0.0
        %2434 = vmatpush2.msra.mxu0 0.0
        %2435 = vmatprep.subr.mxu0 0.0
        %2436 = vmatpush2.msra.mxu0 0.0
        %2437 = vmatprep.subr.mxu0 0.0
        %2438 = vmatpush2.msra.mxu0 0.0
        %2439 = vmatprep.subr.mxu0 0.0
        %2440 = vmatpush2.msra.mxu0 0.0
        %2441 = vmatprep.subr.mxu0 0.0
        %2442 = vmatpush2.msra.mxu0 0.0
        %2443 = vmatprep.subr.mxu0 0.0
        %2444 = vmatpush2.msra.mxu0 0.0
        %2445 = vmatprep.subr.mxu0 0.0
        %2446 = vmatpush2.msra.mxu0 0.0
        %2447 = vmatprep.subr.mxu0 0.0
        %2448 = vmatpush2.msra.mxu0 0.0
        %2449 = vmatprep.subr.mxu0 0.0
        %2450 = vmatpush2.msra.mxu0 0.0
        %2451 = vmatprep.subr.mxu0 0.0
        %2452 = vmatpush2.msra.mxu0 0.0
        %2453 = vmatprep.subr.mxu0 0.0
        %2454 = vmatpush2.msra.mxu0 0.0
        %2455 = vmatprep.subr.mxu0 0.0
        %2456 = vmatpush2.msra.mxu0 0.0
        %2457 = vmatprep.mubr.f32.mxu0 0.0
        %2458 = vmatmul.mubr.f32.gmra.mxu0 %v2295
        %v2459 = vpop.f32.mrf.mxu0
        %v2460 = vadd.f32 0.0, %v2459
        %v2461 = vpop.f32.mrf.mxu0
        %2462 = vmatprep.mubr.f32.mxu0 0.0
        %2463 = vmatmul.mubr.f32.gmra.mxu0 %v2298
        %v2464 = vpop.f32.mrf.mxu0
        %v2465 = vadd.f32 0.0, %v2464
        %v2466 = vpop.f32.mrf.mxu0
        %2467 = vmatprep.mubr.f32.mxu0 0.0
        %2468 = vmatmul.mubr.f32.gmra.mxu0 %v2301
        %v2469 = vpop.f32.mrf.mxu0
        %v2470 = vadd.f32 0.0, %v2469
        %v2471 = vpop.f32.mrf.mxu0
        %2472 = vmatprep.mubr.f32.mxu0 0.0
        %2473 = vmatmul.mubr.f32.gmra.mxu0 %v2304
        %v2474 = vpop.f32.mrf.mxu0
        %v2475 = vadd.f32 0.0, %v2474
        %v2476 = vpop.f32.mrf.mxu0
        %2477 = vmatprep.mubr.f32.mxu0 0.0
        %2478 = vmatmul.mubr.f32.gmra.mxu0 %v2307
        %v2479 = vpop.f32.mrf.mxu0
        %v2480 = vadd.f32 0.0, %v2479
        %v2481 = vpop.f32.mrf.mxu0
        %2482 = vmatprep.mubr.f32.mxu0 0.0
        %2483 = vmatmul.mubr.f32.gmra.mxu0 %v2310
        %v2484 = vpop.f32.mrf.mxu0
        %v2485 = vadd.f32 0.0, %v2484
        %v2486 = vpop.f32.mrf.mxu0
        %2487 = vmatprep.mubr.f32.mxu0 0.0
        %2488 = vmatmul.mubr.f32.gmra.mxu0 %v2313
        %v2489 = vpop.f32.mrf.mxu0
        %v2490 = vadd.f32 0.0, %v2489
        %v2491 = vpop.f32.mrf.mxu0
        %2492 = vmatprep.mubr.f32.mxu0 0.0
        %2493 = vmatmul.mubr.f32.gmra.mxu0 %v2316
        %v2494 = vpop.f32.mrf.mxu0
        %v2495 = vadd.f32 0.0, %v2494
        %v2496 = vpop.f32.mrf.mxu0
        %2497 = vmatprep.mubr.f32.mxu0 0.0
        %2498 = vmatmul.mubr.f32.gmra.mxu0 %v2319
        %v2499 = vpop.f32.mrf.mxu0
        %v2500 = vadd.f32 0.0, %v2499
        %v2501 = vpop.f32.mrf.mxu0
        %2502 = vmatprep.mubr.f32.mxu0 0.0
        %2503 = vmatmul.mubr.f32.gmra.mxu0 %v2322
        %v2504 = vpop.f32.mrf.mxu0
        %v2505 = vadd.f32 0.0, %v2504
        %v2506 = vpop.f32.mrf.mxu0
        %2507 = vmatprep.mubr.f32.mxu0 0.0
        %2508 = vmatmul.mubr.f32.gmra.mxu0 %v2325
        %v2509 = vpop.f32.mrf.mxu0
        %v2510 = vadd.f32 0.0, %v2509
        %v2511 = vpop.f32.mrf.mxu0
        %2512 = vmatprep.mubr.f32.mxu0 0.0
        %2513 = vmatmul.mubr.f32.gmra.mxu0 %v2328
        %v2514 = vpop.f32.mrf.mxu0
        %v2515 = vadd.f32 0.0, %v2514
        %v2516 = vpop.f32.mrf.mxu0
        %2517 = vmatprep.mubr.f32.mxu0 0.0
        %2518 = vmatmul.mubr.f32.gmra.mxu0 %v2331
        %v2519 = vpop.f32.mrf.mxu0
        %v2520 = vadd.f32 0.0, %v2519
        %v2521 = vpop.f32.mrf.mxu0
        %2522 = vmatprep.mubr.f32.mxu0 0.0
        %2523 = vmatmul.mubr.f32.gmra.mxu0 %v2334
        %v2524 = vpop.f32.mrf.mxu0
        %v2525 = vadd.f32 0.0, %v2524
        %v2526 = vpop.f32.mrf.mxu0
        %2527 = vmatprep.mubr.f32.mxu0 0.0
        %2528 = vmatmul.mubr.f32.gmra.mxu0 %v2337
        %v2529 = vpop.f32.mrf.mxu0
        %v2530 = vadd.f32 0.0, %v2529
        %v2531 = vpop.f32.mrf.mxu0
        %2532 = vmatprep.mubr.f32.mxu0 0.0
        %2533 = vmatmul.mubr.f32.gmra.mxu0 %v2340
        %v2534 = vpop.f32.mrf.mxu0
        %v2535 = vadd.f32 0.0, %v2534
        %v2536 = vpop.f32.mrf.mxu0
        %2537 = vmatprep.mubr.f32.mxu0 0.0
        %2538 = vmatmul.mubr.f32.gmra.mxu0 %v2343
        %v2539 = vpop.f32.mrf.mxu0
        %v2540 = vadd.f32 0.0, %v2539
        %v2541 = vpop.f32.mrf.mxu0
        %2542 = vmatprep.mubr.f32.mxu0 0.0
        %2543 = vmatmul.mubr.f32.gmra.mxu0 %v2346
        %v2544 = vpop.f32.mrf.mxu0
        %v2545 = vadd.f32 0.0, %v2544
        %v2546 = vpop.f32.mrf.mxu0
        %2547 = vmatprep.mubr.f32.mxu0 0.0
        %2548 = vmatmul.mubr.f32.gmra.mxu0 %v2349
        %v2549 = vpop.f32.mrf.mxu0
        %v2550 = vadd.f32 0.0, %v2549
        %v2551 = vpop.f32.mrf.mxu0
        %2552 = vmatprep.mubr.f32.mxu0 0.0
        %2553 = vmatmul.mubr.f32.gmra.mxu0 %v2352
        %v2554 = vpop.f32.mrf.mxu0
        %v2555 = vadd.f32 0.0, %v2554
        %v2556 = vpop.f32.mrf.mxu0
        %2557 = vmatprep.mubr.f32.mxu0 0.0
        %2558 = vmatmul.mubr.f32.gmra.mxu0 %v2355
        %v2559 = vpop.f32.mrf.mxu0
        %v2560 = vadd.f32 0.0, %v2559
        %v2561 = vpop.f32.mrf.mxu0
        %2562 = vmatprep.mubr.f32.mxu0 0.0
        %2563 = vmatmul.mubr.f32.gmra.mxu0 %v2358
        %v2564 = vpop.f32.mrf.mxu0
        %v2565 = vadd.f32 0.0, %v2564
        %v2566 = vpop.f32.mrf.mxu0
        %2567 = vmatprep.mubr.f32.mxu0 0.0
        %2568 = vmatmul.mubr.f32.gmra.mxu0 %v2361
        %v2569 = vpop.f32.mrf.mxu0
        %v2570 = vadd.f32 0.0, %v2569
        %v2571 = vpop.f32.mrf.mxu0
        %2572 = vmatprep.mubr.f32.mxu0 0.0
        %2573 = vmatmul.mubr.f32.gmra.mxu0 %v2364
        %v2574 = vpop.f32.mrf.mxu0
        %v2575 = vadd.f32 0.0, %v2574
        %v2576 = vpop.f32.mrf.mxu0
        %2577 = vmatprep.mubr.f32.mxu0 0.0
        %2578 = vmatmul.mubr.f32.gmra.mxu0 %v2367
        %v2579 = vpop.f32.mrf.mxu0
        %v2580 = vadd.f32 0.0, %v2579
        %v2581 = vpop.f32.mrf.mxu0
        %2582 = vmatprep.mubr.f32.mxu0 0.0
        %2583 = vmatmul.mubr.f32.gmra.mxu0 %v2370
        %v2584 = vpop.f32.mrf.mxu0
        %v2585 = vadd.f32 0.0, %v2584
        %v2586 = vpop.f32.mrf.mxu0
        %2587 = vmatprep.mubr.f32.mxu0 0.0
        %2588 = vmatmul.mubr.f32.gmra.mxu0 %v2373
        %v2589 = vpop.f32.mrf.mxu0
        %v2590 = vadd.f32 0.0, %v2589
        %v2591 = vpop.f32.mrf.mxu0
        %2592 = vmatprep.mubr.f32.mxu0 0.0
        %2593 = vmatmul.mubr.f32.gmra.mxu0 %v2376
        %v2594 = vpop.f32.mrf.mxu0
        %v2595 = vadd.f32 0.0, %v2594
        %v2596 = vpop.f32.mrf.mxu0
        %2597 = vmatprep.mubr.f32.mxu0 0.0
        %2598 = vmatmul.mubr.f32.gmra.mxu0 %v2379
        %v2599 = vpop.f32.mrf.mxu0
        %v2600 = vadd.f32 0.0, %v2599
        %v2601 = vpop.f32.mrf.mxu0
        %2602 = vmatprep.mubr.f32.mxu0 0.0
        %2603 = vmatmul.mubr.f32.gmra.mxu0 %v2382
        %v2604 = vpop.f32.mrf.mxu0
        %v2605 = vadd.f32 0.0, %v2604
        %v2606 = vpop.f32.mrf.mxu0
        %2607 = vmatprep.mubr.f32.mxu0 0.0
        %2608 = vmatmul.mubr.f32.gmra.mxu0 %v2385
        %v2609 = vpop.f32.mrf.mxu0
        %v2610 = vadd.f32 0.0, %v2609
        %v2611 = vpop.f32.mrf.mxu0
        %2612 = vmatprep.mubr.f32.mxu0 0.0
        %2613 = vmatmul.mubr.f32.gmra.mxu0 %v2388
        %v2614 = vpop.f32.mrf.mxu0
        %v2615 = vadd.f32 0.0, %v2614
        %v2616 = vpop.f32.mrf.mxu0
        %2617 = vdwg.mxu0
        %v2618 = vadd.f32 %v2228, %v2460
        %v2619 = vadd.f32 %v2229, %v2465
        %v2620 = vadd.f32 %v2230, %v2470
        %v2621 = vadd.f32 %v2231, %v2475
        %v2622 = vadd.f32 %v2232, %v2480
        %v2623 = vadd.f32 %v2233, %v2485
        %v2624 = vadd.f32 %v2234, %v2490
        %v2625 = vadd.f32 %v2235, %v2495
        %v2626 = vadd.f32 %v2236, %v2500
        %v2627 = vadd.f32 %v2237, %v2505
        %v2628 = vadd.f32 %v2238, %v2510
        %v2629 = vadd.f32 %v2239, %v2515
        %v2630 = vadd.f32 %v2240, %v2520
        %v2631 = vadd.f32 %v2241, %v2525
        %v2632 = vadd.f32 %v2242, %v2530
        %v2633 = vadd.f32 %v2243, %v2535
        %v2634 = vadd.f32 %v2244, %v2540
        %v2635 = vadd.f32 %v2245, %v2545
        %v2636 = vadd.f32 %v2246, %v2550
        %v2637 = vadd.f32 %v2247, %v2555
        %v2638 = vadd.f32 %v2248, %v2560
        %v2639 = vadd.f32 %v2249, %v2565
        %v2640 = vadd.f32 %v2250, %v2570
        %v2641 = vadd.f32 %v2251, %v2575
        %v2642 = vadd.f32 %v2252, %v2580
        %v2643 = vadd.f32 %v2253, %v2585
        %v2644 = vadd.f32 %v2254, %v2590
        %v2645 = vadd.f32 %v2255, %v2595
        %v2646 = vadd.f32 %v2256, %v2600
        %v2647 = vadd.f32 %v2257, %v2605
        %v2648 = vadd.f32 %v2258, %v2610
        %v2649 = vadd.f32 %v2259, %v2615
        %s2650 = scalar_lea.vmem [#allocation2], 48
        %v2651 = vld [vmem:[%s2650] sm:$0xff]
        %v2652 = vld [vmem:[%s2650 + $0x8] sm:$0xff]
        %v2653 = vld [vmem:[%s2650 + $0x18] sm:$0xff]
        %v2654 = vld [vmem:[%s2650 + $0x20] sm:$0xff]
        %v2655 = vld [vmem:[%s2650 + $0x30] sm:$0xff]
        %v2656 = vld [vmem:[%s2650 + $0x38] sm:$0xff]
        %v2657 = vld [vmem:[%s2650 + $0x48] sm:$0xff]
        %v2658 = vld [vmem:[%s2650 + $0x50] sm:$0xff]
        %v2659 = vld [vmem:[%s2650 + $0x60] sm:$0xff]
        %v2660 = vld [vmem:[%s2650 + $0x68] sm:$0xff]
        %v2661 = vld [vmem:[%s2650 + $0x78] sm:$0xff]
        %v2662 = vld [vmem:[%s2650 + $0x80] sm:$0xff]
        %v2663 = vld [vmem:[%s2650 + $0x90] sm:$0xff]
        %v2664 = vld [vmem:[%s2650 + $0x98] sm:$0xff]
        %v2665 = vld [vmem:[%s2650 + $0xa8] sm:$0xff]
        %v2666 = vld [vmem:[%s2650 + $0xb0] sm:$0xff]
        %v2667 = vld [vmem:[%s2650 + $0xc0] sm:$0xff]
        %v2668 = vld [vmem:[%s2650 + $0xc8] sm:$0xff]
        %v2669 = vld [vmem:[%s2650 + $0xd8] sm:$0xff]
        %v2670 = vld [vmem:[%s2650 + $0xe0] sm:$0xff]
        %v2671 = vld [vmem:[%s2650 + $0xf0] sm:$0xff]
        %v2672 = vld [vmem:[%s2650 + $0xf8] sm:$0xff]
        %v2673 = vld [vmem:[%s2650 + $0x108] sm:$0xff]
        %v2674 = vld [vmem:[%s2650 + $0x110] sm:$0xff]
        %v2675 = vld [vmem:[%s2650 + $0x120] sm:$0xff]
        %v2676 = vld [vmem:[%s2650 + $0x128] sm:$0xff]
        %v2677 = vld [vmem:[%s2650 + $0x138] sm:$0xff]
        %v2678 = vld [vmem:[%s2650 + $0x140] sm:$0xff]
        %v2679 = vld [vmem:[%s2650 + $0x150] sm:$0xff]
        %v2680 = vld [vmem:[%s2650 + $0x158] sm:$0xff]
        %v2681 = vld [vmem:[%s2650 + $0x168] sm:$0xff]
        %v2682 = vld [vmem:[%s2650 + $0x170] sm:$0xff]
        %s2683 = scalar_lea.vmem %s1, 24
        %v2684 = vld [vmem:[%s2683] sm:$0xf]
        %v2686 = vsel %vm196, %v2651, 0
        %v2689 = vsel %vm196, %v2652, 0
        %v2692 = vsel %vm196, %v2653, 0
        %v2695 = vsel %vm196, %v2654, 0
        %v2698 = vsel %vm196, %v2655, 0
        %v2701 = vsel %vm196, %v2656, 0
        %v2704 = vsel %vm196, %v2657, 0
        %v2707 = vsel %vm196, %v2658, 0
        %v2710 = vsel %vm196, %v2659, 0
        %v2713 = vsel %vm196, %v2660, 0
        %v2716 = vsel %vm196, %v2661, 0
        %v2719 = vsel %vm196, %v2662, 0
        %v2722 = vsel %vm196, %v2663, 0
        %v2725 = vsel %vm196, %v2664, 0
        %v2728 = vsel %vm196, %v2665, 0
        %v2731 = vsel %vm196, %v2666, 0
        %v2734 = vsel %vm196, %v2667, 0
        %v2737 = vsel %vm196, %v2668, 0
        %v2740 = vsel %vm196, %v2669, 0
        %v2743 = vsel %vm196, %v2670, 0
        %v2746 = vsel %vm196, %v2671, 0
        %v2749 = vsel %vm196, %v2672, 0
        %v2752 = vsel %vm196, %v2673, 0
        %v2755 = vsel %vm196, %v2674, 0
        %v2758 = vsel %vm196, %v2675, 0
        %v2761 = vsel %vm196, %v2676, 0
        %v2764 = vsel %vm196, %v2677, 0
        %v2767 = vsel %vm196, %v2678, 0
        %v2770 = vsel %vm196, %v2679, 0
        %v2773 = vsel %vm196, %v2680, 0
        %v2776 = vsel %vm196, %v2681, 0
        %v2779 = vsel %vm196, %v2682, 0
        %v2782 = vsel %vm537, %v2684, 0
        %2784 = vmatprep.subr.mxu0 0.0
        %2785 = vmatpush1.msra.mxu0 0.0
        %2786 = vmatprep.subr.mxu0 0.0
        %2787 = vmatpush1.msra.mxu0 0.0
        %2788 = vmatprep.subr.mxu0 0.0
        %2789 = vmatpush1.msra.mxu0 0.0
        %2790 = vmatprep.subr.mxu0 0.0
        %2791 = vmatpush1.msra.mxu0 0.0
        %2792 = vmatprep.subr.mxu0 0.0
        %2793 = vmatpush1.msra.mxu0 0.0
        %2794 = vmatprep.subr.mxu0 0.0
        %2795 = vmatpush1.msra.mxu0 0.0
        %2796 = vmatprep.subr.mxu0 0.0
        %2797 = vmatpush1.msra.mxu0 0.0
        %2798 = vmatprep.subr.mxu0 0.0
        %2799 = vmatpush1.msra.mxu0 0.0
        %2800 = vmatprep.subr.mxu0 0.0
        %2801 = vmatpush1.msra.mxu0 0.0
        %2802 = vmatprep.subr.mxu0 0.0
        %2803 = vmatpush1.msra.mxu0 0.0
        %2804 = vmatprep.subr.mxu0 0.0
        %2805 = vmatpush1.msra.mxu0 0.0
        %2806 = vmatprep.subr.mxu0 0.0
        %2807 = vmatpush1.msra.mxu0 0.0
        %2808 = vmatprep.subr.mxu0 0.0
        %2809 = vmatpush1.msra.mxu0 0.0
        %2810 = vmatprep.subr.mxu0 0.0
        %2811 = vmatpush1.msra.mxu0 0.0
        %2812 = vmatprep.subr.mxu0 0.0
        %2813 = vmatpush1.msra.mxu0 0.0
        %2814 = vmatprep.subr.mxu0 0.0
        %2815 = vmatpush1.msra.mxu0 %v2782
        %2816 = vmatprep.subr.mxu0 0.0
        %2817 = vmatpush2.msra.mxu0 0.0
        %2818 = vmatprep.subr.mxu0 0.0
        %2819 = vmatpush2.msra.mxu0 0.0
        %2820 = vmatprep.subr.mxu0 0.0
        %2821 = vmatpush2.msra.mxu0 0.0
        %2822 = vmatprep.subr.mxu0 0.0
        %2823 = vmatpush2.msra.mxu0 0.0
        %2824 = vmatprep.subr.mxu0 0.0
        %2825 = vmatpush2.msra.mxu0 0.0
        %2826 = vmatprep.subr.mxu0 0.0
        %2827 = vmatpush2.msra.mxu0 0.0
        %2828 = vmatprep.subr.mxu0 0.0
        %2829 = vmatpush2.msra.mxu0 0.0
        %2830 = vmatprep.subr.mxu0 0.0
        %2831 = vmatpush2.msra.mxu0 0.0
        %2832 = vmatprep.subr.mxu0 0.0
        %2833 = vmatpush2.msra.mxu0 0.0
        %2834 = vmatprep.subr.mxu0 0.0
        %2835 = vmatpush2.msra.mxu0 0.0
        %2836 = vmatprep.subr.mxu0 0.0
        %2837 = vmatpush2.msra.mxu0 0.0
        %2838 = vmatprep.subr.mxu0 0.0
        %2839 = vmatpush2.msra.mxu0 0.0
        %2840 = vmatprep.subr.mxu0 0.0
        %2841 = vmatpush2.msra.mxu0 0.0
        %2842 = vmatprep.subr.mxu0 0.0
        %2843 = vmatpush2.msra.mxu0 0.0
        %2844 = vmatprep.subr.mxu0 0.0
        %2845 = vmatpush2.msra.mxu0 0.0
        %2846 = vmatprep.subr.mxu0 0.0
        %2847 = vmatpush2.msra.mxu0 0.0
        %2848 = vmatprep.mubr.f32.mxu0 0.0
        %2849 = vmatmul.mubr.f32.gmra.mxu0 %v2686
        %v2850 = vpop.f32.mrf.mxu0
        %v2851 = vadd.f32 0.0, %v2850
        %v2852 = vpop.f32.mrf.mxu0
        %2853 = vmatprep.mubr.f32.mxu0 0.0
        %2854 = vmatmul.mubr.f32.gmra.mxu0 %v2689
        %v2855 = vpop.f32.mrf.mxu0
        %v2856 = vadd.f32 0.0, %v2855
        %v2857 = vpop.f32.mrf.mxu0
        %2858 = vmatprep.mubr.f32.mxu0 0.0
        %2859 = vmatmul.mubr.f32.gmra.mxu0 %v2692
        %v2860 = vpop.f32.mrf.mxu0
        %v2861 = vadd.f32 0.0, %v2860
        %v2862 = vpop.f32.mrf.mxu0
        %2863 = vmatprep.mubr.f32.mxu0 0.0
        %2864 = vmatmul.mubr.f32.gmra.mxu0 %v2695
        %v2865 = vpop.f32.mrf.mxu0
        %v2866 = vadd.f32 0.0, %v2865
        %v2867 = vpop.f32.mrf.mxu0
        %2868 = vmatprep.mubr.f32.mxu0 0.0
        %2869 = vmatmul.mubr.f32.gmra.mxu0 %v2698
        %v2870 = vpop.f32.mrf.mxu0
        %v2871 = vadd.f32 0.0, %v2870
        %v2872 = vpop.f32.mrf.mxu0
        %2873 = vmatprep.mubr.f32.mxu0 0.0
        %2874 = vmatmul.mubr.f32.gmra.mxu0 %v2701
        %v2875 = vpop.f32.mrf.mxu0
        %v2876 = vadd.f32 0.0, %v2875
        %v2877 = vpop.f32.mrf.mxu0
        %2878 = vmatprep.mubr.f32.mxu0 0.0
        %2879 = vmatmul.mubr.f32.gmra.mxu0 %v2704
        %v2880 = vpop.f32.mrf.mxu0
        %v2881 = vadd.f32 0.0, %v2880
        %v2882 = vpop.f32.mrf.mxu0
        %2883 = vmatprep.mubr.f32.mxu0 0.0
        %2884 = vmatmul.mubr.f32.gmra.mxu0 %v2707
        %v2885 = vpop.f32.mrf.mxu0
        %v2886 = vadd.f32 0.0, %v2885
        %v2887 = vpop.f32.mrf.mxu0
        %2888 = vmatprep.mubr.f32.mxu0 0.0
        %2889 = vmatmul.mubr.f32.gmra.mxu0 %v2710
        %v2890 = vpop.f32.mrf.mxu0
        %v2891 = vadd.f32 0.0, %v2890
        %v2892 = vpop.f32.mrf.mxu0
        %2893 = vmatprep.mubr.f32.mxu0 0.0
        %2894 = vmatmul.mubr.f32.gmra.mxu0 %v2713
        %v2895 = vpop.f32.mrf.mxu0
        %v2896 = vadd.f32 0.0, %v2895
        %v2897 = vpop.f32.mrf.mxu0
        %2898 = vmatprep.mubr.f32.mxu0 0.0
        %2899 = vmatmul.mubr.f32.gmra.mxu0 %v2716
        %v2900 = vpop.f32.mrf.mxu0
        %v2901 = vadd.f32 0.0, %v2900
        %v2902 = vpop.f32.mrf.mxu0
        %2903 = vmatprep.mubr.f32.mxu0 0.0
        %2904 = vmatmul.mubr.f32.gmra.mxu0 %v2719
        %v2905 = vpop.f32.mrf.mxu0
        %v2906 = vadd.f32 0.0, %v2905
        %v2907 = vpop.f32.mrf.mxu0
        %2908 = vmatprep.mubr.f32.mxu0 0.0
        %2909 = vmatmul.mubr.f32.gmra.mxu0 %v2722
        %v2910 = vpop.f32.mrf.mxu0
        %v2911 = vadd.f32 0.0, %v2910
        %v2912 = vpop.f32.mrf.mxu0
        %2913 = vmatprep.mubr.f32.mxu0 0.0
        %2914 = vmatmul.mubr.f32.gmra.mxu0 %v2725
        %v2915 = vpop.f32.mrf.mxu0
        %v2916 = vadd.f32 0.0, %v2915
        %v2917 = vpop.f32.mrf.mxu0
        %2918 = vmatprep.mubr.f32.mxu0 0.0
        %2919 = vmatmul.mubr.f32.gmra.mxu0 %v2728
        %v2920 = vpop.f32.mrf.mxu0
        %v2921 = vadd.f32 0.0, %v2920
        %v2922 = vpop.f32.mrf.mxu0
        %2923 = vmatprep.mubr.f32.mxu0 0.0
        %2924 = vmatmul.mubr.f32.gmra.mxu0 %v2731
        %v2925 = vpop.f32.mrf.mxu0
        %v2926 = vadd.f32 0.0, %v2925
        %v2927 = vpop.f32.mrf.mxu0
        %2928 = vmatprep.mubr.f32.mxu0 0.0
        %2929 = vmatmul.mubr.f32.gmra.mxu0 %v2734
        %v2930 = vpop.f32.mrf.mxu0
        %v2931 = vadd.f32 0.0, %v2930
        %v2932 = vpop.f32.mrf.mxu0
        %2933 = vmatprep.mubr.f32.mxu0 0.0
        %2934 = vmatmul.mubr.f32.gmra.mxu0 %v2737
        %v2935 = vpop.f32.mrf.mxu0
        %v2936 = vadd.f32 0.0, %v2935
        %v2937 = vpop.f32.mrf.mxu0
        %2938 = vmatprep.mubr.f32.mxu0 0.0
        %2939 = vmatmul.mubr.f32.gmra.mxu0 %v2740
        %v2940 = vpop.f32.mrf.mxu0
        %v2941 = vadd.f32 0.0, %v2940
        %v2942 = vpop.f32.mrf.mxu0
        %2943 = vmatprep.mubr.f32.mxu0 0.0
        %2944 = vmatmul.mubr.f32.gmra.mxu0 %v2743
        %v2945 = vpop.f32.mrf.mxu0
        %v2946 = vadd.f32 0.0, %v2945
        %v2947 = vpop.f32.mrf.mxu0
        %2948 = vmatprep.mubr.f32.mxu0 0.0
        %2949 = vmatmul.mubr.f32.gmra.mxu0 %v2746
        %v2950 = vpop.f32.mrf.mxu0
        %v2951 = vadd.f32 0.0, %v2950
        %v2952 = vpop.f32.mrf.mxu0
        %2953 = vmatprep.mubr.f32.mxu0 0.0
        %2954 = vmatmul.mubr.f32.gmra.mxu0 %v2749
        %v2955 = vpop.f32.mrf.mxu0
        %v2956 = vadd.f32 0.0, %v2955
        %v2957 = vpop.f32.mrf.mxu0
        %2958 = vmatprep.mubr.f32.mxu0 0.0
        %2959 = vmatmul.mubr.f32.gmra.mxu0 %v2752
        %v2960 = vpop.f32.mrf.mxu0
        %v2961 = vadd.f32 0.0, %v2960
        %v2962 = vpop.f32.mrf.mxu0
        %2963 = vmatprep.mubr.f32.mxu0 0.0
        %2964 = vmatmul.mubr.f32.gmra.mxu0 %v2755
        %v2965 = vpop.f32.mrf.mxu0
        %v2966 = vadd.f32 0.0, %v2965
        %v2967 = vpop.f32.mrf.mxu0
        %2968 = vmatprep.mubr.f32.mxu0 0.0
        %2969 = vmatmul.mubr.f32.gmra.mxu0 %v2758
        %v2970 = vpop.f32.mrf.mxu0
        %v2971 = vadd.f32 0.0, %v2970
        %v2972 = vpop.f32.mrf.mxu0
        %2973 = vmatprep.mubr.f32.mxu0 0.0
        %2974 = vmatmul.mubr.f32.gmra.mxu0 %v2761
        %v2975 = vpop.f32.mrf.mxu0
        %v2976 = vadd.f32 0.0, %v2975
        %v2977 = vpop.f32.mrf.mxu0
        %2978 = vmatprep.mubr.f32.mxu0 0.0
        %2979 = vmatmul.mubr.f32.gmra.mxu0 %v2764
        %v2980 = vpop.f32.mrf.mxu0
        %v2981 = vadd.f32 0.0, %v2980
        %v2982 = vpop.f32.mrf.mxu0
        %2983 = vmatprep.mubr.f32.mxu0 0.0
        %2984 = vmatmul.mubr.f32.gmra.mxu0 %v2767
        %v2985 = vpop.f32.mrf.mxu0
        %v2986 = vadd.f32 0.0, %v2985
        %v2987 = vpop.f32.mrf.mxu0
        %2988 = vmatprep.mubr.f32.mxu0 0.0
        %2989 = vmatmul.mubr.f32.gmra.mxu0 %v2770
        %v2990 = vpop.f32.mrf.mxu0
        %v2991 = vadd.f32 0.0, %v2990
        %v2992 = vpop.f32.mrf.mxu0
        %2993 = vmatprep.mubr.f32.mxu0 0.0
        %2994 = vmatmul.mubr.f32.gmra.mxu0 %v2773
        %v2995 = vpop.f32.mrf.mxu0
        %v2996 = vadd.f32 0.0, %v2995
        %v2997 = vpop.f32.mrf.mxu0
        %2998 = vmatprep.mubr.f32.mxu0 0.0
        %2999 = vmatmul.mubr.f32.gmra.mxu0 %v2776
        %v3000 = vpop.f32.mrf.mxu0
        %v3001 = vadd.f32 0.0, %v3000
        %v3002 = vpop.f32.mrf.mxu0
        %3003 = vmatprep.mubr.f32.mxu0 0.0
        %3004 = vmatmul.mubr.f32.gmra.mxu0 %v2779
        %v3005 = vpop.f32.mrf.mxu0
        %v3006 = vadd.f32 0.0, %v3005
        %v3007 = vpop.f32.mrf.mxu0
        %3008 = vdwg.mxu0
        %v3009 = vadd.f32 %v2618, %v2851
        %v3010 = vadd.f32 %v2619, %v2856
        %v3011 = vadd.f32 %v2620, %v2861
        %v3012 = vadd.f32 %v2621, %v2866
        %v3013 = vadd.f32 %v2622, %v2871
        %v3014 = vadd.f32 %v2623, %v2876
        %v3015 = vadd.f32 %v2624, %v2881
        %v3016 = vadd.f32 %v2625, %v2886
        %v3017 = vadd.f32 %v2626, %v2891
        %v3018 = vadd.f32 %v2627, %v2896
        %v3019 = vadd.f32 %v2628, %v2901
        %v3020 = vadd.f32 %v2629, %v2906
        %v3021 = vadd.f32 %v2630, %v2911
        %v3022 = vadd.f32 %v2631, %v2916
        %v3023 = vadd.f32 %v2632, %v2921
        %v3024 = vadd.f32 %v2633, %v2926
        %v3025 = vadd.f32 %v2634, %v2931
        %v3026 = vadd.f32 %v2635, %v2936
        %v3027 = vadd.f32 %v2636, %v2941
        %v3028 = vadd.f32 %v2637, %v2946
        %v3029 = vadd.f32 %v2638, %v2951
        %v3030 = vadd.f32 %v2639, %v2956
        %v3031 = vadd.f32 %v2640, %v2961
        %v3032 = vadd.f32 %v2641, %v2966
        %v3033 = vadd.f32 %v2642, %v2971
        %v3034 = vadd.f32 %v2643, %v2976
        %v3035 = vadd.f32 %v2644, %v2981
        %v3036 = vadd.f32 %v2645, %v2986
        %v3037 = vadd.f32 %v2646, %v2991
        %v3038 = vadd.f32 %v2647, %v2996
        %v3039 = vadd.f32 %v2648, %v3001
        %v3040 = vadd.f32 %v2649, %v3006
        %v3041 = vld [vmem:[%s2650 + $0x1] sm:$0xff]
        %v3042 = vld [vmem:[%s2650 + $0x9] sm:$0xff]
        %v3043 = vld [vmem:[%s2650 + $0x19] sm:$0xff]
        %v3044 = vld [vmem:[%s2650 + $0x21] sm:$0xff]
        %v3045 = vld [vmem:[%s2650 + $0x31] sm:$0xff]
        %v3046 = vld [vmem:[%s2650 + $0x39] sm:$0xff]
        %v3047 = vld [vmem:[%s2650 + $0x49] sm:$0xff]
        %v3048 = vld [vmem:[%s2650 + $0x51] sm:$0xff]
        %v3049 = vld [vmem:[%s2650 + $0x61] sm:$0xff]
        %v3050 = vld [vmem:[%s2650 + $0x69] sm:$0xff]
        %v3051 = vld [vmem:[%s2650 + $0x79] sm:$0xff]
        %v3052 = vld [vmem:[%s2650 + $0x81] sm:$0xff]
        %v3053 = vld [vmem:[%s2650 + $0x91] sm:$0xff]
        %v3054 = vld [vmem:[%s2650 + $0x99] sm:$0xff]
        %v3055 = vld [vmem:[%s2650 + $0xa9] sm:$0xff]
        %v3056 = vld [vmem:[%s2650 + $0xb1] sm:$0xff]
        %v3057 = vld [vmem:[%s2650 + $0xc1] sm:$0xff]
        %v3058 = vld [vmem:[%s2650 + $0xc9] sm:$0xff]
        %v3059 = vld [vmem:[%s2650 + $0xd9] sm:$0xff]
        %v3060 = vld [vmem:[%s2650 + $0xe1] sm:$0xff]
        %v3061 = vld [vmem:[%s2650 + $0xf1] sm:$0xff]
        %v3062 = vld [vmem:[%s2650 + $0xf9] sm:$0xff]
        %v3063 = vld [vmem:[%s2650 + $0x109] sm:$0xff]
        %v3064 = vld [vmem:[%s2650 + $0x111] sm:$0xff]
        %v3065 = vld [vmem:[%s2650 + $0x121] sm:$0xff]
        %v3066 = vld [vmem:[%s2650 + $0x129] sm:$0xff]
        %v3067 = vld [vmem:[%s2650 + $0x139] sm:$0xff]
        %v3068 = vld [vmem:[%s2650 + $0x141] sm:$0xff]
        %v3069 = vld [vmem:[%s2650 + $0x151] sm:$0xff]
        %v3070 = vld [vmem:[%s2650 + $0x159] sm:$0xff]
        %v3071 = vld [vmem:[%s2650 + $0x169] sm:$0xff]
        %v3072 = vld [vmem:[%s2650 + $0x171] sm:$0xff]
        %s3073 = scalar_lea.vmem %s1, 28
        %v3074 = vld [vmem:[%s3073] sm:$0xf]
        %v3076 = vsel %vm196, %v3041, 0
        %v3079 = vsel %vm196, %v3042, 0
        %v3082 = vsel %vm196, %v3043, 0
        %v3085 = vsel %vm196, %v3044, 0
        %v3088 = vsel %vm196, %v3045, 0
        %v3091 = vsel %vm196, %v3046, 0
        %v3094 = vsel %vm196, %v3047, 0
        %v3097 = vsel %vm196, %v3048, 0
        %v3100 = vsel %vm196, %v3049, 0
        %v3103 = vsel %vm196, %v3050, 0
        %v3106 = vsel %vm196, %v3051, 0
        %v3109 = vsel %vm196, %v3052, 0
        %v3112 = vsel %vm196, %v3053, 0
        %v3115 = vsel %vm196, %v3054, 0
        %v3118 = vsel %vm196, %v3055, 0
        %v3121 = vsel %vm196, %v3056, 0
        %v3124 = vsel %vm196, %v3057, 0
        %v3127 = vsel %vm196, %v3058, 0
        %v3130 = vsel %vm196, %v3059, 0
        %v3133 = vsel %vm196, %v3060, 0
        %v3136 = vsel %vm196, %v3061, 0
        %v3139 = vsel %vm196, %v3062, 0
        %v3142 = vsel %vm196, %v3063, 0
        %v3145 = vsel %vm196, %v3064, 0
        %v3148 = vsel %vm196, %v3065, 0
        %v3151 = vsel %vm196, %v3066, 0
        %v3154 = vsel %vm196, %v3067, 0
        %v3157 = vsel %vm196, %v3068, 0
        %v3160 = vsel %vm196, %v3069, 0
        %v3163 = vsel %vm196, %v3070, 0
        %v3166 = vsel %vm196, %v3071, 0
        %v3169 = vsel %vm196, %v3072, 0
        %v3172 = vsel %vm537, %v3074, 0
        %3174 = vmatprep.subr.mxu0 0.0
        %3175 = vmatpush1.msra.mxu0 0.0
        %3176 = vmatprep.subr.mxu0 0.0
        %3177 = vmatpush1.msra.mxu0 0.0
        %3178 = vmatprep.subr.mxu0 0.0
        %3179 = vmatpush1.msra.mxu0 0.0
        %3180 = vmatprep.subr.mxu0 0.0
        %3181 = vmatpush1.msra.mxu0 0.0
        %3182 = vmatprep.subr.mxu0 0.0
        %3183 = vmatpush1.msra.mxu0 0.0
        %3184 = vmatprep.subr.mxu0 0.0
        %3185 = vmatpush1.msra.mxu0 0.0
        %3186 = vmatprep.subr.mxu0 0.0
        %3187 = vmatpush1.msra.mxu0 0.0
        %3188 = vmatprep.subr.mxu0 0.0
        %3189 = vmatpush1.msra.mxu0 0.0
        %3190 = vmatprep.subr.mxu0 0.0
        %3191 = vmatpush1.msra.mxu0 0.0
        %3192 = vmatprep.subr.mxu0 0.0
        %3193 = vmatpush1.msra.mxu0 0.0
        %3194 = vmatprep.subr.mxu0 0.0
        %3195 = vmatpush1.msra.mxu0 0.0
        %3196 = vmatprep.subr.mxu0 0.0
        %3197 = vmatpush1.msra.mxu0 0.0
        %3198 = vmatprep.subr.mxu0 0.0
        %3199 = vmatpush1.msra.mxu0 0.0
        %3200 = vmatprep.subr.mxu0 0.0
        %3201 = vmatpush1.msra.mxu0 0.0
        %3202 = vmatprep.subr.mxu0 0.0
        %3203 = vmatpush1.msra.mxu0 0.0
        %3204 = vmatprep.subr.mxu0 0.0
        %3205 = vmatpush1.msra.mxu0 %v3172
        %3206 = vmatprep.subr.mxu0 0.0
        %3207 = vmatpush2.msra.mxu0 0.0
        %3208 = vmatprep.subr.mxu0 0.0
        %3209 = vmatpush2.msra.mxu0 0.0
        %3210 = vmatprep.subr.mxu0 0.0
        %3211 = vmatpush2.msra.mxu0 0.0
        %3212 = vmatprep.subr.mxu0 0.0
        %3213 = vmatpush2.msra.mxu0 0.0
        %3214 = vmatprep.subr.mxu0 0.0
        %3215 = vmatpush2.msra.mxu0 0.0
        %3216 = vmatprep.subr.mxu0 0.0
        %3217 = vmatpush2.msra.mxu0 0.0
        %3218 = vmatprep.subr.mxu0 0.0
        %3219 = vmatpush2.msra.mxu0 0.0
        %3220 = vmatprep.subr.mxu0 0.0
        %3221 = vmatpush2.msra.mxu0 0.0
        %3222 = vmatprep.subr.mxu0 0.0
        %3223 = vmatpush2.msra.mxu0 0.0
        %3224 = vmatprep.subr.mxu0 0.0
        %3225 = vmatpush2.msra.mxu0 0.0
        %3226 = vmatprep.subr.mxu0 0.0
        %3227 = vmatpush2.msra.mxu0 0.0
        %3228 = vmatprep.subr.mxu0 0.0
        %3229 = vmatpush2.msra.mxu0 0.0
        %3230 = vmatprep.subr.mxu0 0.0
        %3231 = vmatpush2.msra.mxu0 0.0
        %3232 = vmatprep.subr.mxu0 0.0
        %3233 = vmatpush2.msra.mxu0 0.0
        %3234 = vmatprep.subr.mxu0 0.0
        %3235 = vmatpush2.msra.mxu0 0.0
        %3236 = vmatprep.subr.mxu0 0.0
        %3237 = vmatpush2.msra.mxu0 0.0
        %3238 = vmatprep.mubr.f32.mxu0 0.0
        %3239 = vmatmul.mubr.f32.gmra.mxu0 %v3076
        %v3240 = vpop.f32.mrf.mxu0
        %v3241 = vadd.f32 0.0, %v3240
        %v3242 = vpop.f32.mrf.mxu0
        %3243 = vmatprep.mubr.f32.mxu0 0.0
        %3244 = vmatmul.mubr.f32.gmra.mxu0 %v3079
        %v3245 = vpop.f32.mrf.mxu0
        %v3246 = vadd.f32 0.0, %v3245
        %v3247 = vpop.f32.mrf.mxu0
        %3248 = vmatprep.mubr.f32.mxu0 0.0
        %3249 = vmatmul.mubr.f32.gmra.mxu0 %v3082
        %v3250 = vpop.f32.mrf.mxu0
        %v3251 = vadd.f32 0.0, %v3250
        %v3252 = vpop.f32.mrf.mxu0
        %3253 = vmatprep.mubr.f32.mxu0 0.0
        %3254 = vmatmul.mubr.f32.gmra.mxu0 %v3085
        %v3255 = vpop.f32.mrf.mxu0
        %v3256 = vadd.f32 0.0, %v3255
        %v3257 = vpop.f32.mrf.mxu0
        %3258 = vmatprep.mubr.f32.mxu0 0.0
        %3259 = vmatmul.mubr.f32.gmra.mxu0 %v3088
        %v3260 = vpop.f32.mrf.mxu0
        %v3261 = vadd.f32 0.0, %v3260
        %v3262 = vpop.f32.mrf.mxu0
        %3263 = vmatprep.mubr.f32.mxu0 0.0
        %3264 = vmatmul.mubr.f32.gmra.mxu0 %v3091
        %v3265 = vpop.f32.mrf.mxu0
        %v3266 = vadd.f32 0.0, %v3265
        %v3267 = vpop.f32.mrf.mxu0
        %3268 = vmatprep.mubr.f32.mxu0 0.0
        %3269 = vmatmul.mubr.f32.gmra.mxu0 %v3094
        %v3270 = vpop.f32.mrf.mxu0
        %v3271 = vadd.f32 0.0, %v3270
        %v3272 = vpop.f32.mrf.mxu0
        %3273 = vmatprep.mubr.f32.mxu0 0.0
        %3274 = vmatmul.mubr.f32.gmra.mxu0 %v3097
        %v3275 = vpop.f32.mrf.mxu0
        %v3276 = vadd.f32 0.0, %v3275
        %v3277 = vpop.f32.mrf.mxu0
        %3278 = vmatprep.mubr.f32.mxu0 0.0
        %3279 = vmatmul.mubr.f32.gmra.mxu0 %v3100
        %v3280 = vpop.f32.mrf.mxu0
        %v3281 = vadd.f32 0.0, %v3280
        %v3282 = vpop.f32.mrf.mxu0
        %3283 = vmatprep.mubr.f32.mxu0 0.0
        %3284 = vmatmul.mubr.f32.gmra.mxu0 %v3103
        %v3285 = vpop.f32.mrf.mxu0
        %v3286 = vadd.f32 0.0, %v3285
        %v3287 = vpop.f32.mrf.mxu0
        %3288 = vmatprep.mubr.f32.mxu0 0.0
        %3289 = vmatmul.mubr.f32.gmra.mxu0 %v3106
        %v3290 = vpop.f32.mrf.mxu0
        %v3291 = vadd.f32 0.0, %v3290
        %v3292 = vpop.f32.mrf.mxu0
        %3293 = vmatprep.mubr.f32.mxu0 0.0
        %3294 = vmatmul.mubr.f32.gmra.mxu0 %v3109
        %v3295 = vpop.f32.mrf.mxu0
        %v3296 = vadd.f32 0.0, %v3295
        %v3297 = vpop.f32.mrf.mxu0
        %3298 = vmatprep.mubr.f32.mxu0 0.0
        %3299 = vmatmul.mubr.f32.gmra.mxu0 %v3112
        %v3300 = vpop.f32.mrf.mxu0
        %v3301 = vadd.f32 0.0, %v3300
        %v3302 = vpop.f32.mrf.mxu0
        %3303 = vmatprep.mubr.f32.mxu0 0.0
        %3304 = vmatmul.mubr.f32.gmra.mxu0 %v3115
        %v3305 = vpop.f32.mrf.mxu0
        %v3306 = vadd.f32 0.0, %v3305
        %v3307 = vpop.f32.mrf.mxu0
        %3308 = vmatprep.mubr.f32.mxu0 0.0
        %3309 = vmatmul.mubr.f32.gmra.mxu0 %v3118
        %v3310 = vpop.f32.mrf.mxu0
        %v3311 = vadd.f32 0.0, %v3310
        %v3312 = vpop.f32.mrf.mxu0
        %3313 = vmatprep.mubr.f32.mxu0 0.0
        %3314 = vmatmul.mubr.f32.gmra.mxu0 %v3121
        %v3315 = vpop.f32.mrf.mxu0
        %v3316 = vadd.f32 0.0, %v3315
        %v3317 = vpop.f32.mrf.mxu0
        %3318 = vmatprep.mubr.f32.mxu0 0.0
        %3319 = vmatmul.mubr.f32.gmra.mxu0 %v3124
        %v3320 = vpop.f32.mrf.mxu0
        %v3321 = vadd.f32 0.0, %v3320
        %v3322 = vpop.f32.mrf.mxu0
        %3323 = vmatprep.mubr.f32.mxu0 0.0
        %3324 = vmatmul.mubr.f32.gmra.mxu0 %v3127
        %v3325 = vpop.f32.mrf.mxu0
        %v3326 = vadd.f32 0.0, %v3325
        %v3327 = vpop.f32.mrf.mxu0
        %3328 = vmatprep.mubr.f32.mxu0 0.0
        %3329 = vmatmul.mubr.f32.gmra.mxu0 %v3130
        %v3330 = vpop.f32.mrf.mxu0
        %v3331 = vadd.f32 0.0, %v3330
        %v3332 = vpop.f32.mrf.mxu0
        %3333 = vmatprep.mubr.f32.mxu0 0.0
        %3334 = vmatmul.mubr.f32.gmra.mxu0 %v3133
        %v3335 = vpop.f32.mrf.mxu0
        %v3336 = vadd.f32 0.0, %v3335
        %v3337 = vpop.f32.mrf.mxu0
        %3338 = vmatprep.mubr.f32.mxu0 0.0
        %3339 = vmatmul.mubr.f32.gmra.mxu0 %v3136
        %v3340 = vpop.f32.mrf.mxu0
        %v3341 = vadd.f32 0.0, %v3340
        %v3342 = vpop.f32.mrf.mxu0
        %3343 = vmatprep.mubr.f32.mxu0 0.0
        %3344 = vmatmul.mubr.f32.gmra.mxu0 %v3139
        %v3345 = vpop.f32.mrf.mxu0
        %v3346 = vadd.f32 0.0, %v3345
        %v3347 = vpop.f32.mrf.mxu0
        %3348 = vmatprep.mubr.f32.mxu0 0.0
        %3349 = vmatmul.mubr.f32.gmra.mxu0 %v3142
        %v3350 = vpop.f32.mrf.mxu0
        %v3351 = vadd.f32 0.0, %v3350
        %v3352 = vpop.f32.mrf.mxu0
        %3353 = vmatprep.mubr.f32.mxu0 0.0
        %3354 = vmatmul.mubr.f32.gmra.mxu0 %v3145
        %v3355 = vpop.f32.mrf.mxu0
        %v3356 = vadd.f32 0.0, %v3355
        %v3357 = vpop.f32.mrf.mxu0
        %3358 = vmatprep.mubr.f32.mxu0 0.0
        %3359 = vmatmul.mubr.f32.gmra.mxu0 %v3148
        %v3360 = vpop.f32.mrf.mxu0
        %v3361 = vadd.f32 0.0, %v3360
        %v3362 = vpop.f32.mrf.mxu0
        %3363 = vmatprep.mubr.f32.mxu0 0.0
        %3364 = vmatmul.mubr.f32.gmra.mxu0 %v3151
        %v3365 = vpop.f32.mrf.mxu0
        %v3366 = vadd.f32 0.0, %v3365
        %v3367 = vpop.f32.mrf.mxu0
        %3368 = vmatprep.mubr.f32.mxu0 0.0
        %3369 = vmatmul.mubr.f32.gmra.mxu0 %v3154
        %v3370 = vpop.f32.mrf.mxu0
        %v3371 = vadd.f32 0.0, %v3370
        %v3372 = vpop.f32.mrf.mxu0
        %3373 = vmatprep.mubr.f32.mxu0 0.0
        %3374 = vmatmul.mubr.f32.gmra.mxu0 %v3157
        %v3375 = vpop.f32.mrf.mxu0
        %v3376 = vadd.f32 0.0, %v3375
        %v3377 = vpop.f32.mrf.mxu0
        %3378 = vmatprep.mubr.f32.mxu0 0.0
        %3379 = vmatmul.mubr.f32.gmra.mxu0 %v3160
        %v3380 = vpop.f32.mrf.mxu0
        %v3381 = vadd.f32 0.0, %v3380
        %v3382 = vpop.f32.mrf.mxu0
        %3383 = vmatprep.mubr.f32.mxu0 0.0
        %3384 = vmatmul.mubr.f32.gmra.mxu0 %v3163
        %v3385 = vpop.f32.mrf.mxu0
        %v3386 = vadd.f32 0.0, %v3385
        %v3387 = vpop.f32.mrf.mxu0
        %3388 = vmatprep.mubr.f32.mxu0 0.0
        %3389 = vmatmul.mubr.f32.gmra.mxu0 %v3166
        %v3390 = vpop.f32.mrf.mxu0
        %v3391 = vadd.f32 0.0, %v3390
        %v3392 = vpop.f32.mrf.mxu0
        %3393 = vmatprep.mubr.f32.mxu0 0.0
        %3394 = vmatmul.mubr.f32.gmra.mxu0 %v3169
        %v3395 = vpop.f32.mrf.mxu0
        %v3396 = vadd.f32 0.0, %v3395
        %v3397 = vpop.f32.mrf.mxu0
        %3398 = vdwg.mxu0
        %v3399 = vadd.f32 %v3009, %v3241
        %v3400 = vadd.f32 %v3010, %v3246
        %v3401 = vadd.f32 %v3011, %v3251
        %v3402 = vadd.f32 %v3012, %v3256
        %v3403 = vadd.f32 %v3013, %v3261
        %v3404 = vadd.f32 %v3014, %v3266
        %v3405 = vadd.f32 %v3015, %v3271
        %v3406 = vadd.f32 %v3016, %v3276
        %v3407 = vadd.f32 %v3017, %v3281
        %v3408 = vadd.f32 %v3018, %v3286
        %v3409 = vadd.f32 %v3019, %v3291
        %v3410 = vadd.f32 %v3020, %v3296
        %v3411 = vadd.f32 %v3021, %v3301
        %v3412 = vadd.f32 %v3022, %v3306
        %v3413 = vadd.f32 %v3023, %v3311
        %v3414 = vadd.f32 %v3024, %v3316
        %v3415 = vadd.f32 %v3025, %v3321
        %v3416 = vadd.f32 %v3026, %v3326
        %v3417 = vadd.f32 %v3027, %v3331
        %v3418 = vadd.f32 %v3028, %v3336
        %v3419 = vadd.f32 %v3029, %v3341
        %v3420 = vadd.f32 %v3030, %v3346
        %v3421 = vadd.f32 %v3031, %v3351
        %v3422 = vadd.f32 %v3032, %v3356
        %v3423 = vadd.f32 %v3033, %v3361
        %v3424 = vadd.f32 %v3034, %v3366
        %v3425 = vadd.f32 %v3035, %v3371
        %v3426 = vadd.f32 %v3036, %v3376
        %v3427 = vadd.f32 %v3037, %v3381
        %v3428 = vadd.f32 %v3038, %v3386
        %v3429 = vadd.f32 %v3039, %v3391
        %v3430 = vadd.f32 %v3040, %v3396
        %v3431 = vld [vmem:[%s2650 + $0x2] sm:$0xff]
        %v3432 = vld [vmem:[%s2650 + $0xa] sm:$0xff]
        %v3433 = vld [vmem:[%s2650 + $0x1a] sm:$0xff]
        %v3434 = vld [vmem:[%s2650 + $0x22] sm:$0xff]
        %v3435 = vld [vmem:[%s2650 + $0x32] sm:$0xff]
        %v3436 = vld [vmem:[%s2650 + $0x3a] sm:$0xff]
        %v3437 = vld [vmem:[%s2650 + $0x4a] sm:$0xff]
        %v3438 = vld [vmem:[%s2650 + $0x52] sm:$0xff]
        %v3439 = vld [vmem:[%s2650 + $0x62] sm:$0xff]
        %v3440 = vld [vmem:[%s2650 + $0x6a] sm:$0xff]
        %v3441 = vld [vmem:[%s2650 + $0x7a] sm:$0xff]
        %v3442 = vld [vmem:[%s2650 + $0x82] sm:$0xff]
        %v3443 = vld [vmem:[%s2650 + $0x92] sm:$0xff]
        %v3444 = vld [vmem:[%s2650 + $0x9a] sm:$0xff]
        %v3445 = vld [vmem:[%s2650 + $0xaa] sm:$0xff]
        %v3446 = vld [vmem:[%s2650 + $0xb2] sm:$0xff]
        %v3447 = vld [vmem:[%s2650 + $0xc2] sm:$0xff]
        %v3448 = vld [vmem:[%s2650 + $0xca] sm:$0xff]
        %v3449 = vld [vmem:[%s2650 + $0xda] sm:$0xff]
        %v3450 = vld [vmem:[%s2650 + $0xe2] sm:$0xff]
        %v3451 = vld [vmem:[%s2650 + $0xf2] sm:$0xff]
        %v3452 = vld [vmem:[%s2650 + $0xfa] sm:$0xff]
        %v3453 = vld [vmem:[%s2650 + $0x10a] sm:$0xff]
        %v3454 = vld [vmem:[%s2650 + $0x112] sm:$0xff]
        %v3455 = vld [vmem:[%s2650 + $0x122] sm:$0xff]
        %v3456 = vld [vmem:[%s2650 + $0x12a] sm:$0xff]
        %v3457 = vld [vmem:[%s2650 + $0x13a] sm:$0xff]
        %v3458 = vld [vmem:[%s2650 + $0x142] sm:$0xff]
        %v3459 = vld [vmem:[%s2650 + $0x152] sm:$0xff]
        %v3460 = vld [vmem:[%s2650 + $0x15a] sm:$0xff]
        %v3461 = vld [vmem:[%s2650 + $0x16a] sm:$0xff]
        %v3462 = vld [vmem:[%s2650 + $0x172] sm:$0xff]
        %s3463 = scalar_lea.vmem %s1, 32
        %v3464 = vld [vmem:[%s3463] sm:$0xf]
        %v3466 = vsel %vm196, %v3431, 0
        %v3469 = vsel %vm196, %v3432, 0
        %v3472 = vsel %vm196, %v3433, 0
        %v3475 = vsel %vm196, %v3434, 0
        %v3478 = vsel %vm196, %v3435, 0
        %v3481 = vsel %vm196, %v3436, 0
        %v3484 = vsel %vm196, %v3437, 0
        %v3487 = vsel %vm196, %v3438, 0
        %v3490 = vsel %vm196, %v3439, 0
        %v3493 = vsel %vm196, %v3440, 0
        %v3496 = vsel %vm196, %v3441, 0
        %v3499 = vsel %vm196, %v3442, 0
        %v3502 = vsel %vm196, %v3443, 0
        %v3505 = vsel %vm196, %v3444, 0
        %v3508 = vsel %vm196, %v3445, 0
        %v3511 = vsel %vm196, %v3446, 0
        %v3514 = vsel %vm196, %v3447, 0
        %v3517 = vsel %vm196, %v3448, 0
        %v3520 = vsel %vm196, %v3449, 0
        %v3523 = vsel %vm196, %v3450, 0
        %v3526 = vsel %vm196, %v3451, 0
        %v3529 = vsel %vm196, %v3452, 0
        %v3532 = vsel %vm196, %v3453, 0
        %v3535 = vsel %vm196, %v3454, 0
        %v3538 = vsel %vm196, %v3455, 0
        %v3541 = vsel %vm196, %v3456, 0
        %v3544 = vsel %vm196, %v3457, 0
        %v3547 = vsel %vm196, %v3458, 0
        %v3550 = vsel %vm196, %v3459, 0
        %v3553 = vsel %vm196, %v3460, 0
        %v3556 = vsel %vm196, %v3461, 0
        %v3559 = vsel %vm196, %v3462, 0
        %v3562 = vsel %vm537, %v3464, 0
        %3564 = vmatprep.subr.mxu0 0.0
        %3565 = vmatpush1.msra.mxu0 0.0
        %3566 = vmatprep.subr.mxu0 0.0
        %3567 = vmatpush1.msra.mxu0 0.0
        %3568 = vmatprep.subr.mxu0 0.0
        %3569 = vmatpush1.msra.mxu0 0.0
        %3570 = vmatprep.subr.mxu0 0.0
        %3571 = vmatpush1.msra.mxu0 0.0
        %3572 = vmatprep.subr.mxu0 0.0
        %3573 = vmatpush1.msra.mxu0 0.0
        %3574 = vmatprep.subr.mxu0 0.0
        %3575 = vmatpush1.msra.mxu0 0.0
        %3576 = vmatprep.subr.mxu0 0.0
        %3577 = vmatpush1.msra.mxu0 0.0
        %3578 = vmatprep.subr.mxu0 0.0
        %3579 = vmatpush1.msra.mxu0 0.0
        %3580 = vmatprep.subr.mxu0 0.0
        %3581 = vmatpush1.msra.mxu0 0.0
        %3582 = vmatprep.subr.mxu0 0.0
        %3583 = vmatpush1.msra.mxu0 0.0
        %3584 = vmatprep.subr.mxu0 0.0
        %3585 = vmatpush1.msra.mxu0 0.0
        %3586 = vmatprep.subr.mxu0 0.0
        %3587 = vmatpush1.msra.mxu0 0.0
        %3588 = vmatprep.subr.mxu0 0.0
        %3589 = vmatpush1.msra.mxu0 0.0
        %3590 = vmatprep.subr.mxu0 0.0
        %3591 = vmatpush1.msra.mxu0 0.0
        %3592 = vmatprep.subr.mxu0 0.0
        %3593 = vmatpush1.msra.mxu0 0.0
        %3594 = vmatprep.subr.mxu0 0.0
        %3595 = vmatpush1.msra.mxu0 %v3562
        %3596 = vmatprep.subr.mxu0 0.0
        %3597 = vmatpush2.msra.mxu0 0.0
        %3598 = vmatprep.subr.mxu0 0.0
        %3599 = vmatpush2.msra.mxu0 0.0
        %3600 = vmatprep.subr.mxu0 0.0
        %3601 = vmatpush2.msra.mxu0 0.0
        %3602 = vmatprep.subr.mxu0 0.0
        %3603 = vmatpush2.msra.mxu0 0.0
        %3604 = vmatprep.subr.mxu0 0.0
        %3605 = vmatpush2.msra.mxu0 0.0
        %3606 = vmatprep.subr.mxu0 0.0
        %3607 = vmatpush2.msra.mxu0 0.0
        %3608 = vmatprep.subr.mxu0 0.0
        %3609 = vmatpush2.msra.mxu0 0.0
        %3610 = vmatprep.subr.mxu0 0.0
        %3611 = vmatpush2.msra.mxu0 0.0
        %3612 = vmatprep.subr.mxu0 0.0
        %3613 = vmatpush2.msra.mxu0 0.0
        %3614 = vmatprep.subr.mxu0 0.0
        %3615 = vmatpush2.msra.mxu0 0.0
        %3616 = vmatprep.subr.mxu0 0.0
        %3617 = vmatpush2.msra.mxu0 0.0
        %3618 = vmatprep.subr.mxu0 0.0
        %3619 = vmatpush2.msra.mxu0 0.0
        %3620 = vmatprep.subr.mxu0 0.0
        %3621 = vmatpush2.msra.mxu0 0.0
        %3622 = vmatprep.subr.mxu0 0.0
        %3623 = vmatpush2.msra.mxu0 0.0
        %3624 = vmatprep.subr.mxu0 0.0
        %3625 = vmatpush2.msra.mxu0 0.0
        %3626 = vmatprep.subr.mxu0 0.0
        %3627 = vmatpush2.msra.mxu0 0.0
        %3628 = vmatprep.mubr.f32.mxu0 0.0
        %3629 = vmatmul.mubr.f32.gmra.mxu0 %v3466
        %v3630 = vpop.f32.mrf.mxu0
        %v3631 = vadd.f32 0.0, %v3630
        %v3632 = vpop.f32.mrf.mxu0
        %3633 = vmatprep.mubr.f32.mxu0 0.0
        %3634 = vmatmul.mubr.f32.gmra.mxu0 %v3469
        %v3635 = vpop.f32.mrf.mxu0
        %v3636 = vadd.f32 0.0, %v3635
        %v3637 = vpop.f32.mrf.mxu0
        %3638 = vmatprep.mubr.f32.mxu0 0.0
        %3639 = vmatmul.mubr.f32.gmra.mxu0 %v3472
        %v3640 = vpop.f32.mrf.mxu0
        %v3641 = vadd.f32 0.0, %v3640
        %v3642 = vpop.f32.mrf.mxu0
        %3643 = vmatprep.mubr.f32.mxu0 0.0
        %3644 = vmatmul.mubr.f32.gmra.mxu0 %v3475
        %v3645 = vpop.f32.mrf.mxu0
        %v3646 = vadd.f32 0.0, %v3645
        %v3647 = vpop.f32.mrf.mxu0
        %3648 = vmatprep.mubr.f32.mxu0 0.0
        %3649 = vmatmul.mubr.f32.gmra.mxu0 %v3478
        %v3650 = vpop.f32.mrf.mxu0
        %v3651 = vadd.f32 0.0, %v3650
        %v3652 = vpop.f32.mrf.mxu0
        %3653 = vmatprep.mubr.f32.mxu0 0.0
        %3654 = vmatmul.mubr.f32.gmra.mxu0 %v3481
        %v3655 = vpop.f32.mrf.mxu0
        %v3656 = vadd.f32 0.0, %v3655
        %v3657 = vpop.f32.mrf.mxu0
        %3658 = vmatprep.mubr.f32.mxu0 0.0
        %3659 = vmatmul.mubr.f32.gmra.mxu0 %v3484
        %v3660 = vpop.f32.mrf.mxu0
        %v3661 = vadd.f32 0.0, %v3660
        %v3662 = vpop.f32.mrf.mxu0
        %3663 = vmatprep.mubr.f32.mxu0 0.0
        %3664 = vmatmul.mubr.f32.gmra.mxu0 %v3487
        %v3665 = vpop.f32.mrf.mxu0
        %v3666 = vadd.f32 0.0, %v3665
        %v3667 = vpop.f32.mrf.mxu0
        %3668 = vmatprep.mubr.f32.mxu0 0.0
        %3669 = vmatmul.mubr.f32.gmra.mxu0 %v3490
        %v3670 = vpop.f32.mrf.mxu0
        %v3671 = vadd.f32 0.0, %v3670
        %v3672 = vpop.f32.mrf.mxu0
        %3673 = vmatprep.mubr.f32.mxu0 0.0
        %3674 = vmatmul.mubr.f32.gmra.mxu0 %v3493
        %v3675 = vpop.f32.mrf.mxu0
        %v3676 = vadd.f32 0.0, %v3675
        %v3677 = vpop.f32.mrf.mxu0
        %3678 = vmatprep.mubr.f32.mxu0 0.0
        %3679 = vmatmul.mubr.f32.gmra.mxu0 %v3496
        %v3680 = vpop.f32.mrf.mxu0
        %v3681 = vadd.f32 0.0, %v3680
        %v3682 = vpop.f32.mrf.mxu0
        %3683 = vmatprep.mubr.f32.mxu0 0.0
        %3684 = vmatmul.mubr.f32.gmra.mxu0 %v3499
        %v3685 = vpop.f32.mrf.mxu0
        %v3686 = vadd.f32 0.0, %v3685
        %v3687 = vpop.f32.mrf.mxu0
        %3688 = vmatprep.mubr.f32.mxu0 0.0
        %3689 = vmatmul.mubr.f32.gmra.mxu0 %v3502
        %v3690 = vpop.f32.mrf.mxu0
        %v3691 = vadd.f32 0.0, %v3690
        %v3692 = vpop.f32.mrf.mxu0
        %3693 = vmatprep.mubr.f32.mxu0 0.0
        %3694 = vmatmul.mubr.f32.gmra.mxu0 %v3505
        %v3695 = vpop.f32.mrf.mxu0
        %v3696 = vadd.f32 0.0, %v3695
        %v3697 = vpop.f32.mrf.mxu0
        %3698 = vmatprep.mubr.f32.mxu0 0.0
        %3699 = vmatmul.mubr.f32.gmra.mxu0 %v3508
        %v3700 = vpop.f32.mrf.mxu0
        %v3701 = vadd.f32 0.0, %v3700
        %v3702 = vpop.f32.mrf.mxu0
        %3703 = vmatprep.mubr.f32.mxu0 0.0
        %3704 = vmatmul.mubr.f32.gmra.mxu0 %v3511
        %v3705 = vpop.f32.mrf.mxu0
        %v3706 = vadd.f32 0.0, %v3705
        %v3707 = vpop.f32.mrf.mxu0
        %3708 = vmatprep.mubr.f32.mxu0 0.0
        %3709 = vmatmul.mubr.f32.gmra.mxu0 %v3514
        %v3710 = vpop.f32.mrf.mxu0
        %v3711 = vadd.f32 0.0, %v3710
        %v3712 = vpop.f32.mrf.mxu0
        %3713 = vmatprep.mubr.f32.mxu0 0.0
        %3714 = vmatmul.mubr.f32.gmra.mxu0 %v3517
        %v3715 = vpop.f32.mrf.mxu0
        %v3716 = vadd.f32 0.0, %v3715
        %v3717 = vpop.f32.mrf.mxu0
        %3718 = vmatprep.mubr.f32.mxu0 0.0
        %3719 = vmatmul.mubr.f32.gmra.mxu0 %v3520
        %v3720 = vpop.f32.mrf.mxu0
        %v3721 = vadd.f32 0.0, %v3720
        %v3722 = vpop.f32.mrf.mxu0
        %3723 = vmatprep.mubr.f32.mxu0 0.0
        %3724 = vmatmul.mubr.f32.gmra.mxu0 %v3523
        %v3725 = vpop.f32.mrf.mxu0
        %v3726 = vadd.f32 0.0, %v3725
        %v3727 = vpop.f32.mrf.mxu0
        %3728 = vmatprep.mubr.f32.mxu0 0.0
        %3729 = vmatmul.mubr.f32.gmra.mxu0 %v3526
        %v3730 = vpop.f32.mrf.mxu0
        %v3731 = vadd.f32 0.0, %v3730
        %v3732 = vpop.f32.mrf.mxu0
        %3733 = vmatprep.mubr.f32.mxu0 0.0
        %3734 = vmatmul.mubr.f32.gmra.mxu0 %v3529
        %v3735 = vpop.f32.mrf.mxu0
        %v3736 = vadd.f32 0.0, %v3735
        %v3737 = vpop.f32.mrf.mxu0
        %3738 = vmatprep.mubr.f32.mxu0 0.0
        %3739 = vmatmul.mubr.f32.gmra.mxu0 %v3532
        %v3740 = vpop.f32.mrf.mxu0
        %v3741 = vadd.f32 0.0, %v3740
        %v3742 = vpop.f32.mrf.mxu0
        %3743 = vmatprep.mubr.f32.mxu0 0.0
        %3744 = vmatmul.mubr.f32.gmra.mxu0 %v3535
        %v3745 = vpop.f32.mrf.mxu0
        %v3746 = vadd.f32 0.0, %v3745
        %v3747 = vpop.f32.mrf.mxu0
        %3748 = vmatprep.mubr.f32.mxu0 0.0
        %3749 = vmatmul.mubr.f32.gmra.mxu0 %v3538
        %v3750 = vpop.f32.mrf.mxu0
        %v3751 = vadd.f32 0.0, %v3750
        %v3752 = vpop.f32.mrf.mxu0
        %3753 = vmatprep.mubr.f32.mxu0 0.0
        %3754 = vmatmul.mubr.f32.gmra.mxu0 %v3541
        %v3755 = vpop.f32.mrf.mxu0
        %v3756 = vadd.f32 0.0, %v3755
        %v3757 = vpop.f32.mrf.mxu0
        %3758 = vmatprep.mubr.f32.mxu0 0.0
        %3759 = vmatmul.mubr.f32.gmra.mxu0 %v3544
        %v3760 = vpop.f32.mrf.mxu0
        %v3761 = vadd.f32 0.0, %v3760
        %v3762 = vpop.f32.mrf.mxu0
        %3763 = vmatprep.mubr.f32.mxu0 0.0
        %3764 = vmatmul.mubr.f32.gmra.mxu0 %v3547
        %v3765 = vpop.f32.mrf.mxu0
        %v3766 = vadd.f32 0.0, %v3765
        %v3767 = vpop.f32.mrf.mxu0
        %3768 = vmatprep.mubr.f32.mxu0 0.0
        %3769 = vmatmul.mubr.f32.gmra.mxu0 %v3550
        %v3770 = vpop.f32.mrf.mxu0
        %v3771 = vadd.f32 0.0, %v3770
        %v3772 = vpop.f32.mrf.mxu0
        %3773 = vmatprep.mubr.f32.mxu0 0.0
        %3774 = vmatmul.mubr.f32.gmra.mxu0 %v3553
        %v3775 = vpop.f32.mrf.mxu0
        %v3776 = vadd.f32 0.0, %v3775
        %v3777 = vpop.f32.mrf.mxu0
        %3778 = vmatprep.mubr.f32.mxu0 0.0
        %3779 = vmatmul.mubr.f32.gmra.mxu0 %v3556
        %v3780 = vpop.f32.mrf.mxu0
        %v3781 = vadd.f32 0.0, %v3780
        %v3782 = vpop.f32.mrf.mxu0
        %3783 = vmatprep.mubr.f32.mxu0 0.0
        %3784 = vmatmul.mubr.f32.gmra.mxu0 %v3559
        %v3785 = vpop.f32.mrf.mxu0
        %v3786 = vadd.f32 0.0, %v3785
        %v3787 = vpop.f32.mrf.mxu0
        %3788 = vdwg.mxu0
        %v3789 = vadd.f32 %v3399, %v3631
        %v3790 = vadd.f32 %v3400, %v3636
        %v3791 = vadd.f32 %v3401, %v3641
        %v3792 = vadd.f32 %v3402, %v3646
        %v3793 = vadd.f32 %v3403, %v3651
        %v3794 = vadd.f32 %v3404, %v3656
        %v3795 = vadd.f32 %v3405, %v3661
        %v3796 = vadd.f32 %v3406, %v3666
        %v3797 = vadd.f32 %v3407, %v3671
        %v3798 = vadd.f32 %v3408, %v3676
        %v3799 = vadd.f32 %v3409, %v3681
        %v3800 = vadd.f32 %v3410, %v3686
        %v3801 = vadd.f32 %v3411, %v3691
        %v3802 = vadd.f32 %v3412, %v3696
        %v3803 = vadd.f32 %v3413, %v3701
        %v3804 = vadd.f32 %v3414, %v3706
        %v3805 = vadd.f32 %v3415, %v3711
        %v3806 = vadd.f32 %v3416, %v3716
        %v3807 = vadd.f32 %v3417, %v3721
        %v3808 = vadd.f32 %v3418, %v3726
        %v3809 = vadd.f32 %v3419, %v3731
        %v3810 = vadd.f32 %v3420, %v3736
        %v3811 = vadd.f32 %v3421, %v3741
        %v3812 = vadd.f32 %v3422, %v3746
        %v3813 = vadd.f32 %v3423, %v3751
        %v3814 = vadd.f32 %v3424, %v3756
        %v3815 = vadd.f32 %v3425, %v3761
        %v3816 = vadd.f32 %v3426, %v3766
        %v3817 = vadd.f32 %v3427, %v3771
        %v3818 = vadd.f32 %v3428, %v3776
        %v3819 = vadd.f32 %v3429, %v3781
        %v3820 = vadd.f32 %v3430, %v3786
        %v3821 = vlaneseq
        %v3822 = vshrl.u32 %v3821, 7
        %v3823 = vsub.s32 0, %v3822
        %v3824 = vrot.slane %v373, %v3823
        %v3825 = vadd.f32 %v3789, %v3824
        %v3826 = vadd.f32 %v3790, %v3824
        %v3827 = vadd.f32 %v3791, %v3824
        %v3828 = vadd.f32 %v3792, %v3824
        %v3829 = vadd.f32 %v3793, %v3824
        %v3830 = vadd.f32 %v3794, %v3824
        %v3831 = vadd.f32 %v3795, %v3824
        %v3832 = vadd.f32 %v3796, %v3824
        %v3833 = vadd.f32 %v3797, %v3824
        %v3834 = vadd.f32 %v3798, %v3824
        %v3835 = vadd.f32 %v3799, %v3824
        %v3836 = vadd.f32 %v3800, %v3824
        %v3837 = vadd.f32 %v3801, %v3824
        %v3838 = vadd.f32 %v3802, %v3824
        %v3839 = vadd.f32 %v3803, %v3824
        %v3840 = vadd.f32 %v3804, %v3824
        %v3841 = vadd.f32 %v3805, %v3824
        %v3842 = vadd.f32 %v3806, %v3824
        %v3843 = vadd.f32 %v3807, %v3824
        %v3844 = vadd.f32 %v3808, %v3824
        %v3845 = vadd.f32 %v3809, %v3824
        %v3846 = vadd.f32 %v3810, %v3824
        %v3847 = vadd.f32 %v3811, %v3824
        %v3848 = vadd.f32 %v3812, %v3824
        %v3849 = vadd.f32 %v3813, %v3824
        %v3850 = vadd.f32 %v3814, %v3824
        %v3851 = vadd.f32 %v3815, %v3824
        %v3852 = vadd.f32 %v3816, %v3824
        %v3853 = vadd.f32 %v3817, %v3824
        %v3854 = vadd.f32 %v3818, %v3824
        %v3855 = vadd.f32 %v3819, %v3824
        %v3856 = vadd.f32 %v3820, %v3824
        %s3857 = scalar_lea.vmem [#allocation3], 24
        %3858 = vst.msk [vmem:[%s3857 + $0x1] sm:$0xff] %vm252, %v3825
        %3859 = vst.msk [vmem:[%s3857 + $0x9] sm:$0xff] %vm252, %v3826
        %3860 = vst.msk [vmem:[%s3857 + $0x19] sm:$0xff] %vm252, %v3827
        %3861 = vst.msk [vmem:[%s3857 + $0x21] sm:$0xff] %vm252, %v3828
        %3862 = vst.msk [vmem:[%s3857 + $0x31] sm:$0xff] %vm252, %v3829
        %3863 = vst.msk [vmem:[%s3857 + $0x39] sm:$0xff] %vm252, %v3830
        %3864 = vst.msk [vmem:[%s3857 + $0x49] sm:$0xff] %vm252, %v3831
        %3865 = vst.msk [vmem:[%s3857 + $0x51] sm:$0xff] %vm252, %v3832
        %3866 = vst.msk [vmem:[%s3857 + $0x61] sm:$0xff] %vm252, %v3833
        %3867 = vst.msk [vmem:[%s3857 + $0x69] sm:$0xff] %vm252, %v3834
        %3868 = vst.msk [vmem:[%s3857 + $0x79] sm:$0xff] %vm252, %v3835
        %3869 = vst.msk [vmem:[%s3857 + $0x81] sm:$0xff] %vm252, %v3836
        %3870 = vst.msk [vmem:[%s3857 + $0x91] sm:$0xff] %vm252, %v3837
        %3871 = vst.msk [vmem:[%s3857 + $0x99] sm:$0xff] %vm252, %v3838
        %3872 = vst.msk [vmem:[%s3857 + $0xa9] sm:$0xff] %vm252, %v3839
        %3873 = vst.msk [vmem:[%s3857 + $0xb1] sm:$0xff] %vm252, %v3840
        %3874 = vst.msk [vmem:[%s3857 + $0xc1] sm:$0xff] %vm252, %v3841
        %3875 = vst.msk [vmem:[%s3857 + $0xc9] sm:$0xff] %vm252, %v3842
        %3876 = vst.msk [vmem:[%s3857 + $0xd9] sm:$0xff] %vm252, %v3843
        %3877 = vst.msk [vmem:[%s3857 + $0xe1] sm:$0xff] %vm252, %v3844
        %3878 = vst.msk [vmem:[%s3857 + $0xf1] sm:$0xff] %vm252, %v3845
        %3879 = vst.msk [vmem:[%s3857 + $0xf9] sm:$0xff] %vm252, %v3846
        %3880 = vst.msk [vmem:[%s3857 + $0x109] sm:$0xff] %vm252, %v3847
        %3881 = vst.msk [vmem:[%s3857 + $0x111] sm:$0xff] %vm252, %v3848
        %3882 = vst.msk [vmem:[%s3857 + $0x121] sm:$0xff] %vm252, %v3849
        %3883 = vst.msk [vmem:[%s3857 + $0x129] sm:$0xff] %vm252, %v3850
        %3884 = vst.msk [vmem:[%s3857 + $0x139] sm:$0xff] %vm252, %v3851
        %3885 = vst.msk [vmem:[%s3857 + $0x141] sm:$0xff] %vm252, %v3852
        %3886 = vst.msk [vmem:[%s3857 + $0x151] sm:$0xff] %vm252, %v3853
        %3887 = vst.msk [vmem:[%s3857 + $0x159] sm:$0xff] %vm252, %v3854
        %3888 = vst.msk [vmem:[%s3857 + $0x169] sm:$0xff] %vm252, %v3855
        %3889 = vst.msk [vmem:[%s3857 + $0x171] sm:$0xff] %vm252, %v3856
        %v3890 = vld [vmem:[#allocation3] sm:$0xff]
        %v3891 = vld [vmem:[#allocation3 + $0x8] sm:$0xff]
        %v3892 = vld [vmem:[#allocation3 + $0x18] sm:$0xff]
        %v3893 = vld [vmem:[#allocation3 + $0x20] sm:$0xff]
        %v3894 = vld [vmem:[#allocation3 + $0x30] sm:$0xff]
        %v3895 = vld [vmem:[#allocation3 + $0x38] sm:$0xff]
        %v3896 = vld [vmem:[#allocation3 + $0x48] sm:$0xff]
        %v3897 = vld [vmem:[#allocation3 + $0x50] sm:$0xff]
        %v3898 = vld [vmem:[#allocation3 + $0x60] sm:$0xff]
        %v3899 = vld [vmem:[#allocation3 + $0x68] sm:$0xff]
        %v3900 = vld [vmem:[#allocation3 + $0x78] sm:$0xff]
        %v3901 = vld [vmem:[#allocation3 + $0x80] sm:$0xff]
        %v3902 = vld [vmem:[#allocation3 + $0x90] sm:$0xff]
        %v3903 = vld [vmem:[#allocation3 + $0x98] sm:$0xff]
        %v3904 = vld [vmem:[#allocation3 + $0xa8] sm:$0xff]
        %v3905 = vld [vmem:[#allocation3 + $0xb0] sm:$0xff]
        %v3906 = vld [vmem:[#allocation3 + $0xc0] sm:$0xff]
        %v3907 = vld [vmem:[#allocation3 + $0xc8] sm:$0xff]
        %v3908 = vld [vmem:[#allocation3 + $0xd8] sm:$0xff]
        %v3909 = vld [vmem:[#allocation3 + $0xe0] sm:$0xff]
        %v3910 = vld [vmem:[#allocation3 + $0xf0] sm:$0xff]
        %v3911 = vld [vmem:[#allocation3 + $0xf8] sm:$0xff]
        %v3912 = vld [vmem:[#allocation3 + $0x108] sm:$0xff]
        %v3913 = vld [vmem:[#allocation3 + $0x110] sm:$0xff]
        %v3914 = vld [vmem:[#allocation3 + $0x120] sm:$0xff]
        %v3915 = vld [vmem:[#allocation3 + $0x128] sm:$0xff]
        %v3916 = vld [vmem:[#allocation3 + $0x138] sm:$0xff]
        %v3917 = vld [vmem:[#allocation3 + $0x140] sm:$0xff]
        %v3918 = vld [vmem:[#allocation3 + $0x150] sm:$0xff]
        %v3919 = vld [vmem:[#allocation3 + $0x158] sm:$0xff]
        %v3920 = vld [vmem:[#allocation3 + $0x168] sm:$0xff]
        %v3921 = vld [vmem:[#allocation3 + $0x170] sm:$0xff]
        %v3922 = vld [vmem:[%s2] sm:$0xff]
        %v3923 = vld [vmem:[#allocation3 + $0x1] sm:$0xff]
        %v3924 = vld [vmem:[#allocation3 + $0x9] sm:$0xff]
        %v3925 = vld [vmem:[#allocation3 + $0x19] sm:$0xff]
        %v3926 = vld [vmem:[#allocation3 + $0x21] sm:$0xff]
        %v3927 = vld [vmem:[#allocation3 + $0x31] sm:$0xff]
        %v3928 = vld [vmem:[#allocation3 + $0x39] sm:$0xff]
        %v3929 = vld [vmem:[#allocation3 + $0x49] sm:$0xff]
        %v3930 = vld [vmem:[#allocation3 + $0x51] sm:$0xff]
        %v3931 = vld [vmem:[#allocation3 + $0x61] sm:$0xff]
        %v3932 = vld [vmem:[#allocation3 + $0x69] sm:$0xff]
        %v3933 = vld [vmem:[#allocation3 + $0x79] sm:$0xff]
        %v3934 = vld [vmem:[#allocation3 + $0x81] sm:$0xff]
        %v3935 = vld [vmem:[#allocation3 + $0x91] sm:$0xff]
        %v3936 = vld [vmem:[#allocation3 + $0x99] sm:$0xff]
        %v3937 = vld [vmem:[#allocation3 + $0xa9] sm:$0xff]
        %v3938 = vld [vmem:[#allocation3 + $0xb1] sm:$0xff]
        %v3939 = vld [vmem:[#allocation3 + $0xc1] sm:$0xff]
        %v3940 = vld [vmem:[#allocation3 + $0xc9] sm:$0xff]
        %v3941 = vld [vmem:[#allocation3 + $0xd9] sm:$0xff]
        %v3942 = vld [vmem:[#allocation3 + $0xe1] sm:$0xff]
        %v3943 = vld [vmem:[#allocation3 + $0xf1] sm:$0xff]
        %v3944 = vld [vmem:[#allocation3 + $0xf9] sm:$0xff]
        %v3945 = vld [vmem:[#allocation3 + $0x109] sm:$0xff]
        %v3946 = vld [vmem:[#allocation3 + $0x111] sm:$0xff]
        %v3947 = vld [vmem:[#allocation3 + $0x121] sm:$0xff]
        %v3948 = vld [vmem:[#allocation3 + $0x129] sm:$0xff]
        %v3949 = vld [vmem:[#allocation3 + $0x139] sm:$0xff]
        %v3950 = vld [vmem:[#allocation3 + $0x141] sm:$0xff]
        %v3951 = vld [vmem:[#allocation3 + $0x151] sm:$0xff]
        %v3952 = vld [vmem:[#allocation3 + $0x159] sm:$0xff]
        %v3953 = vld [vmem:[#allocation3 + $0x169] sm:$0xff]
        %v3954 = vld [vmem:[#allocation3 + $0x171] sm:$0xff]
        %s3955 = scalar_lea.vmem %s2, 8
        %v3956 = vld [vmem:[%s3955] sm:$0xff]
        %v3958 = vsel %vm252, %v3923, 0
        %v3961 = vsel %vm252, %v3924, 0
        %v3964 = vsel %vm252, %v3925, 0
        %v3967 = vsel %vm252, %v3926, 0
        %v3970 = vsel %vm252, %v3927, 0
        %v3973 = vsel %vm252, %v3928, 0
        %v3976 = vsel %vm252, %v3929, 0
        %v3979 = vsel %vm252, %v3930, 0
        %v3982 = vsel %vm252, %v3931, 0
        %v3985 = vsel %vm252, %v3932, 0
        %v3988 = vsel %vm252, %v3933, 0
        %v3991 = vsel %vm252, %v3934, 0
        %v3994 = vsel %vm252, %v3935, 0
        %v3997 = vsel %vm252, %v3936, 0
        %v4000 = vsel %vm252, %v3937, 0
        %v4003 = vsel %vm252, %v3938, 0
        %v4006 = vsel %vm252, %v3939, 0
        %v4009 = vsel %vm252, %v3940, 0
        %v4012 = vsel %vm252, %v3941, 0
        %v4015 = vsel %vm252, %v3942, 0
        %v4018 = vsel %vm252, %v3943, 0
        %v4021 = vsel %vm252, %v3944, 0
        %v4024 = vsel %vm252, %v3945, 0
        %v4027 = vsel %vm252, %v3946, 0
        %v4030 = vsel %vm252, %v3947, 0
        %v4033 = vsel %vm252, %v3948, 0
        %v4036 = vsel %vm252, %v3949, 0
        %v4039 = vsel %vm252, %v3950, 0
        %v4042 = vsel %vm252, %v3951, 0
        %v4045 = vsel %vm252, %v3952, 0
        %v4048 = vsel %vm252, %v3953, 0
        %v4051 = vsel %vm252, %v3954, 0
        %4053 = vmatprep.subr.mxu0 0.0
        %4054 = vmatpush1.msra.mxu0 0.0
        %4055 = vmatprep.subr.mxu0 0.0
        %4056 = vmatpush1.msra.mxu0 0.0
        %4057 = vmatprep.subr.mxu0 0.0
        %4058 = vmatpush1.msra.mxu0 0.0
        %4059 = vmatprep.subr.mxu0 0.0
        %4060 = vmatpush1.msra.mxu0 0.0
        %4061 = vmatprep.subr.mxu0 0.0
        %4062 = vmatpush1.msra.mxu0 0.0
        %4063 = vmatprep.subr.mxu0 0.0
        %4064 = vmatpush1.msra.mxu0 0.0
        %4065 = vmatprep.subr.mxu0 0.0
        %4066 = vmatpush1.msra.mxu0 0.0
        %4067 = vmatprep.subr.mxu0 0.0
        %4068 = vmatpush1.msra.mxu0 0.0
        %4069 = vmatprep.subr.mxu0 0.0
        %4070 = vmatpush1.msra.mxu0 0.0
        %4071 = vmatprep.subr.mxu0 0.0
        %4072 = vmatpush1.msra.mxu0 0.0
        %4073 = vmatprep.subr.mxu0 0.0
        %4074 = vmatpush1.msra.mxu0 0.0
        %4075 = vmatprep.subr.mxu0 0.0
        %4076 = vmatpush1.msra.mxu0 0.0
        %4077 = vmatprep.subr.mxu0 0.0
        %4078 = vmatpush1.msra.mxu0 0.0
        %4079 = vmatprep.subr.mxu0 0.0
        %4080 = vmatpush1.msra.mxu0 0.0
        %4081 = vmatprep.subr.mxu0 0.0
        %4082 = vmatpush1.msra.mxu0 0.0
        %4083 = vmatprep.subr.mxu0 0.0
        %4084 = vmatpush1.msra.mxu0 %v3956
        %4085 = vmatprep.subr.mxu0 0.0
        %4086 = vmatpush2.msra.mxu0 0.0
        %4087 = vmatprep.subr.mxu0 0.0
        %4088 = vmatpush2.msra.mxu0 0.0
        %4089 = vmatprep.subr.mxu0 0.0
        %4090 = vmatpush2.msra.mxu0 0.0
        %4091 = vmatprep.subr.mxu0 0.0
        %4092 = vmatpush2.msra.mxu0 0.0
        %4093 = vmatprep.subr.mxu0 0.0
        %4094 = vmatpush2.msra.mxu0 0.0
        %4095 = vmatprep.subr.mxu0 0.0
        %4096 = vmatpush2.msra.mxu0 0.0
        %4097 = vmatprep.subr.mxu0 0.0
        %4098 = vmatpush2.msra.mxu0 0.0
        %4099 = vmatprep.subr.mxu0 0.0
        %4100 = vmatpush2.msra.mxu0 0.0
        %4101 = vmatprep.subr.mxu0 0.0
        %4102 = vmatpush2.msra.mxu0 0.0
        %4103 = vmatprep.subr.mxu0 0.0
        %4104 = vmatpush2.msra.mxu0 0.0
        %4105 = vmatprep.subr.mxu0 0.0
        %4106 = vmatpush2.msra.mxu0 0.0
        %4107 = vmatprep.subr.mxu0 0.0
        %4108 = vmatpush2.msra.mxu0 0.0
        %4109 = vmatprep.subr.mxu0 0.0
        %4110 = vmatpush2.msra.mxu0 0.0
        %4111 = vmatprep.subr.mxu0 0.0
        %4112 = vmatpush2.msra.mxu0 0.0
        %4113 = vmatprep.subr.mxu0 0.0
        %4114 = vmatpush2.msra.mxu0 0.0
        %4115 = vmatprep.subr.mxu0 0.0
        %4116 = vmatpush2.msra.mxu0 0.0
        %4117 = vmatprep.mubr.f32.mxu0 0.0
        %4118 = vmatmul.mubr.f32.gmra.mxu0 %v3958
        %v4119 = vpop.f32.mrf.mxu0
        %v4120 = vadd.f32 0.0, %v4119
        %v4121 = vpop.f32.mrf.mxu0
        %4122 = vmatprep.mubr.f32.mxu0 0.0
        %4123 = vmatmul.mubr.f32.gmra.mxu0 %v3961
        %v4124 = vpop.f32.mrf.mxu0
        %v4125 = vadd.f32 0.0, %v4124
        %v4126 = vpop.f32.mrf.mxu0
        %4127 = vmatprep.mubr.f32.mxu0 0.0
        %4128 = vmatmul.mubr.f32.gmra.mxu0 %v3964
        %v4129 = vpop.f32.mrf.mxu0
        %v4130 = vadd.f32 0.0, %v4129
        %v4131 = vpop.f32.mrf.mxu0
        %4132 = vmatprep.mubr.f32.mxu0 0.0
        %4133 = vmatmul.mubr.f32.gmra.mxu0 %v3967
        %v4134 = vpop.f32.mrf.mxu0
        %v4135 = vadd.f32 0.0, %v4134
        %v4136 = vpop.f32.mrf.mxu0
        %4137 = vmatprep.mubr.f32.mxu0 0.0
        %4138 = vmatmul.mubr.f32.gmra.mxu0 %v3970
        %v4139 = vpop.f32.mrf.mxu0
        %v4140 = vadd.f32 0.0, %v4139
        %v4141 = vpop.f32.mrf.mxu0
        %4142 = vmatprep.mubr.f32.mxu0 0.0
        %4143 = vmatmul.mubr.f32.gmra.mxu0 %v3973
        %v4144 = vpop.f32.mrf.mxu0
        %v4145 = vadd.f32 0.0, %v4144
        %v4146 = vpop.f32.mrf.mxu0
        %4147 = vmatprep.mubr.f32.mxu0 0.0
        %4148 = vmatmul.mubr.f32.gmra.mxu0 %v3976
        %v4149 = vpop.f32.mrf.mxu0
        %v4150 = vadd.f32 0.0, %v4149
        %v4151 = vpop.f32.mrf.mxu0
        %4152 = vmatprep.mubr.f32.mxu0 0.0
        %4153 = vmatmul.mubr.f32.gmra.mxu0 %v3979
        %v4154 = vpop.f32.mrf.mxu0
        %v4155 = vadd.f32 0.0, %v4154
        %v4156 = vpop.f32.mrf.mxu0
        %4157 = vmatprep.mubr.f32.mxu0 0.0
        %4158 = vmatmul.mubr.f32.gmra.mxu0 %v3982
        %v4159 = vpop.f32.mrf.mxu0
        %v4160 = vadd.f32 0.0, %v4159
        %v4161 = vpop.f32.mrf.mxu0
        %4162 = vmatprep.mubr.f32.mxu0 0.0
        %4163 = vmatmul.mubr.f32.gmra.mxu0 %v3985
        %v4164 = vpop.f32.mrf.mxu0
        %v4165 = vadd.f32 0.0, %v4164
        %v4166 = vpop.f32.mrf.mxu0
        %4167 = vmatprep.mubr.f32.mxu0 0.0
        %4168 = vmatmul.mubr.f32.gmra.mxu0 %v3988
        %v4169 = vpop.f32.mrf.mxu0
        %v4170 = vadd.f32 0.0, %v4169
        %v4171 = vpop.f32.mrf.mxu0
        %4172 = vmatprep.mubr.f32.mxu0 0.0
        %4173 = vmatmul.mubr.f32.gmra.mxu0 %v3991
        %v4174 = vpop.f32.mrf.mxu0
        %v4175 = vadd.f32 0.0, %v4174
        %v4176 = vpop.f32.mrf.mxu0
        %4177 = vmatprep.mubr.f32.mxu0 0.0
        %4178 = vmatmul.mubr.f32.gmra.mxu0 %v3994
        %v4179 = vpop.f32.mrf.mxu0
        %v4180 = vadd.f32 0.0, %v4179
        %v4181 = vpop.f32.mrf.mxu0
        %4182 = vmatprep.mubr.f32.mxu0 0.0
        %4183 = vmatmul.mubr.f32.gmra.mxu0 %v3997
        %v4184 = vpop.f32.mrf.mxu0
        %v4185 = vadd.f32 0.0, %v4184
        %v4186 = vpop.f32.mrf.mxu0
        %4187 = vmatprep.mubr.f32.mxu0 0.0
        %4188 = vmatmul.mubr.f32.gmra.mxu0 %v4000
        %v4189 = vpop.f32.mrf.mxu0
        %v4190 = vadd.f32 0.0, %v4189
        %v4191 = vpop.f32.mrf.mxu0
        %4192 = vmatprep.mubr.f32.mxu0 0.0
        %4193 = vmatmul.mubr.f32.gmra.mxu0 %v4003
        %v4194 = vpop.f32.mrf.mxu0
        %v4195 = vadd.f32 0.0, %v4194
        %v4196 = vpop.f32.mrf.mxu0
        %4197 = vmatprep.mubr.f32.mxu0 0.0
        %4198 = vmatmul.mubr.f32.gmra.mxu0 %v4006
        %v4199 = vpop.f32.mrf.mxu0
        %v4200 = vadd.f32 0.0, %v4199
        %v4201 = vpop.f32.mrf.mxu0
        %4202 = vmatprep.mubr.f32.mxu0 0.0
        %4203 = vmatmul.mubr.f32.gmra.mxu0 %v4009
        %v4204 = vpop.f32.mrf.mxu0
        %v4205 = vadd.f32 0.0, %v4204
        %v4206 = vpop.f32.mrf.mxu0
        %4207 = vmatprep.mubr.f32.mxu0 0.0
        %4208 = vmatmul.mubr.f32.gmra.mxu0 %v4012
        %v4209 = vpop.f32.mrf.mxu0
        %v4210 = vadd.f32 0.0, %v4209
        %v4211 = vpop.f32.mrf.mxu0
        %4212 = vmatprep.mubr.f32.mxu0 0.0
        %4213 = vmatmul.mubr.f32.gmra.mxu0 %v4015
        %v4214 = vpop.f32.mrf.mxu0
        %v4215 = vadd.f32 0.0, %v4214
        %v4216 = vpop.f32.mrf.mxu0
        %4217 = vmatprep.mubr.f32.mxu0 0.0
        %4218 = vmatmul.mubr.f32.gmra.mxu0 %v4018
        %v4219 = vpop.f32.mrf.mxu0
        %v4220 = vadd.f32 0.0, %v4219
        %v4221 = vpop.f32.mrf.mxu0
        %4222 = vmatprep.mubr.f32.mxu0 0.0
        %4223 = vmatmul.mubr.f32.gmra.mxu0 %v4021
        %v4224 = vpop.f32.mrf.mxu0
        %v4225 = vadd.f32 0.0, %v4224
        %v4226 = vpop.f32.mrf.mxu0
        %4227 = vmatprep.mubr.f32.mxu0 0.0
        %4228 = vmatmul.mubr.f32.gmra.mxu0 %v4024
        %v4229 = vpop.f32.mrf.mxu0
        %v4230 = vadd.f32 0.0, %v4229
        %v4231 = vpop.f32.mrf.mxu0
        %4232 = vmatprep.mubr.f32.mxu0 0.0
        %4233 = vmatmul.mubr.f32.gmra.mxu0 %v4027
        %v4234 = vpop.f32.mrf.mxu0
        %v4235 = vadd.f32 0.0, %v4234
        %v4236 = vpop.f32.mrf.mxu0
        %4237 = vmatprep.mubr.f32.mxu0 0.0
        %4238 = vmatmul.mubr.f32.gmra.mxu0 %v4030
        %v4239 = vpop.f32.mrf.mxu0
        %v4240 = vadd.f32 0.0, %v4239
        %v4241 = vpop.f32.mrf.mxu0
        %4242 = vmatprep.mubr.f32.mxu0 0.0
        %4243 = vmatmul.mubr.f32.gmra.mxu0 %v4033
        %v4244 = vpop.f32.mrf.mxu0
        %v4245 = vadd.f32 0.0, %v4244
        %v4246 = vpop.f32.mrf.mxu0
        %4247 = vmatprep.mubr.f32.mxu0 0.0
        %4248 = vmatmul.mubr.f32.gmra.mxu0 %v4036
        %v4249 = vpop.f32.mrf.mxu0
        %v4250 = vadd.f32 0.0, %v4249
        %v4251 = vpop.f32.mrf.mxu0
        %4252 = vmatprep.mubr.f32.mxu0 0.0
        %4253 = vmatmul.mubr.f32.gmra.mxu0 %v4039
        %v4254 = vpop.f32.mrf.mxu0
        %v4255 = vadd.f32 0.0, %v4254
        %v4256 = vpop.f32.mrf.mxu0
        %4257 = vmatprep.mubr.f32.mxu0 0.0
        %4258 = vmatmul.mubr.f32.gmra.mxu0 %v4042
        %v4259 = vpop.f32.mrf.mxu0
        %v4260 = vadd.f32 0.0, %v4259
        %v4261 = vpop.f32.mrf.mxu0
        %4262 = vmatprep.mubr.f32.mxu0 0.0
        %4263 = vmatmul.mubr.f32.gmra.mxu0 %v4045
        %v4264 = vpop.f32.mrf.mxu0
        %v4265 = vadd.f32 0.0, %v4264
        %v4266 = vpop.f32.mrf.mxu0
        %4267 = vmatprep.mubr.f32.mxu0 0.0
        %4268 = vmatmul.mubr.f32.gmra.mxu0 %v4048
        %v4269 = vpop.f32.mrf.mxu0
        %v4270 = vadd.f32 0.0, %v4269
        %v4271 = vpop.f32.mrf.mxu0
        %4272 = vmatprep.mubr.f32.mxu0 0.0
        %4273 = vmatmul.mubr.f32.gmra.mxu0 %v4051
        %v4274 = vpop.f32.mrf.mxu0
        %v4275 = vadd.f32 0.0, %v4274
        %v4276 = vpop.f32.mrf.mxu0
        %4277 = vdwg.mxu0
        %v4279 = vsel %vm252, %v3890, 0
        %v4282 = vsel %vm252, %v3891, 0
        %v4285 = vsel %vm252, %v3892, 0
        %v4288 = vsel %vm252, %v3893, 0
        %v4291 = vsel %vm252, %v3894, 0
        %v4294 = vsel %vm252, %v3895, 0
        %v4297 = vsel %vm252, %v3896, 0
        %v4300 = vsel %vm252, %v3897, 0
        %v4303 = vsel %vm252, %v3898, 0
        %v4306 = vsel %vm252, %v3899, 0
        %v4309 = vsel %vm252, %v3900, 0
        %v4312 = vsel %vm252, %v3901, 0
        %v4315 = vsel %vm252, %v3902, 0
        %v4318 = vsel %vm252, %v3903, 0
        %v4321 = vsel %vm252, %v3904, 0
        %v4324 = vsel %vm252, %v3905, 0
        %v4327 = vsel %vm252, %v3906, 0
        %v4330 = vsel %vm252, %v3907, 0
        %v4333 = vsel %vm252, %v3908, 0
        %v4336 = vsel %vm252, %v3909, 0
        %v4339 = vsel %vm252, %v3910, 0
        %v4342 = vsel %vm252, %v3911, 0
        %v4345 = vsel %vm252, %v3912, 0
        %v4348 = vsel %vm252, %v3913, 0
        %v4351 = vsel %vm252, %v3914, 0
        %v4354 = vsel %vm252, %v3915, 0
        %v4357 = vsel %vm252, %v3916, 0
        %v4360 = vsel %vm252, %v3917, 0
        %v4363 = vsel %vm252, %v3918, 0
        %v4366 = vsel %vm252, %v3919, 0
        %v4369 = vsel %vm252, %v3920, 0
        %v4372 = vsel %vm252, %v3921, 0
        %4374 = vmatprep.subr.mxu0 0.0
        %4375 = vmatpush1.msra.mxu0 0.0
        %4376 = vmatprep.subr.mxu0 0.0
        %4377 = vmatpush1.msra.mxu0 0.0
        %4378 = vmatprep.subr.mxu0 0.0
        %4379 = vmatpush1.msra.mxu0 0.0
        %4380 = vmatprep.subr.mxu0 0.0
        %4381 = vmatpush1.msra.mxu0 0.0
        %4382 = vmatprep.subr.mxu0 0.0
        %4383 = vmatpush1.msra.mxu0 0.0
        %4384 = vmatprep.subr.mxu0 0.0
        %4385 = vmatpush1.msra.mxu0 0.0
        %4386 = vmatprep.subr.mxu0 0.0
        %4387 = vmatpush1.msra.mxu0 0.0
        %4388 = vmatprep.subr.mxu0 0.0
        %4389 = vmatpush1.msra.mxu0 0.0
        %4390 = vmatprep.subr.mxu0 0.0
        %4391 = vmatpush1.msra.mxu0 0.0
        %4392 = vmatprep.subr.mxu0 0.0
        %4393 = vmatpush1.msra.mxu0 0.0
        %4394 = vmatprep.subr.mxu0 0.0
        %4395 = vmatpush1.msra.mxu0 0.0
        %4396 = vmatprep.subr.mxu0 0.0
        %4397 = vmatpush1.msra.mxu0 0.0
        %4398 = vmatprep.subr.mxu0 0.0
        %4399 = vmatpush1.msra.mxu0 0.0
        %4400 = vmatprep.subr.mxu0 0.0
        %4401 = vmatpush1.msra.mxu0 0.0
        %4402 = vmatprep.subr.mxu0 0.0
        %4403 = vmatpush1.msra.mxu0 0.0
        %4404 = vmatprep.subr.mxu0 0.0
        %4405 = vmatpush1.msra.mxu0 %v3922
        %4406 = vmatprep.subr.mxu0 0.0
        %4407 = vmatpush2.msra.mxu0 0.0
        %4408 = vmatprep.subr.mxu0 0.0
        %4409 = vmatpush2.msra.mxu0 0.0
        %4410 = vmatprep.subr.mxu0 0.0
        %4411 = vmatpush2.msra.mxu0 0.0
        %4412 = vmatprep.subr.mxu0 0.0
        %4413 = vmatpush2.msra.mxu0 0.0
        %4414 = vmatprep.subr.mxu0 0.0
        %4415 = vmatpush2.msra.mxu0 0.0
        %4416 = vmatprep.subr.mxu0 0.0
        %4417 = vmatpush2.msra.mxu0 0.0
        %4418 = vmatprep.subr.mxu0 0.0
        %4419 = vmatpush2.msra.mxu0 0.0
        %4420 = vmatprep.subr.mxu0 0.0
        %4421 = vmatpush2.msra.mxu0 0.0
        %4422 = vmatprep.subr.mxu0 0.0
        %4423 = vmatpush2.msra.mxu0 0.0
        %4424 = vmatprep.subr.mxu0 0.0
        %4425 = vmatpush2.msra.mxu0 0.0
        %4426 = vmatprep.subr.mxu0 0.0
        %4427 = vmatpush2.msra.mxu0 0.0
        %4428 = vmatprep.subr.mxu0 0.0
        %4429 = vmatpush2.msra.mxu0 0.0
        %4430 = vmatprep.subr.mxu0 0.0
        %4431 = vmatpush2.msra.mxu0 0.0
        %4432 = vmatprep.subr.mxu0 0.0
        %4433 = vmatpush2.msra.mxu0 0.0
        %4434 = vmatprep.subr.mxu0 0.0
        %4435 = vmatpush2.msra.mxu0 0.0
        %4436 = vmatprep.subr.mxu0 0.0
        %4437 = vmatpush2.msra.mxu0 0.0
        %4438 = vmatprep.mubr.f32.mxu0 0.0
        %4439 = vmatmul.mubr.f32.gmra.mxu0 %v4279
        %v4440 = vpop.f32.mrf.mxu0
        %v4441 = vadd.f32 %v4120, %v4440
        %v4442 = vpop.f32.mrf.mxu0
        %4443 = vmatprep.mubr.f32.mxu0 0.0
        %4444 = vmatmul.mubr.f32.gmra.mxu0 %v4282
        %v4445 = vpop.f32.mrf.mxu0
        %v4446 = vadd.f32 %v4125, %v4445
        %v4447 = vpop.f32.mrf.mxu0
        %4448 = vmatprep.mubr.f32.mxu0 0.0
        %4449 = vmatmul.mubr.f32.gmra.mxu0 %v4285
        %v4450 = vpop.f32.mrf.mxu0
        %v4451 = vadd.f32 %v4130, %v4450
        %v4452 = vpop.f32.mrf.mxu0
        %4453 = vmatprep.mubr.f32.mxu0 0.0
        %4454 = vmatmul.mubr.f32.gmra.mxu0 %v4288
        %v4455 = vpop.f32.mrf.mxu0
        %v4456 = vadd.f32 %v4135, %v4455
        %v4457 = vpop.f32.mrf.mxu0
        %4458 = vmatprep.mubr.f32.mxu0 0.0
        %4459 = vmatmul.mubr.f32.gmra.mxu0 %v4291
        %v4460 = vpop.f32.mrf.mxu0
        %v4461 = vadd.f32 %v4140, %v4460
        %v4462 = vpop.f32.mrf.mxu0
        %4463 = vmatprep.mubr.f32.mxu0 0.0
        %4464 = vmatmul.mubr.f32.gmra.mxu0 %v4294
        %v4465 = vpop.f32.mrf.mxu0
        %v4466 = vadd.f32 %v4145, %v4465
        %v4467 = vpop.f32.mrf.mxu0
        %4468 = vmatprep.mubr.f32.mxu0 0.0
        %4469 = vmatmul.mubr.f32.gmra.mxu0 %v4297
        %v4470 = vpop.f32.mrf.mxu0
        %v4471 = vadd.f32 %v4150, %v4470
        %v4472 = vpop.f32.mrf.mxu0
        %4473 = vmatprep.mubr.f32.mxu0 0.0
        %4474 = vmatmul.mubr.f32.gmra.mxu0 %v4300
        %v4475 = vpop.f32.mrf.mxu0
        %v4476 = vadd.f32 %v4155, %v4475
        %v4477 = vpop.f32.mrf.mxu0
        %4478 = vmatprep.mubr.f32.mxu0 0.0
        %4479 = vmatmul.mubr.f32.gmra.mxu0 %v4303
        %v4480 = vpop.f32.mrf.mxu0
        %v4481 = vadd.f32 %v4160, %v4480
        %v4482 = vpop.f32.mrf.mxu0
        %4483 = vmatprep.mubr.f32.mxu0 0.0
        %4484 = vmatmul.mubr.f32.gmra.mxu0 %v4306
        %v4485 = vpop.f32.mrf.mxu0
        %v4486 = vadd.f32 %v4165, %v4485
        %v4487 = vpop.f32.mrf.mxu0
        %4488 = vmatprep.mubr.f32.mxu0 0.0
        %4489 = vmatmul.mubr.f32.gmra.mxu0 %v4309
        %v4490 = vpop.f32.mrf.mxu0
        %v4491 = vadd.f32 %v4170, %v4490
        %v4492 = vpop.f32.mrf.mxu0
        %4493 = vmatprep.mubr.f32.mxu0 0.0
        %4494 = vmatmul.mubr.f32.gmra.mxu0 %v4312
        %v4495 = vpop.f32.mrf.mxu0
        %v4496 = vadd.f32 %v4175, %v4495
        %v4497 = vpop.f32.mrf.mxu0
        %4498 = vmatprep.mubr.f32.mxu0 0.0
        %4499 = vmatmul.mubr.f32.gmra.mxu0 %v4315
        %v4500 = vpop.f32.mrf.mxu0
        %v4501 = vadd.f32 %v4180, %v4500
        %v4502 = vpop.f32.mrf.mxu0
        %4503 = vmatprep.mubr.f32.mxu0 0.0
        %4504 = vmatmul.mubr.f32.gmra.mxu0 %v4318
        %v4505 = vpop.f32.mrf.mxu0
        %v4506 = vadd.f32 %v4185, %v4505
        %v4507 = vpop.f32.mrf.mxu0
        %4508 = vmatprep.mubr.f32.mxu0 0.0
        %4509 = vmatmul.mubr.f32.gmra.mxu0 %v4321
        %v4510 = vpop.f32.mrf.mxu0
        %v4511 = vadd.f32 %v4190, %v4510
        %v4512 = vpop.f32.mrf.mxu0
        %4513 = vmatprep.mubr.f32.mxu0 0.0
        %4514 = vmatmul.mubr.f32.gmra.mxu0 %v4324
        %v4515 = vpop.f32.mrf.mxu0
        %v4516 = vadd.f32 %v4195, %v4515
        %v4517 = vpop.f32.mrf.mxu0
        %4518 = vmatprep.mubr.f32.mxu0 0.0
        %4519 = vmatmul.mubr.f32.gmra.mxu0 %v4327
        %v4520 = vpop.f32.mrf.mxu0
        %v4521 = vadd.f32 %v4200, %v4520
        %v4522 = vpop.f32.mrf.mxu0
        %4523 = vmatprep.mubr.f32.mxu0 0.0
        %4524 = vmatmul.mubr.f32.gmra.mxu0 %v4330
        %v4525 = vpop.f32.mrf.mxu0
        %v4526 = vadd.f32 %v4205, %v4525
        %v4527 = vpop.f32.mrf.mxu0
        %4528 = vmatprep.mubr.f32.mxu0 0.0
        %4529 = vmatmul.mubr.f32.gmra.mxu0 %v4333
        %v4530 = vpop.f32.mrf.mxu0
        %v4531 = vadd.f32 %v4210, %v4530
        %v4532 = vpop.f32.mrf.mxu0
        %4533 = vmatprep.mubr.f32.mxu0 0.0
        %4534 = vmatmul.mubr.f32.gmra.mxu0 %v4336
        %v4535 = vpop.f32.mrf.mxu0
        %v4536 = vadd.f32 %v4215, %v4535
        %v4537 = vpop.f32.mrf.mxu0
        %4538 = vmatprep.mubr.f32.mxu0 0.0
        %4539 = vmatmul.mubr.f32.gmra.mxu0 %v4339
        %v4540 = vpop.f32.mrf.mxu0
        %v4541 = vadd.f32 %v4220, %v4540
        %v4542 = vpop.f32.mrf.mxu0
        %4543 = vmatprep.mubr.f32.mxu0 0.0
        %4544 = vmatmul.mubr.f32.gmra.mxu0 %v4342
        %v4545 = vpop.f32.mrf.mxu0
        %v4546 = vadd.f32 %v4225, %v4545
        %v4547 = vpop.f32.mrf.mxu0
        %4548 = vmatprep.mubr.f32.mxu0 0.0
        %4549 = vmatmul.mubr.f32.gmra.mxu0 %v4345
        %v4550 = vpop.f32.mrf.mxu0
        %v4551 = vadd.f32 %v4230, %v4550
        %v4552 = vpop.f32.mrf.mxu0
        %4553 = vmatprep.mubr.f32.mxu0 0.0
        %4554 = vmatmul.mubr.f32.gmra.mxu0 %v4348
        %v4555 = vpop.f32.mrf.mxu0
        %v4556 = vadd.f32 %v4235, %v4555
        %v4557 = vpop.f32.mrf.mxu0
        %4558 = vmatprep.mubr.f32.mxu0 0.0
        %4559 = vmatmul.mubr.f32.gmra.mxu0 %v4351
        %v4560 = vpop.f32.mrf.mxu0
        %v4561 = vadd.f32 %v4240, %v4560
        %v4562 = vpop.f32.mrf.mxu0
        %4563 = vmatprep.mubr.f32.mxu0 0.0
        %4564 = vmatmul.mubr.f32.gmra.mxu0 %v4354
        %v4565 = vpop.f32.mrf.mxu0
        %v4566 = vadd.f32 %v4245, %v4565
        %v4567 = vpop.f32.mrf.mxu0
        %4568 = vmatprep.mubr.f32.mxu0 0.0
        %4569 = vmatmul.mubr.f32.gmra.mxu0 %v4357
        %v4570 = vpop.f32.mrf.mxu0
        %v4571 = vadd.f32 %v4250, %v4570
        %v4572 = vpop.f32.mrf.mxu0
        %4573 = vmatprep.mubr.f32.mxu0 0.0
        %4574 = vmatmul.mubr.f32.gmra.mxu0 %v4360
        %v4575 = vpop.f32.mrf.mxu0
        %v4576 = vadd.f32 %v4255, %v4575
        %v4577 = vpop.f32.mrf.mxu0
        %4578 = vmatprep.mubr.f32.mxu0 0.0
        %4579 = vmatmul.mubr.f32.gmra.mxu0 %v4363
        %v4580 = vpop.f32.mrf.mxu0
        %v4581 = vadd.f32 %v4260, %v4580
        %v4582 = vpop.f32.mrf.mxu0
        %4583 = vmatprep.mubr.f32.mxu0 0.0
        %4584 = vmatmul.mubr.f32.gmra.mxu0 %v4366
        %v4585 = vpop.f32.mrf.mxu0
        %v4586 = vadd.f32 %v4265, %v4585
        %v4587 = vpop.f32.mrf.mxu0
        %4588 = vmatprep.mubr.f32.mxu0 0.0
        %4589 = vmatmul.mubr.f32.gmra.mxu0 %v4369
        %v4590 = vpop.f32.mrf.mxu0
        %v4591 = vadd.f32 %v4270, %v4590
        %v4592 = vpop.f32.mrf.mxu0
        %4593 = vmatprep.mubr.f32.mxu0 0.0
        %4594 = vmatmul.mubr.f32.gmra.mxu0 %v4372
        %v4595 = vpop.f32.mrf.mxu0
        %v4596 = vadd.f32 %v4275, %v4595
        %v4597 = vpop.f32.mrf.mxu0
        %4598 = vdwg.mxu0
        %v4599 = vld [vmem:[#allocation3 + $0x2] sm:$0xff]
        %v4600 = vld [vmem:[#allocation3 + $0xa] sm:$0xff]
        %v4601 = vld [vmem:[#allocation3 + $0x1a] sm:$0xff]
        %v4602 = vld [vmem:[#allocation3 + $0x22] sm:$0xff]
        %v4603 = vld [vmem:[#allocation3 + $0x32] sm:$0xff]
        %v4604 = vld [vmem:[#allocation3 + $0x3a] sm:$0xff]
        %v4605 = vld [vmem:[#allocation3 + $0x4a] sm:$0xff]
        %v4606 = vld [vmem:[#allocation3 + $0x52] sm:$0xff]
        %v4607 = vld [vmem:[#allocation3 + $0x62] sm:$0xff]
        %v4608 = vld [vmem:[#allocation3 + $0x6a] sm:$0xff]
        %v4609 = vld [vmem:[#allocation3 + $0x7a] sm:$0xff]
        %v4610 = vld [vmem:[#allocation3 + $0x82] sm:$0xff]
        %v4611 = vld [vmem:[#allocation3 + $0x92] sm:$0xff]
        %v4612 = vld [vmem:[#allocation3 + $0x9a] sm:$0xff]
        %v4613 = vld [vmem:[#allocation3 + $0xaa] sm:$0xff]
        %v4614 = vld [vmem:[#allocation3 + $0xb2] sm:$0xff]
        %v4615 = vld [vmem:[#allocation3 + $0xc2] sm:$0xff]
        %v4616 = vld [vmem:[#allocation3 + $0xca] sm:$0xff]
        %v4617 = vld [vmem:[#allocation3 + $0xda] sm:$0xff]
        %v4618 = vld [vmem:[#allocation3 + $0xe2] sm:$0xff]
        %v4619 = vld [vmem:[#allocation3 + $0xf2] sm:$0xff]
        %v4620 = vld [vmem:[#allocation3 + $0xfa] sm:$0xff]
        %v4621 = vld [vmem:[#allocation3 + $0x10a] sm:$0xff]
        %v4622 = vld [vmem:[#allocation3 + $0x112] sm:$0xff]
        %v4623 = vld [vmem:[#allocation3 + $0x122] sm:$0xff]
        %v4624 = vld [vmem:[#allocation3 + $0x12a] sm:$0xff]
        %v4625 = vld [vmem:[#allocation3 + $0x13a] sm:$0xff]
        %v4626 = vld [vmem:[#allocation3 + $0x142] sm:$0xff]
        %v4627 = vld [vmem:[#allocation3 + $0x152] sm:$0xff]
        %v4628 = vld [vmem:[#allocation3 + $0x15a] sm:$0xff]
        %v4629 = vld [vmem:[#allocation3 + $0x16a] sm:$0xff]
        %v4630 = vld [vmem:[#allocation3 + $0x172] sm:$0xff]
        %s4631 = scalar_lea.vmem %s2, 16
        %v4632 = vld [vmem:[%s4631] sm:$0xff]
        %v4634 = vsel %vm252, %v4599, 0
        %v4637 = vsel %vm252, %v4600, 0
        %v4640 = vsel %vm252, %v4601, 0
        %v4643 = vsel %vm252, %v4602, 0
        %v4646 = vsel %vm252, %v4603, 0
        %v4649 = vsel %vm252, %v4604, 0
        %v4652 = vsel %vm252, %v4605, 0
        %v4655 = vsel %vm252, %v4606, 0
        %v4658 = vsel %vm252, %v4607, 0
        %v4661 = vsel %vm252, %v4608, 0
        %v4664 = vsel %vm252, %v4609, 0
        %v4667 = vsel %vm252, %v4610, 0
        %v4670 = vsel %vm252, %v4611, 0
        %v4673 = vsel %vm252, %v4612, 0
        %v4676 = vsel %vm252, %v4613, 0
        %v4679 = vsel %vm252, %v4614, 0
        %v4682 = vsel %vm252, %v4615, 0
        %v4685 = vsel %vm252, %v4616, 0
        %v4688 = vsel %vm252, %v4617, 0
        %v4691 = vsel %vm252, %v4618, 0
        %v4694 = vsel %vm252, %v4619, 0
        %v4697 = vsel %vm252, %v4620, 0
        %v4700 = vsel %vm252, %v4621, 0
        %v4703 = vsel %vm252, %v4622, 0
        %v4706 = vsel %vm252, %v4623, 0
        %v4709 = vsel %vm252, %v4624, 0
        %v4712 = vsel %vm252, %v4625, 0
        %v4715 = vsel %vm252, %v4626, 0
        %v4718 = vsel %vm252, %v4627, 0
        %v4721 = vsel %vm252, %v4628, 0
        %v4724 = vsel %vm252, %v4629, 0
        %v4727 = vsel %vm252, %v4630, 0
        %4729 = vmatprep.subr.mxu0 0.0
        %4730 = vmatpush1.msra.mxu0 0.0
        %4731 = vmatprep.subr.mxu0 0.0
        %4732 = vmatpush1.msra.mxu0 0.0
        %4733 = vmatprep.subr.mxu0 0.0
        %4734 = vmatpush1.msra.mxu0 0.0
        %4735 = vmatprep.subr.mxu0 0.0
        %4736 = vmatpush1.msra.mxu0 0.0
        %4737 = vmatprep.subr.mxu0 0.0
        %4738 = vmatpush1.msra.mxu0 0.0
        %4739 = vmatprep.subr.mxu0 0.0
        %4740 = vmatpush1.msra.mxu0 0.0
        %4741 = vmatprep.subr.mxu0 0.0
        %4742 = vmatpush1.msra.mxu0 0.0
        %4743 = vmatprep.subr.mxu0 0.0
        %4744 = vmatpush1.msra.mxu0 0.0
        %4745 = vmatprep.subr.mxu0 0.0
        %4746 = vmatpush1.msra.mxu0 0.0
        %4747 = vmatprep.subr.mxu0 0.0
        %4748 = vmatpush1.msra.mxu0 0.0
        %4749 = vmatprep.subr.mxu0 0.0
        %4750 = vmatpush1.msra.mxu0 0.0
        %4751 = vmatprep.subr.mxu0 0.0
        %4752 = vmatpush1.msra.mxu0 0.0
        %4753 = vmatprep.subr.mxu0 0.0
        %4754 = vmatpush1.msra.mxu0 0.0
        %4755 = vmatprep.subr.mxu0 0.0
        %4756 = vmatpush1.msra.mxu0 0.0
        %4757 = vmatprep.subr.mxu0 0.0
        %4758 = vmatpush1.msra.mxu0 0.0
        %4759 = vmatprep.subr.mxu0 0.0
        %4760 = vmatpush1.msra.mxu0 %v4632
        %4761 = vmatprep.subr.mxu0 0.0
        %4762 = vmatpush2.msra.mxu0 0.0
        %4763 = vmatprep.subr.mxu0 0.0
        %4764 = vmatpush2.msra.mxu0 0.0
        %4765 = vmatprep.subr.mxu0 0.0
        %4766 = vmatpush2.msra.mxu0 0.0
        %4767 = vmatprep.subr.mxu0 0.0
        %4768 = vmatpush2.msra.mxu0 0.0
        %4769 = vmatprep.subr.mxu0 0.0
        %4770 = vmatpush2.msra.mxu0 0.0
        %4771 = vmatprep.subr.mxu0 0.0
        %4772 = vmatpush2.msra.mxu0 0.0
        %4773 = vmatprep.subr.mxu0 0.0
        %4774 = vmatpush2.msra.mxu0 0.0
        %4775 = vmatprep.subr.mxu0 0.0
        %4776 = vmatpush2.msra.mxu0 0.0
        %4777 = vmatprep.subr.mxu0 0.0
        %4778 = vmatpush2.msra.mxu0 0.0
        %4779 = vmatprep.subr.mxu0 0.0
        %4780 = vmatpush2.msra.mxu0 0.0
        %4781 = vmatprep.subr.mxu0 0.0
        %4782 = vmatpush2.msra.mxu0 0.0
        %4783 = vmatprep.subr.mxu0 0.0
        %4784 = vmatpush2.msra.mxu0 0.0
        %4785 = vmatprep.subr.mxu0 0.0
        %4786 = vmatpush2.msra.mxu0 0.0
        %4787 = vmatprep.subr.mxu0 0.0
        %4788 = vmatpush2.msra.mxu0 0.0
        %4789 = vmatprep.subr.mxu0 0.0
        %4790 = vmatpush2.msra.mxu0 0.0
        %4791 = vmatprep.subr.mxu0 0.0
        %4792 = vmatpush2.msra.mxu0 0.0
        %4793 = vmatprep.mubr.f32.mxu0 0.0
        %4794 = vmatmul.mubr.f32.gmra.mxu0 %v4634
        %v4795 = vpop.f32.mrf.mxu0
        %v4796 = vadd.f32 0.0, %v4795
        %v4797 = vpop.f32.mrf.mxu0
        %4798 = vmatprep.mubr.f32.mxu0 0.0
        %4799 = vmatmul.mubr.f32.gmra.mxu0 %v4637
        %v4800 = vpop.f32.mrf.mxu0
        %v4801 = vadd.f32 0.0, %v4800
        %v4802 = vpop.f32.mrf.mxu0
        %4803 = vmatprep.mubr.f32.mxu0 0.0
        %4804 = vmatmul.mubr.f32.gmra.mxu0 %v4640
        %v4805 = vpop.f32.mrf.mxu0
        %v4806 = vadd.f32 0.0, %v4805
        %v4807 = vpop.f32.mrf.mxu0
        %4808 = vmatprep.mubr.f32.mxu0 0.0
        %4809 = vmatmul.mubr.f32.gmra.mxu0 %v4643
        %v4810 = vpop.f32.mrf.mxu0
        %v4811 = vadd.f32 0.0, %v4810
        %v4812 = vpop.f32.mrf.mxu0
        %4813 = vmatprep.mubr.f32.mxu0 0.0
        %4814 = vmatmul.mubr.f32.gmra.mxu0 %v4646
        %v4815 = vpop.f32.mrf.mxu0
        %v4816 = vadd.f32 0.0, %v4815
        %v4817 = vpop.f32.mrf.mxu0
        %4818 = vmatprep.mubr.f32.mxu0 0.0
        %4819 = vmatmul.mubr.f32.gmra.mxu0 %v4649
        %v4820 = vpop.f32.mrf.mxu0
        %v4821 = vadd.f32 0.0, %v4820
        %v4822 = vpop.f32.mrf.mxu0
        %4823 = vmatprep.mubr.f32.mxu0 0.0
        %4824 = vmatmul.mubr.f32.gmra.mxu0 %v4652
        %v4825 = vpop.f32.mrf.mxu0
        %v4826 = vadd.f32 0.0, %v4825
        %v4827 = vpop.f32.mrf.mxu0
        %4828 = vmatprep.mubr.f32.mxu0 0.0
        %4829 = vmatmul.mubr.f32.gmra.mxu0 %v4655
        %v4830 = vpop.f32.mrf.mxu0
        %v4831 = vadd.f32 0.0, %v4830
        %v4832 = vpop.f32.mrf.mxu0
        %4833 = vmatprep.mubr.f32.mxu0 0.0
        %4834 = vmatmul.mubr.f32.gmra.mxu0 %v4658
        %v4835 = vpop.f32.mrf.mxu0
        %v4836 = vadd.f32 0.0, %v4835
        %v4837 = vpop.f32.mrf.mxu0
        %4838 = vmatprep.mubr.f32.mxu0 0.0
        %4839 = vmatmul.mubr.f32.gmra.mxu0 %v4661
        %v4840 = vpop.f32.mrf.mxu0
        %v4841 = vadd.f32 0.0, %v4840
        %v4842 = vpop.f32.mrf.mxu0
        %4843 = vmatprep.mubr.f32.mxu0 0.0
        %4844 = vmatmul.mubr.f32.gmra.mxu0 %v4664
        %v4845 = vpop.f32.mrf.mxu0
        %v4846 = vadd.f32 0.0, %v4845
        %v4847 = vpop.f32.mrf.mxu0
        %4848 = vmatprep.mubr.f32.mxu0 0.0
        %4849 = vmatmul.mubr.f32.gmra.mxu0 %v4667
        %v4850 = vpop.f32.mrf.mxu0
        %v4851 = vadd.f32 0.0, %v4850
        %v4852 = vpop.f32.mrf.mxu0
        %4853 = vmatprep.mubr.f32.mxu0 0.0
        %4854 = vmatmul.mubr.f32.gmra.mxu0 %v4670
        %v4855 = vpop.f32.mrf.mxu0
        %v4856 = vadd.f32 0.0, %v4855
        %v4857 = vpop.f32.mrf.mxu0
        %4858 = vmatprep.mubr.f32.mxu0 0.0
        %4859 = vmatmul.mubr.f32.gmra.mxu0 %v4673
        %v4860 = vpop.f32.mrf.mxu0
        %v4861 = vadd.f32 0.0, %v4860
        %v4862 = vpop.f32.mrf.mxu0
        %4863 = vmatprep.mubr.f32.mxu0 0.0
        %4864 = vmatmul.mubr.f32.gmra.mxu0 %v4676
        %v4865 = vpop.f32.mrf.mxu0
        %v4866 = vadd.f32 0.0, %v4865
        %v4867 = vpop.f32.mrf.mxu0
        %4868 = vmatprep.mubr.f32.mxu0 0.0
        %4869 = vmatmul.mubr.f32.gmra.mxu0 %v4679
        %v4870 = vpop.f32.mrf.mxu0
        %v4871 = vadd.f32 0.0, %v4870
        %v4872 = vpop.f32.mrf.mxu0
        %4873 = vmatprep.mubr.f32.mxu0 0.0
        %4874 = vmatmul.mubr.f32.gmra.mxu0 %v4682
        %v4875 = vpop.f32.mrf.mxu0
        %v4876 = vadd.f32 0.0, %v4875
        %v4877 = vpop.f32.mrf.mxu0
        %4878 = vmatprep.mubr.f32.mxu0 0.0
        %4879 = vmatmul.mubr.f32.gmra.mxu0 %v4685
        %v4880 = vpop.f32.mrf.mxu0
        %v4881 = vadd.f32 0.0, %v4880
        %v4882 = vpop.f32.mrf.mxu0
        %4883 = vmatprep.mubr.f32.mxu0 0.0
        %4884 = vmatmul.mubr.f32.gmra.mxu0 %v4688
        %v4885 = vpop.f32.mrf.mxu0
        %v4886 = vadd.f32 0.0, %v4885
        %v4887 = vpop.f32.mrf.mxu0
        %4888 = vmatprep.mubr.f32.mxu0 0.0
        %4889 = vmatmul.mubr.f32.gmra.mxu0 %v4691
        %v4890 = vpop.f32.mrf.mxu0
        %v4891 = vadd.f32 0.0, %v4890
        %v4892 = vpop.f32.mrf.mxu0
        %4893 = vmatprep.mubr.f32.mxu0 0.0
        %4894 = vmatmul.mubr.f32.gmra.mxu0 %v4694
        %v4895 = vpop.f32.mrf.mxu0
        %v4896 = vadd.f32 0.0, %v4895
        %v4897 = vpop.f32.mrf.mxu0
        %4898 = vmatprep.mubr.f32.mxu0 0.0
        %4899 = vmatmul.mubr.f32.gmra.mxu0 %v4697
        %v4900 = vpop.f32.mrf.mxu0
        %v4901 = vadd.f32 0.0, %v4900
        %v4902 = vpop.f32.mrf.mxu0
        %4903 = vmatprep.mubr.f32.mxu0 0.0
        %4904 = vmatmul.mubr.f32.gmra.mxu0 %v4700
        %v4905 = vpop.f32.mrf.mxu0
        %v4906 = vadd.f32 0.0, %v4905
        %v4907 = vpop.f32.mrf.mxu0
        %4908 = vmatprep.mubr.f32.mxu0 0.0
        %4909 = vmatmul.mubr.f32.gmra.mxu0 %v4703
        %v4910 = vpop.f32.mrf.mxu0
        %v4911 = vadd.f32 0.0, %v4910
        %v4912 = vpop.f32.mrf.mxu0
        %4913 = vmatprep.mubr.f32.mxu0 0.0
        %4914 = vmatmul.mubr.f32.gmra.mxu0 %v4706
        %v4915 = vpop.f32.mrf.mxu0
        %v4916 = vadd.f32 0.0, %v4915
        %v4917 = vpop.f32.mrf.mxu0
        %4918 = vmatprep.mubr.f32.mxu0 0.0
        %4919 = vmatmul.mubr.f32.gmra.mxu0 %v4709
        %v4920 = vpop.f32.mrf.mxu0
        %v4921 = vadd.f32 0.0, %v4920
        %v4922 = vpop.f32.mrf.mxu0
        %4923 = vmatprep.mubr.f32.mxu0 0.0
        %4924 = vmatmul.mubr.f32.gmra.mxu0 %v4712
        %v4925 = vpop.f32.mrf.mxu0
        %v4926 = vadd.f32 0.0, %v4925
        %v4927 = vpop.f32.mrf.mxu0
        %4928 = vmatprep.mubr.f32.mxu0 0.0
        %4929 = vmatmul.mubr.f32.gmra.mxu0 %v4715
        %v4930 = vpop.f32.mrf.mxu0
        %v4931 = vadd.f32 0.0, %v4930
        %v4932 = vpop.f32.mrf.mxu0
        %4933 = vmatprep.mubr.f32.mxu0 0.0
        %4934 = vmatmul.mubr.f32.gmra.mxu0 %v4718
        %v4935 = vpop.f32.mrf.mxu0
        %v4936 = vadd.f32 0.0, %v4935
        %v4937 = vpop.f32.mrf.mxu0
        %4938 = vmatprep.mubr.f32.mxu0 0.0
        %4939 = vmatmul.mubr.f32.gmra.mxu0 %v4721
        %v4940 = vpop.f32.mrf.mxu0
        %v4941 = vadd.f32 0.0, %v4940
        %v4942 = vpop.f32.mrf.mxu0
        %4943 = vmatprep.mubr.f32.mxu0 0.0
        %4944 = vmatmul.mubr.f32.gmra.mxu0 %v4724
        %v4945 = vpop.f32.mrf.mxu0
        %v4946 = vadd.f32 0.0, %v4945
        %v4947 = vpop.f32.mrf.mxu0
        %4948 = vmatprep.mubr.f32.mxu0 0.0
        %4949 = vmatmul.mubr.f32.gmra.mxu0 %v4727
        %v4950 = vpop.f32.mrf.mxu0
        %v4951 = vadd.f32 0.0, %v4950
        %v4952 = vpop.f32.mrf.mxu0
        %4953 = vdwg.mxu0
        %v4954 = vadd.f32 %v4441, %v4796
        %v4955 = vadd.f32 %v4446, %v4801
        %v4956 = vadd.f32 %v4451, %v4806
        %v4957 = vadd.f32 %v4456, %v4811
        %v4958 = vadd.f32 %v4461, %v4816
        %v4959 = vadd.f32 %v4466, %v4821
        %v4960 = vadd.f32 %v4471, %v4826
        %v4961 = vadd.f32 %v4476, %v4831
        %v4962 = vadd.f32 %v4481, %v4836
        %v4963 = vadd.f32 %v4486, %v4841
        %v4964 = vadd.f32 %v4491, %v4846
        %v4965 = vadd.f32 %v4496, %v4851
        %v4966 = vadd.f32 %v4501, %v4856
        %v4967 = vadd.f32 %v4506, %v4861
        %v4968 = vadd.f32 %v4511, %v4866
        %v4969 = vadd.f32 %v4516, %v4871
        %v4970 = vadd.f32 %v4521, %v4876
        %v4971 = vadd.f32 %v4526, %v4881
        %v4972 = vadd.f32 %v4531, %v4886
        %v4973 = vadd.f32 %v4536, %v4891
        %v4974 = vadd.f32 %v4541, %v4896
        %v4975 = vadd.f32 %v4546, %v4901
        %v4976 = vadd.f32 %v4551, %v4906
        %v4977 = vadd.f32 %v4556, %v4911
        %v4978 = vadd.f32 %v4561, %v4916
        %v4979 = vadd.f32 %v4566, %v4921
        %v4980 = vadd.f32 %v4571, %v4926
        %v4981 = vadd.f32 %v4576, %v4931
        %v4982 = vadd.f32 %v4581, %v4936
        %v4983 = vadd.f32 %v4586, %v4941
        %v4984 = vadd.f32 %v4591, %v4946
        %v4985 = vadd.f32 %v4596, %v4951
        %v4986 = vld [vmem:[%s3857] sm:$0xff]
        %v4987 = vld [vmem:[%s3857 + $0x8] sm:$0xff]
        %v4988 = vld [vmem:[%s3857 + $0x18] sm:$0xff]
        %v4989 = vld [vmem:[%s3857 + $0x20] sm:$0xff]
        %v4990 = vld [vmem:[%s3857 + $0x30] sm:$0xff]
        %v4991 = vld [vmem:[%s3857 + $0x38] sm:$0xff]
        %v4992 = vld [vmem:[%s3857 + $0x48] sm:$0xff]
        %v4993 = vld [vmem:[%s3857 + $0x50] sm:$0xff]
        %v4994 = vld [vmem:[%s3857 + $0x60] sm:$0xff]
        %v4995 = vld [vmem:[%s3857 + $0x68] sm:$0xff]
        %v4996 = vld [vmem:[%s3857 + $0x78] sm:$0xff]
        %v4997 = vld [vmem:[%s3857 + $0x80] sm:$0xff]
        %v4998 = vld [vmem:[%s3857 + $0x90] sm:$0xff]
        %v4999 = vld [vmem:[%s3857 + $0x98] sm:$0xff]
        %v5000 = vld [vmem:[%s3857 + $0xa8] sm:$0xff]
        %v5001 = vld [vmem:[%s3857 + $0xb0] sm:$0xff]
        %v5002 = vld [vmem:[%s3857 + $0xc0] sm:$0xff]
        %v5003 = vld [vmem:[%s3857 + $0xc8] sm:$0xff]
        %v5004 = vld [vmem:[%s3857 + $0xd8] sm:$0xff]
        %v5005 = vld [vmem:[%s3857 + $0xe0] sm:$0xff]
        %v5006 = vld [vmem:[%s3857 + $0xf0] sm:$0xff]
        %v5007 = vld [vmem:[%s3857 + $0xf8] sm:$0xff]
        %v5008 = vld [vmem:[%s3857 + $0x108] sm:$0xff]
        %v5009 = vld [vmem:[%s3857 + $0x110] sm:$0xff]
        %v5010 = vld [vmem:[%s3857 + $0x120] sm:$0xff]
        %v5011 = vld [vmem:[%s3857 + $0x128] sm:$0xff]
        %v5012 = vld [vmem:[%s3857 + $0x138] sm:$0xff]
        %v5013 = vld [vmem:[%s3857 + $0x140] sm:$0xff]
        %v5014 = vld [vmem:[%s3857 + $0x150] sm:$0xff]
        %v5015 = vld [vmem:[%s3857 + $0x158] sm:$0xff]
        %v5016 = vld [vmem:[%s3857 + $0x168] sm:$0xff]
        %v5017 = vld [vmem:[%s3857 + $0x170] sm:$0xff]
        %s5018 = scalar_lea.vmem %s2, 24
        %v5019 = vld [vmem:[%s5018] sm:$0xff]
        %v5021 = vsel %vm252, %v4986, 0
        %v5024 = vsel %vm252, %v4987, 0
        %v5027 = vsel %vm252, %v4988, 0
        %v5030 = vsel %vm252, %v4989, 0
        %v5033 = vsel %vm252, %v4990, 0
        %v5036 = vsel %vm252, %v4991, 0
        %v5039 = vsel %vm252, %v4992, 0
        %v5042 = vsel %vm252, %v4993, 0
        %v5045 = vsel %vm252, %v4994, 0
        %v5048 = vsel %vm252, %v4995, 0
        %v5051 = vsel %vm252, %v4996, 0
        %v5054 = vsel %vm252, %v4997, 0
        %v5057 = vsel %vm252, %v4998, 0
        %v5060 = vsel %vm252, %v4999, 0
        %v5063 = vsel %vm252, %v5000, 0
        %v5066 = vsel %vm252, %v5001, 0
        %v5069 = vsel %vm252, %v5002, 0
        %v5072 = vsel %vm252, %v5003, 0
        %v5075 = vsel %vm252, %v5004, 0
        %v5078 = vsel %vm252, %v5005, 0
        %v5081 = vsel %vm252, %v5006, 0
        %v5084 = vsel %vm252, %v5007, 0
        %v5087 = vsel %vm252, %v5008, 0
        %v5090 = vsel %vm252, %v5009, 0
        %v5093 = vsel %vm252, %v5010, 0
        %v5096 = vsel %vm252, %v5011, 0
        %v5099 = vsel %vm252, %v5012, 0
        %v5102 = vsel %vm252, %v5013, 0
        %v5105 = vsel %vm252, %v5014, 0
        %v5108 = vsel %vm252, %v5015, 0
        %v5111 = vsel %vm252, %v5016, 0
        %v5114 = vsel %vm252, %v5017, 0
        %5116 = vmatprep.subr.mxu0 0.0
        %5117 = vmatpush1.msra.mxu0 0.0
        %5118 = vmatprep.subr.mxu0 0.0
        %5119 = vmatpush1.msra.mxu0 0.0
        %5120 = vmatprep.subr.mxu0 0.0
        %5121 = vmatpush1.msra.mxu0 0.0
        %5122 = vmatprep.subr.mxu0 0.0
        %5123 = vmatpush1.msra.mxu0 0.0
        %5124 = vmatprep.subr.mxu0 0.0
        %5125 = vmatpush1.msra.mxu0 0.0
        %5126 = vmatprep.subr.mxu0 0.0
        %5127 = vmatpush1.msra.mxu0 0.0
        %5128 = vmatprep.subr.mxu0 0.0
        %5129 = vmatpush1.msra.mxu0 0.0
        %5130 = vmatprep.subr.mxu0 0.0
        %5131 = vmatpush1.msra.mxu0 0.0
        %5132 = vmatprep.subr.mxu0 0.0
        %5133 = vmatpush1.msra.mxu0 0.0
        %5134 = vmatprep.subr.mxu0 0.0
        %5135 = vmatpush1.msra.mxu0 0.0
        %5136 = vmatprep.subr.mxu0 0.0
        %5137 = vmatpush1.msra.mxu0 0.0
        %5138 = vmatprep.subr.mxu0 0.0
        %5139 = vmatpush1.msra.mxu0 0.0
        %5140 = vmatprep.subr.mxu0 0.0
        %5141 = vmatpush1.msra.mxu0 0.0
        %5142 = vmatprep.subr.mxu0 0.0
        %5143 = vmatpush1.msra.mxu0 0.0
        %5144 = vmatprep.subr.mxu0 0.0
        %5145 = vmatpush1.msra.mxu0 0.0
        %5146 = vmatprep.subr.mxu0 0.0
        %5147 = vmatpush1.msra.mxu0 %v5019
        %5148 = vmatprep.subr.mxu0 0.0
        %5149 = vmatpush2.msra.mxu0 0.0
        %5150 = vmatprep.subr.mxu0 0.0
        %5151 = vmatpush2.msra.mxu0 0.0
        %5152 = vmatprep.subr.mxu0 0.0
        %5153 = vmatpush2.msra.mxu0 0.0
        %5154 = vmatprep.subr.mxu0 0.0
        %5155 = vmatpush2.msra.mxu0 0.0
        %5156 = vmatprep.subr.mxu0 0.0
        %5157 = vmatpush2.msra.mxu0 0.0
        %5158 = vmatprep.subr.mxu0 0.0
        %5159 = vmatpush2.msra.mxu0 0.0
        %5160 = vmatprep.subr.mxu0 0.0
        %5161 = vmatpush2.msra.mxu0 0.0
        %5162 = vmatprep.subr.mxu0 0.0
        %5163 = vmatpush2.msra.mxu0 0.0
        %5164 = vmatprep.subr.mxu0 0.0
        %5165 = vmatpush2.msra.mxu0 0.0
        %5166 = vmatprep.subr.mxu0 0.0
        %5167 = vmatpush2.msra.mxu0 0.0
        %5168 = vmatprep.subr.mxu0 0.0
        %5169 = vmatpush2.msra.mxu0 0.0
        %5170 = vmatprep.subr.mxu0 0.0
        %5171 = vmatpush2.msra.mxu0 0.0
        %5172 = vmatprep.subr.mxu0 0.0
        %5173 = vmatpush2.msra.mxu0 0.0
        %5174 = vmatprep.subr.mxu0 0.0
        %5175 = vmatpush2.msra.mxu0 0.0
        %5176 = vmatprep.subr.mxu0 0.0
        %5177 = vmatpush2.msra.mxu0 0.0
        %5178 = vmatprep.subr.mxu0 0.0
        %5179 = vmatpush2.msra.mxu0 0.0
        %5180 = vmatprep.mubr.f32.mxu0 0.0
        %5181 = vmatmul.mubr.f32.gmra.mxu0 %v5021
        %v5182 = vpop.f32.mrf.mxu0
        %v5183 = vadd.f32 0.0, %v5182
        %v5184 = vpop.f32.mrf.mxu0
        %5185 = vmatprep.mubr.f32.mxu0 0.0
        %5186 = vmatmul.mubr.f32.gmra.mxu0 %v5024
        %v5187 = vpop.f32.mrf.mxu0
        %v5188 = vadd.f32 0.0, %v5187
        %v5189 = vpop.f32.mrf.mxu0
        %5190 = vmatprep.mubr.f32.mxu0 0.0
        %5191 = vmatmul.mubr.f32.gmra.mxu0 %v5027
        %v5192 = vpop.f32.mrf.mxu0
        %v5193 = vadd.f32 0.0, %v5192
        %v5194 = vpop.f32.mrf.mxu0
        %5195 = vmatprep.mubr.f32.mxu0 0.0
        %5196 = vmatmul.mubr.f32.gmra.mxu0 %v5030
        %v5197 = vpop.f32.mrf.mxu0
        %v5198 = vadd.f32 0.0, %v5197
        %v5199 = vpop.f32.mrf.mxu0
        %5200 = vmatprep.mubr.f32.mxu0 0.0
        %5201 = vmatmul.mubr.f32.gmra.mxu0 %v5033
        %v5202 = vpop.f32.mrf.mxu0
        %v5203 = vadd.f32 0.0, %v5202
        %v5204 = vpop.f32.mrf.mxu0
        %5205 = vmatprep.mubr.f32.mxu0 0.0
        %5206 = vmatmul.mubr.f32.gmra.mxu0 %v5036
        %v5207 = vpop.f32.mrf.mxu0
        %v5208 = vadd.f32 0.0, %v5207
        %v5209 = vpop.f32.mrf.mxu0
        %5210 = vmatprep.mubr.f32.mxu0 0.0
        %5211 = vmatmul.mubr.f32.gmra.mxu0 %v5039
        %v5212 = vpop.f32.mrf.mxu0
        %v5213 = vadd.f32 0.0, %v5212
        %v5214 = vpop.f32.mrf.mxu0
        %5215 = vmatprep.mubr.f32.mxu0 0.0
        %5216 = vmatmul.mubr.f32.gmra.mxu0 %v5042
        %v5217 = vpop.f32.mrf.mxu0
        %v5218 = vadd.f32 0.0, %v5217
        %v5219 = vpop.f32.mrf.mxu0
        %5220 = vmatprep.mubr.f32.mxu0 0.0
        %5221 = vmatmul.mubr.f32.gmra.mxu0 %v5045
        %v5222 = vpop.f32.mrf.mxu0
        %v5223 = vadd.f32 0.0, %v5222
        %v5224 = vpop.f32.mrf.mxu0
        %5225 = vmatprep.mubr.f32.mxu0 0.0
        %5226 = vmatmul.mubr.f32.gmra.mxu0 %v5048
        %v5227 = vpop.f32.mrf.mxu0
        %v5228 = vadd.f32 0.0, %v5227
        %v5229 = vpop.f32.mrf.mxu0
        %5230 = vmatprep.mubr.f32.mxu0 0.0
        %5231 = vmatmul.mubr.f32.gmra.mxu0 %v5051
        %v5232 = vpop.f32.mrf.mxu0
        %v5233 = vadd.f32 0.0, %v5232
        %v5234 = vpop.f32.mrf.mxu0
        %5235 = vmatprep.mubr.f32.mxu0 0.0
        %5236 = vmatmul.mubr.f32.gmra.mxu0 %v5054
        %v5237 = vpop.f32.mrf.mxu0
        %v5238 = vadd.f32 0.0, %v5237
        %v5239 = vpop.f32.mrf.mxu0
        %5240 = vmatprep.mubr.f32.mxu0 0.0
        %5241 = vmatmul.mubr.f32.gmra.mxu0 %v5057
        %v5242 = vpop.f32.mrf.mxu0
        %v5243 = vadd.f32 0.0, %v5242
        %v5244 = vpop.f32.mrf.mxu0
        %5245 = vmatprep.mubr.f32.mxu0 0.0
        %5246 = vmatmul.mubr.f32.gmra.mxu0 %v5060
        %v5247 = vpop.f32.mrf.mxu0
        %v5248 = vadd.f32 0.0, %v5247
        %v5249 = vpop.f32.mrf.mxu0
        %5250 = vmatprep.mubr.f32.mxu0 0.0
        %5251 = vmatmul.mubr.f32.gmra.mxu0 %v5063
        %v5252 = vpop.f32.mrf.mxu0
        %v5253 = vadd.f32 0.0, %v5252
        %v5254 = vpop.f32.mrf.mxu0
        %5255 = vmatprep.mubr.f32.mxu0 0.0
        %5256 = vmatmul.mubr.f32.gmra.mxu0 %v5066
        %v5257 = vpop.f32.mrf.mxu0
        %v5258 = vadd.f32 0.0, %v5257
        %v5259 = vpop.f32.mrf.mxu0
        %5260 = vmatprep.mubr.f32.mxu0 0.0
        %5261 = vmatmul.mubr.f32.gmra.mxu0 %v5069
        %v5262 = vpop.f32.mrf.mxu0
        %v5263 = vadd.f32 0.0, %v5262
        %v5264 = vpop.f32.mrf.mxu0
        %5265 = vmatprep.mubr.f32.mxu0 0.0
        %5266 = vmatmul.mubr.f32.gmra.mxu0 %v5072
        %v5267 = vpop.f32.mrf.mxu0
        %v5268 = vadd.f32 0.0, %v5267
        %v5269 = vpop.f32.mrf.mxu0
        %5270 = vmatprep.mubr.f32.mxu0 0.0
        %5271 = vmatmul.mubr.f32.gmra.mxu0 %v5075
        %v5272 = vpop.f32.mrf.mxu0
        %v5273 = vadd.f32 0.0, %v5272
        %v5274 = vpop.f32.mrf.mxu0
        %5275 = vmatprep.mubr.f32.mxu0 0.0
        %5276 = vmatmul.mubr.f32.gmra.mxu0 %v5078
        %v5277 = vpop.f32.mrf.mxu0
        %v5278 = vadd.f32 0.0, %v5277
        %v5279 = vpop.f32.mrf.mxu0
        %5280 = vmatprep.mubr.f32.mxu0 0.0
        %5281 = vmatmul.mubr.f32.gmra.mxu0 %v5081
        %v5282 = vpop.f32.mrf.mxu0
        %v5283 = vadd.f32 0.0, %v5282
        %v5284 = vpop.f32.mrf.mxu0
        %5285 = vmatprep.mubr.f32.mxu0 0.0
        %5286 = vmatmul.mubr.f32.gmra.mxu0 %v5084
        %v5287 = vpop.f32.mrf.mxu0
        %v5288 = vadd.f32 0.0, %v5287
        %v5289 = vpop.f32.mrf.mxu0
        %5290 = vmatprep.mubr.f32.mxu0 0.0
        %5291 = vmatmul.mubr.f32.gmra.mxu0 %v5087
        %v5292 = vpop.f32.mrf.mxu0
        %v5293 = vadd.f32 0.0, %v5292
        %v5294 = vpop.f32.mrf.mxu0
        %5295 = vmatprep.mubr.f32.mxu0 0.0
        %5296 = vmatmul.mubr.f32.gmra.mxu0 %v5090
        %v5297 = vpop.f32.mrf.mxu0
        %v5298 = vadd.f32 0.0, %v5297
        %v5299 = vpop.f32.mrf.mxu0
        %5300 = vmatprep.mubr.f32.mxu0 0.0
        %5301 = vmatmul.mubr.f32.gmra.mxu0 %v5093
        %v5302 = vpop.f32.mrf.mxu0
        %v5303 = vadd.f32 0.0, %v5302
        %v5304 = vpop.f32.mrf.mxu0
        %5305 = vmatprep.mubr.f32.mxu0 0.0
        %5306 = vmatmul.mubr.f32.gmra.mxu0 %v5096
        %v5307 = vpop.f32.mrf.mxu0
        %v5308 = vadd.f32 0.0, %v5307
        %v5309 = vpop.f32.mrf.mxu0
        %5310 = vmatprep.mubr.f32.mxu0 0.0
        %5311 = vmatmul.mubr.f32.gmra.mxu0 %v5099
        %v5312 = vpop.f32.mrf.mxu0
        %v5313 = vadd.f32 0.0, %v5312
        %v5314 = vpop.f32.mrf.mxu0
        %5315 = vmatprep.mubr.f32.mxu0 0.0
        %5316 = vmatmul.mubr.f32.gmra.mxu0 %v5102
        %v5317 = vpop.f32.mrf.mxu0
        %v5318 = vadd.f32 0.0, %v5317
        %v5319 = vpop.f32.mrf.mxu0
        %5320 = vmatprep.mubr.f32.mxu0 0.0
        %5321 = vmatmul.mubr.f32.gmra.mxu0 %v5105
        %v5322 = vpop.f32.mrf.mxu0
        %v5323 = vadd.f32 0.0, %v5322
        %v5324 = vpop.f32.mrf.mxu0
        %5325 = vmatprep.mubr.f32.mxu0 0.0
        %5326 = vmatmul.mubr.f32.gmra.mxu0 %v5108
        %v5327 = vpop.f32.mrf.mxu0
        %v5328 = vadd.f32 0.0, %v5327
        %v5329 = vpop.f32.mrf.mxu0
        %5330 = vmatprep.mubr.f32.mxu0 0.0
        %5331 = vmatmul.mubr.f32.gmra.mxu0 %v5111
        %v5332 = vpop.f32.mrf.mxu0
        %v5333 = vadd.f32 0.0, %v5332
        %v5334 = vpop.f32.mrf.mxu0
        %5335 = vmatprep.mubr.f32.mxu0 0.0
        %5336 = vmatmul.mubr.f32.gmra.mxu0 %v5114
        %v5337 = vpop.f32.mrf.mxu0
        %v5338 = vadd.f32 0.0, %v5337
        %v5339 = vpop.f32.mrf.mxu0
        %5340 = vdwg.mxu0
        %v5341 = vadd.f32 %v4954, %v5183
        %v5342 = vadd.f32 %v4955, %v5188
        %v5343 = vadd.f32 %v4956, %v5193
        %v5344 = vadd.f32 %v4957, %v5198
        %v5345 = vadd.f32 %v4958, %v5203
        %v5346 = vadd.f32 %v4959, %v5208
        %v5347 = vadd.f32 %v4960, %v5213
        %v5348 = vadd.f32 %v4961, %v5218
        %v5349 = vadd.f32 %v4962, %v5223
        %v5350 = vadd.f32 %v4963, %v5228
        %v5351 = vadd.f32 %v4964, %v5233
        %v5352 = vadd.f32 %v4965, %v5238
        %v5353 = vadd.f32 %v4966, %v5243
        %v5354 = vadd.f32 %v4967, %v5248
        %v5355 = vadd.f32 %v4968, %v5253
        %v5356 = vadd.f32 %v4969, %v5258
        %v5357 = vadd.f32 %v4970, %v5263
        %v5358 = vadd.f32 %v4971, %v5268
        %v5359 = vadd.f32 %v4972, %v5273
        %v5360 = vadd.f32 %v4973, %v5278
        %v5361 = vadd.f32 %v4974, %v5283
        %v5362 = vadd.f32 %v4975, %v5288
        %v5363 = vadd.f32 %v4976, %v5293
        %v5364 = vadd.f32 %v4977, %v5298
        %v5365 = vadd.f32 %v4978, %v5303
        %v5366 = vadd.f32 %v4979, %v5308
        %v5367 = vadd.f32 %v4980, %v5313
        %v5368 = vadd.f32 %v4981, %v5318
        %v5369 = vadd.f32 %v4982, %v5323
        %v5370 = vadd.f32 %v4983, %v5328
        %v5371 = vadd.f32 %v4984, %v5333
        %v5372 = vadd.f32 %v4985, %v5338
        %v5373 = vld [vmem:[%s3857 + $0x1] sm:$0xff]
        %v5374 = vld [vmem:[%s3857 + $0x9] sm:$0xff]
        %v5375 = vld [vmem:[%s3857 + $0x19] sm:$0xff]
        %v5376 = vld [vmem:[%s3857 + $0x21] sm:$0xff]
        %v5377 = vld [vmem:[%s3857 + $0x31] sm:$0xff]
        %v5378 = vld [vmem:[%s3857 + $0x39] sm:$0xff]
        %v5379 = vld [vmem:[%s3857 + $0x49] sm:$0xff]
        %v5380 = vld [vmem:[%s3857 + $0x51] sm:$0xff]
        %v5381 = vld [vmem:[%s3857 + $0x61] sm:$0xff]
        %v5382 = vld [vmem:[%s3857 + $0x69] sm:$0xff]
        %v5383 = vld [vmem:[%s3857 + $0x79] sm:$0xff]
        %v5384 = vld [vmem:[%s3857 + $0x81] sm:$0xff]
        %v5385 = vld [vmem:[%s3857 + $0x91] sm:$0xff]
        %v5386 = vld [vmem:[%s3857 + $0x99] sm:$0xff]
        %v5387 = vld [vmem:[%s3857 + $0xa9] sm:$0xff]
        %v5388 = vld [vmem:[%s3857 + $0xb1] sm:$0xff]
        %v5389 = vld [vmem:[%s3857 + $0xc1] sm:$0xff]
        %v5390 = vld [vmem:[%s3857 + $0xc9] sm:$0xff]
        %v5391 = vld [vmem:[%s3857 + $0xd9] sm:$0xff]
        %v5392 = vld [vmem:[%s3857 + $0xe1] sm:$0xff]
        %v5393 = vld [vmem:[%s3857 + $0xf1] sm:$0xff]
        %v5394 = vld [vmem:[%s3857 + $0xf9] sm:$0xff]
        %v5395 = vld [vmem:[%s3857 + $0x109] sm:$0xff]
        %v5396 = vld [vmem:[%s3857 + $0x111] sm:$0xff]
        %v5397 = vld [vmem:[%s3857 + $0x121] sm:$0xff]
        %v5398 = vld [vmem:[%s3857 + $0x129] sm:$0xff]
        %v5399 = vld [vmem:[%s3857 + $0x139] sm:$0xff]
        %v5400 = vld [vmem:[%s3857 + $0x141] sm:$0xff]
        %v5401 = vld [vmem:[%s3857 + $0x151] sm:$0xff]
        %v5402 = vld [vmem:[%s3857 + $0x159] sm:$0xff]
        %v5403 = vld [vmem:[%s3857 + $0x169] sm:$0xff]
        %v5404 = vld [vmem:[%s3857 + $0x171] sm:$0xff]
        %s5405 = scalar_lea.vmem %s2, 32
        %v5406 = vld [vmem:[%s5405] sm:$0xff]
        %v5408 = vsel %vm252, %v5373, 0
        %v5411 = vsel %vm252, %v5374, 0
        %v5414 = vsel %vm252, %v5375, 0
        %v5417 = vsel %vm252, %v5376, 0
        %v5420 = vsel %vm252, %v5377, 0
        %v5423 = vsel %vm252, %v5378, 0
        %v5426 = vsel %vm252, %v5379, 0
        %v5429 = vsel %vm252, %v5380, 0
        %v5432 = vsel %vm252, %v5381, 0
        %v5435 = vsel %vm252, %v5382, 0
        %v5438 = vsel %vm252, %v5383, 0
        %v5441 = vsel %vm252, %v5384, 0
        %v5444 = vsel %vm252, %v5385, 0
        %v5447 = vsel %vm252, %v5386, 0
        %v5450 = vsel %vm252, %v5387, 0
        %v5453 = vsel %vm252, %v5388, 0
        %v5456 = vsel %vm252, %v5389, 0
        %v5459 = vsel %vm252, %v5390, 0
        %v5462 = vsel %vm252, %v5391, 0
        %v5465 = vsel %vm252, %v5392, 0
        %v5468 = vsel %vm252, %v5393, 0
        %v5471 = vsel %vm252, %v5394, 0
        %v5474 = vsel %vm252, %v5395, 0
        %v5477 = vsel %vm252, %v5396, 0
        %v5480 = vsel %vm252, %v5397, 0
        %v5483 = vsel %vm252, %v5398, 0
        %v5486 = vsel %vm252, %v5399, 0
        %v5489 = vsel %vm252, %v5400, 0
        %v5492 = vsel %vm252, %v5401, 0
        %v5495 = vsel %vm252, %v5402, 0
        %v5498 = vsel %vm252, %v5403, 0
        %v5501 = vsel %vm252, %v5404, 0
        %5503 = vmatprep.subr.mxu0 0.0
        %5504 = vmatpush1.msra.mxu0 0.0
        %5505 = vmatprep.subr.mxu0 0.0
        %5506 = vmatpush1.msra.mxu0 0.0
        %5507 = vmatprep.subr.mxu0 0.0
        %5508 = vmatpush1.msra.mxu0 0.0
        %5509 = vmatprep.subr.mxu0 0.0
        %5510 = vmatpush1.msra.mxu0 0.0
        %5511 = vmatprep.subr.mxu0 0.0
        %5512 = vmatpush1.msra.mxu0 0.0
        %5513 = vmatprep.subr.mxu0 0.0
        %5514 = vmatpush1.msra.mxu0 0.0
        %5515 = vmatprep.subr.mxu0 0.0
        %5516 = vmatpush1.msra.mxu0 0.0
        %5517 = vmatprep.subr.mxu0 0.0
        %5518 = vmatpush1.msra.mxu0 0.0
        %5519 = vmatprep.subr.mxu0 0.0
        %5520 = vmatpush1.msra.mxu0 0.0
        %5521 = vmatprep.subr.mxu0 0.0
        %5522 = vmatpush1.msra.mxu0 0.0
        %5523 = vmatprep.subr.mxu0 0.0
        %5524 = vmatpush1.msra.mxu0 0.0
        %5525 = vmatprep.subr.mxu0 0.0
        %5526 = vmatpush1.msra.mxu0 0.0
        %5527 = vmatprep.subr.mxu0 0.0
        %5528 = vmatpush1.msra.mxu0 0.0
        %5529 = vmatprep.subr.mxu0 0.0
        %5530 = vmatpush1.msra.mxu0 0.0
        %5531 = vmatprep.subr.mxu0 0.0
        %5532 = vmatpush1.msra.mxu0 0.0
        %5533 = vmatprep.subr.mxu0 0.0
        %5534 = vmatpush1.msra.mxu0 %v5406
        %5535 = vmatprep.subr.mxu0 0.0
        %5536 = vmatpush2.msra.mxu0 0.0
        %5537 = vmatprep.subr.mxu0 0.0
        %5538 = vmatpush2.msra.mxu0 0.0
        %5539 = vmatprep.subr.mxu0 0.0
        %5540 = vmatpush2.msra.mxu0 0.0
        %5541 = vmatprep.subr.mxu0 0.0
        %5542 = vmatpush2.msra.mxu0 0.0
        %5543 = vmatprep.subr.mxu0 0.0
        %5544 = vmatpush2.msra.mxu0 0.0
        %5545 = vmatprep.subr.mxu0 0.0
        %5546 = vmatpush2.msra.mxu0 0.0
        %5547 = vmatprep.subr.mxu0 0.0
        %5548 = vmatpush2.msra.mxu0 0.0
        %5549 = vmatprep.subr.mxu0 0.0
        %5550 = vmatpush2.msra.mxu0 0.0
        %5551 = vmatprep.subr.mxu0 0.0
        %5552 = vmatpush2.msra.mxu0 0.0
        %5553 = vmatprep.subr.mxu0 0.0
        %5554 = vmatpush2.msra.mxu0 0.0
        %5555 = vmatprep.subr.mxu0 0.0
        %5556 = vmatpush2.msra.mxu0 0.0
        %5557 = vmatprep.subr.mxu0 0.0
        %5558 = vmatpush2.msra.mxu0 0.0
        %5559 = vmatprep.subr.mxu0 0.0
        %5560 = vmatpush2.msra.mxu0 0.0
        %5561 = vmatprep.subr.mxu0 0.0
        %5562 = vmatpush2.msra.mxu0 0.0
        %5563 = vmatprep.subr.mxu0 0.0
        %5564 = vmatpush2.msra.mxu0 0.0
        %5565 = vmatprep.subr.mxu0 0.0
        %5566 = vmatpush2.msra.mxu0 0.0
        %5567 = vmatprep.mubr.f32.mxu0 0.0
        %5568 = vmatmul.mubr.f32.gmra.mxu0 %v5408
        %v5569 = vpop.f32.mrf.mxu0
        %v5570 = vadd.f32 0.0, %v5569
        %v5571 = vpop.f32.mrf.mxu0
        %5572 = vmatprep.mubr.f32.mxu0 0.0
        %5573 = vmatmul.mubr.f32.gmra.mxu0 %v5411
        %v5574 = vpop.f32.mrf.mxu0
        %v5575 = vadd.f32 0.0, %v5574
        %v5576 = vpop.f32.mrf.mxu0
        %5577 = vmatprep.mubr.f32.mxu0 0.0
        %5578 = vmatmul.mubr.f32.gmra.mxu0 %v5414
        %v5579 = vpop.f32.mrf.mxu0
        %v5580 = vadd.f32 0.0, %v5579
        %v5581 = vpop.f32.mrf.mxu0
        %5582 = vmatprep.mubr.f32.mxu0 0.0
        %5583 = vmatmul.mubr.f32.gmra.mxu0 %v5417
        %v5584 = vpop.f32.mrf.mxu0
        %v5585 = vadd.f32 0.0, %v5584
        %v5586 = vpop.f32.mrf.mxu0
        %5587 = vmatprep.mubr.f32.mxu0 0.0
        %5588 = vmatmul.mubr.f32.gmra.mxu0 %v5420
        %v5589 = vpop.f32.mrf.mxu0
        %v5590 = vadd.f32 0.0, %v5589
        %v5591 = vpop.f32.mrf.mxu0
        %5592 = vmatprep.mubr.f32.mxu0 0.0
        %5593 = vmatmul.mubr.f32.gmra.mxu0 %v5423
        %v5594 = vpop.f32.mrf.mxu0
        %v5595 = vadd.f32 0.0, %v5594
        %v5596 = vpop.f32.mrf.mxu0
        %5597 = vmatprep.mubr.f32.mxu0 0.0
        %5598 = vmatmul.mubr.f32.gmra.mxu0 %v5426
        %v5599 = vpop.f32.mrf.mxu0
        %v5600 = vadd.f32 0.0, %v5599
        %v5601 = vpop.f32.mrf.mxu0
        %5602 = vmatprep.mubr.f32.mxu0 0.0
        %5603 = vmatmul.mubr.f32.gmra.mxu0 %v5429
        %v5604 = vpop.f32.mrf.mxu0
        %v5605 = vadd.f32 0.0, %v5604
        %v5606 = vpop.f32.mrf.mxu0
        %5607 = vmatprep.mubr.f32.mxu0 0.0
        %5608 = vmatmul.mubr.f32.gmra.mxu0 %v5432
        %v5609 = vpop.f32.mrf.mxu0
        %v5610 = vadd.f32 0.0, %v5609
        %v5611 = vpop.f32.mrf.mxu0
        %5612 = vmatprep.mubr.f32.mxu0 0.0
        %5613 = vmatmul.mubr.f32.gmra.mxu0 %v5435
        %v5614 = vpop.f32.mrf.mxu0
        %v5615 = vadd.f32 0.0, %v5614
        %v5616 = vpop.f32.mrf.mxu0
        %5617 = vmatprep.mubr.f32.mxu0 0.0
        %5618 = vmatmul.mubr.f32.gmra.mxu0 %v5438
        %v5619 = vpop.f32.mrf.mxu0
        %v5620 = vadd.f32 0.0, %v5619
        %v5621 = vpop.f32.mrf.mxu0
        %5622 = vmatprep.mubr.f32.mxu0 0.0
        %5623 = vmatmul.mubr.f32.gmra.mxu0 %v5441
        %v5624 = vpop.f32.mrf.mxu0
        %v5625 = vadd.f32 0.0, %v5624
        %v5626 = vpop.f32.mrf.mxu0
        %5627 = vmatprep.mubr.f32.mxu0 0.0
        %5628 = vmatmul.mubr.f32.gmra.mxu0 %v5444
        %v5629 = vpop.f32.mrf.mxu0
        %v5630 = vadd.f32 0.0, %v5629
        %v5631 = vpop.f32.mrf.mxu0
        %5632 = vmatprep.mubr.f32.mxu0 0.0
        %5633 = vmatmul.mubr.f32.gmra.mxu0 %v5447
        %v5634 = vpop.f32.mrf.mxu0
        %v5635 = vadd.f32 0.0, %v5634
        %v5636 = vpop.f32.mrf.mxu0
        %5637 = vmatprep.mubr.f32.mxu0 0.0
        %5638 = vmatmul.mubr.f32.gmra.mxu0 %v5450
        %v5639 = vpop.f32.mrf.mxu0
        %v5640 = vadd.f32 0.0, %v5639
        %v5641 = vpop.f32.mrf.mxu0
        %5642 = vmatprep.mubr.f32.mxu0 0.0
        %5643 = vmatmul.mubr.f32.gmra.mxu0 %v5453
        %v5644 = vpop.f32.mrf.mxu0
        %v5645 = vadd.f32 0.0, %v5644
        %v5646 = vpop.f32.mrf.mxu0
        %5647 = vmatprep.mubr.f32.mxu0 0.0
        %5648 = vmatmul.mubr.f32.gmra.mxu0 %v5456
        %v5649 = vpop.f32.mrf.mxu0
        %v5650 = vadd.f32 0.0, %v5649
        %v5651 = vpop.f32.mrf.mxu0
        %5652 = vmatprep.mubr.f32.mxu0 0.0
        %5653 = vmatmul.mubr.f32.gmra.mxu0 %v5459
        %v5654 = vpop.f32.mrf.mxu0
        %v5655 = vadd.f32 0.0, %v5654
        %v5656 = vpop.f32.mrf.mxu0
        %5657 = vmatprep.mubr.f32.mxu0 0.0
        %5658 = vmatmul.mubr.f32.gmra.mxu0 %v5462
        %v5659 = vpop.f32.mrf.mxu0
        %v5660 = vadd.f32 0.0, %v5659
        %v5661 = vpop.f32.mrf.mxu0
        %5662 = vmatprep.mubr.f32.mxu0 0.0
        %5663 = vmatmul.mubr.f32.gmra.mxu0 %v5465
        %v5664 = vpop.f32.mrf.mxu0
        %v5665 = vadd.f32 0.0, %v5664
        %v5666 = vpop.f32.mrf.mxu0
        %5667 = vmatprep.mubr.f32.mxu0 0.0
        %5668 = vmatmul.mubr.f32.gmra.mxu0 %v5468
        %v5669 = vpop.f32.mrf.mxu0
        %v5670 = vadd.f32 0.0, %v5669
        %v5671 = vpop.f32.mrf.mxu0
        %5672 = vmatprep.mubr.f32.mxu0 0.0
        %5673 = vmatmul.mubr.f32.gmra.mxu0 %v5471
        %v5674 = vpop.f32.mrf.mxu0
        %v5675 = vadd.f32 0.0, %v5674
        %v5676 = vpop.f32.mrf.mxu0
        %5677 = vmatprep.mubr.f32.mxu0 0.0
        %5678 = vmatmul.mubr.f32.gmra.mxu0 %v5474
        %v5679 = vpop.f32.mrf.mxu0
        %v5680 = vadd.f32 0.0, %v5679
        %v5681 = vpop.f32.mrf.mxu0
        %5682 = vmatprep.mubr.f32.mxu0 0.0
        %5683 = vmatmul.mubr.f32.gmra.mxu0 %v5477
        %v5684 = vpop.f32.mrf.mxu0
        %v5685 = vadd.f32 0.0, %v5684
        %v5686 = vpop.f32.mrf.mxu0
        %5687 = vmatprep.mubr.f32.mxu0 0.0
        %5688 = vmatmul.mubr.f32.gmra.mxu0 %v5480
        %v5689 = vpop.f32.mrf.mxu0
        %v5690 = vadd.f32 0.0, %v5689
        %v5691 = vpop.f32.mrf.mxu0
        %5692 = vmatprep.mubr.f32.mxu0 0.0
        %5693 = vmatmul.mubr.f32.gmra.mxu0 %v5483
        %v5694 = vpop.f32.mrf.mxu0
        %v5695 = vadd.f32 0.0, %v5694
        %v5696 = vpop.f32.mrf.mxu0
        %5697 = vmatprep.mubr.f32.mxu0 0.0
        %5698 = vmatmul.mubr.f32.gmra.mxu0 %v5486
        %v5699 = vpop.f32.mrf.mxu0
        %v5700 = vadd.f32 0.0, %v5699
        %v5701 = vpop.f32.mrf.mxu0
        %5702 = vmatprep.mubr.f32.mxu0 0.0
        %5703 = vmatmul.mubr.f32.gmra.mxu0 %v5489
        %v5704 = vpop.f32.mrf.mxu0
        %v5705 = vadd.f32 0.0, %v5704
        %v5706 = vpop.f32.mrf.mxu0
        %5707 = vmatprep.mubr.f32.mxu0 0.0
        %5708 = vmatmul.mubr.f32.gmra.mxu0 %v5492
        %v5709 = vpop.f32.mrf.mxu0
        %v5710 = vadd.f32 0.0, %v5709
        %v5711 = vpop.f32.mrf.mxu0
        %5712 = vmatprep.mubr.f32.mxu0 0.0
        %5713 = vmatmul.mubr.f32.gmra.mxu0 %v5495
        %v5714 = vpop.f32.mrf.mxu0
        %v5715 = vadd.f32 0.0, %v5714
        %v5716 = vpop.f32.mrf.mxu0
        %5717 = vmatprep.mubr.f32.mxu0 0.0
        %5718 = vmatmul.mubr.f32.gmra.mxu0 %v5498
        %v5719 = vpop.f32.mrf.mxu0
        %v5720 = vadd.f32 0.0, %v5719
        %v5721 = vpop.f32.mrf.mxu0
        %5722 = vmatprep.mubr.f32.mxu0 0.0
        %5723 = vmatmul.mubr.f32.gmra.mxu0 %v5501
        %v5724 = vpop.f32.mrf.mxu0
        %v5725 = vadd.f32 0.0, %v5724
        %v5726 = vpop.f32.mrf.mxu0
        %5727 = vdwg.mxu0
        %v5728 = vadd.f32 %v5341, %v5570
        %v5729 = vadd.f32 %v5342, %v5575
        %v5730 = vadd.f32 %v5343, %v5580
        %v5731 = vadd.f32 %v5344, %v5585
        %v5732 = vadd.f32 %v5345, %v5590
        %v5733 = vadd.f32 %v5346, %v5595
        %v5734 = vadd.f32 %v5347, %v5600
        %v5735 = vadd.f32 %v5348, %v5605
        %v5736 = vadd.f32 %v5349, %v5610
        %v5737 = vadd.f32 %v5350, %v5615
        %v5738 = vadd.f32 %v5351, %v5620
        %v5739 = vadd.f32 %v5352, %v5625
        %v5740 = vadd.f32 %v5353, %v5630
        %v5741 = vadd.f32 %v5354, %v5635
        %v5742 = vadd.f32 %v5355, %v5640
        %v5743 = vadd.f32 %v5356, %v5645
        %v5744 = vadd.f32 %v5357, %v5650
        %v5745 = vadd.f32 %v5358, %v5655
        %v5746 = vadd.f32 %v5359, %v5660
        %v5747 = vadd.f32 %v5360, %v5665
        %v5748 = vadd.f32 %v5361, %v5670
        %v5749 = vadd.f32 %v5362, %v5675
        %v5750 = vadd.f32 %v5363, %v5680
        %v5751 = vadd.f32 %v5364, %v5685
        %v5752 = vadd.f32 %v5365, %v5690
        %v5753 = vadd.f32 %v5366, %v5695
        %v5754 = vadd.f32 %v5367, %v5700
        %v5755 = vadd.f32 %v5368, %v5705
        %v5756 = vadd.f32 %v5369, %v5710
        %v5757 = vadd.f32 %v5370, %v5715
        %v5758 = vadd.f32 %v5371, %v5720
        %v5759 = vadd.f32 %v5372, %v5725
        %v5760 = vld [vmem:[%s3857 + $0x2] sm:$0xff]
        %v5761 = vld [vmem:[%s3857 + $0xa] sm:$0xff]
        %v5762 = vld [vmem:[%s3857 + $0x1a] sm:$0xff]
        %v5763 = vld [vmem:[%s3857 + $0x22] sm:$0xff]
        %v5764 = vld [vmem:[%s3857 + $0x32] sm:$0xff]
        %v5765 = vld [vmem:[%s3857 + $0x3a] sm:$0xff]
        %v5766 = vld [vmem:[%s3857 + $0x4a] sm:$0xff]
        %v5767 = vld [vmem:[%s3857 + $0x52] sm:$0xff]
        %v5768 = vld [vmem:[%s3857 + $0x62] sm:$0xff]
        %v5769 = vld [vmem:[%s3857 + $0x6a] sm:$0xff]
        %v5770 = vld [vmem:[%s3857 + $0x7a] sm:$0xff]
        %v5771 = vld [vmem:[%s3857 + $0x82] sm:$0xff]
        %v5772 = vld [vmem:[%s3857 + $0x92] sm:$0xff]
        %v5773 = vld [vmem:[%s3857 + $0x9a] sm:$0xff]
        %v5774 = vld [vmem:[%s3857 + $0xaa] sm:$0xff]
        %v5775 = vld [vmem:[%s3857 + $0xb2] sm:$0xff]
        %v5776 = vld [vmem:[%s3857 + $0xc2] sm:$0xff]
        %v5777 = vld [vmem:[%s3857 + $0xca] sm:$0xff]
        %v5778 = vld [vmem:[%s3857 + $0xda] sm:$0xff]
        %v5779 = vld [vmem:[%s3857 + $0xe2] sm:$0xff]
        %v5780 = vld [vmem:[%s3857 + $0xf2] sm:$0xff]
        %v5781 = vld [vmem:[%s3857 + $0xfa] sm:$0xff]
        %v5782 = vld [vmem:[%s3857 + $0x10a] sm:$0xff]
        %v5783 = vld [vmem:[%s3857 + $0x112] sm:$0xff]
        %v5784 = vld [vmem:[%s3857 + $0x122] sm:$0xff]
        %v5785 = vld [vmem:[%s3857 + $0x12a] sm:$0xff]
        %v5786 = vld [vmem:[%s3857 + $0x13a] sm:$0xff]
        %v5787 = vld [vmem:[%s3857 + $0x142] sm:$0xff]
        %v5788 = vld [vmem:[%s3857 + $0x152] sm:$0xff]
        %v5789 = vld [vmem:[%s3857 + $0x15a] sm:$0xff]
        %v5790 = vld [vmem:[%s3857 + $0x16a] sm:$0xff]
        %v5791 = vld [vmem:[%s3857 + $0x172] sm:$0xff]
        %s5792 = scalar_lea.vmem %s2, 40
        %v5793 = vld [vmem:[%s5792] sm:$0xff]
        %v5795 = vsel %vm252, %v5760, 0
        %v5798 = vsel %vm252, %v5761, 0
        %v5801 = vsel %vm252, %v5762, 0
        %v5804 = vsel %vm252, %v5763, 0
        %v5807 = vsel %vm252, %v5764, 0
        %v5810 = vsel %vm252, %v5765, 0
        %v5813 = vsel %vm252, %v5766, 0
        %v5816 = vsel %vm252, %v5767, 0
        %v5819 = vsel %vm252, %v5768, 0
        %v5822 = vsel %vm252, %v5769, 0
        %v5825 = vsel %vm252, %v5770, 0
        %v5828 = vsel %vm252, %v5771, 0
        %v5831 = vsel %vm252, %v5772, 0
        %v5834 = vsel %vm252, %v5773, 0
        %v5837 = vsel %vm252, %v5774, 0
        %v5840 = vsel %vm252, %v5775, 0
        %v5843 = vsel %vm252, %v5776, 0
        %v5846 = vsel %vm252, %v5777, 0
        %v5849 = vsel %vm252, %v5778, 0
        %v5852 = vsel %vm252, %v5779, 0
        %v5855 = vsel %vm252, %v5780, 0
        %v5858 = vsel %vm252, %v5781, 0
        %v5861 = vsel %vm252, %v5782, 0
        %v5864 = vsel %vm252, %v5783, 0
        %v5867 = vsel %vm252, %v5784, 0
        %v5870 = vsel %vm252, %v5785, 0
        %v5873 = vsel %vm252, %v5786, 0
        %v5876 = vsel %vm252, %v5787, 0
        %v5879 = vsel %vm252, %v5788, 0
        %v5882 = vsel %vm252, %v5789, 0
        %v5885 = vsel %vm252, %v5790, 0
        %v5888 = vsel %vm252, %v5791, 0
        %5890 = vmatprep.subr.mxu0 0.0
        %5891 = vmatpush1.msra.mxu0 0.0
        %5892 = vmatprep.subr.mxu0 0.0
        %5893 = vmatpush1.msra.mxu0 0.0
        %5894 = vmatprep.subr.mxu0 0.0
        %5895 = vmatpush1.msra.mxu0 0.0
        %5896 = vmatprep.subr.mxu0 0.0
        %5897 = vmatpush1.msra.mxu0 0.0
        %5898 = vmatprep.subr.mxu0 0.0
        %5899 = vmatpush1.msra.mxu0 0.0
        %5900 = vmatprep.subr.mxu0 0.0
        %5901 = vmatpush1.msra.mxu0 0.0
        %5902 = vmatprep.subr.mxu0 0.0
        %5903 = vmatpush1.msra.mxu0 0.0
        %5904 = vmatprep.subr.mxu0 0.0
        %5905 = vmatpush1.msra.mxu0 0.0
        %5906 = vmatprep.subr.mxu0 0.0
        %5907 = vmatpush1.msra.mxu0 0.0
        %5908 = vmatprep.subr.mxu0 0.0
        %5909 = vmatpush1.msra.mxu0 0.0
        %5910 = vmatprep.subr.mxu0 0.0
        %5911 = vmatpush1.msra.mxu0 0.0
        %5912 = vmatprep.subr.mxu0 0.0
        %5913 = vmatpush1.msra.mxu0 0.0
        %5914 = vmatprep.subr.mxu0 0.0
        %5915 = vmatpush1.msra.mxu0 0.0
        %5916 = vmatprep.subr.mxu0 0.0
        %5917 = vmatpush1.msra.mxu0 0.0
        %5918 = vmatprep.subr.mxu0 0.0
        %5919 = vmatpush1.msra.mxu0 0.0
        %5920 = vmatprep.subr.mxu0 0.0
        %5921 = vmatpush1.msra.mxu0 %v5793
        %5922 = vmatprep.subr.mxu0 0.0
        %5923 = vmatpush2.msra.mxu0 0.0
        %5924 = vmatprep.subr.mxu0 0.0
        %5925 = vmatpush2.msra.mxu0 0.0
        %5926 = vmatprep.subr.mxu0 0.0
        %5927 = vmatpush2.msra.mxu0 0.0
        %5928 = vmatprep.subr.mxu0 0.0
        %5929 = vmatpush2.msra.mxu0 0.0
        %5930 = vmatprep.subr.mxu0 0.0
        %5931 = vmatpush2.msra.mxu0 0.0
        %5932 = vmatprep.subr.mxu0 0.0
        %5933 = vmatpush2.msra.mxu0 0.0
        %5934 = vmatprep.subr.mxu0 0.0
        %5935 = vmatpush2.msra.mxu0 0.0
        %5936 = vmatprep.subr.mxu0 0.0
        %5937 = vmatpush2.msra.mxu0 0.0
        %5938 = vmatprep.subr.mxu0 0.0
        %5939 = vmatpush2.msra.mxu0 0.0
        %5940 = vmatprep.subr.mxu0 0.0
        %5941 = vmatpush2.msra.mxu0 0.0
        %5942 = vmatprep.subr.mxu0 0.0
        %5943 = vmatpush2.msra.mxu0 0.0
        %5944 = vmatprep.subr.mxu0 0.0
        %5945 = vmatpush2.msra.mxu0 0.0
        %5946 = vmatprep.subr.mxu0 0.0
        %5947 = vmatpush2.msra.mxu0 0.0
        %5948 = vmatprep.subr.mxu0 0.0
        %5949 = vmatpush2.msra.mxu0 0.0
        %5950 = vmatprep.subr.mxu0 0.0
        %5951 = vmatpush2.msra.mxu0 0.0
        %5952 = vmatprep.subr.mxu0 0.0
        %5953 = vmatpush2.msra.mxu0 0.0
        %5954 = vmatprep.mubr.f32.mxu0 0.0
        %5955 = vmatmul.mubr.f32.gmra.mxu0 %v5795
        %v5956 = vpop.f32.mrf.mxu0
        %v5957 = vadd.f32 0.0, %v5956
        %v5958 = vpop.f32.mrf.mxu0
        %5959 = vmatprep.mubr.f32.mxu0 0.0
        %5960 = vmatmul.mubr.f32.gmra.mxu0 %v5798
        %v5961 = vpop.f32.mrf.mxu0
        %v5962 = vadd.f32 0.0, %v5961
        %v5963 = vpop.f32.mrf.mxu0
        %5964 = vmatprep.mubr.f32.mxu0 0.0
        %5965 = vmatmul.mubr.f32.gmra.mxu0 %v5801
        %v5966 = vpop.f32.mrf.mxu0
        %v5967 = vadd.f32 0.0, %v5966
        %v5968 = vpop.f32.mrf.mxu0
        %5969 = vmatprep.mubr.f32.mxu0 0.0
        %5970 = vmatmul.mubr.f32.gmra.mxu0 %v5804
        %v5971 = vpop.f32.mrf.mxu0
        %v5972 = vadd.f32 0.0, %v5971
        %v5973 = vpop.f32.mrf.mxu0
        %5974 = vmatprep.mubr.f32.mxu0 0.0
        %5975 = vmatmul.mubr.f32.gmra.mxu0 %v5807
        %v5976 = vpop.f32.mrf.mxu0
        %v5977 = vadd.f32 0.0, %v5976
        %v5978 = vpop.f32.mrf.mxu0
        %5979 = vmatprep.mubr.f32.mxu0 0.0
        %5980 = vmatmul.mubr.f32.gmra.mxu0 %v5810
        %v5981 = vpop.f32.mrf.mxu0
        %v5982 = vadd.f32 0.0, %v5981
        %v5983 = vpop.f32.mrf.mxu0
        %5984 = vmatprep.mubr.f32.mxu0 0.0
        %5985 = vmatmul.mubr.f32.gmra.mxu0 %v5813
        %v5986 = vpop.f32.mrf.mxu0
        %v5987 = vadd.f32 0.0, %v5986
        %v5988 = vpop.f32.mrf.mxu0
        %5989 = vmatprep.mubr.f32.mxu0 0.0
        %5990 = vmatmul.mubr.f32.gmra.mxu0 %v5816
        %v5991 = vpop.f32.mrf.mxu0
        %v5992 = vadd.f32 0.0, %v5991
        %v5993 = vpop.f32.mrf.mxu0
        %5994 = vmatprep.mubr.f32.mxu0 0.0
        %5995 = vmatmul.mubr.f32.gmra.mxu0 %v5819
        %v5996 = vpop.f32.mrf.mxu0
        %v5997 = vadd.f32 0.0, %v5996
        %v5998 = vpop.f32.mrf.mxu0
        %5999 = vmatprep.mubr.f32.mxu0 0.0
        %6000 = vmatmul.mubr.f32.gmra.mxu0 %v5822
        %v6001 = vpop.f32.mrf.mxu0
        %v6002 = vadd.f32 0.0, %v6001
        %v6003 = vpop.f32.mrf.mxu0
        %6004 = vmatprep.mubr.f32.mxu0 0.0
        %6005 = vmatmul.mubr.f32.gmra.mxu0 %v5825
        %v6006 = vpop.f32.mrf.mxu0
        %v6007 = vadd.f32 0.0, %v6006
        %v6008 = vpop.f32.mrf.mxu0
        %6009 = vmatprep.mubr.f32.mxu0 0.0
        %6010 = vmatmul.mubr.f32.gmra.mxu0 %v5828
        %v6011 = vpop.f32.mrf.mxu0
        %v6012 = vadd.f32 0.0, %v6011
        %v6013 = vpop.f32.mrf.mxu0
        %6014 = vmatprep.mubr.f32.mxu0 0.0
        %6015 = vmatmul.mubr.f32.gmra.mxu0 %v5831
        %v6016 = vpop.f32.mrf.mxu0
        %v6017 = vadd.f32 0.0, %v6016
        %v6018 = vpop.f32.mrf.mxu0
        %6019 = vmatprep.mubr.f32.mxu0 0.0
        %6020 = vmatmul.mubr.f32.gmra.mxu0 %v5834
        %v6021 = vpop.f32.mrf.mxu0
        %v6022 = vadd.f32 0.0, %v6021
        %v6023 = vpop.f32.mrf.mxu0
        %6024 = vmatprep.mubr.f32.mxu0 0.0
        %6025 = vmatmul.mubr.f32.gmra.mxu0 %v5837
        %v6026 = vpop.f32.mrf.mxu0
        %v6027 = vadd.f32 0.0, %v6026
        %v6028 = vpop.f32.mrf.mxu0
        %6029 = vmatprep.mubr.f32.mxu0 0.0
        %6030 = vmatmul.mubr.f32.gmra.mxu0 %v5840
        %v6031 = vpop.f32.mrf.mxu0
        %v6032 = vadd.f32 0.0, %v6031
        %v6033 = vpop.f32.mrf.mxu0
        %6034 = vmatprep.mubr.f32.mxu0 0.0
        %6035 = vmatmul.mubr.f32.gmra.mxu0 %v5843
        %v6036 = vpop.f32.mrf.mxu0
        %v6037 = vadd.f32 0.0, %v6036
        %v6038 = vpop.f32.mrf.mxu0
        %6039 = vmatprep.mubr.f32.mxu0 0.0
        %6040 = vmatmul.mubr.f32.gmra.mxu0 %v5846
        %v6041 = vpop.f32.mrf.mxu0
        %v6042 = vadd.f32 0.0, %v6041
        %v6043 = vpop.f32.mrf.mxu0
        %6044 = vmatprep.mubr.f32.mxu0 0.0
        %6045 = vmatmul.mubr.f32.gmra.mxu0 %v5849
        %v6046 = vpop.f32.mrf.mxu0
        %v6047 = vadd.f32 0.0, %v6046
        %v6048 = vpop.f32.mrf.mxu0
        %6049 = vmatprep.mubr.f32.mxu0 0.0
        %6050 = vmatmul.mubr.f32.gmra.mxu0 %v5852
        %v6051 = vpop.f32.mrf.mxu0
        %v6052 = vadd.f32 0.0, %v6051
        %v6053 = vpop.f32.mrf.mxu0
        %6054 = vmatprep.mubr.f32.mxu0 0.0
        %6055 = vmatmul.mubr.f32.gmra.mxu0 %v5855
        %v6056 = vpop.f32.mrf.mxu0
        %v6057 = vadd.f32 0.0, %v6056
        %v6058 = vpop.f32.mrf.mxu0
        %6059 = vmatprep.mubr.f32.mxu0 0.0
        %6060 = vmatmul.mubr.f32.gmra.mxu0 %v5858
        %v6061 = vpop.f32.mrf.mxu0
        %v6062 = vadd.f32 0.0, %v6061
        %v6063 = vpop.f32.mrf.mxu0
        %6064 = vmatprep.mubr.f32.mxu0 0.0
        %6065 = vmatmul.mubr.f32.gmra.mxu0 %v5861
        %v6066 = vpop.f32.mrf.mxu0
        %v6067 = vadd.f32 0.0, %v6066
        %v6068 = vpop.f32.mrf.mxu0
        %6069 = vmatprep.mubr.f32.mxu0 0.0
        %6070 = vmatmul.mubr.f32.gmra.mxu0 %v5864
        %v6071 = vpop.f32.mrf.mxu0
        %v6072 = vadd.f32 0.0, %v6071
        %v6073 = vpop.f32.mrf.mxu0
        %6074 = vmatprep.mubr.f32.mxu0 0.0
        %6075 = vmatmul.mubr.f32.gmra.mxu0 %v5867
        %v6076 = vpop.f32.mrf.mxu0
        %v6077 = vadd.f32 0.0, %v6076
        %v6078 = vpop.f32.mrf.mxu0
        %6079 = vmatprep.mubr.f32.mxu0 0.0
        %6080 = vmatmul.mubr.f32.gmra.mxu0 %v5870
        %v6081 = vpop.f32.mrf.mxu0
        %v6082 = vadd.f32 0.0, %v6081
        %v6083 = vpop.f32.mrf.mxu0
        %6084 = vmatprep.mubr.f32.mxu0 0.0
        %6085 = vmatmul.mubr.f32.gmra.mxu0 %v5873
        %v6086 = vpop.f32.mrf.mxu0
        %v6087 = vadd.f32 0.0, %v6086
        %v6088 = vpop.f32.mrf.mxu0
        %6089 = vmatprep.mubr.f32.mxu0 0.0
        %6090 = vmatmul.mubr.f32.gmra.mxu0 %v5876
        %v6091 = vpop.f32.mrf.mxu0
        %v6092 = vadd.f32 0.0, %v6091
        %v6093 = vpop.f32.mrf.mxu0
        %6094 = vmatprep.mubr.f32.mxu0 0.0
        %6095 = vmatmul.mubr.f32.gmra.mxu0 %v5879
        %v6096 = vpop.f32.mrf.mxu0
        %v6097 = vadd.f32 0.0, %v6096
        %v6098 = vpop.f32.mrf.mxu0
        %6099 = vmatprep.mubr.f32.mxu0 0.0
        %6100 = vmatmul.mubr.f32.gmra.mxu0 %v5882
        %v6101 = vpop.f32.mrf.mxu0
        %v6102 = vadd.f32 0.0, %v6101
        %v6103 = vpop.f32.mrf.mxu0
        %6104 = vmatprep.mubr.f32.mxu0 0.0
        %6105 = vmatmul.mubr.f32.gmra.mxu0 %v5885
        %v6106 = vpop.f32.mrf.mxu0
        %v6107 = vadd.f32 0.0, %v6106
        %v6108 = vpop.f32.mrf.mxu0
        %6109 = vmatprep.mubr.f32.mxu0 0.0
        %6110 = vmatmul.mubr.f32.gmra.mxu0 %v5888
        %v6111 = vpop.f32.mrf.mxu0
        %v6112 = vadd.f32 0.0, %v6111
        %v6113 = vpop.f32.mrf.mxu0
        %6114 = vdwg.mxu0
        %v6115 = vadd.f32 %v5728, %v5957
        %v6116 = vadd.f32 %v5729, %v5962
        %v6117 = vadd.f32 %v5730, %v5967
        %v6118 = vadd.f32 %v5731, %v5972
        %v6119 = vadd.f32 %v5732, %v5977
        %v6120 = vadd.f32 %v5733, %v5982
        %v6121 = vadd.f32 %v5734, %v5987
        %v6122 = vadd.f32 %v5735, %v5992
        %v6123 = vadd.f32 %v5736, %v5997
        %v6124 = vadd.f32 %v5737, %v6002
        %v6125 = vadd.f32 %v5738, %v6007
        %v6126 = vadd.f32 %v5739, %v6012
        %v6127 = vadd.f32 %v5740, %v6017
        %v6128 = vadd.f32 %v5741, %v6022
        %v6129 = vadd.f32 %v5742, %v6027
        %v6130 = vadd.f32 %v5743, %v6032
        %v6131 = vadd.f32 %v5744, %v6037
        %v6132 = vadd.f32 %v5745, %v6042
        %v6133 = vadd.f32 %v5746, %v6047
        %v6134 = vadd.f32 %v5747, %v6052
        %v6135 = vadd.f32 %v5748, %v6057
        %v6136 = vadd.f32 %v5749, %v6062
        %v6137 = vadd.f32 %v5750, %v6067
        %v6138 = vadd.f32 %v5751, %v6072
        %v6139 = vadd.f32 %v5752, %v6077
        %v6140 = vadd.f32 %v5753, %v6082
        %v6141 = vadd.f32 %v5754, %v6087
        %v6142 = vadd.f32 %v5755, %v6092
        %v6143 = vadd.f32 %v5756, %v6097
        %v6144 = vadd.f32 %v5757, %v6102
        %v6145 = vadd.f32 %v5758, %v6107
        %v6146 = vadd.f32 %v5759, %v6112
        %s6147 = scalar_lea.vmem [#allocation3], 48
        %v6148 = vld [vmem:[%s6147] sm:$0xff]
        %v6149 = vld [vmem:[%s6147 + $0x8] sm:$0xff]
        %v6150 = vld [vmem:[%s6147 + $0x18] sm:$0xff]
        %v6151 = vld [vmem:[%s6147 + $0x20] sm:$0xff]
        %v6152 = vld [vmem:[%s6147 + $0x30] sm:$0xff]
        %v6153 = vld [vmem:[%s6147 + $0x38] sm:$0xff]
        %v6154 = vld [vmem:[%s6147 + $0x48] sm:$0xff]
        %v6155 = vld [vmem:[%s6147 + $0x50] sm:$0xff]
        %v6156 = vld [vmem:[%s6147 + $0x60] sm:$0xff]
        %v6157 = vld [vmem:[%s6147 + $0x68] sm:$0xff]
        %v6158 = vld [vmem:[%s6147 + $0x78] sm:$0xff]
        %v6159 = vld [vmem:[%s6147 + $0x80] sm:$0xff]
        %v6160 = vld [vmem:[%s6147 + $0x90] sm:$0xff]
        %v6161 = vld [vmem:[%s6147 + $0x98] sm:$0xff]
        %v6162 = vld [vmem:[%s6147 + $0xa8] sm:$0xff]
        %v6163 = vld [vmem:[%s6147 + $0xb0] sm:$0xff]
        %v6164 = vld [vmem:[%s6147 + $0xc0] sm:$0xff]
        %v6165 = vld [vmem:[%s6147 + $0xc8] sm:$0xff]
        %v6166 = vld [vmem:[%s6147 + $0xd8] sm:$0xff]
        %v6167 = vld [vmem:[%s6147 + $0xe0] sm:$0xff]
        %v6168 = vld [vmem:[%s6147 + $0xf0] sm:$0xff]
        %v6169 = vld [vmem:[%s6147 + $0xf8] sm:$0xff]
        %v6170 = vld [vmem:[%s6147 + $0x108] sm:$0xff]
        %v6171 = vld [vmem:[%s6147 + $0x110] sm:$0xff]
        %v6172 = vld [vmem:[%s6147 + $0x120] sm:$0xff]
        %v6173 = vld [vmem:[%s6147 + $0x128] sm:$0xff]
        %v6174 = vld [vmem:[%s6147 + $0x138] sm:$0xff]
        %v6175 = vld [vmem:[%s6147 + $0x140] sm:$0xff]
        %v6176 = vld [vmem:[%s6147 + $0x150] sm:$0xff]
        %v6177 = vld [vmem:[%s6147 + $0x158] sm:$0xff]
        %v6178 = vld [vmem:[%s6147 + $0x168] sm:$0xff]
        %v6179 = vld [vmem:[%s6147 + $0x170] sm:$0xff]
        %s6180 = scalar_lea.vmem %s2, 48
        %v6181 = vld [vmem:[%s6180] sm:$0xff]
        %v6183 = vsel %vm252, %v6148, 0
        %v6186 = vsel %vm252, %v6149, 0
        %v6189 = vsel %vm252, %v6150, 0
        %v6192 = vsel %vm252, %v6151, 0
        %v6195 = vsel %vm252, %v6152, 0
        %v6198 = vsel %vm252, %v6153, 0
        %v6201 = vsel %vm252, %v6154, 0
        %v6204 = vsel %vm252, %v6155, 0
        %v6207 = vsel %vm252, %v6156, 0
        %v6210 = vsel %vm252, %v6157, 0
        %v6213 = vsel %vm252, %v6158, 0
        %v6216 = vsel %vm252, %v6159, 0
        %v6219 = vsel %vm252, %v6160, 0
        %v6222 = vsel %vm252, %v6161, 0
        %v6225 = vsel %vm252, %v6162, 0
        %v6228 = vsel %vm252, %v6163, 0
        %v6231 = vsel %vm252, %v6164, 0
        %v6234 = vsel %vm252, %v6165, 0
        %v6237 = vsel %vm252, %v6166, 0
        %v6240 = vsel %vm252, %v6167, 0
        %v6243 = vsel %vm252, %v6168, 0
        %v6246 = vsel %vm252, %v6169, 0
        %v6249 = vsel %vm252, %v6170, 0
        %v6252 = vsel %vm252, %v6171, 0
        %v6255 = vsel %vm252, %v6172, 0
        %v6258 = vsel %vm252, %v6173, 0
        %v6261 = vsel %vm252, %v6174, 0
        %v6264 = vsel %vm252, %v6175, 0
        %v6267 = vsel %vm252, %v6176, 0
        %v6270 = vsel %vm252, %v6177, 0
        %v6273 = vsel %vm252, %v6178, 0
        %v6276 = vsel %vm252, %v6179, 0
        %6278 = vmatprep.subr.mxu0 0.0
        %6279 = vmatpush1.msra.mxu0 0.0
        %6280 = vmatprep.subr.mxu0 0.0
        %6281 = vmatpush1.msra.mxu0 0.0
        %6282 = vmatprep.subr.mxu0 0.0
        %6283 = vmatpush1.msra.mxu0 0.0
        %6284 = vmatprep.subr.mxu0 0.0
        %6285 = vmatpush1.msra.mxu0 0.0
        %6286 = vmatprep.subr.mxu0 0.0
        %6287 = vmatpush1.msra.mxu0 0.0
        %6288 = vmatprep.subr.mxu0 0.0
        %6289 = vmatpush1.msra.mxu0 0.0
        %6290 = vmatprep.subr.mxu0 0.0
        %6291 = vmatpush1.msra.mxu0 0.0
        %6292 = vmatprep.subr.mxu0 0.0
        %6293 = vmatpush1.msra.mxu0 0.0
        %6294 = vmatprep.subr.mxu0 0.0
        %6295 = vmatpush1.msra.mxu0 0.0
        %6296 = vmatprep.subr.mxu0 0.0
        %6297 = vmatpush1.msra.mxu0 0.0
        %6298 = vmatprep.subr.mxu0 0.0
        %6299 = vmatpush1.msra.mxu0 0.0
        %6300 = vmatprep.subr.mxu0 0.0
        %6301 = vmatpush1.msra.mxu0 0.0
        %6302 = vmatprep.subr.mxu0 0.0
        %6303 = vmatpush1.msra.mxu0 0.0
        %6304 = vmatprep.subr.mxu0 0.0
        %6305 = vmatpush1.msra.mxu0 0.0
        %6306 = vmatprep.subr.mxu0 0.0
        %6307 = vmatpush1.msra.mxu0 0.0
        %6308 = vmatprep.subr.mxu0 0.0
        %6309 = vmatpush1.msra.mxu0 %v6181
        %6310 = vmatprep.subr.mxu0 0.0
        %6311 = vmatpush2.msra.mxu0 0.0
        %6312 = vmatprep.subr.mxu0 0.0
        %6313 = vmatpush2.msra.mxu0 0.0
        %6314 = vmatprep.subr.mxu0 0.0
        %6315 = vmatpush2.msra.mxu0 0.0
        %6316 = vmatprep.subr.mxu0 0.0
        %6317 = vmatpush2.msra.mxu0 0.0
        %6318 = vmatprep.subr.mxu0 0.0
        %6319 = vmatpush2.msra.mxu0 0.0
        %6320 = vmatprep.subr.mxu0 0.0
        %6321 = vmatpush2.msra.mxu0 0.0
        %6322 = vmatprep.subr.mxu0 0.0
        %6323 = vmatpush2.msra.mxu0 0.0
        %6324 = vmatprep.subr.mxu0 0.0
        %6325 = vmatpush2.msra.mxu0 0.0
        %6326 = vmatprep.subr.mxu0 0.0
        %6327 = vmatpush2.msra.mxu0 0.0
        %6328 = vmatprep.subr.mxu0 0.0
        %6329 = vmatpush2.msra.mxu0 0.0
        %6330 = vmatprep.subr.mxu0 0.0
        %6331 = vmatpush2.msra.mxu0 0.0
        %6332 = vmatprep.subr.mxu0 0.0
        %6333 = vmatpush2.msra.mxu0 0.0
        %6334 = vmatprep.subr.mxu0 0.0
        %6335 = vmatpush2.msra.mxu0 0.0
        %6336 = vmatprep.subr.mxu0 0.0
        %6337 = vmatpush2.msra.mxu0 0.0
        %6338 = vmatprep.subr.mxu0 0.0
        %6339 = vmatpush2.msra.mxu0 0.0
        %6340 = vmatprep.subr.mxu0 0.0
        %6341 = vmatpush2.msra.mxu0 0.0
        %6342 = vmatprep.mubr.f32.mxu0 0.0
        %6343 = vmatmul.mubr.f32.gmra.mxu0 %v6183
        %v6344 = vpop.f32.mrf.mxu0
        %v6345 = vadd.f32 0.0, %v6344
        %v6346 = vpop.f32.mrf.mxu0
        %6347 = vmatprep.mubr.f32.mxu0 0.0
        %6348 = vmatmul.mubr.f32.gmra.mxu0 %v6186
        %v6349 = vpop.f32.mrf.mxu0
        %v6350 = vadd.f32 0.0, %v6349
        %v6351 = vpop.f32.mrf.mxu0
        %6352 = vmatprep.mubr.f32.mxu0 0.0
        %6353 = vmatmul.mubr.f32.gmra.mxu0 %v6189
        %v6354 = vpop.f32.mrf.mxu0
        %v6355 = vadd.f32 0.0, %v6354
        %v6356 = vpop.f32.mrf.mxu0
        %6357 = vmatprep.mubr.f32.mxu0 0.0
        %6358 = vmatmul.mubr.f32.gmra.mxu0 %v6192
        %v6359 = vpop.f32.mrf.mxu0
        %v6360 = vadd.f32 0.0, %v6359
        %v6361 = vpop.f32.mrf.mxu0
        %6362 = vmatprep.mubr.f32.mxu0 0.0
        %6363 = vmatmul.mubr.f32.gmra.mxu0 %v6195
        %v6364 = vpop.f32.mrf.mxu0
        %v6365 = vadd.f32 0.0, %v6364
        %v6366 = vpop.f32.mrf.mxu0
        %6367 = vmatprep.mubr.f32.mxu0 0.0
        %6368 = vmatmul.mubr.f32.gmra.mxu0 %v6198
        %v6369 = vpop.f32.mrf.mxu0
        %v6370 = vadd.f32 0.0, %v6369
        %v6371 = vpop.f32.mrf.mxu0
        %6372 = vmatprep.mubr.f32.mxu0 0.0
        %6373 = vmatmul.mubr.f32.gmra.mxu0 %v6201
        %v6374 = vpop.f32.mrf.mxu0
        %v6375 = vadd.f32 0.0, %v6374
        %v6376 = vpop.f32.mrf.mxu0
        %6377 = vmatprep.mubr.f32.mxu0 0.0
        %6378 = vmatmul.mubr.f32.gmra.mxu0 %v6204
        %v6379 = vpop.f32.mrf.mxu0
        %v6380 = vadd.f32 0.0, %v6379
        %v6381 = vpop.f32.mrf.mxu0
        %6382 = vmatprep.mubr.f32.mxu0 0.0
        %6383 = vmatmul.mubr.f32.gmra.mxu0 %v6207
        %v6384 = vpop.f32.mrf.mxu0
        %v6385 = vadd.f32 0.0, %v6384
        %v6386 = vpop.f32.mrf.mxu0
        %6387 = vmatprep.mubr.f32.mxu0 0.0
        %6388 = vmatmul.mubr.f32.gmra.mxu0 %v6210
        %v6389 = vpop.f32.mrf.mxu0
        %v6390 = vadd.f32 0.0, %v6389
        %v6391 = vpop.f32.mrf.mxu0
        %6392 = vmatprep.mubr.f32.mxu0 0.0
        %6393 = vmatmul.mubr.f32.gmra.mxu0 %v6213
        %v6394 = vpop.f32.mrf.mxu0
        %v6395 = vadd.f32 0.0, %v6394
        %v6396 = vpop.f32.mrf.mxu0
        %6397 = vmatprep.mubr.f32.mxu0 0.0
        %6398 = vmatmul.mubr.f32.gmra.mxu0 %v6216
        %v6399 = vpop.f32.mrf.mxu0
        %v6400 = vadd.f32 0.0, %v6399
        %v6401 = vpop.f32.mrf.mxu0
        %6402 = vmatprep.mubr.f32.mxu0 0.0
        %6403 = vmatmul.mubr.f32.gmra.mxu0 %v6219
        %v6404 = vpop.f32.mrf.mxu0
        %v6405 = vadd.f32 0.0, %v6404
        %v6406 = vpop.f32.mrf.mxu0
        %6407 = vmatprep.mubr.f32.mxu0 0.0
        %6408 = vmatmul.mubr.f32.gmra.mxu0 %v6222
        %v6409 = vpop.f32.mrf.mxu0
        %v6410 = vadd.f32 0.0, %v6409
        %v6411 = vpop.f32.mrf.mxu0
        %6412 = vmatprep.mubr.f32.mxu0 0.0
        %6413 = vmatmul.mubr.f32.gmra.mxu0 %v6225
        %v6414 = vpop.f32.mrf.mxu0
        %v6415 = vadd.f32 0.0, %v6414
        %v6416 = vpop.f32.mrf.mxu0
        %6417 = vmatprep.mubr.f32.mxu0 0.0
        %6418 = vmatmul.mubr.f32.gmra.mxu0 %v6228
        %v6419 = vpop.f32.mrf.mxu0
        %v6420 = vadd.f32 0.0, %v6419
        %v6421 = vpop.f32.mrf.mxu0
        %6422 = vmatprep.mubr.f32.mxu0 0.0
        %6423 = vmatmul.mubr.f32.gmra.mxu0 %v6231
        %v6424 = vpop.f32.mrf.mxu0
        %v6425 = vadd.f32 0.0, %v6424
        %v6426 = vpop.f32.mrf.mxu0
        %6427 = vmatprep.mubr.f32.mxu0 0.0
        %6428 = vmatmul.mubr.f32.gmra.mxu0 %v6234
        %v6429 = vpop.f32.mrf.mxu0
        %v6430 = vadd.f32 0.0, %v6429
        %v6431 = vpop.f32.mrf.mxu0
        %6432 = vmatprep.mubr.f32.mxu0 0.0
        %6433 = vmatmul.mubr.f32.gmra.mxu0 %v6237
        %v6434 = vpop.f32.mrf.mxu0
        %v6435 = vadd.f32 0.0, %v6434
        %v6436 = vpop.f32.mrf.mxu0
        %6437 = vmatprep.mubr.f32.mxu0 0.0
        %6438 = vmatmul.mubr.f32.gmra.mxu0 %v6240
        %v6439 = vpop.f32.mrf.mxu0
        %v6440 = vadd.f32 0.0, %v6439
        %v6441 = vpop.f32.mrf.mxu0
        %6442 = vmatprep.mubr.f32.mxu0 0.0
        %6443 = vmatmul.mubr.f32.gmra.mxu0 %v6243
        %v6444 = vpop.f32.mrf.mxu0
        %v6445 = vadd.f32 0.0, %v6444
        %v6446 = vpop.f32.mrf.mxu0
        %6447 = vmatprep.mubr.f32.mxu0 0.0
        %6448 = vmatmul.mubr.f32.gmra.mxu0 %v6246
        %v6449 = vpop.f32.mrf.mxu0
        %v6450 = vadd.f32 0.0, %v6449
        %v6451 = vpop.f32.mrf.mxu0
        %6452 = vmatprep.mubr.f32.mxu0 0.0
        %6453 = vmatmul.mubr.f32.gmra.mxu0 %v6249
        %v6454 = vpop.f32.mrf.mxu0
        %v6455 = vadd.f32 0.0, %v6454
        %v6456 = vpop.f32.mrf.mxu0
        %6457 = vmatprep.mubr.f32.mxu0 0.0
        %6458 = vmatmul.mubr.f32.gmra.mxu0 %v6252
        %v6459 = vpop.f32.mrf.mxu0
        %v6460 = vadd.f32 0.0, %v6459
        %v6461 = vpop.f32.mrf.mxu0
        %6462 = vmatprep.mubr.f32.mxu0 0.0
        %6463 = vmatmul.mubr.f32.gmra.mxu0 %v6255
        %v6464 = vpop.f32.mrf.mxu0
        %v6465 = vadd.f32 0.0, %v6464
        %v6466 = vpop.f32.mrf.mxu0
        %6467 = vmatprep.mubr.f32.mxu0 0.0
        %6468 = vmatmul.mubr.f32.gmra.mxu0 %v6258
        %v6469 = vpop.f32.mrf.mxu0
        %v6470 = vadd.f32 0.0, %v6469
        %v6471 = vpop.f32.mrf.mxu0
        %6472 = vmatprep.mubr.f32.mxu0 0.0
        %6473 = vmatmul.mubr.f32.gmra.mxu0 %v6261
        %v6474 = vpop.f32.mrf.mxu0
        %v6475 = vadd.f32 0.0, %v6474
        %v6476 = vpop.f32.mrf.mxu0
        %6477 = vmatprep.mubr.f32.mxu0 0.0
        %6478 = vmatmul.mubr.f32.gmra.mxu0 %v6264
        %v6479 = vpop.f32.mrf.mxu0
        %v6480 = vadd.f32 0.0, %v6479
        %v6481 = vpop.f32.mrf.mxu0
        %6482 = vmatprep.mubr.f32.mxu0 0.0
        %6483 = vmatmul.mubr.f32.gmra.mxu0 %v6267
        %v6484 = vpop.f32.mrf.mxu0
        %v6485 = vadd.f32 0.0, %v6484
        %v6486 = vpop.f32.mrf.mxu0
        %6487 = vmatprep.mubr.f32.mxu0 0.0
        %6488 = vmatmul.mubr.f32.gmra.mxu0 %v6270
        %v6489 = vpop.f32.mrf.mxu0
        %v6490 = vadd.f32 0.0, %v6489
        %v6491 = vpop.f32.mrf.mxu0
        %6492 = vmatprep.mubr.f32.mxu0 0.0
        %6493 = vmatmul.mubr.f32.gmra.mxu0 %v6273
        %v6494 = vpop.f32.mrf.mxu0
        %v6495 = vadd.f32 0.0, %v6494
        %v6496 = vpop.f32.mrf.mxu0
        %6497 = vmatprep.mubr.f32.mxu0 0.0
        %6498 = vmatmul.mubr.f32.gmra.mxu0 %v6276
        %v6499 = vpop.f32.mrf.mxu0
        %v6500 = vadd.f32 0.0, %v6499
        %v6501 = vpop.f32.mrf.mxu0
        %6502 = vdwg.mxu0
        %v6503 = vadd.f32 %v6115, %v6345
        %v6504 = vadd.f32 %v6116, %v6350
        %v6505 = vadd.f32 %v6117, %v6355
        %v6506 = vadd.f32 %v6118, %v6360
        %v6507 = vadd.f32 %v6119, %v6365
        %v6508 = vadd.f32 %v6120, %v6370
        %v6509 = vadd.f32 %v6121, %v6375
        %v6510 = vadd.f32 %v6122, %v6380
        %v6511 = vadd.f32 %v6123, %v6385
        %v6512 = vadd.f32 %v6124, %v6390
        %v6513 = vadd.f32 %v6125, %v6395
        %v6514 = vadd.f32 %v6126, %v6400
        %v6515 = vadd.f32 %v6127, %v6405
        %v6516 = vadd.f32 %v6128, %v6410
        %v6517 = vadd.f32 %v6129, %v6415
        %v6518 = vadd.f32 %v6130, %v6420
        %v6519 = vadd.f32 %v6131, %v6425
        %v6520 = vadd.f32 %v6132, %v6430
        %v6521 = vadd.f32 %v6133, %v6435
        %v6522 = vadd.f32 %v6134, %v6440
        %v6523 = vadd.f32 %v6135, %v6445
        %v6524 = vadd.f32 %v6136, %v6450
        %v6525 = vadd.f32 %v6137, %v6455
        %v6526 = vadd.f32 %v6138, %v6460
        %v6527 = vadd.f32 %v6139, %v6465
        %v6528 = vadd.f32 %v6140, %v6470
        %v6529 = vadd.f32 %v6141, %v6475
        %v6530 = vadd.f32 %v6142, %v6480
        %v6531 = vadd.f32 %v6143, %v6485
        %v6532 = vadd.f32 %v6144, %v6490
        %v6533 = vadd.f32 %v6145, %v6495
        %v6534 = vadd.f32 %v6146, %v6500
        %v6535 = vld [vmem:[%s6147 + $0x1] sm:$0xff]
        %v6536 = vld [vmem:[%s6147 + $0x9] sm:$0xff]
        %v6537 = vld [vmem:[%s6147 + $0x19] sm:$0xff]
        %v6538 = vld [vmem:[%s6147 + $0x21] sm:$0xff]
        %v6539 = vld [vmem:[%s6147 + $0x31] sm:$0xff]
        %v6540 = vld [vmem:[%s6147 + $0x39] sm:$0xff]
        %v6541 = vld [vmem:[%s6147 + $0x49] sm:$0xff]
        %v6542 = vld [vmem:[%s6147 + $0x51] sm:$0xff]
        %v6543 = vld [vmem:[%s6147 + $0x61] sm:$0xff]
        %v6544 = vld [vmem:[%s6147 + $0x69] sm:$0xff]
        %v6545 = vld [vmem:[%s6147 + $0x79] sm:$0xff]
        %v6546 = vld [vmem:[%s6147 + $0x81] sm:$0xff]
        %v6547 = vld [vmem:[%s6147 + $0x91] sm:$0xff]
        %v6548 = vld [vmem:[%s6147 + $0x99] sm:$0xff]
        %v6549 = vld [vmem:[%s6147 + $0xa9] sm:$0xff]
        %v6550 = vld [vmem:[%s6147 + $0xb1] sm:$0xff]
        %v6551 = vld [vmem:[%s6147 + $0xc1] sm:$0xff]
        %v6552 = vld [vmem:[%s6147 + $0xc9] sm:$0xff]
        %v6553 = vld [vmem:[%s6147 + $0xd9] sm:$0xff]
        %v6554 = vld [vmem:[%s6147 + $0xe1] sm:$0xff]
        %v6555 = vld [vmem:[%s6147 + $0xf1] sm:$0xff]
        %v6556 = vld [vmem:[%s6147 + $0xf9] sm:$0xff]
        %v6557 = vld [vmem:[%s6147 + $0x109] sm:$0xff]
        %v6558 = vld [vmem:[%s6147 + $0x111] sm:$0xff]
        %v6559 = vld [vmem:[%s6147 + $0x121] sm:$0xff]
        %v6560 = vld [vmem:[%s6147 + $0x129] sm:$0xff]
        %v6561 = vld [vmem:[%s6147 + $0x139] sm:$0xff]
        %v6562 = vld [vmem:[%s6147 + $0x141] sm:$0xff]
        %v6563 = vld [vmem:[%s6147 + $0x151] sm:$0xff]
        %v6564 = vld [vmem:[%s6147 + $0x159] sm:$0xff]
        %v6565 = vld [vmem:[%s6147 + $0x169] sm:$0xff]
        %v6566 = vld [vmem:[%s6147 + $0x171] sm:$0xff]
        %s6567 = scalar_lea.vmem %s2, 56
        %v6568 = vld [vmem:[%s6567] sm:$0xff]
        %v6570 = vsel %vm252, %v6535, 0
        %v6573 = vsel %vm252, %v6536, 0
        %v6576 = vsel %vm252, %v6537, 0
        %v6579 = vsel %vm252, %v6538, 0
        %v6582 = vsel %vm252, %v6539, 0
        %v6585 = vsel %vm252, %v6540, 0
        %v6588 = vsel %vm252, %v6541, 0
        %v6591 = vsel %vm252, %v6542, 0
        %v6594 = vsel %vm252, %v6543, 0
        %v6597 = vsel %vm252, %v6544, 0
        %v6600 = vsel %vm252, %v6545, 0
        %v6603 = vsel %vm252, %v6546, 0
        %v6606 = vsel %vm252, %v6547, 0
        %v6609 = vsel %vm252, %v6548, 0
        %v6612 = vsel %vm252, %v6549, 0
        %v6615 = vsel %vm252, %v6550, 0
        %v6618 = vsel %vm252, %v6551, 0
        %v6621 = vsel %vm252, %v6552, 0
        %v6624 = vsel %vm252, %v6553, 0
        %v6627 = vsel %vm252, %v6554, 0
        %v6630 = vsel %vm252, %v6555, 0
        %v6633 = vsel %vm252, %v6556, 0
        %v6636 = vsel %vm252, %v6557, 0
        %v6639 = vsel %vm252, %v6558, 0
        %v6642 = vsel %vm252, %v6559, 0
        %v6645 = vsel %vm252, %v6560, 0
        %v6648 = vsel %vm252, %v6561, 0
        %v6651 = vsel %vm252, %v6562, 0
        %v6654 = vsel %vm252, %v6563, 0
        %v6657 = vsel %vm252, %v6564, 0
        %v6660 = vsel %vm252, %v6565, 0
        %v6663 = vsel %vm252, %v6566, 0
        %6665 = vmatprep.subr.mxu0 0.0
        %6666 = vmatpush1.msra.mxu0 0.0
        %6667 = vmatprep.subr.mxu0 0.0
        %6668 = vmatpush1.msra.mxu0 0.0
        %6669 = vmatprep.subr.mxu0 0.0
        %6670 = vmatpush1.msra.mxu0 0.0
        %6671 = vmatprep.subr.mxu0 0.0
        %6672 = vmatpush1.msra.mxu0 0.0
        %6673 = vmatprep.subr.mxu0 0.0
        %6674 = vmatpush1.msra.mxu0 0.0
        %6675 = vmatprep.subr.mxu0 0.0
        %6676 = vmatpush1.msra.mxu0 0.0
        %6677 = vmatprep.subr.mxu0 0.0
        %6678 = vmatpush1.msra.mxu0 0.0
        %6679 = vmatprep.subr.mxu0 0.0
        %6680 = vmatpush1.msra.mxu0 0.0
        %6681 = vmatprep.subr.mxu0 0.0
        %6682 = vmatpush1.msra.mxu0 0.0
        %6683 = vmatprep.subr.mxu0 0.0
        %6684 = vmatpush1.msra.mxu0 0.0
        %6685 = vmatprep.subr.mxu0 0.0
        %6686 = vmatpush1.msra.mxu0 0.0
        %6687 = vmatprep.subr.mxu0 0.0
        %6688 = vmatpush1.msra.mxu0 0.0
        %6689 = vmatprep.subr.mxu0 0.0
        %6690 = vmatpush1.msra.mxu0 0.0
        %6691 = vmatprep.subr.mxu0 0.0
        %6692 = vmatpush1.msra.mxu0 0.0
        %6693 = vmatprep.subr.mxu0 0.0
        %6694 = vmatpush1.msra.mxu0 0.0
        %6695 = vmatprep.subr.mxu0 0.0
        %6696 = vmatpush1.msra.mxu0 %v6568
        %6697 = vmatprep.subr.mxu0 0.0
        %6698 = vmatpush2.msra.mxu0 0.0
        %6699 = vmatprep.subr.mxu0 0.0
        %6700 = vmatpush2.msra.mxu0 0.0
        %6701 = vmatprep.subr.mxu0 0.0
        %6702 = vmatpush2.msra.mxu0 0.0
        %6703 = vmatprep.subr.mxu0 0.0
        %6704 = vmatpush2.msra.mxu0 0.0
        %6705 = vmatprep.subr.mxu0 0.0
        %6706 = vmatpush2.msra.mxu0 0.0
        %6707 = vmatprep.subr.mxu0 0.0
        %6708 = vmatpush2.msra.mxu0 0.0
        %6709 = vmatprep.subr.mxu0 0.0
        %6710 = vmatpush2.msra.mxu0 0.0
        %6711 = vmatprep.subr.mxu0 0.0
        %6712 = vmatpush2.msra.mxu0 0.0
        %6713 = vmatprep.subr.mxu0 0.0
        %6714 = vmatpush2.msra.mxu0 0.0
        %6715 = vmatprep.subr.mxu0 0.0
        %6716 = vmatpush2.msra.mxu0 0.0
        %6717 = vmatprep.subr.mxu0 0.0
        %6718 = vmatpush2.msra.mxu0 0.0
        %6719 = vmatprep.subr.mxu0 0.0
        %6720 = vmatpush2.msra.mxu0 0.0
        %6721 = vmatprep.subr.mxu0 0.0
        %6722 = vmatpush2.msra.mxu0 0.0
        %6723 = vmatprep.subr.mxu0 0.0
        %6724 = vmatpush2.msra.mxu0 0.0
        %6725 = vmatprep.subr.mxu0 0.0
        %6726 = vmatpush2.msra.mxu0 0.0
        %6727 = vmatprep.subr.mxu0 0.0
        %6728 = vmatpush2.msra.mxu0 0.0
        %6729 = vmatprep.mubr.f32.mxu0 0.0
        %6730 = vmatmul.mubr.f32.gmra.mxu0 %v6570
        %v6731 = vpop.f32.mrf.mxu0
        %v6732 = vadd.f32 0.0, %v6731
        %v6733 = vpop.f32.mrf.mxu0
        %6734 = vmatprep.mubr.f32.mxu0 0.0
        %6735 = vmatmul.mubr.f32.gmra.mxu0 %v6573
        %v6736 = vpop.f32.mrf.mxu0
        %v6737 = vadd.f32 0.0, %v6736
        %v6738 = vpop.f32.mrf.mxu0
        %6739 = vmatprep.mubr.f32.mxu0 0.0
        %6740 = vmatmul.mubr.f32.gmra.mxu0 %v6576
        %v6741 = vpop.f32.mrf.mxu0
        %v6742 = vadd.f32 0.0, %v6741
        %v6743 = vpop.f32.mrf.mxu0
        %6744 = vmatprep.mubr.f32.mxu0 0.0
        %6745 = vmatmul.mubr.f32.gmra.mxu0 %v6579
        %v6746 = vpop.f32.mrf.mxu0
        %v6747 = vadd.f32 0.0, %v6746
        %v6748 = vpop.f32.mrf.mxu0
        %6749 = vmatprep.mubr.f32.mxu0 0.0
        %6750 = vmatmul.mubr.f32.gmra.mxu0 %v6582
        %v6751 = vpop.f32.mrf.mxu0
        %v6752 = vadd.f32 0.0, %v6751
        %v6753 = vpop.f32.mrf.mxu0
        %6754 = vmatprep.mubr.f32.mxu0 0.0
        %6755 = vmatmul.mubr.f32.gmra.mxu0 %v6585
        %v6756 = vpop.f32.mrf.mxu0
        %v6757 = vadd.f32 0.0, %v6756
        %v6758 = vpop.f32.mrf.mxu0
        %6759 = vmatprep.mubr.f32.mxu0 0.0
        %6760 = vmatmul.mubr.f32.gmra.mxu0 %v6588
        %v6761 = vpop.f32.mrf.mxu0
        %v6762 = vadd.f32 0.0, %v6761
        %v6763 = vpop.f32.mrf.mxu0
        %6764 = vmatprep.mubr.f32.mxu0 0.0
        %6765 = vmatmul.mubr.f32.gmra.mxu0 %v6591
        %v6766 = vpop.f32.mrf.mxu0
        %v6767 = vadd.f32 0.0, %v6766
        %v6768 = vpop.f32.mrf.mxu0
        %6769 = vmatprep.mubr.f32.mxu0 0.0
        %6770 = vmatmul.mubr.f32.gmra.mxu0 %v6594
        %v6771 = vpop.f32.mrf.mxu0
        %v6772 = vadd.f32 0.0, %v6771
        %v6773 = vpop.f32.mrf.mxu0
        %6774 = vmatprep.mubr.f32.mxu0 0.0
        %6775 = vmatmul.mubr.f32.gmra.mxu0 %v6597
        %v6776 = vpop.f32.mrf.mxu0
        %v6777 = vadd.f32 0.0, %v6776
        %v6778 = vpop.f32.mrf.mxu0
        %6779 = vmatprep.mubr.f32.mxu0 0.0
        %6780 = vmatmul.mubr.f32.gmra.mxu0 %v6600
        %v6781 = vpop.f32.mrf.mxu0
        %v6782 = vadd.f32 0.0, %v6781
        %v6783 = vpop.f32.mrf.mxu0
        %6784 = vmatprep.mubr.f32.mxu0 0.0
        %6785 = vmatmul.mubr.f32.gmra.mxu0 %v6603
        %v6786 = vpop.f32.mrf.mxu0
        %v6787 = vadd.f32 0.0, %v6786
        %v6788 = vpop.f32.mrf.mxu0
        %6789 = vmatprep.mubr.f32.mxu0 0.0
        %6790 = vmatmul.mubr.f32.gmra.mxu0 %v6606
        %v6791 = vpop.f32.mrf.mxu0
        %v6792 = vadd.f32 0.0, %v6791
        %v6793 = vpop.f32.mrf.mxu0
        %6794 = vmatprep.mubr.f32.mxu0 0.0
        %6795 = vmatmul.mubr.f32.gmra.mxu0 %v6609
        %v6796 = vpop.f32.mrf.mxu0
        %v6797 = vadd.f32 0.0, %v6796
        %v6798 = vpop.f32.mrf.mxu0
        %6799 = vmatprep.mubr.f32.mxu0 0.0
        %6800 = vmatmul.mubr.f32.gmra.mxu0 %v6612
        %v6801 = vpop.f32.mrf.mxu0
        %v6802 = vadd.f32 0.0, %v6801
        %v6803 = vpop.f32.mrf.mxu0
        %6804 = vmatprep.mubr.f32.mxu0 0.0
        %6805 = vmatmul.mubr.f32.gmra.mxu0 %v6615
        %v6806 = vpop.f32.mrf.mxu0
        %v6807 = vadd.f32 0.0, %v6806
        %v6808 = vpop.f32.mrf.mxu0
        %6809 = vmatprep.mubr.f32.mxu0 0.0
        %6810 = vmatmul.mubr.f32.gmra.mxu0 %v6618
        %v6811 = vpop.f32.mrf.mxu0
        %v6812 = vadd.f32 0.0, %v6811
        %v6813 = vpop.f32.mrf.mxu0
        %6814 = vmatprep.mubr.f32.mxu0 0.0
        %6815 = vmatmul.mubr.f32.gmra.mxu0 %v6621
        %v6816 = vpop.f32.mrf.mxu0
        %v6817 = vadd.f32 0.0, %v6816
        %v6818 = vpop.f32.mrf.mxu0
        %6819 = vmatprep.mubr.f32.mxu0 0.0
        %6820 = vmatmul.mubr.f32.gmra.mxu0 %v6624
        %v6821 = vpop.f32.mrf.mxu0
        %v6822 = vadd.f32 0.0, %v6821
        %v6823 = vpop.f32.mrf.mxu0
        %6824 = vmatprep.mubr.f32.mxu0 0.0
        %6825 = vmatmul.mubr.f32.gmra.mxu0 %v6627
        %v6826 = vpop.f32.mrf.mxu0
        %v6827 = vadd.f32 0.0, %v6826
        %v6828 = vpop.f32.mrf.mxu0
        %6829 = vmatprep.mubr.f32.mxu0 0.0
        %6830 = vmatmul.mubr.f32.gmra.mxu0 %v6630
        %v6831 = vpop.f32.mrf.mxu0
        %v6832 = vadd.f32 0.0, %v6831
        %v6833 = vpop.f32.mrf.mxu0
        %6834 = vmatprep.mubr.f32.mxu0 0.0
        %6835 = vmatmul.mubr.f32.gmra.mxu0 %v6633
        %v6836 = vpop.f32.mrf.mxu0
        %v6837 = vadd.f32 0.0, %v6836
        %v6838 = vpop.f32.mrf.mxu0
        %6839 = vmatprep.mubr.f32.mxu0 0.0
        %6840 = vmatmul.mubr.f32.gmra.mxu0 %v6636
        %v6841 = vpop.f32.mrf.mxu0
        %v6842 = vadd.f32 0.0, %v6841
        %v6843 = vpop.f32.mrf.mxu0
        %6844 = vmatprep.mubr.f32.mxu0 0.0
        %6845 = vmatmul.mubr.f32.gmra.mxu0 %v6639
        %v6846 = vpop.f32.mrf.mxu0
        %v6847 = vadd.f32 0.0, %v6846
        %v6848 = vpop.f32.mrf.mxu0
        %6849 = vmatprep.mubr.f32.mxu0 0.0
        %6850 = vmatmul.mubr.f32.gmra.mxu0 %v6642
        %v6851 = vpop.f32.mrf.mxu0
        %v6852 = vadd.f32 0.0, %v6851
        %v6853 = vpop.f32.mrf.mxu0
        %6854 = vmatprep.mubr.f32.mxu0 0.0
        %6855 = vmatmul.mubr.f32.gmra.mxu0 %v6645
        %v6856 = vpop.f32.mrf.mxu0
        %v6857 = vadd.f32 0.0, %v6856
        %v6858 = vpop.f32.mrf.mxu0
        %6859 = vmatprep.mubr.f32.mxu0 0.0
        %6860 = vmatmul.mubr.f32.gmra.mxu0 %v6648
        %v6861 = vpop.f32.mrf.mxu0
        %v6862 = vadd.f32 0.0, %v6861
        %v6863 = vpop.f32.mrf.mxu0
        %6864 = vmatprep.mubr.f32.mxu0 0.0
        %6865 = vmatmul.mubr.f32.gmra.mxu0 %v6651
        %v6866 = vpop.f32.mrf.mxu0
        %v6867 = vadd.f32 0.0, %v6866
        %v6868 = vpop.f32.mrf.mxu0
        %6869 = vmatprep.mubr.f32.mxu0 0.0
        %6870 = vmatmul.mubr.f32.gmra.mxu0 %v6654
        %v6871 = vpop.f32.mrf.mxu0
        %v6872 = vadd.f32 0.0, %v6871
        %v6873 = vpop.f32.mrf.mxu0
        %6874 = vmatprep.mubr.f32.mxu0 0.0
        %6875 = vmatmul.mubr.f32.gmra.mxu0 %v6657
        %v6876 = vpop.f32.mrf.mxu0
        %v6877 = vadd.f32 0.0, %v6876
        %v6878 = vpop.f32.mrf.mxu0
        %6879 = vmatprep.mubr.f32.mxu0 0.0
        %6880 = vmatmul.mubr.f32.gmra.mxu0 %v6660
        %v6881 = vpop.f32.mrf.mxu0
        %v6882 = vadd.f32 0.0, %v6881
        %v6883 = vpop.f32.mrf.mxu0
        %6884 = vmatprep.mubr.f32.mxu0 0.0
        %6885 = vmatmul.mubr.f32.gmra.mxu0 %v6663
        %v6886 = vpop.f32.mrf.mxu0
        %v6887 = vadd.f32 0.0, %v6886
        %v6888 = vpop.f32.mrf.mxu0
        %6889 = vdwg.mxu0
        %v6890 = vadd.f32 %v6503, %v6732
        %v6891 = vadd.f32 %v6504, %v6737
        %v6892 = vadd.f32 %v6505, %v6742
        %v6893 = vadd.f32 %v6506, %v6747
        %v6894 = vadd.f32 %v6507, %v6752
        %v6895 = vadd.f32 %v6508, %v6757
        %v6896 = vadd.f32 %v6509, %v6762
        %v6897 = vadd.f32 %v6510, %v6767
        %v6898 = vadd.f32 %v6511, %v6772
        %v6899 = vadd.f32 %v6512, %v6777
        %v6900 = vadd.f32 %v6513, %v6782
        %v6901 = vadd.f32 %v6514, %v6787
        %v6902 = vadd.f32 %v6515, %v6792
        %v6903 = vadd.f32 %v6516, %v6797
        %v6904 = vadd.f32 %v6517, %v6802
        %v6905 = vadd.f32 %v6518, %v6807
        %v6906 = vadd.f32 %v6519, %v6812
        %v6907 = vadd.f32 %v6520, %v6817
        %v6908 = vadd.f32 %v6521, %v6822
        %v6909 = vadd.f32 %v6522, %v6827
        %v6910 = vadd.f32 %v6523, %v6832
        %v6911 = vadd.f32 %v6524, %v6837
        %v6912 = vadd.f32 %v6525, %v6842
        %v6913 = vadd.f32 %v6526, %v6847
        %v6914 = vadd.f32 %v6527, %v6852
        %v6915 = vadd.f32 %v6528, %v6857
        %v6916 = vadd.f32 %v6529, %v6862
        %v6917 = vadd.f32 %v6530, %v6867
        %v6918 = vadd.f32 %v6531, %v6872
        %v6919 = vadd.f32 %v6532, %v6877
        %v6920 = vadd.f32 %v6533, %v6882
        %v6921 = vadd.f32 %v6534, %v6887
        %v6922 = vld [vmem:[%s6147 + $0x2] sm:$0xff]
        %v6923 = vld [vmem:[%s6147 + $0xa] sm:$0xff]
        %v6924 = vld [vmem:[%s6147 + $0x1a] sm:$0xff]
        %v6925 = vld [vmem:[%s6147 + $0x22] sm:$0xff]
        %v6926 = vld [vmem:[%s6147 + $0x32] sm:$0xff]
        %v6927 = vld [vmem:[%s6147 + $0x3a] sm:$0xff]
        %v6928 = vld [vmem:[%s6147 + $0x4a] sm:$0xff]
        %v6929 = vld [vmem:[%s6147 + $0x52] sm:$0xff]
        %v6930 = vld [vmem:[%s6147 + $0x62] sm:$0xff]
        %v6931 = vld [vmem:[%s6147 + $0x6a] sm:$0xff]
        %v6932 = vld [vmem:[%s6147 + $0x7a] sm:$0xff]
        %v6933 = vld [vmem:[%s6147 + $0x82] sm:$0xff]
        %v6934 = vld [vmem:[%s6147 + $0x92] sm:$0xff]
        %v6935 = vld [vmem:[%s6147 + $0x9a] sm:$0xff]
        %v6936 = vld [vmem:[%s6147 + $0xaa] sm:$0xff]
        %v6937 = vld [vmem:[%s6147 + $0xb2] sm:$0xff]
        %v6938 = vld [vmem:[%s6147 + $0xc2] sm:$0xff]
        %v6939 = vld [vmem:[%s6147 + $0xca] sm:$0xff]
        %v6940 = vld [vmem:[%s6147 + $0xda] sm:$0xff]
        %v6941 = vld [vmem:[%s6147 + $0xe2] sm:$0xff]
        %v6942 = vld [vmem:[%s6147 + $0xf2] sm:$0xff]
        %v6943 = vld [vmem:[%s6147 + $0xfa] sm:$0xff]
        %v6944 = vld [vmem:[%s6147 + $0x10a] sm:$0xff]
        %v6945 = vld [vmem:[%s6147 + $0x112] sm:$0xff]
        %v6946 = vld [vmem:[%s6147 + $0x122] sm:$0xff]
        %v6947 = vld [vmem:[%s6147 + $0x12a] sm:$0xff]
        %v6948 = vld [vmem:[%s6147 + $0x13a] sm:$0xff]
        %v6949 = vld [vmem:[%s6147 + $0x142] sm:$0xff]
        %v6950 = vld [vmem:[%s6147 + $0x152] sm:$0xff]
        %v6951 = vld [vmem:[%s6147 + $0x15a] sm:$0xff]
        %v6952 = vld [vmem:[%s6147 + $0x16a] sm:$0xff]
        %v6953 = vld [vmem:[%s6147 + $0x172] sm:$0xff]
        %s6954 = scalar_lea.vmem %s2, 64
        %v6955 = vld [vmem:[%s6954] sm:$0xff]
        %v6957 = vsel %vm252, %v6922, 0
        %v6960 = vsel %vm252, %v6923, 0
        %v6963 = vsel %vm252, %v6924, 0
        %v6966 = vsel %vm252, %v6925, 0
        %v6969 = vsel %vm252, %v6926, 0
        %v6972 = vsel %vm252, %v6927, 0
        %v6975 = vsel %vm252, %v6928, 0
        %v6978 = vsel %vm252, %v6929, 0
        %v6981 = vsel %vm252, %v6930, 0
        %v6984 = vsel %vm252, %v6931, 0
        %v6987 = vsel %vm252, %v6932, 0
        %v6990 = vsel %vm252, %v6933, 0
        %v6993 = vsel %vm252, %v6934, 0
        %v6996 = vsel %vm252, %v6935, 0
        %v6999 = vsel %vm252, %v6936, 0
        %v7002 = vsel %vm252, %v6937, 0
        %v7005 = vsel %vm252, %v6938, 0
        %v7008 = vsel %vm252, %v6939, 0
        %v7011 = vsel %vm252, %v6940, 0
        %v7014 = vsel %vm252, %v6941, 0
        %v7017 = vsel %vm252, %v6942, 0
        %v7020 = vsel %vm252, %v6943, 0
        %v7023 = vsel %vm252, %v6944, 0
        %v7026 = vsel %vm252, %v6945, 0
        %v7029 = vsel %vm252, %v6946, 0
        %v7032 = vsel %vm252, %v6947, 0
        %v7035 = vsel %vm252, %v6948, 0
        %v7038 = vsel %vm252, %v6949, 0
        %v7041 = vsel %vm252, %v6950, 0
        %v7044 = vsel %vm252, %v6951, 0
        %v7047 = vsel %vm252, %v6952, 0
        %v7050 = vsel %vm252, %v6953, 0
        %7052 = vmatprep.subr.mxu0 0.0
        %7053 = vmatpush1.msra.mxu0 0.0
        %7054 = vmatprep.subr.mxu0 0.0
        %7055 = vmatpush1.msra.mxu0 0.0
        %7056 = vmatprep.subr.mxu0 0.0
        %7057 = vmatpush1.msra.mxu0 0.0
        %7058 = vmatprep.subr.mxu0 0.0
        %7059 = vmatpush1.msra.mxu0 0.0
        %7060 = vmatprep.subr.mxu0 0.0
        %7061 = vmatpush1.msra.mxu0 0.0
        %7062 = vmatprep.subr.mxu0 0.0
        %7063 = vmatpush1.msra.mxu0 0.0
        %7064 = vmatprep.subr.mxu0 0.0
        %7065 = vmatpush1.msra.mxu0 0.0
        %7066 = vmatprep.subr.mxu0 0.0
        %7067 = vmatpush1.msra.mxu0 0.0
        %7068 = vmatprep.subr.mxu0 0.0
        %7069 = vmatpush1.msra.mxu0 0.0
        %7070 = vmatprep.subr.mxu0 0.0
        %7071 = vmatpush1.msra.mxu0 0.0
        %7072 = vmatprep.subr.mxu0 0.0
        %7073 = vmatpush1.msra.mxu0 0.0
        %7074 = vmatprep.subr.mxu0 0.0
        %7075 = vmatpush1.msra.mxu0 0.0
        %7076 = vmatprep.subr.mxu0 0.0
        %7077 = vmatpush1.msra.mxu0 0.0
        %7078 = vmatprep.subr.mxu0 0.0
        %7079 = vmatpush1.msra.mxu0 0.0
        %7080 = vmatprep.subr.mxu0 0.0
        %7081 = vmatpush1.msra.mxu0 0.0
        %7082 = vmatprep.subr.mxu0 0.0
        %7083 = vmatpush1.msra.mxu0 %v6955
        %7084 = vmatprep.subr.mxu0 0.0
        %7085 = vmatpush2.msra.mxu0 0.0
        %7086 = vmatprep.subr.mxu0 0.0
        %7087 = vmatpush2.msra.mxu0 0.0
        %7088 = vmatprep.subr.mxu0 0.0
        %7089 = vmatpush2.msra.mxu0 0.0
        %7090 = vmatprep.subr.mxu0 0.0
        %7091 = vmatpush2.msra.mxu0 0.0
        %7092 = vmatprep.subr.mxu0 0.0
        %7093 = vmatpush2.msra.mxu0 0.0
        %7094 = vmatprep.subr.mxu0 0.0
        %7095 = vmatpush2.msra.mxu0 0.0
        %7096 = vmatprep.subr.mxu0 0.0
        %7097 = vmatpush2.msra.mxu0 0.0
        %7098 = vmatprep.subr.mxu0 0.0
        %7099 = vmatpush2.msra.mxu0 0.0
        %7100 = vmatprep.subr.mxu0 0.0
        %7101 = vmatpush2.msra.mxu0 0.0
        %7102 = vmatprep.subr.mxu0 0.0
        %7103 = vmatpush2.msra.mxu0 0.0
        %7104 = vmatprep.subr.mxu0 0.0
        %7105 = vmatpush2.msra.mxu0 0.0
        %7106 = vmatprep.subr.mxu0 0.0
        %7107 = vmatpush2.msra.mxu0 0.0
        %7108 = vmatprep.subr.mxu0 0.0
        %7109 = vmatpush2.msra.mxu0 0.0
        %7110 = vmatprep.subr.mxu0 0.0
        %7111 = vmatpush2.msra.mxu0 0.0
        %7112 = vmatprep.subr.mxu0 0.0
        %7113 = vmatpush2.msra.mxu0 0.0
        %7114 = vmatprep.subr.mxu0 0.0
        %7115 = vmatpush2.msra.mxu0 0.0
        %7116 = vmatprep.mubr.f32.mxu0 0.0
        %7117 = vmatmul.mubr.f32.gmra.mxu0 %v6957
        %v7118 = vpop.f32.mrf.mxu0
        %v7119 = vadd.f32 0.0, %v7118
        %v7120 = vpop.f32.mrf.mxu0
        %7121 = vmatprep.mubr.f32.mxu0 0.0
        %7122 = vmatmul.mubr.f32.gmra.mxu0 %v6960
        %v7123 = vpop.f32.mrf.mxu0
        %v7124 = vadd.f32 0.0, %v7123
        %v7125 = vpop.f32.mrf.mxu0
        %7126 = vmatprep.mubr.f32.mxu0 0.0
        %7127 = vmatmul.mubr.f32.gmra.mxu0 %v6963
        %v7128 = vpop.f32.mrf.mxu0
        %v7129 = vadd.f32 0.0, %v7128
        %v7130 = vpop.f32.mrf.mxu0
        %7131 = vmatprep.mubr.f32.mxu0 0.0
        %7132 = vmatmul.mubr.f32.gmra.mxu0 %v6966
        %v7133 = vpop.f32.mrf.mxu0
        %v7134 = vadd.f32 0.0, %v7133
        %v7135 = vpop.f32.mrf.mxu0
        %7136 = vmatprep.mubr.f32.mxu0 0.0
        %7137 = vmatmul.mubr.f32.gmra.mxu0 %v6969
        %v7138 = vpop.f32.mrf.mxu0
        %v7139 = vadd.f32 0.0, %v7138
        %v7140 = vpop.f32.mrf.mxu0
        %7141 = vmatprep.mubr.f32.mxu0 0.0
        %7142 = vmatmul.mubr.f32.gmra.mxu0 %v6972
        %v7143 = vpop.f32.mrf.mxu0
        %v7144 = vadd.f32 0.0, %v7143
        %v7145 = vpop.f32.mrf.mxu0
        %7146 = vmatprep.mubr.f32.mxu0 0.0
        %7147 = vmatmul.mubr.f32.gmra.mxu0 %v6975
        %v7148 = vpop.f32.mrf.mxu0
        %v7149 = vadd.f32 0.0, %v7148
        %v7150 = vpop.f32.mrf.mxu0
        %7151 = vmatprep.mubr.f32.mxu0 0.0
        %7152 = vmatmul.mubr.f32.gmra.mxu0 %v6978
        %v7153 = vpop.f32.mrf.mxu0
        %v7154 = vadd.f32 0.0, %v7153
        %v7155 = vpop.f32.mrf.mxu0
        %7156 = vmatprep.mubr.f32.mxu0 0.0
        %7157 = vmatmul.mubr.f32.gmra.mxu0 %v6981
        %v7158 = vpop.f32.mrf.mxu0
        %v7159 = vadd.f32 0.0, %v7158
        %v7160 = vpop.f32.mrf.mxu0
        %7161 = vmatprep.mubr.f32.mxu0 0.0
        %7162 = vmatmul.mubr.f32.gmra.mxu0 %v6984
        %v7163 = vpop.f32.mrf.mxu0
        %v7164 = vadd.f32 0.0, %v7163
        %v7165 = vpop.f32.mrf.mxu0
        %7166 = vmatprep.mubr.f32.mxu0 0.0
        %7167 = vmatmul.mubr.f32.gmra.mxu0 %v6987
        %v7168 = vpop.f32.mrf.mxu0
        %v7169 = vadd.f32 0.0, %v7168
        %v7170 = vpop.f32.mrf.mxu0
        %7171 = vmatprep.mubr.f32.mxu0 0.0
        %7172 = vmatmul.mubr.f32.gmra.mxu0 %v6990
        %v7173 = vpop.f32.mrf.mxu0
        %v7174 = vadd.f32 0.0, %v7173
        %v7175 = vpop.f32.mrf.mxu0
        %7176 = vmatprep.mubr.f32.mxu0 0.0
        %7177 = vmatmul.mubr.f32.gmra.mxu0 %v6993
        %v7178 = vpop.f32.mrf.mxu0
        %v7179 = vadd.f32 0.0, %v7178
        %v7180 = vpop.f32.mrf.mxu0
        %7181 = vmatprep.mubr.f32.mxu0 0.0
        %7182 = vmatmul.mubr.f32.gmra.mxu0 %v6996
        %v7183 = vpop.f32.mrf.mxu0
        %v7184 = vadd.f32 0.0, %v7183
        %v7185 = vpop.f32.mrf.mxu0
        %7186 = vmatprep.mubr.f32.mxu0 0.0
        %7187 = vmatmul.mubr.f32.gmra.mxu0 %v6999
        %v7188 = vpop.f32.mrf.mxu0
        %v7189 = vadd.f32 0.0, %v7188
        %v7190 = vpop.f32.mrf.mxu0
        %7191 = vmatprep.mubr.f32.mxu0 0.0
        %7192 = vmatmul.mubr.f32.gmra.mxu0 %v7002
        %v7193 = vpop.f32.mrf.mxu0
        %v7194 = vadd.f32 0.0, %v7193
        %v7195 = vpop.f32.mrf.mxu0
        %7196 = vmatprep.mubr.f32.mxu0 0.0
        %7197 = vmatmul.mubr.f32.gmra.mxu0 %v7005
        %v7198 = vpop.f32.mrf.mxu0
        %v7199 = vadd.f32 0.0, %v7198
        %v7200 = vpop.f32.mrf.mxu0
        %7201 = vmatprep.mubr.f32.mxu0 0.0
        %7202 = vmatmul.mubr.f32.gmra.mxu0 %v7008
        %v7203 = vpop.f32.mrf.mxu0
        %v7204 = vadd.f32 0.0, %v7203
        %v7205 = vpop.f32.mrf.mxu0
        %7206 = vmatprep.mubr.f32.mxu0 0.0
        %7207 = vmatmul.mubr.f32.gmra.mxu0 %v7011
        %v7208 = vpop.f32.mrf.mxu0
        %v7209 = vadd.f32 0.0, %v7208
        %v7210 = vpop.f32.mrf.mxu0
        %7211 = vmatprep.mubr.f32.mxu0 0.0
        %7212 = vmatmul.mubr.f32.gmra.mxu0 %v7014
        %v7213 = vpop.f32.mrf.mxu0
        %v7214 = vadd.f32 0.0, %v7213
        %v7215 = vpop.f32.mrf.mxu0
        %7216 = vmatprep.mubr.f32.mxu0 0.0
        %7217 = vmatmul.mubr.f32.gmra.mxu0 %v7017
        %v7218 = vpop.f32.mrf.mxu0
        %v7219 = vadd.f32 0.0, %v7218
        %v7220 = vpop.f32.mrf.mxu0
        %7221 = vmatprep.mubr.f32.mxu0 0.0
        %7222 = vmatmul.mubr.f32.gmra.mxu0 %v7020
        %v7223 = vpop.f32.mrf.mxu0
        %v7224 = vadd.f32 0.0, %v7223
        %v7225 = vpop.f32.mrf.mxu0
        %7226 = vmatprep.mubr.f32.mxu0 0.0
        %7227 = vmatmul.mubr.f32.gmra.mxu0 %v7023
        %v7228 = vpop.f32.mrf.mxu0
        %v7229 = vadd.f32 0.0, %v7228
        %v7230 = vpop.f32.mrf.mxu0
        %7231 = vmatprep.mubr.f32.mxu0 0.0
        %7232 = vmatmul.mubr.f32.gmra.mxu0 %v7026
        %v7233 = vpop.f32.mrf.mxu0
        %v7234 = vadd.f32 0.0, %v7233
        %v7235 = vpop.f32.mrf.mxu0
        %7236 = vmatprep.mubr.f32.mxu0 0.0
        %7237 = vmatmul.mubr.f32.gmra.mxu0 %v7029
        %v7238 = vpop.f32.mrf.mxu0
        %v7239 = vadd.f32 0.0, %v7238
        %v7240 = vpop.f32.mrf.mxu0
        %7241 = vmatprep.mubr.f32.mxu0 0.0
        %7242 = vmatmul.mubr.f32.gmra.mxu0 %v7032
        %v7243 = vpop.f32.mrf.mxu0
        %v7244 = vadd.f32 0.0, %v7243
        %v7245 = vpop.f32.mrf.mxu0
        %7246 = vmatprep.mubr.f32.mxu0 0.0
        %7247 = vmatmul.mubr.f32.gmra.mxu0 %v7035
        %v7248 = vpop.f32.mrf.mxu0
        %v7249 = vadd.f32 0.0, %v7248
        %v7250 = vpop.f32.mrf.mxu0
        %7251 = vmatprep.mubr.f32.mxu0 0.0
        %7252 = vmatmul.mubr.f32.gmra.mxu0 %v7038
        %v7253 = vpop.f32.mrf.mxu0
        %v7254 = vadd.f32 0.0, %v7253
        %v7255 = vpop.f32.mrf.mxu0
        %7256 = vmatprep.mubr.f32.mxu0 0.0
        %7257 = vmatmul.mubr.f32.gmra.mxu0 %v7041
        %v7258 = vpop.f32.mrf.mxu0
        %v7259 = vadd.f32 0.0, %v7258
        %v7260 = vpop.f32.mrf.mxu0
        %7261 = vmatprep.mubr.f32.mxu0 0.0
        %7262 = vmatmul.mubr.f32.gmra.mxu0 %v7044
        %v7263 = vpop.f32.mrf.mxu0
        %v7264 = vadd.f32 0.0, %v7263
        %v7265 = vpop.f32.mrf.mxu0
        %7266 = vmatprep.mubr.f32.mxu0 0.0
        %7267 = vmatmul.mubr.f32.gmra.mxu0 %v7047
        %v7268 = vpop.f32.mrf.mxu0
        %v7269 = vadd.f32 0.0, %v7268
        %v7270 = vpop.f32.mrf.mxu0
        %7271 = vmatprep.mubr.f32.mxu0 0.0
        %7272 = vmatmul.mubr.f32.gmra.mxu0 %v7050
        %v7273 = vpop.f32.mrf.mxu0
        %v7274 = vadd.f32 0.0, %v7273
        %v7275 = vpop.f32.mrf.mxu0
        %7276 = vdwg.mxu0
        %v7277 = vadd.f32 %v6890, %v7119
        %v7278 = vadd.f32 %v6891, %v7124
        %v7279 = vadd.f32 %v6892, %v7129
        %v7280 = vadd.f32 %v6893, %v7134
        %v7281 = vadd.f32 %v6894, %v7139
        %v7282 = vadd.f32 %v6895, %v7144
        %v7283 = vadd.f32 %v6896, %v7149
        %v7284 = vadd.f32 %v6897, %v7154
        %v7285 = vadd.f32 %v6898, %v7159
        %v7286 = vadd.f32 %v6899, %v7164
        %v7287 = vadd.f32 %v6900, %v7169
        %v7288 = vadd.f32 %v6901, %v7174
        %v7289 = vadd.f32 %v6902, %v7179
        %v7290 = vadd.f32 %v6903, %v7184
        %v7291 = vadd.f32 %v6904, %v7189
        %v7292 = vadd.f32 %v6905, %v7194
        %v7293 = vadd.f32 %v6906, %v7199
        %v7294 = vadd.f32 %v6907, %v7204
        %v7295 = vadd.f32 %v6908, %v7209
        %v7296 = vadd.f32 %v6909, %v7214
        %v7297 = vadd.f32 %v6910, %v7219
        %v7298 = vadd.f32 %v6911, %v7224
        %v7299 = vadd.f32 %v6912, %v7229
        %v7300 = vadd.f32 %v6913, %v7234
        %v7301 = vadd.f32 %v6914, %v7239
        %v7302 = vadd.f32 %v6915, %v7244
        %v7303 = vadd.f32 %v6916, %v7249
        %v7304 = vadd.f32 %v6917, %v7254
        %v7305 = vadd.f32 %v6918, %v7259
        %v7306 = vadd.f32 %v6919, %v7264
        %v7307 = vadd.f32 %v6920, %v7269
        %v7308 = vadd.f32 %v6921, %v7274
        %v7309 = vlaneseq
        %v7310 = vshrl.u32 %v7309, 7
        %v7311 = vsub.s32 1, %v7310
        %v7312 = vrot.slane %v373, %v7311
        %v7313 = vmul.f32 %v7277, %v7312
        %v7314 = vmul.f32 %v7278, %v7312
        %v7315 = vmul.f32 %v7279, %v7312
        %v7316 = vmul.f32 %v7280, %v7312
        %v7317 = vmul.f32 %v7281, %v7312
        %v7318 = vmul.f32 %v7282, %v7312
        %v7319 = vmul.f32 %v7283, %v7312
        %v7320 = vmul.f32 %v7284, %v7312
        %v7321 = vmul.f32 %v7285, %v7312
        %v7322 = vmul.f32 %v7286, %v7312
        %v7323 = vmul.f32 %v7287, %v7312
        %v7324 = vmul.f32 %v7288, %v7312
        %v7325 = vmul.f32 %v7289, %v7312
        %v7326 = vmul.f32 %v7290, %v7312
        %v7327 = vmul.f32 %v7291, %v7312
        %v7328 = vmul.f32 %v7292, %v7312
        %v7329 = vmul.f32 %v7293, %v7312
        %v7330 = vmul.f32 %v7294, %v7312
        %v7331 = vmul.f32 %v7295, %v7312
        %v7332 = vmul.f32 %v7296, %v7312
        %v7333 = vmul.f32 %v7297, %v7312
        %v7334 = vmul.f32 %v7298, %v7312
        %v7335 = vmul.f32 %v7299, %v7312
        %v7336 = vmul.f32 %v7300, %v7312
        %v7337 = vmul.f32 %v7301, %v7312
        %v7338 = vmul.f32 %v7302, %v7312
        %v7339 = vmul.f32 %v7303, %v7312
        %v7340 = vmul.f32 %v7304, %v7312
        %v7341 = vmul.f32 %v7305, %v7312
        %v7342 = vmul.f32 %v7306, %v7312
        %v7343 = vmul.f32 %v7307, %v7312
        %v7344 = vmul.f32 %v7308, %v7312
        %v7345 = vlaneseq
        %v7346 = vshrl.u32 %v7345, 7
        %v7347 = vsub.s32 2, %v7346
        %v7348 = vrot.slane %v373, %v7347
        %v7349 = vadd.f32 %v7313, %v7348
        %v7350 = vadd.f32 %v7314, %v7348
        %v7351 = vadd.f32 %v7315, %v7348
        %v7352 = vadd.f32 %v7316, %v7348
        %v7353 = vadd.f32 %v7317, %v7348
        %v7354 = vadd.f32 %v7318, %v7348
        %v7355 = vadd.f32 %v7319, %v7348
        %v7356 = vadd.f32 %v7320, %v7348
        %v7357 = vadd.f32 %v7321, %v7348
        %v7358 = vadd.f32 %v7322, %v7348
        %v7359 = vadd.f32 %v7323, %v7348
        %v7360 = vadd.f32 %v7324, %v7348
        %v7361 = vadd.f32 %v7325, %v7348
        %v7362 = vadd.f32 %v7326, %v7348
        %v7363 = vadd.f32 %v7327, %v7348
        %v7364 = vadd.f32 %v7328, %v7348
        %v7365 = vadd.f32 %v7329, %v7348
        %v7366 = vadd.f32 %v7330, %v7348
        %v7367 = vadd.f32 %v7331, %v7348
        %v7368 = vadd.f32 %v7332, %v7348
        %v7369 = vadd.f32 %v7333, %v7348
        %v7370 = vadd.f32 %v7334, %v7348
        %v7371 = vadd.f32 %v7335, %v7348
        %v7372 = vadd.f32 %v7336, %v7348
        %v7373 = vadd.f32 %v7337, %v7348
        %v7374 = vadd.f32 %v7338, %v7348
        %v7375 = vadd.f32 %v7339, %v7348
        %v7376 = vadd.f32 %v7340, %v7348
        %v7377 = vadd.f32 %v7341, %v7348
        %v7378 = vadd.f32 %v7342, %v7348
        %v7379 = vadd.f32 %v7343, %v7348
        %v7380 = vadd.f32 %v7344, %v7348
        %v7381 = vmax.f32 %v7349, 0.0
        %v7382 = vmax.f32 %v7350, 0.0
        %v7383 = vmax.f32 %v7351, 0.0
        %v7384 = vmax.f32 %v7352, 0.0
        %v7385 = vmax.f32 %v7353, 0.0
        %v7386 = vmax.f32 %v7354, 0.0
        %v7387 = vmax.f32 %v7355, 0.0
        %v7388 = vmax.f32 %v7356, 0.0
        %v7389 = vmax.f32 %v7357, 0.0
        %v7390 = vmax.f32 %v7358, 0.0
        %v7391 = vmax.f32 %v7359, 0.0
        %v7392 = vmax.f32 %v7360, 0.0
        %v7393 = vmax.f32 %v7361, 0.0
        %v7394 = vmax.f32 %v7362, 0.0
        %v7395 = vmax.f32 %v7363, 0.0
        %v7396 = vmax.f32 %v7364, 0.0
        %v7397 = vmax.f32 %v7365, 0.0
        %v7398 = vmax.f32 %v7366, 0.0
        %v7399 = vmax.f32 %v7367, 0.0
        %v7400 = vmax.f32 %v7368, 0.0
        %v7401 = vmax.f32 %v7369, 0.0
        %v7402 = vmax.f32 %v7370, 0.0
        %v7403 = vmax.f32 %v7371, 0.0
        %v7404 = vmax.f32 %v7372, 0.0
        %v7405 = vmax.f32 %v7373, 0.0
        %v7406 = vmax.f32 %v7374, 0.0
        %v7407 = vmax.f32 %v7375, 0.0
        %v7408 = vmax.f32 %v7376, 0.0
        %v7409 = vmax.f32 %v7377, 0.0
        %v7410 = vmax.f32 %v7378, 0.0
        %v7411 = vmax.f32 %v7379, 0.0
        %v7412 = vmax.f32 %v7380, 0.0
        %v7413 = vsel %vm252, %v7381, -inf
        %v7414 = vsel %vm252, %v7383, -inf
        %v7415 = vmax.f32 %v7413, %v7414
        %v7416 = vsel %vm252, %v7382, -inf
        %v7417 = vsel %vm252, %v7384, -inf
        %v7418 = vmax.f32 %v7416, %v7417
        %v7419 = vsel %vm252, %v7385, -inf
        %v7420 = vsel %vm252, %v7387, -inf
        %v7421 = vmax.f32 %v7419, %v7420
        %v7422 = vsel %vm252, %v7386, -inf
        %v7423 = vsel %vm252, %v7388, -inf
        %v7424 = vmax.f32 %v7422, %v7423
        %v7425 = vsel %vm252, %v7389, -inf
        %v7426 = vsel %vm252, %v7391, -inf
        %v7427 = vmax.f32 %v7425, %v7426
        %v7428 = vsel %vm252, %v7390, -inf
        %v7429 = vsel %vm252, %v7392, -inf
        %v7430 = vmax.f32 %v7428, %v7429
        %v7431 = vsel %vm252, %v7393, -inf
        %v7432 = vsel %vm252, %v7395, -inf
        %v7433 = vmax.f32 %v7431, %v7432
        %v7434 = vsel %vm252, %v7394, -inf
        %v7435 = vsel %vm252, %v7396, -inf
        %v7436 = vmax.f32 %v7434, %v7435
        %v7437 = vsel %vm252, %v7397, -inf
        %v7438 = vsel %vm252, %v7399, -inf
        %v7439 = vmax.f32 %v7437, %v7438
        %v7440 = vsel %vm252, %v7398, -inf
        %v7441 = vsel %vm252, %v7400, -inf
        %v7442 = vmax.f32 %v7440, %v7441
        %v7443 = vsel %vm252, %v7401, -inf
        %v7444 = vsel %vm252, %v7403, -inf
        %v7445 = vmax.f32 %v7443, %v7444
        %v7446 = vsel %vm252, %v7402, -inf
        %v7447 = vsel %vm252, %v7404, -inf
        %v7448 = vmax.f32 %v7446, %v7447
        %v7449 = vsel %vm252, %v7405, -inf
        %v7450 = vsel %vm252, %v7407, -inf
        %v7451 = vmax.f32 %v7449, %v7450
        %v7452 = vsel %vm252, %v7406, -inf
        %v7453 = vsel %vm252, %v7408, -inf
        %v7454 = vmax.f32 %v7452, %v7453
        %v7455 = vsel %vm252, %v7409, -inf
        %v7456 = vsel %vm252, %v7411, -inf
        %v7457 = vmax.f32 %v7455, %v7456
        %v7458 = vsel %vm252, %v7410, -inf
        %v7459 = vsel %vm252, %v7412, -inf
        %v7460 = vmax.f32 %v7458, %v7459
        %v7477 = vcombine.high %v7415, %v7415
        %v7479 = vunpack.c.l.s4 1983009808
        %v7480 = vunpack.c.0.s8 %v7479
        %v7481 = vlaneseq
        %v7482 = vshrl.u32 %v7481, 7
        %v7483 = vsub.s32 %v7480, %v7482
        %v7484 = vrot.slane %v7415, %v7483
        %v7486 = vunpack.c.l.s4 1983009808
        %v7487 = vunpack.c.0.s8 %v7486
        %v7488 = vlaneseq
        %v7489 = vshrl.u32 %v7488, 7
        %v7490 = vsub.s32 %v7487, %v7489
        %v7491 = vrot.slane %v7477, %v7490
        %v7492 = vcombine.high %v7484, %v7484
        %v7493 = vcombine.high %v7491, %v7491
        %v7494 = vcombine.high %v7418, %v7418
        %v7496 = vunpack.c.l.s4 1983009808
        %v7497 = vunpack.c.0.s8 %v7496
        %v7498 = vlaneseq
        %v7499 = vshrl.u32 %v7498, 7
        %v7500 = vsub.s32 %v7497, %v7499
        %v7501 = vrot.slane %v7418, %v7500
        %v7503 = vunpack.c.l.s4 1983009808
        %v7504 = vunpack.c.0.s8 %v7503
        %v7505 = vlaneseq
        %v7506 = vshrl.u32 %v7505, 7
        %v7507 = vsub.s32 %v7504, %v7506
        %v7508 = vrot.slane %v7494, %v7507
        %v7509 = vcombine.high %v7501, %v7501
        %v7510 = vcombine.high %v7508, %v7508
        %v7511 = vcombine.high %v7421, %v7421
        %v7513 = vunpack.c.l.s4 1983009808
        %v7514 = vunpack.c.0.s8 %v7513
        %v7515 = vlaneseq
        %v7516 = vshrl.u32 %v7515, 7
        %v7517 = vsub.s32 %v7514, %v7516
        %v7518 = vrot.slane %v7421, %v7517
        %v7520 = vunpack.c.l.s4 1983009808
        %v7521 = vunpack.c.0.s8 %v7520
        %v7522 = vlaneseq
        %v7523 = vshrl.u32 %v7522, 7
        %v7524 = vsub.s32 %v7521, %v7523
        %v7525 = vrot.slane %v7511, %v7524
        %v7526 = vcombine.high %v7518, %v7518
        %v7527 = vcombine.high %v7525, %v7525
        %v7528 = vcombine.high %v7424, %v7424
        %v7530 = vunpack.c.l.s4 1983009808
        %v7531 = vunpack.c.0.s8 %v7530
        %v7532 = vlaneseq
        %v7533 = vshrl.u32 %v7532, 7
        %v7534 = vsub.s32 %v7531, %v7533
        %v7535 = vrot.slane %v7424, %v7534
        %v7537 = vunpack.c.l.s4 1983009808
        %v7538 = vunpack.c.0.s8 %v7537
        %v7539 = vlaneseq
        %v7540 = vshrl.u32 %v7539, 7
        %v7541 = vsub.s32 %v7538, %v7540
        %v7542 = vrot.slane %v7528, %v7541
        %v7543 = vcombine.high %v7535, %v7535
        %v7544 = vcombine.high %v7542, %v7542
        %v7545 = vcombine.high %v7427, %v7427
        %v7547 = vunpack.c.l.s4 1983009808
        %v7548 = vunpack.c.0.s8 %v7547
        %v7549 = vlaneseq
        %v7550 = vshrl.u32 %v7549, 7
        %v7551 = vsub.s32 %v7548, %v7550
        %v7552 = vrot.slane %v7427, %v7551
        %v7554 = vunpack.c.l.s4 1983009808
        %v7555 = vunpack.c.0.s8 %v7554
        %v7556 = vlaneseq
        %v7557 = vshrl.u32 %v7556, 7
        %v7558 = vsub.s32 %v7555, %v7557
        %v7559 = vrot.slane %v7545, %v7558
        %v7560 = vcombine.high %v7552, %v7552
        %v7561 = vcombine.high %v7559, %v7559
        %v7562 = vcombine.high %v7430, %v7430
        %v7564 = vunpack.c.l.s4 1983009808
        %v7565 = vunpack.c.0.s8 %v7564
        %v7566 = vlaneseq
        %v7567 = vshrl.u32 %v7566, 7
        %v7568 = vsub.s32 %v7565, %v7567
        %v7569 = vrot.slane %v7430, %v7568
        %v7571 = vunpack.c.l.s4 1983009808
        %v7572 = vunpack.c.0.s8 %v7571
        %v7573 = vlaneseq
        %v7574 = vshrl.u32 %v7573, 7
        %v7575 = vsub.s32 %v7572, %v7574
        %v7576 = vrot.slane %v7562, %v7575
        %v7577 = vcombine.high %v7569, %v7569
        %v7578 = vcombine.high %v7576, %v7576
        %v7579 = vcombine.high %v7433, %v7433
        %v7581 = vunpack.c.l.s4 1983009808
        %v7582 = vunpack.c.0.s8 %v7581
        %v7583 = vlaneseq
        %v7584 = vshrl.u32 %v7583, 7
        %v7585 = vsub.s32 %v7582, %v7584
        %v7586 = vrot.slane %v7433, %v7585
        %v7588 = vunpack.c.l.s4 1983009808
        %v7589 = vunpack.c.0.s8 %v7588
        %v7590 = vlaneseq
        %v7591 = vshrl.u32 %v7590, 7
        %v7592 = vsub.s32 %v7589, %v7591
        %v7593 = vrot.slane %v7579, %v7592
        %v7594 = vcombine.high %v7586, %v7586
        %v7595 = vcombine.high %v7593, %v7593
        %v7596 = vcombine.high %v7436, %v7436
        %v7598 = vunpack.c.l.s4 1983009808
        %v7599 = vunpack.c.0.s8 %v7598
        %v7600 = vlaneseq
        %v7601 = vshrl.u32 %v7600, 7
        %v7602 = vsub.s32 %v7599, %v7601
        %v7603 = vrot.slane %v7436, %v7602
        %v7605 = vunpack.c.l.s4 1983009808
        %v7606 = vunpack.c.0.s8 %v7605
        %v7607 = vlaneseq
        %v7608 = vshrl.u32 %v7607, 7
        %v7609 = vsub.s32 %v7606, %v7608
        %v7610 = vrot.slane %v7596, %v7609
        %v7611 = vcombine.high %v7603, %v7603
        %v7612 = vcombine.high %v7610, %v7610
        %v7613 = vcombine.high %v7439, %v7439
        %v7615 = vunpack.c.l.s4 1983009808
        %v7616 = vunpack.c.0.s8 %v7615
        %v7617 = vlaneseq
        %v7618 = vshrl.u32 %v7617, 7
        %v7619 = vsub.s32 %v7616, %v7618
        %v7620 = vrot.slane %v7439, %v7619
        %v7622 = vunpack.c.l.s4 1983009808
        %v7623 = vunpack.c.0.s8 %v7622
        %v7624 = vlaneseq
        %v7625 = vshrl.u32 %v7624, 7
        %v7626 = vsub.s32 %v7623, %v7625
        %v7627 = vrot.slane %v7613, %v7626
        %v7628 = vcombine.high %v7620, %v7620
        %v7629 = vcombine.high %v7627, %v7627
        %v7630 = vcombine.high %v7442, %v7442
        %v7632 = vunpack.c.l.s4 1983009808
        %v7633 = vunpack.c.0.s8 %v7632
        %v7634 = vlaneseq
        %v7635 = vshrl.u32 %v7634, 7
        %v7636 = vsub.s32 %v7633, %v7635
        %v7637 = vrot.slane %v7442, %v7636
        %v7639 = vunpack.c.l.s4 1983009808
        %v7640 = vunpack.c.0.s8 %v7639
        %v7641 = vlaneseq
        %v7642 = vshrl.u32 %v7641, 7
        %v7643 = vsub.s32 %v7640, %v7642
        %v7644 = vrot.slane %v7630, %v7643
        %v7645 = vcombine.high %v7637, %v7637
        %v7646 = vcombine.high %v7644, %v7644
        %v7647 = vcombine.high %v7445, %v7445
        %v7649 = vunpack.c.l.s4 1983009808
        %v7650 = vunpack.c.0.s8 %v7649
        %v7651 = vlaneseq
        %v7652 = vshrl.u32 %v7651, 7
        %v7653 = vsub.s32 %v7650, %v7652
        %v7654 = vrot.slane %v7445, %v7653
        %v7656 = vunpack.c.l.s4 1983009808
        %v7657 = vunpack.c.0.s8 %v7656
        %v7658 = vlaneseq
        %v7659 = vshrl.u32 %v7658, 7
        %v7660 = vsub.s32 %v7657, %v7659
        %v7661 = vrot.slane %v7647, %v7660
        %v7662 = vcombine.high %v7654, %v7654
        %v7663 = vcombine.high %v7661, %v7661
        %v7664 = vcombine.high %v7448, %v7448
        %v7666 = vunpack.c.l.s4 1983009808
        %v7667 = vunpack.c.0.s8 %v7666
        %v7668 = vlaneseq
        %v7669 = vshrl.u32 %v7668, 7
        %v7670 = vsub.s32 %v7667, %v7669
        %v7671 = vrot.slane %v7448, %v7670
        %v7673 = vunpack.c.l.s4 1983009808
        %v7674 = vunpack.c.0.s8 %v7673
        %v7675 = vlaneseq
        %v7676 = vshrl.u32 %v7675, 7
        %v7677 = vsub.s32 %v7674, %v7676
        %v7678 = vrot.slane %v7664, %v7677
        %v7679 = vcombine.high %v7671, %v7671
        %v7680 = vcombine.high %v7678, %v7678
        %v7681 = vcombine.high %v7451, %v7451
        %v7683 = vunpack.c.l.s4 1983009808
        %v7684 = vunpack.c.0.s8 %v7683
        %v7685 = vlaneseq
        %v7686 = vshrl.u32 %v7685, 7
        %v7687 = vsub.s32 %v7684, %v7686
        %v7688 = vrot.slane %v7451, %v7687
        %v7690 = vunpack.c.l.s4 1983009808
        %v7691 = vunpack.c.0.s8 %v7690
        %v7692 = vlaneseq
        %v7693 = vshrl.u32 %v7692, 7
        %v7694 = vsub.s32 %v7691, %v7693
        %v7695 = vrot.slane %v7681, %v7694
        %v7696 = vcombine.high %v7688, %v7688
        %v7697 = vcombine.high %v7695, %v7695
        %v7698 = vcombine.high %v7454, %v7454
        %v7700 = vunpack.c.l.s4 1983009808
        %v7701 = vunpack.c.0.s8 %v7700
        %v7702 = vlaneseq
        %v7703 = vshrl.u32 %v7702, 7
        %v7704 = vsub.s32 %v7701, %v7703
        %v7705 = vrot.slane %v7454, %v7704
        %v7707 = vunpack.c.l.s4 1983009808
        %v7708 = vunpack.c.0.s8 %v7707
        %v7709 = vlaneseq
        %v7710 = vshrl.u32 %v7709, 7
        %v7711 = vsub.s32 %v7708, %v7710
        %v7712 = vrot.slane %v7698, %v7711
        %v7713 = vcombine.high %v7705, %v7705
        %v7714 = vcombine.high %v7712, %v7712
        %v7715 = vcombine.high %v7457, %v7457
        %v7717 = vunpack.c.l.s4 1983009808
        %v7718 = vunpack.c.0.s8 %v7717
        %v7719 = vlaneseq
        %v7720 = vshrl.u32 %v7719, 7
        %v7721 = vsub.s32 %v7718, %v7720
        %v7722 = vrot.slane %v7457, %v7721
        %v7724 = vunpack.c.l.s4 1983009808
        %v7725 = vunpack.c.0.s8 %v7724
        %v7726 = vlaneseq
        %v7727 = vshrl.u32 %v7726, 7
        %v7728 = vsub.s32 %v7725, %v7727
        %v7729 = vrot.slane %v7715, %v7728
        %v7730 = vcombine.high %v7722, %v7722
        %v7731 = vcombine.high %v7729, %v7729
        %v7732 = vcombine.high %v7460, %v7460
        %v7734 = vunpack.c.l.s4 1983009808
        %v7735 = vunpack.c.0.s8 %v7734
        %v7736 = vlaneseq
        %v7737 = vshrl.u32 %v7736, 7
        %v7738 = vsub.s32 %v7735, %v7737
        %v7739 = vrot.slane %v7460, %v7738
        %v7741 = vunpack.c.l.s4 1983009808
        %v7742 = vunpack.c.0.s8 %v7741
        %v7743 = vlaneseq
        %v7744 = vshrl.u32 %v7743, 7
        %v7745 = vsub.s32 %v7742, %v7744
        %v7746 = vrot.slane %v7732, %v7745
        %v7747 = vcombine.high %v7739, %v7739
        %v7748 = vcombine.high %v7746, %v7746
        %v7813 = vsel %vm255, %v7484, -inf
        %v7814 = vrot.slane %v7813, 4
        %v7815 = vmax.f32 %v7813, %v7814
        %v7816 = vrot.slane %v7815, 2
        %v7817 = vmax.f32 %v7815, %v7816
        %v7818 = vrot.slane %v7817, 1
        %v7819 = vmax.f32 %v7817, %v7818
        %v7820 = vsel %vm255, %v7492, -inf
        %v7821 = vrot.slane %v7820, 4
        %v7822 = vmax.f32 %v7820, %v7821
        %v7823 = vrot.slane %v7822, 2
        %v7824 = vmax.f32 %v7822, %v7823
        %v7825 = vrot.slane %v7824, 1
        %v7826 = vmax.f32 %v7824, %v7825
        %v7827 = vsel %vm255, %v7491, -inf
        %v7828 = vrot.slane %v7827, 4
        %v7829 = vmax.f32 %v7827, %v7828
        %v7830 = vrot.slane %v7829, 2
        %v7831 = vmax.f32 %v7829, %v7830
        %v7832 = vrot.slane %v7831, 1
        %v7833 = vmax.f32 %v7831, %v7832
        %v7834 = vsel %vm255, %v7493, -inf
        %v7835 = vrot.slane %v7834, 4
        %v7836 = vmax.f32 %v7834, %v7835
        %v7837 = vrot.slane %v7836, 2
        %v7838 = vmax.f32 %v7836, %v7837
        %v7839 = vrot.slane %v7838, 1
        %v7840 = vmax.f32 %v7838, %v7839
        %v7841 = vsel %vm255, %v7501, -inf
        %v7842 = vrot.slane %v7841, 4
        %v7843 = vmax.f32 %v7841, %v7842
        %v7844 = vrot.slane %v7843, 2
        %v7845 = vmax.f32 %v7843, %v7844
        %v7846 = vrot.slane %v7845, 1
        %v7847 = vmax.f32 %v7845, %v7846
        %v7848 = vsel %vm255, %v7509, -inf
        %v7849 = vrot.slane %v7848, 4
        %v7850 = vmax.f32 %v7848, %v7849
        %v7851 = vrot.slane %v7850, 2
        %v7852 = vmax.f32 %v7850, %v7851
        %v7853 = vrot.slane %v7852, 1
        %v7854 = vmax.f32 %v7852, %v7853
        %v7855 = vsel %vm255, %v7508, -inf
        %v7856 = vrot.slane %v7855, 4
        %v7857 = vmax.f32 %v7855, %v7856
        %v7858 = vrot.slane %v7857, 2
        %v7859 = vmax.f32 %v7857, %v7858
        %v7860 = vrot.slane %v7859, 1
        %v7861 = vmax.f32 %v7859, %v7860
        %v7862 = vsel %vm255, %v7510, -inf
        %v7863 = vrot.slane %v7862, 4
        %v7864 = vmax.f32 %v7862, %v7863
        %v7865 = vrot.slane %v7864, 2
        %v7866 = vmax.f32 %v7864, %v7865
        %v7867 = vrot.slane %v7866, 1
        %v7868 = vmax.f32 %v7866, %v7867
        %v7869 = vsel %vm255, %v7518, -inf
        %v7870 = vrot.slane %v7869, 4
        %v7871 = vmax.f32 %v7869, %v7870
        %v7872 = vrot.slane %v7871, 2
        %v7873 = vmax.f32 %v7871, %v7872
        %v7874 = vrot.slane %v7873, 1
        %v7875 = vmax.f32 %v7873, %v7874
        %v7876 = vsel %vm255, %v7526, -inf
        %v7877 = vrot.slane %v7876, 4
        %v7878 = vmax.f32 %v7876, %v7877
        %v7879 = vrot.slane %v7878, 2
        %v7880 = vmax.f32 %v7878, %v7879
        %v7881 = vrot.slane %v7880, 1
        %v7882 = vmax.f32 %v7880, %v7881
        %v7883 = vsel %vm255, %v7525, -inf
        %v7884 = vrot.slane %v7883, 4
        %v7885 = vmax.f32 %v7883, %v7884
        %v7886 = vrot.slane %v7885, 2
        %v7887 = vmax.f32 %v7885, %v7886
        %v7888 = vrot.slane %v7887, 1
        %v7889 = vmax.f32 %v7887, %v7888
        %v7890 = vsel %vm255, %v7527, -inf
        %v7891 = vrot.slane %v7890, 4
        %v7892 = vmax.f32 %v7890, %v7891
        %v7893 = vrot.slane %v7892, 2
        %v7894 = vmax.f32 %v7892, %v7893
        %v7895 = vrot.slane %v7894, 1
        %v7896 = vmax.f32 %v7894, %v7895
        %v7897 = vsel %vm255, %v7535, -inf
        %v7898 = vrot.slane %v7897, 4
        %v7899 = vmax.f32 %v7897, %v7898
        %v7900 = vrot.slane %v7899, 2
        %v7901 = vmax.f32 %v7899, %v7900
        %v7902 = vrot.slane %v7901, 1
        %v7903 = vmax.f32 %v7901, %v7902
        %v7904 = vsel %vm255, %v7543, -inf
        %v7905 = vrot.slane %v7904, 4
        %v7906 = vmax.f32 %v7904, %v7905
        %v7907 = vrot.slane %v7906, 2
        %v7908 = vmax.f32 %v7906, %v7907
        %v7909 = vrot.slane %v7908, 1
        %v7910 = vmax.f32 %v7908, %v7909
        %v7911 = vsel %vm255, %v7542, -inf
        %v7912 = vrot.slane %v7911, 4
        %v7913 = vmax.f32 %v7911, %v7912
        %v7914 = vrot.slane %v7913, 2
        %v7915 = vmax.f32 %v7913, %v7914
        %v7916 = vrot.slane %v7915, 1
        %v7917 = vmax.f32 %v7915, %v7916
        %v7918 = vsel %vm255, %v7544, -inf
        %v7919 = vrot.slane %v7918, 4
        %v7920 = vmax.f32 %v7918, %v7919
        %v7921 = vrot.slane %v7920, 2
        %v7922 = vmax.f32 %v7920, %v7921
        %v7923 = vrot.slane %v7922, 1
        %v7924 = vmax.f32 %v7922, %v7923
        %v7925 = vsel %vm255, %v7552, -inf
        %v7926 = vrot.slane %v7925, 4
        %v7927 = vmax.f32 %v7925, %v7926
        %v7928 = vrot.slane %v7927, 2
        %v7929 = vmax.f32 %v7927, %v7928
        %v7930 = vrot.slane %v7929, 1
        %v7931 = vmax.f32 %v7929, %v7930
        %v7932 = vsel %vm255, %v7560, -inf
        %v7933 = vrot.slane %v7932, 4
        %v7934 = vmax.f32 %v7932, %v7933
        %v7935 = vrot.slane %v7934, 2
        %v7936 = vmax.f32 %v7934, %v7935
        %v7937 = vrot.slane %v7936, 1
        %v7938 = vmax.f32 %v7936, %v7937
        %v7939 = vsel %vm255, %v7559, -inf
        %v7940 = vrot.slane %v7939, 4
        %v7941 = vmax.f32 %v7939, %v7940
        %v7942 = vrot.slane %v7941, 2
        %v7943 = vmax.f32 %v7941, %v7942
        %v7944 = vrot.slane %v7943, 1
        %v7945 = vmax.f32 %v7943, %v7944
        %v7946 = vsel %vm255, %v7561, -inf
        %v7947 = vrot.slane %v7946, 4
        %v7948 = vmax.f32 %v7946, %v7947
        %v7949 = vrot.slane %v7948, 2
        %v7950 = vmax.f32 %v7948, %v7949
        %v7951 = vrot.slane %v7950, 1
        %v7952 = vmax.f32 %v7950, %v7951
        %v7953 = vsel %vm255, %v7569, -inf
        %v7954 = vrot.slane %v7953, 4
        %v7955 = vmax.f32 %v7953, %v7954
        %v7956 = vrot.slane %v7955, 2
        %v7957 = vmax.f32 %v7955, %v7956
        %v7958 = vrot.slane %v7957, 1
        %v7959 = vmax.f32 %v7957, %v7958
        %v7960 = vsel %vm255, %v7577, -inf
        %v7961 = vrot.slane %v7960, 4
        %v7962 = vmax.f32 %v7960, %v7961
        %v7963 = vrot.slane %v7962, 2
        %v7964 = vmax.f32 %v7962, %v7963
        %v7965 = vrot.slane %v7964, 1
        %v7966 = vmax.f32 %v7964, %v7965
        %v7967 = vsel %vm255, %v7576, -inf
        %v7968 = vrot.slane %v7967, 4
        %v7969 = vmax.f32 %v7967, %v7968
        %v7970 = vrot.slane %v7969, 2
        %v7971 = vmax.f32 %v7969, %v7970
        %v7972 = vrot.slane %v7971, 1
        %v7973 = vmax.f32 %v7971, %v7972
        %v7974 = vsel %vm255, %v7578, -inf
        %v7975 = vrot.slane %v7974, 4
        %v7976 = vmax.f32 %v7974, %v7975
        %v7977 = vrot.slane %v7976, 2
        %v7978 = vmax.f32 %v7976, %v7977
        %v7979 = vrot.slane %v7978, 1
        %v7980 = vmax.f32 %v7978, %v7979
        %v7981 = vsel %vm255, %v7586, -inf
        %v7982 = vrot.slane %v7981, 4
        %v7983 = vmax.f32 %v7981, %v7982
        %v7984 = vrot.slane %v7983, 2
        %v7985 = vmax.f32 %v7983, %v7984
        %v7986 = vrot.slane %v7985, 1
        %v7987 = vmax.f32 %v7985, %v7986
        %v7988 = vsel %vm255, %v7594, -inf
        %v7989 = vrot.slane %v7988, 4
        %v7990 = vmax.f32 %v7988, %v7989
        %v7991 = vrot.slane %v7990, 2
        %v7992 = vmax.f32 %v7990, %v7991
        %v7993 = vrot.slane %v7992, 1
        %v7994 = vmax.f32 %v7992, %v7993
        %v7995 = vsel %vm255, %v7593, -inf
        %v7996 = vrot.slane %v7995, 4
        %v7997 = vmax.f32 %v7995, %v7996
        %v7998 = vrot.slane %v7997, 2
        %v7999 = vmax.f32 %v7997, %v7998
        %v8000 = vrot.slane %v7999, 1
        %v8001 = vmax.f32 %v7999, %v8000
        %v8002 = vsel %vm255, %v7595, -inf
        %v8003 = vrot.slane %v8002, 4
        %v8004 = vmax.f32 %v8002, %v8003
        %v8005 = vrot.slane %v8004, 2
        %v8006 = vmax.f32 %v8004, %v8005
        %v8007 = vrot.slane %v8006, 1
        %v8008 = vmax.f32 %v8006, %v8007
        %v8009 = vsel %vm255, %v7603, -inf
        %v8010 = vrot.slane %v8009, 4
        %v8011 = vmax.f32 %v8009, %v8010
        %v8012 = vrot.slane %v8011, 2
        %v8013 = vmax.f32 %v8011, %v8012
        %v8014 = vrot.slane %v8013, 1
        %v8015 = vmax.f32 %v8013, %v8014
        %v8016 = vsel %vm255, %v7611, -inf
        %v8017 = vrot.slane %v8016, 4
        %v8018 = vmax.f32 %v8016, %v8017
        %v8019 = vrot.slane %v8018, 2
        %v8020 = vmax.f32 %v8018, %v8019
        %v8021 = vrot.slane %v8020, 1
        %v8022 = vmax.f32 %v8020, %v8021
        %v8023 = vsel %vm255, %v7610, -inf
        %v8024 = vrot.slane %v8023, 4
        %v8025 = vmax.f32 %v8023, %v8024
        %v8026 = vrot.slane %v8025, 2
        %v8027 = vmax.f32 %v8025, %v8026
        %v8028 = vrot.slane %v8027, 1
        %v8029 = vmax.f32 %v8027, %v8028
        %v8030 = vsel %vm255, %v7612, -inf
        %v8031 = vrot.slane %v8030, 4
        %v8032 = vmax.f32 %v8030, %v8031
        %v8033 = vrot.slane %v8032, 2
        %v8034 = vmax.f32 %v8032, %v8033
        %v8035 = vrot.slane %v8034, 1
        %v8036 = vmax.f32 %v8034, %v8035
        %v8037 = vsel %vm255, %v7620, -inf
        %v8038 = vrot.slane %v8037, 4
        %v8039 = vmax.f32 %v8037, %v8038
        %v8040 = vrot.slane %v8039, 2
        %v8041 = vmax.f32 %v8039, %v8040
        %v8042 = vrot.slane %v8041, 1
        %v8043 = vmax.f32 %v8041, %v8042
        %v8044 = vsel %vm255, %v7628, -inf
        %v8045 = vrot.slane %v8044, 4
        %v8046 = vmax.f32 %v8044, %v8045
        %v8047 = vrot.slane %v8046, 2
        %v8048 = vmax.f32 %v8046, %v8047
        %v8049 = vrot.slane %v8048, 1
        %v8050 = vmax.f32 %v8048, %v8049
        %v8051 = vsel %vm255, %v7627, -inf
        %v8052 = vrot.slane %v8051, 4
        %v8053 = vmax.f32 %v8051, %v8052
        %v8054 = vrot.slane %v8053, 2
        %v8055 = vmax.f32 %v8053, %v8054
        %v8056 = vrot.slane %v8055, 1
        %v8057 = vmax.f32 %v8055, %v8056
        %v8058 = vsel %vm255, %v7629, -inf
        %v8059 = vrot.slane %v8058, 4
        %v8060 = vmax.f32 %v8058, %v8059
        %v8061 = vrot.slane %v8060, 2
        %v8062 = vmax.f32 %v8060, %v8061
        %v8063 = vrot.slane %v8062, 1
        %v8064 = vmax.f32 %v8062, %v8063
        %v8065 = vsel %vm255, %v7637, -inf
        %v8066 = vrot.slane %v8065, 4
        %v8067 = vmax.f32 %v8065, %v8066
        %v8068 = vrot.slane %v8067, 2
        %v8069 = vmax.f32 %v8067, %v8068
        %v8070 = vrot.slane %v8069, 1
        %v8071 = vmax.f32 %v8069, %v8070
        %v8072 = vsel %vm255, %v7645, -inf
        %v8073 = vrot.slane %v8072, 4
        %v8074 = vmax.f32 %v8072, %v8073
        %v8075 = vrot.slane %v8074, 2
        %v8076 = vmax.f32 %v8074, %v8075
        %v8077 = vrot.slane %v8076, 1
        %v8078 = vmax.f32 %v8076, %v8077
        %v8079 = vsel %vm255, %v7644, -inf
        %v8080 = vrot.slane %v8079, 4
        %v8081 = vmax.f32 %v8079, %v8080
        %v8082 = vrot.slane %v8081, 2
        %v8083 = vmax.f32 %v8081, %v8082
        %v8084 = vrot.slane %v8083, 1
        %v8085 = vmax.f32 %v8083, %v8084
        %v8086 = vsel %vm255, %v7646, -inf
        %v8087 = vrot.slane %v8086, 4
        %v8088 = vmax.f32 %v8086, %v8087
        %v8089 = vrot.slane %v8088, 2
        %v8090 = vmax.f32 %v8088, %v8089
        %v8091 = vrot.slane %v8090, 1
        %v8092 = vmax.f32 %v8090, %v8091
        %v8093 = vsel %vm255, %v7654, -inf
        %v8094 = vrot.slane %v8093, 4
        %v8095 = vmax.f32 %v8093, %v8094
        %v8096 = vrot.slane %v8095, 2
        %v8097 = vmax.f32 %v8095, %v8096
        %v8098 = vrot.slane %v8097, 1
        %v8099 = vmax.f32 %v8097, %v8098
        %v8100 = vsel %vm255, %v7662, -inf
        %v8101 = vrot.slane %v8100, 4
        %v8102 = vmax.f32 %v8100, %v8101
        %v8103 = vrot.slane %v8102, 2
        %v8104 = vmax.f32 %v8102, %v8103
        %v8105 = vrot.slane %v8104, 1
        %v8106 = vmax.f32 %v8104, %v8105
        %v8107 = vsel %vm255, %v7661, -inf
        %v8108 = vrot.slane %v8107, 4
        %v8109 = vmax.f32 %v8107, %v8108
        %v8110 = vrot.slane %v8109, 2
        %v8111 = vmax.f32 %v8109, %v8110
        %v8112 = vrot.slane %v8111, 1
        %v8113 = vmax.f32 %v8111, %v8112
        %v8114 = vsel %vm255, %v7663, -inf
        %v8115 = vrot.slane %v8114, 4
        %v8116 = vmax.f32 %v8114, %v8115
        %v8117 = vrot.slane %v8116, 2
        %v8118 = vmax.f32 %v8116, %v8117
        %v8119 = vrot.slane %v8118, 1
        %v8120 = vmax.f32 %v8118, %v8119
        %v8121 = vsel %vm255, %v7671, -inf
        %v8122 = vrot.slane %v8121, 4
        %v8123 = vmax.f32 %v8121, %v8122
        %v8124 = vrot.slane %v8123, 2
        %v8125 = vmax.f32 %v8123, %v8124
        %v8126 = vrot.slane %v8125, 1
        %v8127 = vmax.f32 %v8125, %v8126
        %v8128 = vsel %vm255, %v7679, -inf
        %v8129 = vrot.slane %v8128, 4
        %v8130 = vmax.f32 %v8128, %v8129
        %v8131 = vrot.slane %v8130, 2
        %v8132 = vmax.f32 %v8130, %v8131
        %v8133 = vrot.slane %v8132, 1
        %v8134 = vmax.f32 %v8132, %v8133
        %v8135 = vsel %vm255, %v7678, -inf
        %v8136 = vrot.slane %v8135, 4
        %v8137 = vmax.f32 %v8135, %v8136
        %v8138 = vrot.slane %v8137, 2
        %v8139 = vmax.f32 %v8137, %v8138
        %v8140 = vrot.slane %v8139, 1
        %v8141 = vmax.f32 %v8139, %v8140
        %v8142 = vsel %vm255, %v7680, -inf
        %v8143 = vrot.slane %v8142, 4
        %v8144 = vmax.f32 %v8142, %v8143
        %v8145 = vrot.slane %v8144, 2
        %v8146 = vmax.f32 %v8144, %v8145
        %v8147 = vrot.slane %v8146, 1
        %v8148 = vmax.f32 %v8146, %v8147
        %v8149 = vsel %vm255, %v7688, -inf
        %v8150 = vrot.slane %v8149, 4
        %v8151 = vmax.f32 %v8149, %v8150
        %v8152 = vrot.slane %v8151, 2
        %v8153 = vmax.f32 %v8151, %v8152
        %v8154 = vrot.slane %v8153, 1
        %v8155 = vmax.f32 %v8153, %v8154
        %v8156 = vsel %vm255, %v7696, -inf
        %v8157 = vrot.slane %v8156, 4
        %v8158 = vmax.f32 %v8156, %v8157
        %v8159 = vrot.slane %v8158, 2
        %v8160 = vmax.f32 %v8158, %v8159
        %v8161 = vrot.slane %v8160, 1
        %v8162 = vmax.f32 %v8160, %v8161
        %v8163 = vsel %vm255, %v7695, -inf
        %v8164 = vrot.slane %v8163, 4
        %v8165 = vmax.f32 %v8163, %v8164
        %v8166 = vrot.slane %v8165, 2
        %v8167 = vmax.f32 %v8165, %v8166
        %v8168 = vrot.slane %v8167, 1
        %v8169 = vmax.f32 %v8167, %v8168
        %v8170 = vsel %vm255, %v7697, -inf
        %v8171 = vrot.slane %v8170, 4
        %v8172 = vmax.f32 %v8170, %v8171
        %v8173 = vrot.slane %v8172, 2
        %v8174 = vmax.f32 %v8172, %v8173
        %v8175 = vrot.slane %v8174, 1
        %v8176 = vmax.f32 %v8174, %v8175
        %v8177 = vsel %vm255, %v7705, -inf
        %v8178 = vrot.slane %v8177, 4
        %v8179 = vmax.f32 %v8177, %v8178
        %v8180 = vrot.slane %v8179, 2
        %v8181 = vmax.f32 %v8179, %v8180
        %v8182 = vrot.slane %v8181, 1
        %v8183 = vmax.f32 %v8181, %v8182
        %v8184 = vsel %vm255, %v7713, -inf
        %v8185 = vrot.slane %v8184, 4
        %v8186 = vmax.f32 %v8184, %v8185
        %v8187 = vrot.slane %v8186, 2
        %v8188 = vmax.f32 %v8186, %v8187
        %v8189 = vrot.slane %v8188, 1
        %v8190 = vmax.f32 %v8188, %v8189
        %v8191 = vsel %vm255, %v7712, -inf
        %v8192 = vrot.slane %v8191, 4
        %v8193 = vmax.f32 %v8191, %v8192
        %v8194 = vrot.slane %v8193, 2
        %v8195 = vmax.f32 %v8193, %v8194
        %v8196 = vrot.slane %v8195, 1
        %v8197 = vmax.f32 %v8195, %v8196
        %v8198 = vsel %vm255, %v7714, -inf
        %v8199 = vrot.slane %v8198, 4
        %v8200 = vmax.f32 %v8198, %v8199
        %v8201 = vrot.slane %v8200, 2
        %v8202 = vmax.f32 %v8200, %v8201
        %v8203 = vrot.slane %v8202, 1
        %v8204 = vmax.f32 %v8202, %v8203
        %v8205 = vsel %vm255, %v7722, -inf
        %v8206 = vrot.slane %v8205, 4
        %v8207 = vmax.f32 %v8205, %v8206
        %v8208 = vrot.slane %v8207, 2
        %v8209 = vmax.f32 %v8207, %v8208
        %v8210 = vrot.slane %v8209, 1
        %v8211 = vmax.f32 %v8209, %v8210
        %v8212 = vsel %vm255, %v7730, -inf
        %v8213 = vrot.slane %v8212, 4
        %v8214 = vmax.f32 %v8212, %v8213
        %v8215 = vrot.slane %v8214, 2
        %v8216 = vmax.f32 %v8214, %v8215
        %v8217 = vrot.slane %v8216, 1
        %v8218 = vmax.f32 %v8216, %v8217
        %v8219 = vsel %vm255, %v7729, -inf
        %v8220 = vrot.slane %v8219, 4
        %v8221 = vmax.f32 %v8219, %v8220
        %v8222 = vrot.slane %v8221, 2
        %v8223 = vmax.f32 %v8221, %v8222
        %v8224 = vrot.slane %v8223, 1
        %v8225 = vmax.f32 %v8223, %v8224
        %v8226 = vsel %vm255, %v7731, -inf
        %v8227 = vrot.slane %v8226, 4
        %v8228 = vmax.f32 %v8226, %v8227
        %v8229 = vrot.slane %v8228, 2
        %v8230 = vmax.f32 %v8228, %v8229
        %v8231 = vrot.slane %v8230, 1
        %v8232 = vmax.f32 %v8230, %v8231
        %v8233 = vsel %vm255, %v7739, -inf
        %v8234 = vrot.slane %v8233, 4
        %v8235 = vmax.f32 %v8233, %v8234
        %v8236 = vrot.slane %v8235, 2
        %v8237 = vmax.f32 %v8235, %v8236
        %v8238 = vrot.slane %v8237, 1
        %v8239 = vmax.f32 %v8237, %v8238
        %v8240 = vsel %vm255, %v7747, -inf
        %v8241 = vrot.slane %v8240, 4
        %v8242 = vmax.f32 %v8240, %v8241
        %v8243 = vrot.slane %v8242, 2
        %v8244 = vmax.f32 %v8242, %v8243
        %v8245 = vrot.slane %v8244, 1
        %v8246 = vmax.f32 %v8244, %v8245
        %v8247 = vsel %vm255, %v7746, -inf
        %v8248 = vrot.slane %v8247, 4
        %v8249 = vmax.f32 %v8247, %v8248
        %v8250 = vrot.slane %v8249, 2
        %v8251 = vmax.f32 %v8249, %v8250
        %v8252 = vrot.slane %v8251, 1
        %v8253 = vmax.f32 %v8251, %v8252
        %v8254 = vsel %vm255, %v7748, -inf
        %v8255 = vrot.slane %v8254, 4
        %v8256 = vmax.f32 %v8254, %v8255
        %v8257 = vrot.slane %v8256, 2
        %v8258 = vmax.f32 %v8256, %v8257
        %v8259 = vrot.slane %v8258, 1
        %v8260 = vmax.f32 %v8258, %v8259
        %vm8325 = vcmask 1041409
        %v8326 = vsel %vm8325, %v7826, %v7819
        %vm8327 = vcmask 1042434
        %v8328 = vsel %vm8327, %v7833, %v8326
        %vm8329 = vcmask 1043459
        %v8330 = vsel %vm8329, %v7840, %v8328
        %vm8331 = vcmask 1044484
        %v8332 = vsel %vm8331, %v7847, %v8330
        %vm8333 = vcmask 1045509
        %v8334 = vsel %vm8333, %v7854, %v8332
        %vm8335 = vcmask 1046534
        %v8336 = vsel %vm8335, %v7861, %v8334
        %vm8337 = vcmask 1047559
        %v8338 = vsel %vm8337, %v7868, %v8336
        %v8339 = vsel %vm8325, %v7882, %v7875
        %v8340 = vsel %vm8327, %v7889, %v8339
        %v8341 = vsel %vm8329, %v7896, %v8340
        %v8342 = vsel %vm8331, %v7903, %v8341
        %v8343 = vsel %vm8333, %v7910, %v8342
        %v8344 = vsel %vm8335, %v7917, %v8343
        %v8345 = vsel %vm8337, %v7924, %v8344
        %v8346 = vsel %vm8325, %v7938, %v7931
        %v8347 = vsel %vm8327, %v7945, %v8346
        %v8348 = vsel %vm8329, %v7952, %v8347
        %v8349 = vsel %vm8331, %v7959, %v8348
        %v8350 = vsel %vm8333, %v7966, %v8349
        %v8351 = vsel %vm8335, %v7973, %v8350
        %v8352 = vsel %vm8337, %v7980, %v8351
        %v8353 = vsel %vm8325, %v7994, %v7987
        %v8354 = vsel %vm8327, %v8001, %v8353
        %v8355 = vsel %vm8329, %v8008, %v8354
        %v8356 = vsel %vm8331, %v8015, %v8355
        %v8357 = vsel %vm8333, %v8022, %v8356
        %v8358 = vsel %vm8335, %v8029, %v8357
        %v8359 = vsel %vm8337, %v8036, %v8358
        %v8360 = vsel %vm8325, %v8050, %v8043
        %v8361 = vsel %vm8327, %v8057, %v8360
        %v8362 = vsel %vm8329, %v8064, %v8361
        %v8363 = vsel %vm8331, %v8071, %v8362
        %v8364 = vsel %vm8333, %v8078, %v8363
        %v8365 = vsel %vm8335, %v8085, %v8364
        %v8366 = vsel %vm8337, %v8092, %v8365
        %v8367 = vsel %vm8325, %v8106, %v8099
        %v8368 = vsel %vm8327, %v8113, %v8367
        %v8369 = vsel %vm8329, %v8120, %v8368
        %v8370 = vsel %vm8331, %v8127, %v8369
        %v8371 = vsel %vm8333, %v8134, %v8370
        %v8372 = vsel %vm8335, %v8141, %v8371
        %v8373 = vsel %vm8337, %v8148, %v8372
        %v8374 = vsel %vm8325, %v8162, %v8155
        %v8375 = vsel %vm8327, %v8169, %v8374
        %v8376 = vsel %vm8329, %v8176, %v8375
        %v8377 = vsel %vm8331, %v8183, %v8376
        %v8378 = vsel %vm8333, %v8190, %v8377
        %v8379 = vsel %vm8335, %v8197, %v8378
        %v8380 = vsel %vm8337, %v8204, %v8379
        %v8381 = vsel %vm8325, %v8218, %v8211
        %v8382 = vsel %vm8327, %v8225, %v8381
        %v8383 = vsel %vm8329, %v8232, %v8382
        %v8384 = vsel %vm8331, %v8239, %v8383
        %v8385 = vsel %vm8333, %v8246, %v8384
        %v8386 = vsel %vm8335, %v8253, %v8385
        %v8387 = vsel %vm8337, %v8260, %v8386
        %8396 = vst.msk [vmem:[%s190] sm:$0xff] %vm252, %v8338
        %8397 = vst.msk [vmem:[%s190 + $0x8] sm:$0xff] %vm252, %v8345
        %8398 = vst.msk [vmem:[%s190 + $0x10] sm:$0xff] %vm252, %v8352
        %8399 = vst.msk [vmem:[%s190 + $0x18] sm:$0xff] %vm252, %v8359
        %8400 = vst.msk [vmem:[%s190 + $0x20] sm:$0xff] %vm252, %v8366
        %8401 = vst.msk [vmem:[%s190 + $0x28] sm:$0xff] %vm252, %v8373
        %8402 = vst.msk [vmem:[%s190 + $0x30] sm:$0xff] %vm252, %v8380
        %8403 = vst.msk [vmem:[%s190 + $0x38] sm:$0xff] %vm252, %v8387
        %s8404 = sand.u32 %s115, 1
        %s8405 = scalar_lea.sflag [#allocation5], %s8404
        %s8406 = sand.u32 %s115, 1
        %s8407 = smul.addr %s8406, 64
        %s8408 = scalar_lea.vmem [#allocation4], %s8407
        // Predicated region
        $region37: #{tpu_custom_call.1} parent=35 // pred_check
          %p8409 = pneg %p125
        $region38: #{tpu_custom_call.1} parent=35 // pred_check_branch
          %8411 = sbr.rel (%p8409) target = $region40
        $region39: #{tpu_custom_call.1} parent=35 // pred_region
          %s8413 = ssub.s32 1024, 1024
          %8414 = vsyncadd %s8405, %s8413
          %s8415 = smul.addr %s18, 8
          %s8416 = smul.addr %s8415, 128
          %s8417 = scalar_lea.hbm %s4, %s8416
          %s8418 = sshll.u32 %s8408, 4
          %s8419 = int_to_ptr.vmem [resolvable:$true] %s8418
          %8424 = dma.vmem_to_hbm [thread:$0]  %s8419, 1024, %s8417, %s8405, 128, 128, 8
        $region40: #{tpu_custom_call.1} parent=35 // pred_fallthru
          _
      $region36: #{tpu_custom_call.1} parent=5 // pred_fallthru
        _
      %p8425 = scmp.le.s32.totalorder 2, %s13
      // Predicated region
      $region41: #{tpu_custom_call.1} parent=5 // pred_check
        %p8426 = pneg %p8425
      $region42: #{tpu_custom_call.1} parent=5 // pred_check_branch
        %8428 = sbr.rel (%p8426) target = $region44
      $region43: #{tpu_custom_call.1} parent=5 // pred_region
        %s8429 = ssub.s32 %s13, 2
        // Predicated region
        $region45: #{tpu_custom_call.1} parent=43 // pred_check
          %p8430 = pneg %p131
        $region46: #{tpu_custom_call.1} parent=43 // pred_check_branch
          %8432 = sbr.rel (%p8430) target = $region48
        $region47: #{tpu_custom_call.1} parent=43 // pred_region
          %s8433 = sand.u32 %s116, 1
          %s8434 = scalar_lea.sflag [#allocation5], %s8433
          %s8435 = sand.u32 %s116, 1
          %s8436 = smul.addr %s8435, 64
          %s8437 = scalar_lea.vmem [#allocation4], %s8436
          %8438 = dma.done %s8434, 1024
        $region48: #{tpu_custom_call.1} parent=43 // pred_fallthru
          _
      $region44: #{tpu_custom_call.1} parent=5 // pred_fallthru
        _
    $region6: #{tpu_custom_call.1} parent=1 // loop_footer
      %s17 = sadd.s32 1, %s13
    $region7: #{tpu_custom_call.1} parent=1 // loop_footer_branch
      %12 = sbr.rel target = $region3
    $region8: #{tpu_custom_call.1} parent=1 // loop_exit
      _
    %8439 = vsyncpa [#allocation5], 1
    %s8440 = scalar_lea.sflag [#allocation5], 1
    %8441 = vsyncpa %s8440, 1

</llo_original>
